<compile_context>
chip_gen: v6e
topology: v6e:2x2x1
jax: 0.10.0
libtpu: 0.0.40
codegen_flags: <defaults>
</compile_context>

<pallas_src>
import functools
import math

import jax
import jax.numpy as jnp
from jax.experimental import pallas as pl
from jax.experimental.pallas import tpu as pltpu


def _round_up(x, m):
    return (x + m - 1) // m * m


# --------------------------- Pallas GEMM kernel ------------------------------

def _matmul_bias_kernel(x_ref, w_ref, b_ref, o_ref, acc_ref, *, relu):
    k = pl.program_id(2)

    @pl.when(k == 0)
    def _():
        acc_ref[...] = jnp.zeros_like(acc_ref)

    acc_ref[...] += jnp.dot(x_ref[...], w_ref[...],
                            preferred_element_type=jnp.float32)

    @pl.when(k == pl.num_programs(2) - 1)
    def _():
        r = acc_ref[...] + b_ref[...]
        if relu:
            r = jnp.maximum(r, 0.0)
        o_ref[...] = r.astype(o_ref.dtype)


def pallas_matmul_bias(x, w, b, *, relu, out_dtype=None):
    """out = x @ w + b (optionally ReLU).  x:(M,K)  w:(K,N)  b:(N,).

    bf16 operands on the MXU, f32 accumulation, adaptive tiles.
    """
    M, K = x.shape
    K2, N = w.shape
    assert K == K2
    out_dtype = out_dtype or x.dtype

    # Adaptive tile sizes.
    tm = min(256, _round_up(M, 8))
    tn = min(256, _round_up(N, 128))
    Kp = _round_up(K, 128)
    if Kp <= 2048:
        tk = Kp                       # single K step for every Stem layer
    else:
        tk = 512
        Kp = _round_up(K, tk)
    Mp = _round_up(M, tm)
    Np = _round_up(N, tn)

    xb = x.astype(jnp.bfloat16)
    wb = w.astype(jnp.bfloat16)
    if (Mp, Kp) != (M, K):
        xb = jnp.pad(xb, ((0, Mp - M), (0, Kp - K)))
    if (Kp, Np) != (K, N):
        wb = jnp.pad(wb, ((0, Kp - K), (0, Np - N)))
    bp = b.astype(jnp.float32)
    if Np != N:
        bp = jnp.pad(bp, (0, Np - N))
    bp = bp.reshape(1, Np)

    out = pl.pallas_call(
        functools.partial(_matmul_bias_kernel, relu=relu),
        out_shape=jax.ShapeDtypeStruct((Mp, Np), out_dtype),
        grid_spec=pltpu.PrefetchScalarGridSpec(
            num_scalar_prefetch=0,
            grid=(Mp // tm, Np // tn, Kp // tk),
            in_specs=[
                pl.BlockSpec((tm, tk), lambda i, j, k: (i, k)),
                pl.BlockSpec((tk, tn), lambda i, j, k: (k, j)),
                pl.BlockSpec((1, tn), lambda i, j, k: (0, j)),
            ],
            out_specs=pl.BlockSpec((tm, tn), lambda i, j, k: (i, j)),
            scratch_shapes=[pltpu.VMEM((tm, tn), jnp.float32)],
        ),
        compiler_params=pltpu.CompilerParams(
            dimension_semantics=("parallel", "parallel", "arbitrary")),
    )(xb, wb, bp)
    if (Mp, Np) != (M, N):
        out = out[:M, :N]
    return out


# --------------------------- conv / pool glue (NHWC) --------------------------

def conv2d(x, w, b, *, stride=(1, 1), padding=(0, 0), relu=False):
    """Conv2d on NHWC activations with PyTorch-layout weight (OC, IC, KH, KW)."""
    N, H, W_, C = x.shape
    OC, IC, KH, KW = w.shape
    assert IC == C
    SH, SW = stride
    PH, PW = padding
    if PH or PW:
        x = jnp.pad(x, ((0, 0), (PH, PH), (PW, PW), (0, 0)))
    OH = (H + 2 * PH - KH) // SH + 1
    OW = (W_ + 2 * PW - KW) // SW + 1
    if KH == 1 and KW == 1 and SH == 1 and SW == 1:
        patch = x.reshape(N * OH * OW, C)
    else:
        cols = []
        for kh in range(KH):
            for kw in range(KW):
                cols.append(x[:, kh:kh + SH * OH:SH, kw:kw + SW * OW:SW, :])
        # rows ordered (n, oh, ow); cols ordered (kh, kw, c)
        patch = jnp.stack(cols, axis=3).reshape(N * OH * OW, KH * KW * C)
    wmat = jnp.transpose(w, (2, 3, 1, 0)).reshape(KH * KW * C, OC)
    out = pallas_matmul_bias(patch, wmat, b, relu=relu, out_dtype=x.dtype)
    return out.reshape(N, OH, OW, OC)          # NHWC, no transpose needed


def maxpool2d(x, k=3, s=2):
    """MaxPool2d(kernel=k, stride=s, padding=0) on NHWC."""
    N, H, W_, C = x.shape
    OH = (H - k) // s + 1
    OW = (W_ - k) // s + 1
    out = x[:, 0:s * OH:s, 0:s * OW:s, :]
    for kh in range(k):
        for kw in range(k):
            if kh == 0 and kw == 0:
                continue
            out = jnp.maximum(out, x[:, kh:kh + s * OH:s, kw:kw + s * OW:s, :])
    return out


# --------------------------- parameter init ----------------------------------

class KeyGen:
    def __init__(self, key):
        self.key = key

    def __call__(self):
        self.key, sub = jax.random.split(self.key)
        return sub


def init_conv(key, oc, ic, kh, kw):
    std = math.sqrt(2.0 / (oc * kh * kw))
    w = std * jax.random.normal(key, (oc, ic, kh, kw), jnp.float32)
    return {"w": w, "b": jnp.zeros((oc,), jnp.float32)}


def init_stem(kg):
    return {
        "conv1": init_conv(kg(), 32, 3, 3, 3),
        "conv2": init_conv(kg(), 32, 32, 3, 3),
        "conv3": init_conv(kg(), 64, 32, 3, 3),
        "conv4": init_conv(kg(), 96, 64, 3, 3),
        "conv5": init_conv(kg(), 64, 160, 1, 1),
        "conv6": init_conv(kg(), 64, 64, 7, 1),
        "conv7": init_conv(kg(), 64, 64, 1, 7),
        "conv8": init_conv(kg(), 96, 64, 3, 3),
        "conv9": init_conv(kg(), 64, 160, 1, 1),
        "conv10": init_conv(kg(), 96, 64, 3, 3),
        "conv11": init_conv(kg(), 192, 192, 3, 3),
    }


# --------------------------- Stem forward ------------------------------------

def stem(p, x):
    """x: NHWC.  Mirrors the PyTorch Stem.forward exactly (channel concat order
    along axis=-1 matches NCHW concat along axis=1)."""
    x = conv2d(x, **p["conv1"], stride=(2, 2), relu=True)
    x = conv2d(x, **p["conv2"], relu=True)
    x = conv2d(x, **p["conv3"], padding=(1, 1), relu=True)
    x0 = maxpool2d(x)
    x = conv2d(x, **p["conv4"], stride=(2, 2), relu=True)
    x = jnp.concatenate((x, x0), axis=-1)
    x1 = conv2d(x, **p["conv5"], relu=True)
    x1 = conv2d(x1, **p["conv6"], padding=(3, 0), relu=True)
    x1 = conv2d(x1, **p["conv7"], padding=(0, 3), relu=True)
    x1 = conv2d(x1, **p["conv8"], relu=True)
    x2 = conv2d(x, **p["conv9"], relu=True)
    x2 = conv2d(x2, **p["conv10"], relu=True)
    x = jnp.concatenate((x1, x2), axis=-1)
    x1 = conv2d(x, **p["conv11"], stride=(2, 2), relu=True)
    x2 = maxpool2d(x)
    return jnp.concatenate((x1, x2), axis=-1)


def forward(params, x_nchw):
    """Public API: NCHW in, NCHW out (PyTorch semantics). Internals run NHWC/bf16."""
    x = jnp.transpose(x_nchw, (0, 2, 3, 1)).astype(jnp.bfloat16)
    y = stem(params, x)
    return jnp.transpose(y, (0, 3, 1, 2)).astype(jnp.float32)


# --------------------------- main ---------------------------------------------

if __name__ == "__main__":
    key = jax.random.PRNGKey(0)
    pkey, xkey = jax.random.split(key)
    params = init_stem(KeyGen(pkey))
    # Smallest "natural" spatial size that cleanly survives the Stem's three
    # stride-2 stages; batch=2, 3 input channels (RGB).
    x = jax.random.normal(xkey, (2, 3, 75, 75), jnp.float32)

    fwd = jax.jit(forward)
    out = jax.block_until_ready(fwd(params, x))
    assert out.shape == (2, 384, 7, 7), out.shape
    assert bool(jnp.all(jnp.isfinite(out)))
    print("KERNEL_OK")
</pallas_src>

<mosaic_0001>
module attributes {stable_mosaic.version = 11 : i64} {
  func.func @_matmul_bias_kernel(%arg0: i32, %arg1: i32, %arg2: i32, %arg3: memref<256x128xbf16, #tpu.memory_space<vmem>>, %arg4: memref<128x128xbf16, #tpu.memory_space<vmem>>, %arg5: memref<1x128xf32, #tpu.memory_space<vmem>>, %arg6: memref<256x128xbf16, #tpu.memory_space<vmem>>, %arg7: memref<256x128xf32, #tpu.memory_space<vmem>>) attributes {dimension_semantics = [#tpu.dimension_semantics<parallel>, #tpu.dimension_semantics<parallel>, #tpu.dimension_semantics<arbitrary>], iteration_bounds = array<i64: 11, 1, 1>, scalar_prefetch = 0 : i64, scratch_operands = 1 : i64, tpu.core_type = #tpu.core_type<tc>, window_params = [{transform_indices = @transform_0, window_bounds = array<i64: 256, 128>}, {transform_indices = @transform_1, window_bounds = array<i64: 128, 128>}, {transform_indices = @transform_2, window_bounds = array<i64: 1, 128>}, {transform_indices = @transform_3, window_bounds = array<i64: 256, 128>}]} {
    %c0_i32 = arith.constant 0 : i32
    %0 = arith.cmpi eq, %arg2, %c0_i32 : i32
    %1 = arith.extui %0 : i1 to i32
    %c0_i32_0 = arith.constant 0 : i32
    %2 = arith.cmpi ne, %1, %c0_i32_0 : i32
    scf.if %2 {
      %cst_10 = arith.constant 0.000000e+00 : f32
      %12 = vector.broadcast %cst_10 : f32 to vector<256x128xf32>
      %c0_11 = arith.constant 0 : index
      %c0_12 = arith.constant 0 : index
      %13 = vector.load %arg7[%c0_11, %c0_12] : memref<256x128xf32, #tpu.memory_space<vmem>>, vector<256x128xf32>
      tpu.vector_store %arg7[%c0_11, %c0_12], %12 {strides = array<i32>} : memref<256x128xf32, #tpu.memory_space<vmem>>, vector<256x128xf32>,
    } else {
    }
    %c0 = arith.constant 0 : index
    %c0_1 = arith.constant 0 : index
    %3 = vector.load %arg7[%c0, %c0_1] : memref<256x128xf32, #tpu.memory_space<vmem>>, vector<256x128xf32>
    %c0_2 = arith.constant 0 : index
    %c0_3 = arith.constant 0 : index
    %4 = vector.load %arg3[%c0_2, %c0_3] : memref<256x128xbf16, #tpu.memory_space<vmem>>, vector<256x128xbf16>
    %c0_4 = arith.constant 0 : index
    %c0_5 = arith.constant 0 : index
    %5 = vector.load %arg4[%c0_4, %c0_5] : memref<128x128xbf16, #tpu.memory_space<vmem>>, vector<128x128xbf16>
    %cst = arith.constant dense<0.000000e+00> : vector<256x128xf32>
    %6 = tpu.matmul %4, %5, %cst {dimension_numbers = #tpu.dot_dimension_numbers<[1], [0], [0], [1], [0, 0, 1, 1], [], []>} : vector<256x128xbf16>, vector<128x128xbf16>, vector<256x128xf32> -> vector<256x128xf32>
    %7 = arith.addf %3, %6 : vector<256x128xf32>
    %c0_6 = arith.constant 0 : index
    %c0_7 = arith.constant 0 : index
    %8 = vector.load %arg7[%c0_6, %c0_7] : memref<256x128xf32, #tpu.memory_space<vmem>>, vector<256x128xf32>
    tpu.vector_store %arg7[%c0_6, %c0_7], %7 {strides = array<i32>} : memref<256x128xf32, #tpu.memory_space<vmem>>, vector<256x128xf32>,
    %c0_i32_8 = arith.constant 0 : i32
    %9 = arith.cmpi eq, %arg2, %c0_i32_8 : i32
    %10 = arith.extui %9 : i1 to i32
    %c0_i32_9 = arith.constant 0 : i32
    %11 = arith.cmpi ne, %10, %c0_i32_9 : i32
    scf.if %11 {
      %c0_10 = arith.constant 0 : index
      %c0_11 = arith.constant 0 : index
      %12 = vector.load %arg7[%c0_10, %c0_11] : memref<256x128xf32, #tpu.memory_space<vmem>>, vector<256x128xf32>
      %c0_12 = arith.constant 0 : index
      %c0_13 = arith.constant 0 : index
      %13 = vector.load %arg5[%c0_12, %c0_13] : memref<1x128xf32, #tpu.memory_space<vmem>>, vector<1x128xf32>
      %14 = vector.broadcast %13 : vector<1x128xf32> to vector<256x128xf32>
      %15 = arith.addf %12, %14 : vector<256x128xf32>
      %cst_14 = arith.constant 0.000000e+00 : f32
      %16 = vector.broadcast %cst_14 : f32 to vector<256x128xf32>
      %17 = arith.maximumf %15, %16 : vector<256x128xf32>
      %18 = arith.truncf %17 : vector<256x128xf32> to vector<256x128xbf16>
      %c0_15 = arith.constant 0 : index
      %c0_16 = arith.constant 0 : index
      %19 = vector.load %arg6[%c0_15, %c0_16] : memref<256x128xbf16, #tpu.memory_space<vmem>>, vector<256x128xbf16>
      tpu.vector_store %arg6[%c0_15, %c0_16], %18 {strides = array<i32>} : memref<256x128xbf16, #tpu.memory_space<vmem>>, vector<256x128xbf16>,
    } else {
    }
    return
  }
  func.func @transform_0(%arg0: i32, %arg1: i32, %arg2: i32) -> (i32, i32) {
    %c0_i32 = arith.constant 0 : i32
    return %arg0, %arg2 : i32, i32
  }
  func.func @transform_1(%arg0: i32, %arg1: i32, %arg2: i32) -> (i32, i32) {
    %c0_i32 = arith.constant 0 : i32
    return %arg2, %arg1 : i32, i32
  }
  func.func @transform_2(%arg0: i32, %arg1: i32, %arg2: i32) -> (i32, i32) {
    %c0_i32 = arith.constant 0 : i32
    %c0_i32_0 = arith.constant 0 : i32
    return %c0_i32, %arg1 : i32, i32
  }
  func.func @transform_3(%arg0: i32, %arg1: i32, %arg2: i32) -> (i32, i32) {
    %c0_i32 = arith.constant 0 : i32
    return %arg0, %arg1 : i32, i32
  }
}

module attributes {stable_mosaic.version = 11 : i64} {
  func.func @_matmul_bias_kernel(%arg0: i32, %arg1: i32, %arg2: i32, %arg3: memref<256x384xbf16, #tpu.memory_space<vmem>>, %arg4: memref<384x128xbf16, #tpu.memory_space<vmem>>, %arg5: memref<1x128xf32, #tpu.memory_space<vmem>>, %arg6: memref<256x128xbf16, #tpu.memory_space<vmem>>, %arg7: memref<256x128xf32, #tpu.memory_space<vmem>>) attributes {dimension_semantics = [#tpu.dimension_semantics<parallel>, #tpu.dimension_semantics<parallel>, #tpu.dimension_semantics<arbitrary>], iteration_bounds = array<i64: 10, 1, 1>, scalar_prefetch = 0 : i64, scratch_operands = 1 : i64, tpu.core_type = #tpu.core_type<tc>, window_params = [{transform_indices = @transform_0, window_bounds = array<i64: 256, 384>}, {transform_indices = @transform_1, window_bounds = array<i64: 384, 128>}, {transform_indices = @transform_2, window_bounds = array<i64: 1, 128>}, {transform_indices = @transform_3, window_bounds = array<i64: 256, 128>}]} {
    %c0_i32 = arith.constant 0 : i32
    %0 = arith.cmpi eq, %arg2, %c0_i32 : i32
    %1 = arith.extui %0 : i1 to i32
    %c0_i32_0 = arith.constant 0 : i32
    %2 = arith.cmpi ne, %1, %c0_i32_0 : i32
    scf.if %2 {
      %cst_10 = arith.constant 0.000000e+00 : f32
      %12 = vector.broadcast %cst_10 : f32 to vector<256x128xf32>
      %c0_11 = arith.constant 0 : index
      %c0_12 = arith.constant 0 : index
      %13 = vector.load %arg7[%c0_11, %c0_12] : memref<256x128xf32, #tpu.memory_space<vmem>>, vector<256x128xf32>
      tpu.vector_store %arg7[%c0_11, %c0_12], %12 {strides = array<i32>} : memref<256x128xf32, #tpu.memory_space<vmem>>, vector<256x128xf32>,
    } else {
    }
    %c0 = arith.constant 0 : index
    %c0_1 = arith.constant 0 : index
    %3 = vector.load %arg7[%c0, %c0_1] : memref<256x128xf32, #tpu.memory_space<vmem>>, vector<256x128xf32>
    %c0_2 = arith.constant 0 : index
    %c0_3 = arith.constant 0 : index
    %4 = vector.load %arg3[%c0_2, %c0_3] : memref<256x384xbf16, #tpu.memory_space<vmem>>, vector<256x384xbf16>
    %c0_4 = arith.constant 0 : index
    %c0_5 = arith.constant 0 : index
    %5 = vector.load %arg4[%c0_4, %c0_5] : memref<384x128xbf16, #tpu.memory_space<vmem>>, vector<384x128xbf16>
    %cst = arith.constant dense<0.000000e+00> : vector<256x128xf32>
    %6 = tpu.matmul %4, %5, %cst {dimension_numbers = #tpu.dot_dimension_numbers<[1], [0], [0], [1], [0, 0, 1, 1], [], []>} : vector<256x384xbf16>, vector<384x128xbf16>, vector<256x128xf32> -> vector<256x128xf32>
    %7 = arith.addf %3, %6 : vector<256x128xf32>
    %c0_6 = arith.constant 0 : index
    %c0_7 = arith.constant 0 : index
    %8 = vector.load %arg7[%c0_6, %c0_7] : memref<256x128xf32, #tpu.memory_space<vmem>>, vector<256x128xf32>
    tpu.vector_store %arg7[%c0_6, %c0_7], %7 {strides = array<i32>} : memref<256x128xf32, #tpu.memory_space<vmem>>, vector<256x128xf32>,
    %c0_i32_8 = arith.constant 0 : i32
    %9 = arith.cmpi eq, %arg2, %c0_i32_8 : i32
    %10 = arith.extui %9 : i1 to i32
    %c0_i32_9 = arith.constant 0 : i32
    %11 = arith.cmpi ne, %10, %c0_i32_9 : i32
    scf.if %11 {
      %c0_10 = arith.constant 0 : index
      %c0_11 = arith.constant 0 : index
      %12 = vector.load %arg7[%c0_10, %c0_11] : memref<256x128xf32, #tpu.memory_space<vmem>>, vector<256x128xf32>
      %c0_12 = arith.constant 0 : index
      %c0_13 = arith.constant 0 : index
      %13 = vector.load %arg5[%c0_12, %c0_13] : memref<1x128xf32, #tpu.memory_space<vmem>>, vector<1x128xf32>
      %14 = vector.broadcast %13 : vector<1x128xf32> to vector<256x128xf32>
      %15 = arith.addf %12, %14 : vector<256x128xf32>
      %cst_14 = arith.constant 0.000000e+00 : f32
      %16 = vector.broadcast %cst_14 : f32 to vector<256x128xf32>
      %17 = arith.maximumf %15, %16 : vector<256x128xf32>
      %18 = arith.truncf %17 : vector<256x128xf32> to vector<256x128xbf16>
      %c0_15 = arith.constant 0 : index
      %c0_16 = arith.constant 0 : index
      %19 = vector.load %arg6[%c0_15, %c0_16] : memref<256x128xbf16, #tpu.memory_space<vmem>>, vector<256x128xbf16>
      tpu.vector_store %arg6[%c0_15, %c0_16], %18 {strides = array<i32>} : memref<256x128xbf16, #tpu.memory_space<vmem>>, vector<256x128xbf16>,
    } else {
    }
    return
  }
  func.func @transform_0(%arg0: i32, %arg1: i32, %arg2: i32) -> (i32, i32) {
    %c0_i32 = arith.constant 0 : i32
    return %arg0, %arg2 : i32, i32
  }
  func.func @transform_1(%arg0: i32, %arg1: i32, %arg2: i32) -> (i32, i32) {
    %c0_i32 = arith.constant 0 : i32
    return %arg2, %arg1 : i32, i32
  }
  func.func @transform_2(%arg0: i32, %arg1: i32, %arg2: i32) -> (i32, i32) {
    %c0_i32 = arith.constant 0 : i32
    %c0_i32_0 = arith.constant 0 : i32
    return %c0_i32, %arg1 : i32, i32
  }
  func.func @transform_3(%arg0: i32, %arg1: i32, %arg2: i32) -> (i32, i32) {
    %c0_i32 = arith.constant 0 : i32
    return %arg0, %arg1 : i32, i32
  }
}

module attributes {stable_mosaic.version = 11 : i64} {
  func.func @_matmul_bias_kernel(%arg0: i32, %arg1: i32, %arg2: i32, %arg3: memref<256x640xbf16, #tpu.memory_space<vmem>>, %arg4: memref<640x128xbf16, #tpu.memory_space<vmem>>, %arg5: memref<1x128xf32, #tpu.memory_space<vmem>>, %arg6: memref<256x128xbf16, #tpu.memory_space<vmem>>, %arg7: memref<256x128xf32, #tpu.memory_space<vmem>>) attributes {dimension_semantics = [#tpu.dimension_semantics<parallel>, #tpu.dimension_semantics<parallel>, #tpu.dimension_semantics<arbitrary>], iteration_bounds = array<i64: 3, 1, 1>, scalar_prefetch = 0 : i64, scratch_operands = 1 : i64, tpu.core_type = #tpu.core_type<tc>, window_params = [{transform_indices = @transform_0, window_bounds = array<i64: 256, 640>}, {transform_indices = @transform_1, window_bounds = array<i64: 640, 128>}, {transform_indices = @transform_2, window_bounds = array<i64: 1, 128>}, {transform_indices = @transform_3, window_bounds = array<i64: 256, 128>}]} {
    %c0_i32 = arith.constant 0 : i32
    %0 = arith.cmpi eq, %arg2, %c0_i32 : i32
    %1 = arith.extui %0 : i1 to i32
    %c0_i32_0 = arith.constant 0 : i32
    %2 = arith.cmpi ne, %1, %c0_i32_0 : i32
    scf.if %2 {
      %cst_10 = arith.constant 0.000000e+00 : f32
      %12 = vector.broadcast %cst_10 : f32 to vector<256x128xf32>
      %c0_11 = arith.constant 0 : index
      %c0_12 = arith.constant 0 : index
      %13 = vector.load %arg7[%c0_11, %c0_12] : memref<256x128xf32, #tpu.memory_space<vmem>>, vector<256x128xf32>
      tpu.vector_store %arg7[%c0_11, %c0_12], %12 {strides = array<i32>} : memref<256x128xf32, #tpu.memory_space<vmem>>, vector<256x128xf32>,
    } else {
    }
    %c0 = arith.constant 0 : index
    %c0_1 = arith.constant 0 : index
    %3 = vector.load %arg7[%c0, %c0_1] : memref<256x128xf32, #tpu.memory_space<vmem>>, vector<256x128xf32>
    %c0_2 = arith.constant 0 : index
    %c0_3 = arith.constant 0 : index
    %4 = vector.load %arg3[%c0_2, %c0_3] : memref<256x640xbf16, #tpu.memory_space<vmem>>, vector<256x640xbf16>
    %c0_4 = arith.constant 0 : index
    %c0_5 = arith.constant 0 : index
    %5 = vector.load %arg4[%c0_4, %c0_5] : memref<640x128xbf16, #tpu.memory_space<vmem>>, vector<640x128xbf16>
    %cst = arith.constant dense<0.000000e+00> : vector<256x128xf32>
    %6 = tpu.matmul %4, %5, %cst {dimension_numbers = #tpu.dot_dimension_numbers<[1], [0], [0], [1], [0, 0, 1, 1], [], []>} : vector<256x640xbf16>, vector<640x128xbf16>, vector<256x128xf32> -> vector<256x128xf32>
    %7 = arith.addf %3, %6 : vector<256x128xf32>
    %c0_6 = arith.constant 0 : index
    %c0_7 = arith.constant 0 : index
    %8 = vector.load %arg7[%c0_6, %c0_7] : memref<256x128xf32, #tpu.memory_space<vmem>>, vector<256x128xf32>
    tpu.vector_store %arg7[%c0_6, %c0_7], %7 {strides = array<i32>} : memref<256x128xf32, #tpu.memory_space<vmem>>, vector<256x128xf32>,
    %c0_i32_8 = arith.constant 0 : i32
    %9 = arith.cmpi eq, %arg2, %c0_i32_8 : i32
    %10 = arith.extui %9 : i1 to i32
    %c0_i32_9 = arith.constant 0 : i32
    %11 = arith.cmpi ne, %10, %c0_i32_9 : i32
    scf.if %11 {
      %c0_10 = arith.constant 0 : index
      %c0_11 = arith.constant 0 : index
      %12 = vector.load %arg7[%c0_10, %c0_11] : memref<256x128xf32, #tpu.memory_space<vmem>>, vector<256x128xf32>
      %c0_12 = arith.constant 0 : index
      %c0_13 = arith.constant 0 : index
      %13 = vector.load %arg5[%c0_12, %c0_13] : memref<1x128xf32, #tpu.memory_space<vmem>>, vector<1x128xf32>
      %14 = vector.broadcast %13 : vector<1x128xf32> to vector<256x128xf32>
      %15 = arith.addf %12, %14 : vector<256x128xf32>
      %cst_14 = arith.constant 0.000000e+00 : f32
      %16 = vector.broadcast %cst_14 : f32 to vector<256x128xf32>
      %17 = arith.maximumf %15, %16 : vector<256x128xf32>
      %18 = arith.truncf %17 : vector<256x128xf32> to vector<256x128xbf16>
      %c0_15 = arith.constant 0 : index
      %c0_16 = arith.constant 0 : index
      %19 = vector.load %arg6[%c0_15, %c0_16] : memref<256x128xbf16, #tpu.memory_space<vmem>>, vector<256x128xbf16>
      tpu.vector_store %arg6[%c0_15, %c0_16], %18 {strides = array<i32>} : memref<256x128xbf16, #tpu.memory_space<vmem>>, vector<256x128xbf16>,
    } else {
    }
    return
  }
  func.func @transform_0(%arg0: i32, %arg1: i32, %arg2: i32) -> (i32, i32) {
    %c0_i32 = arith.constant 0 : i32
    return %arg0, %arg2 : i32, i32
  }
  func.func @transform_1(%arg0: i32, %arg1: i32, %arg2: i32) -> (i32, i32) {
    %c0_i32 = arith.constant 0 : i32
    return %arg2, %arg1 : i32, i32
  }
  func.func @transform_2(%arg0: i32, %arg1: i32, %arg2: i32) -> (i32, i32) {
    %c0_i32 = arith.constant 0 : i32
    %c0_i32_0 = arith.constant 0 : i32
    return %c0_i32, %arg1 : i32, i32
  }
  func.func @transform_3(%arg0: i32, %arg1: i32, %arg2: i32) -> (i32, i32) {
    %c0_i32 = arith.constant 0 : i32
    return %arg0, %arg1 : i32, i32
  }
}

module attributes {stable_mosaic.version = 11 : i64} {
  func.func @_matmul_bias_kernel(%arg0: i32, %arg1: i32, %arg2: i32, %arg3: memref<256x256xbf16, #tpu.memory_space<vmem>>, %arg4: memref<256x128xbf16, #tpu.memory_space<vmem>>, %arg5: memref<1x128xf32, #tpu.memory_space<vmem>>, %arg6: memref<256x128xbf16, #tpu.memory_space<vmem>>, %arg7: memref<256x128xf32, #tpu.memory_space<vmem>>) attributes {dimension_semantics = [#tpu.dimension_semantics<parallel>, #tpu.dimension_semantics<parallel>, #tpu.dimension_semantics<arbitrary>], iteration_bounds = array<i64: 3, 1, 1>, scalar_prefetch = 0 : i64, scratch_operands = 1 : i64, tpu.core_type = #tpu.core_type<tc>, window_params = [{transform_indices = @transform_0, window_bounds = array<i64: 256, 256>}, {transform_indices = @transform_1, window_bounds = array<i64: 256, 128>}, {transform_indices = @transform_2, window_bounds = array<i64: 1, 128>}, {transform_indices = @transform_3, window_bounds = array<i64: 256, 128>}]} {
    %c0_i32 = arith.constant 0 : i32
    %0 = arith.cmpi eq, %arg2, %c0_i32 : i32
    %1 = arith.extui %0 : i1 to i32
    %c0_i32_0 = arith.constant 0 : i32
    %2 = arith.cmpi ne, %1, %c0_i32_0 : i32
    scf.if %2 {
      %cst_10 = arith.constant 0.000000e+00 : f32
      %12 = vector.broadcast %cst_10 : f32 to vector<256x128xf32>
      %c0_11 = arith.constant 0 : index
      %c0_12 = arith.constant 0 : index
      %13 = vector.load %arg7[%c0_11, %c0_12] : memref<256x128xf32, #tpu.memory_space<vmem>>, vector<256x128xf32>
      tpu.vector_store %arg7[%c0_11, %c0_12], %12 {strides = array<i32>} : memref<256x128xf32, #tpu.memory_space<vmem>>, vector<256x128xf32>,
    } else {
    }
    %c0 = arith.constant 0 : index
    %c0_1 = arith.constant 0 : index
    %3 = vector.load %arg7[%c0, %c0_1] : memref<256x128xf32, #tpu.memory_space<vmem>>, vector<256x128xf32>
    %c0_2 = arith.constant 0 : index
    %c0_3 = arith.constant 0 : index
    %4 = vector.load %arg3[%c0_2, %c0_3] : memref<256x256xbf16, #tpu.memory_space<vmem>>, vector<256x256xbf16>
    %c0_4 = arith.constant 0 : index
    %c0_5 = arith.constant 0 : index
    %5 = vector.load %arg4[%c0_4, %c0_5] : memref<256x128xbf16, #tpu.memory_space<vmem>>, vector<256x128xbf16>
    %cst = arith.constant dense<0.000000e+00> : vector<256x128xf32>
    %6 = tpu.matmul %4, %5, %cst {dimension_numbers = #tpu.dot_dimension_numbers<[1], [0], [0], [1], [0, 0, 1, 1], [], []>} : vector<256x256xbf16>, vector<256x128xbf16>, vector<256x128xf32> -> vector<256x128xf32>
    %7 = arith.addf %3, %6 : vector<256x128xf32>
    %c0_6 = arith.constant 0 : index
    %c0_7 = arith.constant 0 : index
    %8 = vector.load %arg7[%c0_6, %c0_7] : memref<256x128xf32, #tpu.memory_space<vmem>>, vector<256x128xf32>
    tpu.vector_store %arg7[%c0_6, %c0_7], %7 {strides = array<i32>} : memref<256x128xf32, #tpu.memory_space<vmem>>, vector<256x128xf32>,
    %c0_i32_8 = arith.constant 0 : i32
    %9 = arith.cmpi eq, %arg2, %c0_i32_8 : i32
    %10 = arith.extui %9 : i1 to i32
    %c0_i32_9 = arith.constant 0 : i32
    %11 = arith.cmpi ne, %10, %c0_i32_9 : i32
    scf.if %11 {
      %c0_10 = arith.constant 0 : index
      %c0_11 = arith.constant 0 : index
      %12 = vector.load %arg7[%c0_10, %c0_11] : memref<256x128xf32, #tpu.memory_space<vmem>>, vector<256x128xf32>
      %c0_12 = arith.constant 0 : index
      %c0_13 = arith.constant 0 : index
      %13 = vector.load %arg5[%c0_12, %c0_13] : memref<1x128xf32, #tpu.memory_space<vmem>>, vector<1x128xf32>
      %14 = vector.broadcast %13 : vector<1x128xf32> to vector<256x128xf32>
      %15 = arith.addf %12, %14 : vector<256x128xf32>
      %cst_14 = arith.constant 0.000000e+00 : f32
      %16 = vector.broadcast %cst_14 : f32 to vector<256x128xf32>
      %17 = arith.maximumf %15, %16 : vector<256x128xf32>
      %18 = arith.truncf %17 : vector<256x128xf32> to vector<256x128xbf16>
      %c0_15 = arith.constant 0 : index
      %c0_16 = arith.constant 0 : index
      %19 = vector.load %arg6[%c0_15, %c0_16] : memref<256x128xbf16, #tpu.memory_space<vmem>>, vector<256x128xbf16>
      tpu.vector_store %arg6[%c0_15, %c0_16], %18 {strides = array<i32>} : memref<256x128xbf16, #tpu.memory_space<vmem>>, vector<256x128xbf16>,
    } else {
    }
    return
  }
  func.func @transform_0(%arg0: i32, %arg1: i32, %arg2: i32) -> (i32, i32) {
    %c0_i32 = arith.constant 0 : i32
    return %arg0, %arg2 : i32, i32
  }
  func.func @transform_1(%arg0: i32, %arg1: i32, %arg2: i32) -> (i32, i32) {
    %c0_i32 = arith.constant 0 : i32
    return %arg2, %arg1 : i32, i32
  }
  func.func @transform_2(%arg0: i32, %arg1: i32, %arg2: i32) -> (i32, i32) {
    %c0_i32 = arith.constant 0 : i32
    %c0_i32_0 = arith.constant 0 : i32
    return %c0_i32, %arg1 : i32, i32
  }
  func.func @transform_3(%arg0: i32, %arg1: i32, %arg2: i32) -> (i32, i32) {
    %c0_i32 = arith.constant 0 : i32
    return %arg0, %arg1 : i32, i32
  }
}

module attributes {stable_mosaic.version = 11 : i64} {
  func.func @_matmul_bias_kernel(%arg0: i32, %arg1: i32, %arg2: i32, %arg3: memref<256x512xbf16, #tpu.memory_space<vmem>>, %arg4: memref<512x128xbf16, #tpu.memory_space<vmem>>, %arg5: memref<1x128xf32, #tpu.memory_space<vmem>>, %arg6: memref<256x128xbf16, #tpu.memory_space<vmem>>, %arg7: memref<256x128xf32, #tpu.memory_space<vmem>>) attributes {dimension_semantics = [#tpu.dimension_semantics<parallel>, #tpu.dimension_semantics<parallel>, #tpu.dimension_semantics<arbitrary>], iteration_bounds = array<i64: 3, 1, 1>, scalar_prefetch = 0 : i64, scratch_operands = 1 : i64, tpu.core_type = #tpu.core_type<tc>, window_params = [{transform_indices = @transform_0, window_bounds = array<i64: 256, 512>}, {transform_indices = @transform_1, window_bounds = array<i64: 512, 128>}, {transform_indices = @transform_2, window_bounds = array<i64: 1, 128>}, {transform_indices = @transform_3, window_bounds = array<i64: 256, 128>}]} {
    %c0_i32 = arith.constant 0 : i32
    %0 = arith.cmpi eq, %arg2, %c0_i32 : i32
    %1 = arith.extui %0 : i1 to i32
    %c0_i32_0 = arith.constant 0 : i32
    %2 = arith.cmpi ne, %1, %c0_i32_0 : i32
    scf.if %2 {
      %cst_10 = arith.constant 0.000000e+00 : f32
      %12 = vector.broadcast %cst_10 : f32 to vector<256x128xf32>
      %c0_11 = arith.constant 0 : index
      %c0_12 = arith.constant 0 : index
      %13 = vector.load %arg7[%c0_11, %c0_12] : memref<256x128xf32, #tpu.memory_space<vmem>>, vector<256x128xf32>
      tpu.vector_store %arg7[%c0_11, %c0_12], %12 {strides = array<i32>} : memref<256x128xf32, #tpu.memory_space<vmem>>, vector<256x128xf32>,
    } else {
    }
    %c0 = arith.constant 0 : index
    %c0_1 = arith.constant 0 : index
    %3 = vector.load %arg7[%c0, %c0_1] : memref<256x128xf32, #tpu.memory_space<vmem>>, vector<256x128xf32>
    %c0_2 = arith.constant 0 : index
    %c0_3 = arith.constant 0 : index
    %4 = vector.load %arg3[%c0_2, %c0_3] : memref<256x512xbf16, #tpu.memory_space<vmem>>, vector<256x512xbf16>
    %c0_4 = arith.constant 0 : index
    %c0_5 = arith.constant 0 : index
    %5 = vector.load %arg4[%c0_4, %c0_5] : memref<512x128xbf16, #tpu.memory_space<vmem>>, vector<512x128xbf16>
    %cst = arith.constant dense<0.000000e+00> : vector<256x128xf32>
    %6 = tpu.matmul %4, %5, %cst {dimension_numbers = #tpu.dot_dimension_numbers<[1], [0], [0], [1], [0, 0, 1, 1], [], []>} : vector<256x512xbf16>, vector<512x128xbf16>, vector<256x128xf32> -> vector<256x128xf32>
    %7 = arith.addf %3, %6 : vector<256x128xf32>
    %c0_6 = arith.constant 0 : index
    %c0_7 = arith.constant 0 : index
    %8 = vector.load %arg7[%c0_6, %c0_7] : memref<256x128xf32, #tpu.memory_space<vmem>>, vector<256x128xf32>
    tpu.vector_store %arg7[%c0_6, %c0_7], %7 {strides = array<i32>} : memref<256x128xf32, #tpu.memory_space<vmem>>, vector<256x128xf32>,
    %c0_i32_8 = arith.constant 0 : i32
    %9 = arith.cmpi eq, %arg2, %c0_i32_8 : i32
    %10 = arith.extui %9 : i1 to i32
    %c0_i32_9 = arith.constant 0 : i32
    %11 = arith.cmpi ne, %10, %c0_i32_9 : i32
    scf.if %11 {
      %c0_10 = arith.constant 0 : index
      %c0_11 = arith.constant 0 : index
      %12 = vector.load %arg7[%c0_10, %c0_11] : memref<256x128xf32, #tpu.memory_space<vmem>>, vector<256x128xf32>
      %c0_12 = arith.constant 0 : index
      %c0_13 = arith.constant 0 : index
      %13 = vector.load %arg5[%c0_12, %c0_13] : memref<1x128xf32, #tpu.memory_space<vmem>>, vector<1x128xf32>
      %14 = vector.broadcast %13 : vector<1x128xf32> to vector<256x128xf32>
      %15 = arith.addf %12, %14 : vector<256x128xf32>
      %cst_14 = arith.constant 0.000000e+00 : f32
      %16 = vector.broadcast %cst_14 : f32 to vector<256x128xf32>
      %17 = arith.maximumf %15, %16 : vector<256x128xf32>
      %18 = arith.truncf %17 : vector<256x128xf32> to vector<256x128xbf16>
      %c0_15 = arith.constant 0 : index
      %c0_16 = arith.constant 0 : index
      %19 = vector.load %arg6[%c0_15, %c0_16] : memref<256x128xbf16, #tpu.memory_space<vmem>>, vector<256x128xbf16>
      tpu.vector_store %arg6[%c0_15, %c0_16], %18 {strides = array<i32>} : memref<256x128xbf16, #tpu.memory_space<vmem>>, vector<256x128xbf16>,
    } else {
    }
    return
  }
  func.func @transform_0(%arg0: i32, %arg1: i32, %arg2: i32) -> (i32, i32) {
    %c0_i32 = arith.constant 0 : i32
    return %arg0, %arg2 : i32, i32
  }
  func.func @transform_1(%arg0: i32, %arg1: i32, %arg2: i32) -> (i32, i32) {
    %c0_i32 = arith.constant 0 : i32
    return %arg2, %arg1 : i32, i32
  }
  func.func @transform_2(%arg0: i32, %arg1: i32, %arg2: i32) -> (i32, i32) {
    %c0_i32 = arith.constant 0 : i32
    %c0_i32_0 = arith.constant 0 : i32
    return %c0_i32, %arg1 : i32, i32
  }
  func.func @transform_3(%arg0: i32, %arg1: i32, %arg2: i32) -> (i32, i32) {
    %c0_i32 = arith.constant 0 : i32
    return %arg0, %arg1 : i32, i32
  }
}

module attributes {stable_mosaic.version = 11 : i64} {
  func.func @_matmul_bias_kernel(%arg0: i32, %arg1: i32, %arg2: i32, %arg3: memref<256x640xbf16, #tpu.memory_space<vmem>>, %arg4: memref<640x128xbf16, #tpu.memory_space<vmem>>, %arg5: memref<1x128xf32, #tpu.memory_space<vmem>>, %arg6: memref<256x128xbf16, #tpu.memory_space<vmem>>, %arg7: memref<256x128xf32, #tpu.memory_space<vmem>>) attributes {dimension_semantics = [#tpu.dimension_semantics<parallel>, #tpu.dimension_semantics<parallel>, #tpu.dimension_semantics<arbitrary>], iteration_bounds = array<i64: 2, 1, 1>, scalar_prefetch = 0 : i64, scratch_operands = 1 : i64, tpu.core_type = #tpu.core_type<tc>, window_params = [{transform_indices = @transform_0, window_bounds = array<i64: 256, 640>}, {transform_indices = @transform_1, window_bounds = array<i64: 640, 128>}, {transform_indices = @transform_2, window_bounds = array<i64: 1, 128>}, {transform_indices = @transform_3, window_bounds = array<i64: 256, 128>}]} {
    %c0_i32 = arith.constant 0 : i32
    %0 = arith.cmpi eq, %arg2, %c0_i32 : i32
    %1 = arith.extui %0 : i1 to i32
    %c0_i32_0 = arith.constant 0 : i32
    %2 = arith.cmpi ne, %1, %c0_i32_0 : i32
    scf.if %2 {
      %cst_10 = arith.constant 0.000000e+00 : f32
      %12 = vector.broadcast %cst_10 : f32 to vector<256x128xf32>
      %c0_11 = arith.constant 0 : index
      %c0_12 = arith.constant 0 : index
      %13 = vector.load %arg7[%c0_11, %c0_12] : memref<256x128xf32, #tpu.memory_space<vmem>>, vector<256x128xf32>
      tpu.vector_store %arg7[%c0_11, %c0_12], %12 {strides = array<i32>} : memref<256x128xf32, #tpu.memory_space<vmem>>, vector<256x128xf32>,
    } else {
    }
    %c0 = arith.constant 0 : index
    %c0_1 = arith.constant 0 : index
    %3 = vector.load %arg7[%c0, %c0_1] : memref<256x128xf32, #tpu.memory_space<vmem>>, vector<256x128xf32>
    %c0_2 = arith.constant 0 : index
    %c0_3 = arith.constant 0 : index
    %4 = vector.load %arg3[%c0_2, %c0_3] : memref<256x640xbf16, #tpu.memory_space<vmem>>, vector<256x640xbf16>
    %c0_4 = arith.constant 0 : index
    %c0_5 = arith.constant 0 : index
    %5 = vector.load %arg4[%c0_4, %c0_5] : memref<640x128xbf16, #tpu.memory_space<vmem>>, vector<640x128xbf16>
    %cst = arith.constant dense<0.000000e+00> : vector<256x128xf32>
    %6 = tpu.matmul %4, %5, %cst {dimension_numbers = #tpu.dot_dimension_numbers<[1], [0], [0], [1], [0, 0, 1, 1], [], []>} : vector<256x640xbf16>, vector<640x128xbf16>, vector<256x128xf32> -> vector<256x128xf32>
    %7 = arith.addf %3, %6 : vector<256x128xf32>
    %c0_6 = arith.constant 0 : index
    %c0_7 = arith.constant 0 : index
    %8 = vector.load %arg7[%c0_6, %c0_7] : memref<256x128xf32, #tpu.memory_space<vmem>>, vector<256x128xf32>
    tpu.vector_store %arg7[%c0_6, %c0_7], %7 {strides = array<i32>} : memref<256x128xf32, #tpu.memory_space<vmem>>, vector<256x128xf32>,
    %c0_i32_8 = arith.constant 0 : i32
    %9 = arith.cmpi eq, %arg2, %c0_i32_8 : i32
    %10 = arith.extui %9 : i1 to i32
    %c0_i32_9 = arith.constant 0 : i32
    %11 = arith.cmpi ne, %10, %c0_i32_9 : i32
    scf.if %11 {
      %c0_10 = arith.constant 0 : index
      %c0_11 = arith.constant 0 : index
      %12 = vector.load %arg7[%c0_10, %c0_11] : memref<256x128xf32, #tpu.memory_space<vmem>>, vector<256x128xf32>
      %c0_12 = arith.constant 0 : index
      %c0_13 = arith.constant 0 : index
      %13 = vector.load %arg5[%c0_12, %c0_13] : memref<1x128xf32, #tpu.memory_space<vmem>>, vector<1x128xf32>
      %14 = vector.broadcast %13 : vector<1x128xf32> to vector<256x128xf32>
      %15 = arith.addf %12, %14 : vector<256x128xf32>
      %cst_14 = arith.constant 0.000000e+00 : f32
      %16 = vector.broadcast %cst_14 : f32 to vector<256x128xf32>
      %17 = arith.maximumf %15, %16 : vector<256x128xf32>
      %18 = arith.truncf %17 : vector<256x128xf32> to vector<256x128xbf16>
      %c0_15 = arith.constant 0 : index
      %c0_16 = arith.constant 0 : index
      %19 = vector.load %arg6[%c0_15, %c0_16] : memref<256x128xbf16, #tpu.memory_space<vmem>>, vector<256x128xbf16>
      tpu.vector_store %arg6[%c0_15, %c0_16], %18 {strides = array<i32>} : memref<256x128xbf16, #tpu.memory_space<vmem>>, vector<256x128xbf16>,
    } else {
    }
    return
  }
  func.func @transform_0(%arg0: i32, %arg1: i32, %arg2: i32) -> (i32, i32) {
    %c0_i32 = arith.constant 0 : i32
    return %arg0, %arg2 : i32, i32
  }
  func.func @transform_1(%arg0: i32, %arg1: i32, %arg2: i32) -> (i32, i32) {
    %c0_i32 = arith.constant 0 : i32
    return %arg2, %arg1 : i32, i32
  }
  func.func @transform_2(%arg0: i32, %arg1: i32, %arg2: i32) -> (i32, i32) {
    %c0_i32 = arith.constant 0 : i32
    %c0_i32_0 = arith.constant 0 : i32
    return %c0_i32, %arg1 : i32, i32
  }
  func.func @transform_3(%arg0: i32, %arg1: i32, %arg2: i32) -> (i32, i32) {
    %c0_i32 = arith.constant 0 : i32
    return %arg0, %arg1 : i32, i32
  }
}

module attributes {stable_mosaic.version = 11 : i64} {
  func.func @_matmul_bias_kernel(%arg0: i32, %arg1: i32, %arg2: i32, %arg3: memref<104x1792xbf16, #tpu.memory_space<vmem>>, %arg4: memref<1792x256xbf16, #tpu.memory_space<vmem>>, %arg5: memref<1x256xf32, #tpu.memory_space<vmem>>, %arg6: memref<104x256xbf16, #tpu.memory_space<vmem>>, %arg7: memref<104x256xf32, #tpu.memory_space<vmem>>) attributes {dimension_semantics = [#tpu.dimension_semantics<parallel>, #tpu.dimension_semantics<parallel>, #tpu.dimension_semantics<arbitrary>], iteration_bounds = array<i64: 1, 1, 1>, scalar_prefetch = 0 : i64, scratch_operands = 1 : i64, tpu.core_type = #tpu.core_type<tc>, window_params = [{transform_indices = @transform_0, window_bounds = array<i64: 104, 1792>}, {transform_indices = @transform_1, window_bounds = array<i64: 1792, 256>}, {transform_indices = @transform_2, window_bounds = array<i64: 1, 256>}, {transform_indices = @transform_3, window_bounds = array<i64: 104, 256>}]} {
    %c0_i32 = arith.constant 0 : i32
    %0 = arith.cmpi eq, %arg2, %c0_i32 : i32
    %1 = arith.extui %0 : i1 to i32
    %c0_i32_0 = arith.constant 0 : i32
    %2 = arith.cmpi ne, %1, %c0_i32_0 : i32
    scf.if %2 {
      %cst_10 = arith.constant 0.000000e+00 : f32
      %12 = vector.broadcast %cst_10 : f32 to vector<104x256xf32>
      %c0_11 = arith.constant 0 : index
      %c0_12 = arith.constant 0 : index
      %13 = vector.load %arg7[%c0_11, %c0_12] : memref<104x256xf32, #tpu.memory_space<vmem>>, vector<104x256xf32>
      tpu.vector_store %arg7[%c0_11, %c0_12], %12 {strides = array<i32>} : memref<104x256xf32, #tpu.memory_space<vmem>>, vector<104x256xf32>,
    } else {
    }
    %c0 = arith.constant 0 : index
    %c0_1 = arith.constant 0 : index
    %3 = vector.load %arg7[%c0, %c0_1] : memref<104x256xf32, #tpu.memory_space<vmem>>, vector<104x256xf32>
    %c0_2 = arith.constant 0 : index
    %c0_3 = arith.constant 0 : index
    %4 = vector.load %arg3[%c0_2, %c0_3] : memref<104x1792xbf16, #tpu.memory_space<vmem>>, vector<104x1792xbf16>
    %c0_4 = arith.constant 0 : index
    %c0_5 = arith.constant 0 : index
    %5 = vector.load %arg4[%c0_4, %c0_5] : memref<1792x256xbf16, #tpu.memory_space<vmem>>, vector<1792x256xbf16>
    %cst = arith.constant dense<0.000000e+00> : vector<104x256xf32>
    %6 = tpu.matmul %4, %5, %cst {dimension_numbers = #tpu.dot_dimension_numbers<[1], [0], [0], [1], [0, 0, 1, 1], [], []>} : vector<104x1792xbf16>, vector<1792x256xbf16>, vector<104x256xf32> -> vector<104x256xf32>
    %7 = arith.addf %3, %6 : vector<104x256xf32>
    %c0_6 = arith.constant 0 : index
    %c0_7 = arith.constant 0 : index
    %8 = vector.load %arg7[%c0_6, %c0_7] : memref<104x256xf32, #tpu.memory_space<vmem>>, vector<104x256xf32>
    tpu.vector_store %arg7[%c0_6, %c0_7], %7 {strides = array<i32>} : memref<104x256xf32, #tpu.memory_space<vmem>>, vector<104x256xf32>,
    %c0_i32_8 = arith.constant 0 : i32
    %9 = arith.cmpi eq, %arg2, %c0_i32_8 : i32
    %10 = arith.extui %9 : i1 to i32
    %c0_i32_9 = arith.constant 0 : i32
    %11 = arith.cmpi ne, %10, %c0_i32_9 : i32
    scf.if %11 {
      %c0_10 = arith.constant 0 : index
      %c0_11 = arith.constant 0 : index
      %12 = vector.load %arg7[%c0_10, %c0_11] : memref<104x256xf32, #tpu.memory_space<vmem>>, vector<104x256xf32>
      %c0_12 = arith.constant 0 : index
      %c0_13 = arith.constant 0 : index
      %13 = vector.load %arg5[%c0_12, %c0_13] : memref<1x256xf32, #tpu.memory_space<vmem>>, vector<1x256xf32>
      %14 = vector.broadcast %13 : vector<1x256xf32> to vector<104x256xf32>
      %15 = arith.addf %12, %14 : vector<104x256xf32>
      %cst_14 = arith.constant 0.000000e+00 : f32
      %16 = vector.broadcast %cst_14 : f32 to vector<104x256xf32>
      %17 = arith.maximumf %15, %16 : vector<104x256xf32>
      %18 = arith.truncf %17 : vector<104x256xf32> to vector<104x256xbf16>
      %c0_15 = arith.constant 0 : index
      %c0_16 = arith.constant 0 : index
      %19 = vector.load %arg6[%c0_15, %c0_16] : memref<104x256xbf16, #tpu.memory_space<vmem>>, vector<104x256xbf16>
      tpu.vector_store %arg6[%c0_15, %c0_16], %18 {strides = array<i32>} : memref<104x256xbf16, #tpu.memory_space<vmem>>, vector<104x256xbf16>,
    } else {
    }
    return
  }
  func.func @transform_0(%arg0: i32, %arg1: i32, %arg2: i32) -> (i32, i32) {
    %c0_i32 = arith.constant 0 : i32
    return %arg0, %arg2 : i32, i32
  }
  func.func @transform_1(%arg0: i32, %arg1: i32, %arg2: i32) -> (i32, i32) {
    %c0_i32 = arith.constant 0 : i32
    return %arg2, %arg1 : i32, i32
  }
  func.func @transform_2(%arg0: i32, %arg1: i32, %arg2: i32) -> (i32, i32) {
    %c0_i32 = arith.constant 0 : i32
    %c0_i32_0 = arith.constant 0 : i32
    return %c0_i32, %arg1 : i32, i32
  }
  func.func @transform_3(%arg0: i32, %arg1: i32, %arg2: i32) -> (i32, i32) {
    %c0_i32 = arith.constant 0 : i32
    return %arg0, %arg1 : i32, i32
  }
}

</mosaic_0001>

<llo_original>
// kernel: forward.11
$region0: #{forward.11}
  #allocation0 [shape = 'u32[]', space=smem, size = 0x4, offset = 0x4, fixed_abs, tag = 'smem constant byte address 0x4 - core index']
  #allocation1 [shape = 'u32[144,128]{1,0:T(1,128)}', space=vmem, size = 0x12000, scoped, tag = 'internal scratch']
  #allocation2 [shape = 'f32[256,128]{1,0:T(8,128)}', space=vmem, size = 0x20000, scoped, tag = 'scratch operand']
  %s0 = inlined_call_operand.vmem [shape: bf16[2816,128], index: 0, kind: input, shape index: {}]
  %s1 = inlined_call_operand.vmem [shape: bf16[128,128], index: 1, kind: input, shape index: {}]
  %s2 = inlined_call_operand.vmem [shape: f32[1,128], index: 2, kind: input, shape index: {}]
  %s3 = inlined_call_operand.vmem [shape: bf16[2816,128], index: 3, kind: output, shape index: {}]
  %s4 = sld [smem:[#allocation0]]
  $region53: #{forward.11} parent=0
    _
  %s6 = ssub.s32 1, %s4
  %s7 = scalar_select 0, %s6, %s4
  loop: start=0, step=1, limit=13
  $region2: #{forward.11} parent=0 // loop_pre_header
    _
  $region3: #{forward.11} parent=0 // loop_header
    %s9 = sphi 0, %s13
    %p10 = scmp.ge.s32.totalorder %s9, 13
    %s16 = sphi 0, %s35
    %s17 = sphi 0, %s31
    %s18 = sphi 0, %s27
    %s19 = sphi 0, %s16
    %s20 = sphi 0, %s17
    %s21 = sphi 0, %s18
    %s22 = sphi 0, %s19
    %s23 = sphi 0, %s20
    %s24 = sphi 0, %s21
    %s40 = sphi 0, %s42
    %s43 = sphi 0, %s40
    %s44 = sphi 0, %s43
    %s60 = sphi 0, %s44
    %s68 = sphi 0, %s70
    %s71 = sphi 0, %s68
    %s72 = sphi 0, %s71
    %s88 = sphi 0, %s72
    %s94 = sphi 0, %s96
    %s97 = sphi 0, %s94
    %s98 = sphi 0, %s97
    %s114 = sphi 0, %s98
    %s122 = sphi 0, %s124
    %s125 = sphi 0, %s122
    %s126 = sphi 0, %s125
    %s142 = sphi 0, %s126
  $region4: #{forward.11} parent=0 // loop_header_branch
    %12 = sbr.rel (%p10) target = $region8
  $region5: #{forward.11} parent=0 // loop_body
    %s14 = ssub.s32 %s9, 1
    %s15 = ssub.s32 %s9, 2
    %s25 = sadd.s32 1, %s18
    %p26 = scmp.ge.s32.totalorder %s25, 1
    %s27 = scalar_select %p26, 0, %s25
    %s28 = sadd.s32 1, %s17
    %s29 = scalar_select %p26, %s28, %s17
    %p30 = scmp.ge.s32.totalorder %s29, 1
    %s31 = scalar_select %p30, 0, %s29
    %s32 = sadd.s32 1, %s16
    %s33 = scalar_select %p30, %s32, %s16
    %p34 = scmp.ge.s32.totalorder %s33, 11
    %s35 = scalar_select %p34, 0, %s33
    %s36 = ssub.s32 %s16, %s35
    %s37 = ssub.s32 %s18, %s27
    %s38 = sor.u32 %s36, %s37
    %p39 = scmp.eq.s32.totalorder %s38, 0
    %s41 = sadd.s32 %s40, 1
    %s42 = scalar_select %p39, %s40, %s41
    %p45 = pneg %p39
    %p46 = scmp.eq.s32.totalorder %s9, 10
    %p47 = por %p45, %p46
    %p48 = scmp.ne.s32.totalorder %s40, %s43
    %p49 = scmp.eq.s32.totalorder %s9, 0
    %p50 = por %p48, %p49
    %p51 = scmp.ne.s32.totalorder %s40, %s43
    %p52 = scmp.eq.s32.totalorder %s14, 10
    %p53 = por %p51, %p52
    %p54 = scmp.ne.s32.totalorder %s43, %s44
    %p55 = scmp.eq.s32.totalorder %s14, 0
    %p56 = por %p54, %p55
    %p57 = scmp.ne.s32.totalorder %s43, %s44
    %p58 = scmp.eq.s32.totalorder %s15, 10
    %p59 = por %p57, %p58
    %p61 = scmp.ne.s32.totalorder %s44, %s60
    %p62 = scmp.eq.s32.totalorder %s15, 0
    %p63 = por %p61, %p62
    %s64 = ssub.s32 %s18, %s27
    %s65 = ssub.s32 %s17, %s31
    %s66 = sor.u32 %s64, %s65
    %p67 = scmp.eq.s32.totalorder %s66, 0
    %s69 = sadd.s32 %s68, 1
    %s70 = scalar_select %p67, %s68, %s69
    %p73 = pneg %p67
    %p74 = scmp.eq.s32.totalorder %s9, 10
    %p75 = por %p73, %p74
    %p76 = scmp.ne.s32.totalorder %s68, %s71
    %p77 = scmp.eq.s32.totalorder %s9, 0
    %p78 = por %p76, %p77
    %p79 = scmp.ne.s32.totalorder %s68, %s71
    %p80 = scmp.eq.s32.totalorder %s14, 10
    %p81 = por %p79, %p80
    %p82 = scmp.ne.s32.totalorder %s71, %s72
    %p83 = scmp.eq.s32.totalorder %s14, 0
    %p84 = por %p82, %p83
    %p85 = scmp.ne.s32.totalorder %s71, %s72
    %p86 = scmp.eq.s32.totalorder %s15, 10
    %p87 = por %p85, %p86
    %p89 = scmp.ne.s32.totalorder %s72, %s88
    %p90 = scmp.eq.s32.totalorder %s15, 0
    %p91 = por %p89, %p90
    %s92 = ssub.s32 %s17, %s31
    %p93 = scmp.eq.s32.totalorder %s92, 0
    %s95 = sadd.s32 %s94, 1
    %s96 = scalar_select %p93, %s94, %s95
    %p99 = pneg %p93
    %p100 = scmp.eq.s32.totalorder %s9, 10
    %p101 = por %p99, %p100
    %p102 = scmp.ne.s32.totalorder %s94, %s97
    %p103 = scmp.eq.s32.totalorder %s9, 0
    %p104 = por %p102, %p103
    %p105 = scmp.ne.s32.totalorder %s94, %s97
    %p106 = scmp.eq.s32.totalorder %s14, 10
    %p107 = por %p105, %p106
    %p108 = scmp.ne.s32.totalorder %s97, %s98
    %p109 = scmp.eq.s32.totalorder %s14, 0
    %p110 = por %p108, %p109
    %p111 = scmp.ne.s32.totalorder %s97, %s98
    %p112 = scmp.eq.s32.totalorder %s15, 10
    %p113 = por %p111, %p112
    %p115 = scmp.ne.s32.totalorder %s98, %s114
    %p116 = scmp.eq.s32.totalorder %s15, 0
    %p117 = por %p115, %p116
    %s118 = ssub.s32 %s16, %s35
    %s119 = ssub.s32 %s17, %s31
    %s120 = sor.u32 %s118, %s119
    %p121 = scmp.eq.s32.totalorder %s120, 0
    %s123 = sadd.s32 %s122, 1
    %s124 = scalar_select %p121, %s122, %s123
    %p127 = pneg %p121
    %p128 = scmp.eq.s32.totalorder %s9, 10
    %p129 = por %p127, %p128
    %p130 = scmp.ne.s32.totalorder %s122, %s125
    %p131 = scmp.eq.s32.totalorder %s9, 0
    %p132 = por %p130, %p131
    %p133 = scmp.ne.s32.totalorder %s122, %s125
    %p134 = scmp.eq.s32.totalorder %s14, 10
    %p135 = por %p133, %p134
    %p136 = scmp.ne.s32.totalorder %s125, %s126
    %p137 = scmp.eq.s32.totalorder %s14, 0
    %p138 = por %p136, %p137
    %p139 = scmp.ne.s32.totalorder %s125, %s126
    %p140 = scmp.eq.s32.totalorder %s15, 10
    %p141 = por %p139, %p140
    %p143 = scmp.ne.s32.totalorder %s126, %s142
    %p144 = scmp.eq.s32.totalorder %s15, 0
    %p145 = por %p143, %p144
    %p146 = scmp.le.s32.totalorder 1, %s9
    %p147 = scmp.lt.s32.totalorder %s9, 12
    %p148 = pnand %p146, %p147
    %p149 = pneg %p148
    // Predicated region
    $region9: #{forward.11} parent=5 // pred_check
      _
    $region10: #{forward.11} parent=5 // pred_check_branch
      %151 = sbr.rel (%p148) target = $region12
    $region11: #{forward.11} parent=5 // pred_region
      %s152 = ssub.s32 %s9, 1
      // Predicated region
      $region13: #{forward.11} parent=11 // pred_check
        %p153 = pneg %p84
      $region14: #{forward.11} parent=11 // pred_check_branch
        %155 = sbr.rel (%p153) target = $region16
      $region15: #{forward.11} parent=11 // pred_region
        %s156 = smul.u32 16, %s21
        %p157 = scmp.lt.s32.totalorder %s156, 15
        %s158 = scalar_select %p157, %s156, 15
        %p159 = scmp.lt.s32.totalorder %s20, 0
        %s160 = scalar_select %p159, %s20, 0
        %s161 = sadd.s32 %s160, %s158
        %s162 = smul.addr %s161, 4
        %s163 = scalar_lea.vmem %s1, %s162
        %s164 = smul.u32 16, %s21
      $region16: #{forward.11} parent=11 // pred_fallthru
        _
      // Predicated region
      $region17: #{forward.11} parent=11 // pred_check
        %p165 = pneg %p110
      $region18: #{forward.11} parent=11 // pred_check_branch
        %167 = sbr.rel (%p165) target = $region20
      $region19: #{forward.11} parent=11 // pred_region
        %p168 = scmp.lt.s32.totalorder %s20, 0
        %s169 = scalar_select %p168, %s20, 0
        %s170 = scalar_lea.vmem %s2, %s169
      $region20: #{forward.11} parent=11 // pred_fallthru
        _
    $region12: #{forward.11} parent=5 // pred_fallthru
      _
    %p171 = scmp.lt.s32.totalorder %s9, 11
    // Predicated region
    $region21: #{forward.11} parent=5 // pred_check
      %p172 = pneg %p171
    $region22: #{forward.11} parent=5 // pred_check_branch
      %174 = sbr.rel (%p172) target = $region24
    $region23: #{forward.11} parent=5 // pred_region
      // Predicated region
      $region25: #{forward.11} parent=23 // pred_check
        %p175 = pneg %p50
      $region26: #{forward.11} parent=23 // pred_check_branch
        %177 = sbr.rel (%p175) target = $region28
      $region27: #{forward.11} parent=23 // pred_region
        %s178 = smul.u32 32, %s16
        %p179 = scmp.lt.s32.totalorder %s178, 351
        %s180 = scalar_select %p179, %s178, 351
        %p181 = scmp.lt.s32.totalorder %s18, 0
        %s182 = scalar_select %p181, %s18, 0
        %s183 = sadd.s32 %s182, %s180
        %s184 = smul.addr %s183, 4
        %s185 = scalar_lea.vmem %s0, %s184
        %s186 = smul.u32 32, %s16
      $region28: #{forward.11} parent=23 // pred_fallthru
        _
    $region24: #{forward.11} parent=5 // pred_fallthru
      _
    %p187 = scmp.le.s32.totalorder 1, %s9
    %p188 = scmp.lt.s32.totalorder %s9, 12
    %p189 = pnand %p187, %p188
    %p190 = pneg %p189
    // Predicated region
    $region29: #{forward.11} parent=5 // pred_check
      _
    $region30: #{forward.11} parent=5 // pred_check_branch
      %192 = sbr.rel (%p189) target = $region32
    $region31: #{forward.11} parent=5 // pred_region
      %s193 = ssub.s32 %s9, 1
      %s194 = smul.u32 32, %s19
      %p195 = scmp.lt.s32.totalorder %s194, 351
      %s196 = scalar_select %p195, %s194, 351
      %p197 = scmp.lt.s32.totalorder %s21, 0
      %s198 = scalar_select %p197, %s21, 0
      %s199 = sadd.s32 %s198, %s196
      %s200 = smul.addr %s199, 4
      %s201 = scalar_lea.vmem %s0, %s200
      %p202 = pneg %p56
      %p203 = pneg %p53
      %s204 = smul.u32 16, %s21
      %p205 = scmp.lt.s32.totalorder %s204, 15
      %s206 = scalar_select %p205, %s204, 15
      %p207 = scmp.lt.s32.totalorder %s20, 0
      %s208 = scalar_select %p207, %s20, 0
      %s209 = sadd.s32 %s208, %s206
      %s210 = smul.addr %s209, 4
      %s211 = scalar_lea.vmem %s1, %s210
      %p212 = pneg %p84
      %p213 = pneg %p81
      %p214 = scmp.lt.s32.totalorder %s20, 0
      %s215 = scalar_select %p214, %s20, 0
      %s216 = scalar_lea.vmem %s2, %s215
      %p217 = pneg %p110
      %p218 = pneg %p107
      %p219 = pneg %p138
      %p220 = pneg %p135
      %s221 = smul.u32 32, %s19
      %p222 = scmp.lt.s32.totalorder %s221, 351
      %s223 = scalar_select %p222, %s221, 351
      %p224 = scmp.lt.s32.totalorder %s20, 0
      %s225 = scalar_select %p224, %s20, 0
      %s226 = sadd.s32 %s225, %s223
      %s227 = smul.addr %s226, 4
      %s228 = scalar_lea.vmem %s3, %s227
      %s229 = smul.u32 32, %s19
      %p230 = scmp.lt.s32.totalorder %s229, 351
      %s231 = scalar_select %p230, %s229, 351
      %p232 = scmp.lt.s32.totalorder %s21, 0
      %s233 = scalar_select %p232, %s21, 0
      %s234 = sadd.s32 %s233, %s231
      %s235 = smul.addr %s234, 4
      %s236 = scalar_lea.vmem %s0, %s235
      %s237 = smul.u32 32, %s19
      %s238 = smul.u32 16, %s21
      %p239 = scmp.lt.s32.totalorder %s238, 15
      %s240 = scalar_select %p239, %s238, 15
      %p241 = scmp.lt.s32.totalorder %s20, 0
      %s242 = scalar_select %p241, %s20, 0
      %s243 = sadd.s32 %s242, %s240
      %s244 = smul.addr %s243, 4
      %s245 = scalar_lea.vmem %s1, %s244
      %s246 = smul.u32 16, %s21
      %p247 = scmp.lt.s32.totalorder %s20, 0
      %s248 = scalar_select %p247, %s20, 0
      %s249 = scalar_lea.vmem %s2, %s248
      %s250 = smul.u32 32, %s19
      %p251 = scmp.lt.s32.totalorder %s250, 351
      %s252 = scalar_select %p251, %s250, 351
      %p253 = scmp.lt.s32.totalorder %s20, 0
      %s254 = scalar_select %p253, %s20, 0
      %s255 = sadd.s32 %s254, %s252
      %s256 = smul.addr %s255, 4
      %s257 = scalar_lea.vmem %s3, %s256
      %s258 = smul.u32 32, %s19
      %p260 = scmp.eq.s32.totalorder %s21, 0
      // Predicated region
      $region33: #{forward.11} parent=31 // pred_check
        %p261 = pneg %p260
      $region34: #{forward.11} parent=31 // pred_check_branch
        %263 = sbr.rel (%p261) target = $region36
      $region35: #{forward.11} parent=31 // pred_region
        %264 = vst [vmem:[#allocation2] sm:$0xff] 0.0
        %265 = vst [vmem:[#allocation2 + $0x8] sm:$0xff] 0.0
        %266 = vst [vmem:[#allocation2 + $0x10] sm:$0xff] 0.0
        %267 = vst [vmem:[#allocation2 + $0x18] sm:$0xff] 0.0
        %268 = vst [vmem:[#allocation2 + $0x20] sm:$0xff] 0.0
        %269 = vst [vmem:[#allocation2 + $0x28] sm:$0xff] 0.0
        %270 = vst [vmem:[#allocation2 + $0x30] sm:$0xff] 0.0
        %271 = vst [vmem:[#allocation2 + $0x38] sm:$0xff] 0.0
        %272 = vst [vmem:[#allocation2 + $0x40] sm:$0xff] 0.0
        %273 = vst [vmem:[#allocation2 + $0x48] sm:$0xff] 0.0
        %274 = vst [vmem:[#allocation2 + $0x50] sm:$0xff] 0.0
        %275 = vst [vmem:[#allocation2 + $0x58] sm:$0xff] 0.0
        %276 = vst [vmem:[#allocation2 + $0x60] sm:$0xff] 0.0
        %277 = vst [vmem:[#allocation2 + $0x68] sm:$0xff] 0.0
        %278 = vst [vmem:[#allocation2 + $0x70] sm:$0xff] 0.0
        %279 = vst [vmem:[#allocation2 + $0x78] sm:$0xff] 0.0
        %280 = vst [vmem:[#allocation2 + $0x80] sm:$0xff] 0.0
        %281 = vst [vmem:[#allocation2 + $0x88] sm:$0xff] 0.0
        %282 = vst [vmem:[#allocation2 + $0x90] sm:$0xff] 0.0
        %283 = vst [vmem:[#allocation2 + $0x98] sm:$0xff] 0.0
        %284 = vst [vmem:[#allocation2 + $0xa0] sm:$0xff] 0.0
        %285 = vst [vmem:[#allocation2 + $0xa8] sm:$0xff] 0.0
        %286 = vst [vmem:[#allocation2 + $0xb0] sm:$0xff] 0.0
        %287 = vst [vmem:[#allocation2 + $0xb8] sm:$0xff] 0.0
        %288 = vst [vmem:[#allocation2 + $0xc0] sm:$0xff] 0.0
        %289 = vst [vmem:[#allocation2 + $0xc8] sm:$0xff] 0.0
        %290 = vst [vmem:[#allocation2 + $0xd0] sm:$0xff] 0.0
        %291 = vst [vmem:[#allocation2 + $0xd8] sm:$0xff] 0.0
        %292 = vst [vmem:[#allocation2 + $0xe0] sm:$0xff] 0.0
        %293 = vst [vmem:[#allocation2 + $0xe8] sm:$0xff] 0.0
        %294 = vst [vmem:[#allocation2 + $0xf0] sm:$0xff] 0.0
        %295 = vst [vmem:[#allocation2 + $0xf8] sm:$0xff] 0.0
      $region36: #{forward.11} parent=31 // pred_fallthru
        _
      %v296 = vld [vmem:[#allocation2] sm:$0xff]
      %v297 = vld [vmem:[#allocation2 + $0x8] sm:$0xff]
      %v298 = vld [vmem:[#allocation2 + $0x10] sm:$0xff]
      %v299 = vld [vmem:[#allocation2 + $0x18] sm:$0xff]
      %v300 = vld [vmem:[#allocation2 + $0x20] sm:$0xff]
      %v301 = vld [vmem:[#allocation2 + $0x28] sm:$0xff]
      %v302 = vld [vmem:[#allocation2 + $0x30] sm:$0xff]
      %v303 = vld [vmem:[#allocation2 + $0x38] sm:$0xff]
      %v304 = vld [vmem:[#allocation2 + $0x40] sm:$0xff]
      %v305 = vld [vmem:[#allocation2 + $0x48] sm:$0xff]
      %v306 = vld [vmem:[#allocation2 + $0x50] sm:$0xff]
      %v307 = vld [vmem:[#allocation2 + $0x58] sm:$0xff]
      %v308 = vld [vmem:[#allocation2 + $0x60] sm:$0xff]
      %v309 = vld [vmem:[#allocation2 + $0x68] sm:$0xff]
      %v310 = vld [vmem:[#allocation2 + $0x70] sm:$0xff]
      %v311 = vld [vmem:[#allocation2 + $0x78] sm:$0xff]
      %v312 = vld [vmem:[#allocation2 + $0x80] sm:$0xff]
      %v313 = vld [vmem:[#allocation2 + $0x88] sm:$0xff]
      %v314 = vld [vmem:[#allocation2 + $0x90] sm:$0xff]
      %v315 = vld [vmem:[#allocation2 + $0x98] sm:$0xff]
      %v316 = vld [vmem:[#allocation2 + $0xa0] sm:$0xff]
      %v317 = vld [vmem:[#allocation2 + $0xa8] sm:$0xff]
      %v318 = vld [vmem:[#allocation2 + $0xb0] sm:$0xff]
      %v319 = vld [vmem:[#allocation2 + $0xb8] sm:$0xff]
      %v320 = vld [vmem:[#allocation2 + $0xc0] sm:$0xff]
      %v321 = vld [vmem:[#allocation2 + $0xc8] sm:$0xff]
      %v322 = vld [vmem:[#allocation2 + $0xd0] sm:$0xff]
      %v323 = vld [vmem:[#allocation2 + $0xd8] sm:$0xff]
      %v324 = vld [vmem:[#allocation2 + $0xe0] sm:$0xff]
      %v325 = vld [vmem:[#allocation2 + $0xe8] sm:$0xff]
      %v326 = vld [vmem:[#allocation2 + $0xf0] sm:$0xff]
      %v327 = vld [vmem:[#allocation2 + $0xf8] sm:$0xff]
      %v328 = vld [vmem:[%s236] sm:$0xf]
      %v329 = vld [vmem:[%s236 + $0x4] sm:$0xf]
      %v330 = vld [vmem:[%s236 + $0x8] sm:$0xf]
      %v331 = vld [vmem:[%s236 + $0xc] sm:$0xf]
      %v332 = vld [vmem:[%s236 + $0x10] sm:$0xf]
      %v333 = vld [vmem:[%s236 + $0x14] sm:$0xf]
      %v334 = vld [vmem:[%s236 + $0x18] sm:$0xf]
      %v335 = vld [vmem:[%s236 + $0x1c] sm:$0xf]
      %v336 = vld [vmem:[%s236 + $0x20] sm:$0xf]
      %v337 = vld [vmem:[%s236 + $0x24] sm:$0xf]
      %v338 = vld [vmem:[%s236 + $0x28] sm:$0xf]
      %v339 = vld [vmem:[%s236 + $0x2c] sm:$0xf]
      %v340 = vld [vmem:[%s236 + $0x30] sm:$0xf]
      %v341 = vld [vmem:[%s236 + $0x34] sm:$0xf]
      %v342 = vld [vmem:[%s236 + $0x38] sm:$0xf]
      %v343 = vld [vmem:[%s236 + $0x3c] sm:$0xf]
      %v344 = vld [vmem:[%s236 + $0x40] sm:$0xf]
      %v345 = vld [vmem:[%s236 + $0x44] sm:$0xf]
      %v346 = vld [vmem:[%s236 + $0x48] sm:$0xf]
      %v347 = vld [vmem:[%s236 + $0x4c] sm:$0xf]
      %v348 = vld [vmem:[%s236 + $0x50] sm:$0xf]
      %v349 = vld [vmem:[%s236 + $0x54] sm:$0xf]
      %v350 = vld [vmem:[%s236 + $0x58] sm:$0xf]
      %v351 = vld [vmem:[%s236 + $0x5c] sm:$0xf]
      %v352 = vld [vmem:[%s236 + $0x60] sm:$0xf]
      %v353 = vld [vmem:[%s236 + $0x64] sm:$0xf]
      %v354 = vld [vmem:[%s236 + $0x68] sm:$0xf]
      %v355 = vld [vmem:[%s236 + $0x6c] sm:$0xf]
      %v356 = vld [vmem:[%s236 + $0x70] sm:$0xf]
      %v357 = vld [vmem:[%s236 + $0x74] sm:$0xf]
      %v358 = vld [vmem:[%s236 + $0x78] sm:$0xf]
      %v359 = vld [vmem:[%s236 + $0x7c] sm:$0xf]
      %v360 = vld [vmem:[%s245] sm:$0xf]
      %v361 = vld [vmem:[%s245 + $0x4] sm:$0xf]
      %v362 = vld [vmem:[%s245 + $0x8] sm:$0xf]
      %v363 = vld [vmem:[%s245 + $0xc] sm:$0xf]
      %v364 = vld [vmem:[%s245 + $0x10] sm:$0xf]
      %v365 = vld [vmem:[%s245 + $0x14] sm:$0xf]
      %v366 = vld [vmem:[%s245 + $0x18] sm:$0xf]
      %v367 = vld [vmem:[%s245 + $0x1c] sm:$0xf]
      %v368 = vld [vmem:[%s245 + $0x20] sm:$0xf]
      %v369 = vld [vmem:[%s245 + $0x24] sm:$0xf]
      %v370 = vld [vmem:[%s245 + $0x28] sm:$0xf]
      %v371 = vld [vmem:[%s245 + $0x2c] sm:$0xf]
      %v372 = vld [vmem:[%s245 + $0x30] sm:$0xf]
      %v373 = vld [vmem:[%s245 + $0x34] sm:$0xf]
      %v374 = vld [vmem:[%s245 + $0x38] sm:$0xf]
      %v375 = vld [vmem:[%s245 + $0x3c] sm:$0xf]
      %v408 = vunpack.c.l.b16 %v328
      %v409 = vunpack.c.l.b16 %v329
      %v410 = vunpack.c.l.b16 %v330
      %v411 = vunpack.c.l.b16 %v331
      %v412 = vunpack.c.l.b16 %v332
      %v413 = vunpack.c.l.b16 %v333
      %v414 = vunpack.c.l.b16 %v334
      %v415 = vunpack.c.l.b16 %v335
      %v416 = vunpack.c.l.b16 %v336
      %v417 = vunpack.c.l.b16 %v337
      %v418 = vunpack.c.l.b16 %v338
      %v419 = vunpack.c.l.b16 %v339
      %v420 = vunpack.c.l.b16 %v340
      %v421 = vunpack.c.l.b16 %v341
      %v422 = vunpack.c.l.b16 %v342
      %v423 = vunpack.c.l.b16 %v343
      %v424 = vunpack.c.l.b16 %v344
      %v425 = vunpack.c.l.b16 %v345
      %v426 = vunpack.c.l.b16 %v346
      %v427 = vunpack.c.l.b16 %v347
      %v428 = vunpack.c.l.b16 %v348
      %v429 = vunpack.c.l.b16 %v349
      %v430 = vunpack.c.l.b16 %v350
      %v431 = vunpack.c.l.b16 %v351
      %v432 = vunpack.c.l.b16 %v352
      %v433 = vunpack.c.l.b16 %v353
      %v434 = vunpack.c.l.b16 %v354
      %v435 = vunpack.c.l.b16 %v355
      %v436 = vunpack.c.l.b16 %v356
      %v437 = vunpack.c.l.b16 %v357
      %v438 = vunpack.c.l.b16 %v358
      %v439 = vunpack.c.l.b16 %v359
      %v440 = vpack.c.b16 %v409, %v408
      %v441 = vpack.c.b16 %v411, %v410
      %v442 = vpack.c.b16 %v413, %v412
      %v443 = vpack.c.b16 %v415, %v414
      %v444 = vpack.c.b16 %v417, %v416
      %v445 = vpack.c.b16 %v419, %v418
      %v446 = vpack.c.b16 %v421, %v420
      %v447 = vpack.c.b16 %v423, %v422
      %v448 = vpack.c.b16 %v425, %v424
      %v449 = vpack.c.b16 %v427, %v426
      %v450 = vpack.c.b16 %v429, %v428
      %v451 = vpack.c.b16 %v431, %v430
      %v452 = vpack.c.b16 %v433, %v432
      %v453 = vpack.c.b16 %v435, %v434
      %v454 = vpack.c.b16 %v437, %v436
      %v455 = vpack.c.b16 %v439, %v438
      %v488 = vunpack.c.l.b16 %v360
      %v489 = vunpack.c.l.b16 %v361
      %v490 = vunpack.c.l.b16 %v362
      %v491 = vunpack.c.l.b16 %v363
      %v492 = vunpack.c.l.b16 %v364
      %v493 = vunpack.c.l.b16 %v365
      %v494 = vunpack.c.l.b16 %v366
      %v495 = vunpack.c.l.b16 %v367
      %v496 = vunpack.c.l.b16 %v368
      %v497 = vunpack.c.l.b16 %v369
      %v498 = vunpack.c.l.b16 %v370
      %v499 = vunpack.c.l.b16 %v371
      %v500 = vunpack.c.l.b16 %v372
      %v501 = vunpack.c.l.b16 %v373
      %v502 = vunpack.c.l.b16 %v374
      %v503 = vunpack.c.l.b16 %v375
      %v504 = vpack.c.b16 %v489, %v488
      %v505 = vpack.c.b16 %v491, %v490
      %v506 = vpack.c.b16 %v493, %v492
      %v507 = vpack.c.b16 %v495, %v494
      %v508 = vpack.c.b16 %v497, %v496
      %v509 = vpack.c.b16 %v499, %v498
      %v510 = vpack.c.b16 %v501, %v500
      %v511 = vpack.c.b16 %v503, %v502
      %520 = vmatprep.subr.bf16.mxu0 0
      %521 = vmatpush1.bf16.msra.mxu0 %v511
      %522 = vmatprep.subr.bf16.mxu0 0
      %523 = vmatpush1.bf16.msra.mxu0 %v510
      %524 = vmatprep.subr.bf16.mxu0 0
      %525 = vmatpush1.bf16.msra.mxu0 %v509
      %526 = vmatprep.subr.bf16.mxu0 0
      %527 = vmatpush1.bf16.msra.mxu0 %v508
      %528 = vmatprep.subr.bf16.mxu0 0
      %529 = vmatpush1.bf16.msra.mxu0 %v507
      %530 = vmatprep.subr.bf16.mxu0 0
      %531 = vmatpush1.bf16.msra.mxu0 %v506
      %532 = vmatprep.subr.bf16.mxu0 0
      %533 = vmatpush1.bf16.msra.mxu0 %v505
      %534 = vmatprep.subr.bf16.mxu0 0
      %535 = vmatpush1.bf16.msra.mxu0 %v504
      %536 = vmatprep.subr.bf16.mxu0 0
      %537 = vmatpush2.bf16.msra.mxu0 0
      %538 = vmatprep.subr.bf16.mxu0 0
      %539 = vmatpush2.bf16.msra.mxu0 0
      %540 = vmatprep.subr.bf16.mxu0 0
      %541 = vmatpush2.bf16.msra.mxu0 0
      %542 = vmatprep.subr.bf16.mxu0 0
      %543 = vmatpush2.bf16.msra.mxu0 0
      %544 = vmatprep.subr.bf16.mxu0 0
      %545 = vmatpush2.bf16.msra.mxu0 0
      %546 = vmatprep.subr.bf16.mxu0 0
      %547 = vmatpush2.bf16.msra.mxu0 0
      %548 = vmatprep.subr.bf16.mxu0 0
      %549 = vmatpush2.bf16.msra.mxu0 0
      %550 = vmatprep.subr.bf16.mxu0 0
      %551 = vmatpush2.bf16.msra.mxu0 0
      %552 = vmatprep.mubr.bf16.mxu0 0
      %553 = vmatmul.mubr.bf16.gmra.mxu0 %v440
      %v554 = vpop.f32.mrf.mxu0
      %v555 = vadd.f32 0.0, %v554
      %v556 = vpop.f32.mrf.mxu0
      %v557 = vpop.f32.mrf.mxu0
      %v558 = vadd.f32 0.0, %v557
      %v559 = vpop.f32.mrf.mxu0
      %560 = vmatprep.mubr.bf16.mxu0 0
      %561 = vmatmul.mubr.bf16.gmra.mxu0 %v441
      %v562 = vpop.f32.mrf.mxu0
      %v563 = vadd.f32 0.0, %v562
      %v564 = vpop.f32.mrf.mxu0
      %v565 = vpop.f32.mrf.mxu0
      %v566 = vadd.f32 0.0, %v565
      %v567 = vpop.f32.mrf.mxu0
      %568 = vmatprep.mubr.bf16.mxu0 0
      %569 = vmatmul.mubr.bf16.gmra.mxu0 %v442
      %v570 = vpop.f32.mrf.mxu0
      %v571 = vadd.f32 0.0, %v570
      %v572 = vpop.f32.mrf.mxu0
      %v573 = vpop.f32.mrf.mxu0
      %v574 = vadd.f32 0.0, %v573
      %v575 = vpop.f32.mrf.mxu0
      %576 = vmatprep.mubr.bf16.mxu0 0
      %577 = vmatmul.mubr.bf16.gmra.mxu0 %v443
      %v578 = vpop.f32.mrf.mxu0
      %v579 = vadd.f32 0.0, %v578
      %v580 = vpop.f32.mrf.mxu0
      %v581 = vpop.f32.mrf.mxu0
      %v582 = vadd.f32 0.0, %v581
      %v583 = vpop.f32.mrf.mxu0
      %584 = vmatprep.mubr.bf16.mxu0 0
      %585 = vmatmul.mubr.bf16.gmra.mxu0 %v444
      %v586 = vpop.f32.mrf.mxu0
      %v587 = vadd.f32 0.0, %v586
      %v588 = vpop.f32.mrf.mxu0
      %v589 = vpop.f32.mrf.mxu0
      %v590 = vadd.f32 0.0, %v589
      %v591 = vpop.f32.mrf.mxu0
      %592 = vmatprep.mubr.bf16.mxu0 0
      %593 = vmatmul.mubr.bf16.gmra.mxu0 %v445
      %v594 = vpop.f32.mrf.mxu0
      %v595 = vadd.f32 0.0, %v594
      %v596 = vpop.f32.mrf.mxu0
      %v597 = vpop.f32.mrf.mxu0
      %v598 = vadd.f32 0.0, %v597
      %v599 = vpop.f32.mrf.mxu0
      %600 = vmatprep.mubr.bf16.mxu0 0
      %601 = vmatmul.mubr.bf16.gmra.mxu0 %v446
      %v602 = vpop.f32.mrf.mxu0
      %v603 = vadd.f32 0.0, %v602
      %v604 = vpop.f32.mrf.mxu0
      %v605 = vpop.f32.mrf.mxu0
      %v606 = vadd.f32 0.0, %v605
      %v607 = vpop.f32.mrf.mxu0
      %608 = vmatprep.mubr.bf16.mxu0 0
      %609 = vmatmul.mubr.bf16.gmra.mxu0 %v447
      %v610 = vpop.f32.mrf.mxu0
      %v611 = vadd.f32 0.0, %v610
      %v612 = vpop.f32.mrf.mxu0
      %v613 = vpop.f32.mrf.mxu0
      %v614 = vadd.f32 0.0, %v613
      %v615 = vpop.f32.mrf.mxu0
      %616 = vmatprep.mubr.bf16.mxu0 0
      %617 = vmatmul.mubr.bf16.gmra.mxu0 %v448
      %v618 = vpop.f32.mrf.mxu0
      %v619 = vadd.f32 0.0, %v618
      %v620 = vpop.f32.mrf.mxu0
      %v621 = vpop.f32.mrf.mxu0
      %v622 = vadd.f32 0.0, %v621
      %v623 = vpop.f32.mrf.mxu0
      %624 = vmatprep.mubr.bf16.mxu0 0
      %625 = vmatmul.mubr.bf16.gmra.mxu0 %v449
      %v626 = vpop.f32.mrf.mxu0
      %v627 = vadd.f32 0.0, %v626
      %v628 = vpop.f32.mrf.mxu0
      %v629 = vpop.f32.mrf.mxu0
      %v630 = vadd.f32 0.0, %v629
      %v631 = vpop.f32.mrf.mxu0
      %632 = vmatprep.mubr.bf16.mxu0 0
      %633 = vmatmul.mubr.bf16.gmra.mxu0 %v450
      %v634 = vpop.f32.mrf.mxu0
      %v635 = vadd.f32 0.0, %v634
      %v636 = vpop.f32.mrf.mxu0
      %v637 = vpop.f32.mrf.mxu0
      %v638 = vadd.f32 0.0, %v637
      %v639 = vpop.f32.mrf.mxu0
      %640 = vmatprep.mubr.bf16.mxu0 0
      %641 = vmatmul.mubr.bf16.gmra.mxu0 %v451
      %v642 = vpop.f32.mrf.mxu0
      %v643 = vadd.f32 0.0, %v642
      %v644 = vpop.f32.mrf.mxu0
      %v645 = vpop.f32.mrf.mxu0
      %v646 = vadd.f32 0.0, %v645
      %v647 = vpop.f32.mrf.mxu0
      %648 = vmatprep.mubr.bf16.mxu0 0
      %649 = vmatmul.mubr.bf16.gmra.mxu0 %v452
      %v650 = vpop.f32.mrf.mxu0
      %v651 = vadd.f32 0.0, %v650
      %v652 = vpop.f32.mrf.mxu0
      %v653 = vpop.f32.mrf.mxu0
      %v654 = vadd.f32 0.0, %v653
      %v655 = vpop.f32.mrf.mxu0
      %656 = vmatprep.mubr.bf16.mxu0 0
      %657 = vmatmul.mubr.bf16.gmra.mxu0 %v453
      %v658 = vpop.f32.mrf.mxu0
      %v659 = vadd.f32 0.0, %v658
      %v660 = vpop.f32.mrf.mxu0
      %v661 = vpop.f32.mrf.mxu0
      %v662 = vadd.f32 0.0, %v661
      %v663 = vpop.f32.mrf.mxu0
      %664 = vmatprep.mubr.bf16.mxu0 0
      %665 = vmatmul.mubr.bf16.gmra.mxu0 %v454
      %v666 = vpop.f32.mrf.mxu0
      %v667 = vadd.f32 0.0, %v666
      %v668 = vpop.f32.mrf.mxu0
      %v669 = vpop.f32.mrf.mxu0
      %v670 = vadd.f32 0.0, %v669
      %v671 = vpop.f32.mrf.mxu0
      %672 = vmatprep.mubr.bf16.mxu0 0
      %673 = vmatmul.mubr.bf16.gmra.mxu0 %v455
      %v674 = vpop.f32.mrf.mxu0
      %v675 = vadd.f32 0.0, %v674
      %v676 = vpop.f32.mrf.mxu0
      %v677 = vpop.f32.mrf.mxu0
      %v678 = vadd.f32 0.0, %v677
      %v679 = vpop.f32.mrf.mxu0
      %680 = vdwg.mxu0
      %v681 = vadd.f32 %v296, %v555
      %v682 = vadd.f32 %v297, %v558
      %v683 = vadd.f32 %v298, %v563
      %v684 = vadd.f32 %v299, %v566
      %v685 = vadd.f32 %v300, %v571
      %v686 = vadd.f32 %v301, %v574
      %v687 = vadd.f32 %v302, %v579
      %v688 = vadd.f32 %v303, %v582
      %v689 = vadd.f32 %v304, %v587
      %v690 = vadd.f32 %v305, %v590
      %v691 = vadd.f32 %v306, %v595
      %v692 = vadd.f32 %v307, %v598
      %v693 = vadd.f32 %v308, %v603
      %v694 = vadd.f32 %v309, %v606
      %v695 = vadd.f32 %v310, %v611
      %v696 = vadd.f32 %v311, %v614
      %v697 = vadd.f32 %v312, %v619
      %v698 = vadd.f32 %v313, %v622
      %v699 = vadd.f32 %v314, %v627
      %v700 = vadd.f32 %v315, %v630
      %v701 = vadd.f32 %v316, %v635
      %v702 = vadd.f32 %v317, %v638
      %v703 = vadd.f32 %v318, %v643
      %v704 = vadd.f32 %v319, %v646
      %v705 = vadd.f32 %v320, %v651
      %v706 = vadd.f32 %v321, %v654
      %v707 = vadd.f32 %v322, %v659
      %v708 = vadd.f32 %v323, %v662
      %v709 = vadd.f32 %v324, %v667
      %v710 = vadd.f32 %v325, %v670
      %v711 = vadd.f32 %v326, %v675
      %v712 = vadd.f32 %v327, %v678
      %713 = vst [vmem:[#allocation2] sm:$0xff] %v681
      %714 = vst [vmem:[#allocation2 + $0x8] sm:$0xff] %v682
      %715 = vst [vmem:[#allocation2 + $0x10] sm:$0xff] %v683
      %716 = vst [vmem:[#allocation2 + $0x18] sm:$0xff] %v684
      %717 = vst [vmem:[#allocation2 + $0x20] sm:$0xff] %v685
      %718 = vst [vmem:[#allocation2 + $0x28] sm:$0xff] %v686
      %719 = vst [vmem:[#allocation2 + $0x30] sm:$0xff] %v687
      %720 = vst [vmem:[#allocation2 + $0x38] sm:$0xff] %v688
      %721 = vst [vmem:[#allocation2 + $0x40] sm:$0xff] %v689
      %722 = vst [vmem:[#allocation2 + $0x48] sm:$0xff] %v690
      %723 = vst [vmem:[#allocation2 + $0x50] sm:$0xff] %v691
      %724 = vst [vmem:[#allocation2 + $0x58] sm:$0xff] %v692
      %725 = vst [vmem:[#allocation2 + $0x60] sm:$0xff] %v693
      %726 = vst [vmem:[#allocation2 + $0x68] sm:$0xff] %v694
      %727 = vst [vmem:[#allocation2 + $0x70] sm:$0xff] %v695
      %728 = vst [vmem:[#allocation2 + $0x78] sm:$0xff] %v696
      %729 = vst [vmem:[#allocation2 + $0x80] sm:$0xff] %v697
      %730 = vst [vmem:[#allocation2 + $0x88] sm:$0xff] %v698
      %731 = vst [vmem:[#allocation2 + $0x90] sm:$0xff] %v699
      %732 = vst [vmem:[#allocation2 + $0x98] sm:$0xff] %v700
      %733 = vst [vmem:[#allocation2 + $0xa0] sm:$0xff] %v701
      %734 = vst [vmem:[#allocation2 + $0xa8] sm:$0xff] %v702
      %735 = vst [vmem:[#allocation2 + $0xb0] sm:$0xff] %v703
      %736 = vst [vmem:[#allocation2 + $0xb8] sm:$0xff] %v704
      %737 = vst [vmem:[#allocation2 + $0xc0] sm:$0xff] %v705
      %738 = vst [vmem:[#allocation2 + $0xc8] sm:$0xff] %v706
      %739 = vst [vmem:[#allocation2 + $0xd0] sm:$0xff] %v707
      %740 = vst [vmem:[#allocation2 + $0xd8] sm:$0xff] %v708
      %741 = vst [vmem:[#allocation2 + $0xe0] sm:$0xff] %v709
      %742 = vst [vmem:[#allocation2 + $0xe8] sm:$0xff] %v710
      %743 = vst [vmem:[#allocation2 + $0xf0] sm:$0xff] %v711
      %744 = vst [vmem:[#allocation2 + $0xf8] sm:$0xff] %v712
      // Predicated region
      $region37: #{forward.11} parent=31 // pred_check
        %p745 = pneg %p260
      $region38: #{forward.11} parent=31 // pred_check_branch
        %747 = sbr.rel (%p745) target = $region40
      $region39: #{forward.11} parent=31 // pred_region
        %v748 = vld [vmem:[#allocation2] sm:$0xff]
        %v749 = vld [vmem:[#allocation2 + $0x8] sm:$0xff]
        %v750 = vld [vmem:[#allocation2 + $0x10] sm:$0xff]
        %v751 = vld [vmem:[#allocation2 + $0x18] sm:$0xff]
        %v752 = vld [vmem:[#allocation2 + $0x20] sm:$0xff]
        %v753 = vld [vmem:[#allocation2 + $0x28] sm:$0xff]
        %v754 = vld [vmem:[#allocation2 + $0x30] sm:$0xff]
        %v755 = vld [vmem:[#allocation2 + $0x38] sm:$0xff]
        %v756 = vld [vmem:[#allocation2 + $0x40] sm:$0xff]
        %v757 = vld [vmem:[#allocation2 + $0x48] sm:$0xff]
        %v758 = vld [vmem:[#allocation2 + $0x50] sm:$0xff]
        %v759 = vld [vmem:[#allocation2 + $0x58] sm:$0xff]
        %v760 = vld [vmem:[#allocation2 + $0x60] sm:$0xff]
        %v761 = vld [vmem:[#allocation2 + $0x68] sm:$0xff]
        %v762 = vld [vmem:[#allocation2 + $0x70] sm:$0xff]
        %v763 = vld [vmem:[#allocation2 + $0x78] sm:$0xff]
        %v764 = vld [vmem:[#allocation2 + $0x80] sm:$0xff]
        %v765 = vld [vmem:[#allocation2 + $0x88] sm:$0xff]
        %v766 = vld [vmem:[#allocation2 + $0x90] sm:$0xff]
        %v767 = vld [vmem:[#allocation2 + $0x98] sm:$0xff]
        %v768 = vld [vmem:[#allocation2 + $0xa0] sm:$0xff]
        %v769 = vld [vmem:[#allocation2 + $0xa8] sm:$0xff]
        %v770 = vld [vmem:[#allocation2 + $0xb0] sm:$0xff]
        %v771 = vld [vmem:[#allocation2 + $0xb8] sm:$0xff]
        %v772 = vld [vmem:[#allocation2 + $0xc0] sm:$0xff]
        %v773 = vld [vmem:[#allocation2 + $0xc8] sm:$0xff]
        %v774 = vld [vmem:[#allocation2 + $0xd0] sm:$0xff]
        %v775 = vld [vmem:[#allocation2 + $0xd8] sm:$0xff]
        %v776 = vld [vmem:[#allocation2 + $0xe0] sm:$0xff]
        %v777 = vld [vmem:[#allocation2 + $0xe8] sm:$0xff]
        %v778 = vld [vmem:[#allocation2 + $0xf0] sm:$0xff]
        %v779 = vld [vmem:[#allocation2 + $0xf8] sm:$0xff]
        %v780 = vld [vmem:[%s249] sm:$0x1]
        %v782 = vlaneseq
        %v783 = vshrl.u32 %v782, 7
        %v784 = vsub.s32 0, %v783
        %v785 = vrot.slane %v780, %v784
        %v787 = vadd.f32 %v748, %v785
        %v788 = vadd.f32 %v749, %v785
        %v789 = vadd.f32 %v750, %v785
        %v790 = vadd.f32 %v751, %v785
        %v791 = vadd.f32 %v752, %v785
        %v792 = vadd.f32 %v753, %v785
        %v793 = vadd.f32 %v754, %v785
        %v794 = vadd.f32 %v755, %v785
        %v795 = vadd.f32 %v756, %v785
        %v796 = vadd.f32 %v757, %v785
        %v797 = vadd.f32 %v758, %v785
        %v798 = vadd.f32 %v759, %v785
        %v799 = vadd.f32 %v760, %v785
        %v800 = vadd.f32 %v761, %v785
        %v801 = vadd.f32 %v762, %v785
        %v802 = vadd.f32 %v763, %v785
        %v803 = vadd.f32 %v764, %v785
        %v804 = vadd.f32 %v765, %v785
        %v805 = vadd.f32 %v766, %v785
        %v806 = vadd.f32 %v767, %v785
        %v807 = vadd.f32 %v768, %v785
        %v808 = vadd.f32 %v769, %v785
        %v809 = vadd.f32 %v770, %v785
        %v810 = vadd.f32 %v771, %v785
        %v811 = vadd.f32 %v772, %v785
        %v812 = vadd.f32 %v773, %v785
        %v813 = vadd.f32 %v774, %v785
        %v814 = vadd.f32 %v775, %v785
        %v815 = vadd.f32 %v776, %v785
        %v816 = vadd.f32 %v777, %v785
        %v817 = vadd.f32 %v778, %v785
        %v818 = vadd.f32 %v779, %v785
        %v819 = vmax.f32 %v787, 0.0
        %v820 = vmax.f32 %v788, 0.0
        %v821 = vmax.f32 %v789, 0.0
        %v822 = vmax.f32 %v790, 0.0
        %v823 = vmax.f32 %v791, 0.0
        %v824 = vmax.f32 %v792, 0.0
        %v825 = vmax.f32 %v793, 0.0
        %v826 = vmax.f32 %v794, 0.0
        %v827 = vmax.f32 %v795, 0.0
        %v828 = vmax.f32 %v796, 0.0
        %v829 = vmax.f32 %v797, 0.0
        %v830 = vmax.f32 %v798, 0.0
        %v831 = vmax.f32 %v799, 0.0
        %v832 = vmax.f32 %v800, 0.0
        %v833 = vmax.f32 %v801, 0.0
        %v834 = vmax.f32 %v802, 0.0
        %v835 = vmax.f32 %v803, 0.0
        %v836 = vmax.f32 %v804, 0.0
        %v837 = vmax.f32 %v805, 0.0
        %v838 = vmax.f32 %v806, 0.0
        %v839 = vmax.f32 %v807, 0.0
        %v840 = vmax.f32 %v808, 0.0
        %v841 = vmax.f32 %v809, 0.0
        %v842 = vmax.f32 %v810, 0.0
        %v843 = vmax.f32 %v811, 0.0
        %v844 = vmax.f32 %v812, 0.0
        %v845 = vmax.f32 %v813, 0.0
        %v846 = vmax.f32 %v814, 0.0
        %v847 = vmax.f32 %v815, 0.0
        %v848 = vmax.f32 %v816, 0.0
        %v849 = vmax.f32 %v817, 0.0
        %v850 = vmax.f32 %v818, 0.0
        %v851 = vpack.c.bf16 %v820, %v819
        %v852 = vpack.c.bf16 %v822, %v821
        %v853 = vpack.c.bf16 %v824, %v823
        %v854 = vpack.c.bf16 %v826, %v825
        %v855 = vpack.c.bf16 %v828, %v827
        %v856 = vpack.c.bf16 %v830, %v829
        %v857 = vpack.c.bf16 %v832, %v831
        %v858 = vpack.c.bf16 %v834, %v833
        %v859 = vpack.c.bf16 %v836, %v835
        %v860 = vpack.c.bf16 %v838, %v837
        %v861 = vpack.c.bf16 %v840, %v839
        %v862 = vpack.c.bf16 %v842, %v841
        %v863 = vpack.c.bf16 %v844, %v843
        %v864 = vpack.c.bf16 %v846, %v845
        %v865 = vpack.c.bf16 %v848, %v847
        %v866 = vpack.c.bf16 %v850, %v849
        %v883 = vunpack.c.l.b16 %v851
        %v884 = vunpack.c.h.b16 %v851
        %v885 = vunpack.c.l.b16 %v852
        %v886 = vunpack.c.h.b16 %v852
        %v887 = vunpack.c.l.b16 %v853
        %v888 = vunpack.c.h.b16 %v853
        %v889 = vunpack.c.l.b16 %v854
        %v890 = vunpack.c.h.b16 %v854
        %v891 = vunpack.c.l.b16 %v855
        %v892 = vunpack.c.h.b16 %v855
        %v893 = vunpack.c.l.b16 %v856
        %v894 = vunpack.c.h.b16 %v856
        %v895 = vunpack.c.l.b16 %v857
        %v896 = vunpack.c.h.b16 %v857
        %v897 = vunpack.c.l.b16 %v858
        %v898 = vunpack.c.h.b16 %v858
        %v899 = vunpack.c.l.b16 %v859
        %v900 = vunpack.c.h.b16 %v859
        %v901 = vunpack.c.l.b16 %v860
        %v902 = vunpack.c.h.b16 %v860
        %v903 = vunpack.c.l.b16 %v861
        %v904 = vunpack.c.h.b16 %v861
        %v905 = vunpack.c.l.b16 %v862
        %v906 = vunpack.c.h.b16 %v862
        %v907 = vunpack.c.l.b16 %v863
        %v908 = vunpack.c.h.b16 %v863
        %v909 = vunpack.c.l.b16 %v864
        %v910 = vunpack.c.h.b16 %v864
        %v911 = vunpack.c.l.b16 %v865
        %v912 = vunpack.c.h.b16 %v865
        %v913 = vunpack.c.l.b16 %v866
        %v914 = vunpack.c.h.b16 %v866
        %v915 = vpack.c.b16 %v883, %v883
        %v916 = vpack.c.b16 %v884, %v884
        %v917 = vpack.c.b16 %v885, %v885
        %v918 = vpack.c.b16 %v886, %v886
        %v919 = vpack.c.b16 %v887, %v887
        %v920 = vpack.c.b16 %v888, %v888
        %v921 = vpack.c.b16 %v889, %v889
        %v922 = vpack.c.b16 %v890, %v890
        %v923 = vpack.c.b16 %v891, %v891
        %v924 = vpack.c.b16 %v892, %v892
        %v925 = vpack.c.b16 %v893, %v893
        %v926 = vpack.c.b16 %v894, %v894
        %v927 = vpack.c.b16 %v895, %v895
        %v928 = vpack.c.b16 %v896, %v896
        %v929 = vpack.c.b16 %v897, %v897
        %v930 = vpack.c.b16 %v898, %v898
        %v931 = vpack.c.b16 %v899, %v899
        %v932 = vpack.c.b16 %v900, %v900
        %v933 = vpack.c.b16 %v901, %v901
        %v934 = vpack.c.b16 %v902, %v902
        %v935 = vpack.c.b16 %v903, %v903
        %v936 = vpack.c.b16 %v904, %v904
        %v937 = vpack.c.b16 %v905, %v905
        %v938 = vpack.c.b16 %v906, %v906
        %v939 = vpack.c.b16 %v907, %v907
        %v940 = vpack.c.b16 %v908, %v908
        %v941 = vpack.c.b16 %v909, %v909
        %v942 = vpack.c.b16 %v910, %v910
        %v943 = vpack.c.b16 %v911, %v911
        %v944 = vpack.c.b16 %v912, %v912
        %v945 = vpack.c.b16 %v913, %v913
        %v946 = vpack.c.b16 %v914, %v914
        %979 = vst [vmem:[%s257] sm:$0xf] %v915
        %980 = vst [vmem:[%s257 + $0x4] sm:$0xf] %v916
        %981 = vst [vmem:[%s257 + $0x8] sm:$0xf] %v917
        %982 = vst [vmem:[%s257 + $0xc] sm:$0xf] %v918
        %983 = vst [vmem:[%s257 + $0x10] sm:$0xf] %v919
        %984 = vst [vmem:[%s257 + $0x14] sm:$0xf] %v920
        %985 = vst [vmem:[%s257 + $0x18] sm:$0xf] %v921
        %986 = vst [vmem:[%s257 + $0x1c] sm:$0xf] %v922
        %987 = vst [vmem:[%s257 + $0x20] sm:$0xf] %v923
        %988 = vst [vmem:[%s257 + $0x24] sm:$0xf] %v924
        %989 = vst [vmem:[%s257 + $0x28] sm:$0xf] %v925
        %990 = vst [vmem:[%s257 + $0x2c] sm:$0xf] %v926
        %991 = vst [vmem:[%s257 + $0x30] sm:$0xf] %v927
        %992 = vst [vmem:[%s257 + $0x34] sm:$0xf] %v928
        %993 = vst [vmem:[%s257 + $0x38] sm:$0xf] %v929
        %994 = vst [vmem:[%s257 + $0x3c] sm:$0xf] %v930
        %995 = vst [vmem:[%s257 + $0x40] sm:$0xf] %v931
        %996 = vst [vmem:[%s257 + $0x44] sm:$0xf] %v932
        %997 = vst [vmem:[%s257 + $0x48] sm:$0xf] %v933
        %998 = vst [vmem:[%s257 + $0x4c] sm:$0xf] %v934
        %999 = vst [vmem:[%s257 + $0x50] sm:$0xf] %v935
        %1000 = vst [vmem:[%s257 + $0x54] sm:$0xf] %v936
        %1001 = vst [vmem:[%s257 + $0x58] sm:$0xf] %v937
        %1002 = vst [vmem:[%s257 + $0x5c] sm:$0xf] %v938
        %1003 = vst [vmem:[%s257 + $0x60] sm:$0xf] %v939
        %1004 = vst [vmem:[%s257 + $0x64] sm:$0xf] %v940
        %1005 = vst [vmem:[%s257 + $0x68] sm:$0xf] %v941
        %1006 = vst [vmem:[%s257 + $0x6c] sm:$0xf] %v942
        %1007 = vst [vmem:[%s257 + $0x70] sm:$0xf] %v943
        %1008 = vst [vmem:[%s257 + $0x74] sm:$0xf] %v944
        %1009 = vst [vmem:[%s257 + $0x78] sm:$0xf] %v945
        %1010 = vst [vmem:[%s257 + $0x7c] sm:$0xf] %v946
      $region40: #{forward.11} parent=31 // pred_fallthru
        _
      %s1011 = smul.u32 32, %s19
      %p1012 = scmp.lt.s32.totalorder %s1011, 351
      %s1013 = scalar_select %p1012, %s1011, 351
      %p1014 = scmp.lt.s32.totalorder %s20, 0
      %s1015 = scalar_select %p1014, %s20, 0
      %s1016 = sadd.s32 %s1015, %s1013
      %s1017 = smul.addr %s1016, 4
      %s1018 = scalar_lea.vmem %s3, %s1017
      // Predicated region
      $region41: #{forward.11} parent=31 // pred_check
        %p1019 = pneg %p135
      $region42: #{forward.11} parent=31 // pred_check_branch
        %1021 = sbr.rel (%p1019) target = $region44
      $region43: #{forward.11} parent=31 // pred_region
        %s1022 = smul.u32 32, %s19
      $region44: #{forward.11} parent=31 // pred_fallthru
        _
    $region32: #{forward.11} parent=5 // pred_fallthru
      _
    %p1023 = scmp.le.s32.totalorder 2, %s9
    // Predicated region
    $region45: #{forward.11} parent=5 // pred_check
      %p1024 = pneg %p1023
    $region46: #{forward.11} parent=5 // pred_check_branch
      %1026 = sbr.rel (%p1024) target = $region48
    $region47: #{forward.11} parent=5 // pred_region
      %s1027 = ssub.s32 %s9, 2
      // Predicated region
      $region49: #{forward.11} parent=47 // pred_check
        %p1028 = pneg %p141
      $region50: #{forward.11} parent=47 // pred_check_branch
        %1030 = sbr.rel (%p1028) target = $region52
      $region51: #{forward.11} parent=47 // pred_region
        %s1031 = smul.u32 32, %s22
        %p1032 = scmp.lt.s32.totalorder %s1031, 351
        %s1033 = scalar_select %p1032, %s1031, 351
        %p1034 = scmp.lt.s32.totalorder %s23, 0
        %s1035 = scalar_select %p1034, %s23, 0
        %s1036 = sadd.s32 %s1035, %s1033
        %s1037 = smul.addr %s1036, 4
        %s1038 = scalar_lea.vmem %s3, %s1037
      $region52: #{forward.11} parent=47 // pred_fallthru
        _
    $region48: #{forward.11} parent=5 // pred_fallthru
      _
  $region6: #{forward.11} parent=0 // loop_footer
    %s13 = sadd.s32 1, %s9
  $region7: #{forward.11} parent=0 // loop_footer_branch
    %8 = sbr.rel target = $region3
  $region8: #{forward.11} parent=0 // loop_exit
    _

// kernel: forward.12
$region0: #{forward.12}
  #allocation0 [shape = 'u32[]', space=smem, size = 0x4, offset = 0x4, fixed_abs, tag = 'smem constant byte address 0x4 - core index']
  #allocation1 [shape = 'u32[144,128]{1,0:T(1,128)}', space=vmem, size = 0x12000, scoped, tag = 'internal scratch']
  #allocation2 [shape = 'f32[256,128]{1,0:T(8,128)}', space=vmem, size = 0x20000, scoped, tag = 'scratch operand']
  %s0 = inlined_call_operand.vmem [shape: bf16[2560,384], index: 0, kind: input, shape index: {}]
  %s1 = inlined_call_operand.vmem [shape: bf16[384,128], index: 1, kind: input, shape index: {}]
  %s2 = inlined_call_operand.vmem [shape: f32[1,128], index: 2, kind: input, shape index: {}]
  %s3 = inlined_call_operand.vmem [shape: bf16[2560,128], index: 3, kind: output, shape index: {}]
  %s4 = sld [smem:[#allocation0]]
  $region53: #{forward.12} parent=0
    _
  %s6 = ssub.s32 1, %s4
  %s7 = scalar_select 0, %s6, %s4
  loop: start=0, step=1, limit=12
  $region2: #{forward.12} parent=0 // loop_pre_header
    _
  $region3: #{forward.12} parent=0 // loop_header
    %s9 = sphi 0, %s13
    %p10 = scmp.ge.s32.totalorder %s9, 12
    %s16 = sphi 0, %s35
    %s17 = sphi 0, %s31
    %s18 = sphi 0, %s27
    %s19 = sphi 0, %s16
    %s20 = sphi 0, %s17
    %s21 = sphi 0, %s18
    %s22 = sphi 0, %s19
    %s23 = sphi 0, %s20
    %s24 = sphi 0, %s21
    %s40 = sphi 0, %s42
    %s43 = sphi 0, %s40
    %s44 = sphi 0, %s43
    %s60 = sphi 0, %s44
    %s68 = sphi 0, %s70
    %s71 = sphi 0, %s68
    %s72 = sphi 0, %s71
    %s88 = sphi 0, %s72
    %s94 = sphi 0, %s96
    %s97 = sphi 0, %s94
    %s98 = sphi 0, %s97
    %s114 = sphi 0, %s98
    %s122 = sphi 0, %s124
    %s125 = sphi 0, %s122
    %s126 = sphi 0, %s125
    %s142 = sphi 0, %s126
  $region4: #{forward.12} parent=0 // loop_header_branch
    %12 = sbr.rel (%p10) target = $region8
  $region5: #{forward.12} parent=0 // loop_body
    %s14 = ssub.s32 %s9, 1
    %s15 = ssub.s32 %s9, 2
    %s25 = sadd.s32 1, %s18
    %p26 = scmp.ge.s32.totalorder %s25, 1
    %s27 = scalar_select %p26, 0, %s25
    %s28 = sadd.s32 1, %s17
    %s29 = scalar_select %p26, %s28, %s17
    %p30 = scmp.ge.s32.totalorder %s29, 1
    %s31 = scalar_select %p30, 0, %s29
    %s32 = sadd.s32 1, %s16
    %s33 = scalar_select %p30, %s32, %s16
    %p34 = scmp.ge.s32.totalorder %s33, 10
    %s35 = scalar_select %p34, 0, %s33
    %s36 = ssub.s32 %s16, %s35
    %s37 = ssub.s32 %s18, %s27
    %s38 = sor.u32 %s36, %s37
    %p39 = scmp.eq.s32.totalorder %s38, 0
    %s41 = sadd.s32 %s40, 1
    %s42 = scalar_select %p39, %s40, %s41
    %p45 = pneg %p39
    %p46 = scmp.eq.s32.totalorder %s9, 9
    %p47 = por %p45, %p46
    %p48 = scmp.ne.s32.totalorder %s40, %s43
    %p49 = scmp.eq.s32.totalorder %s9, 0
    %p50 = por %p48, %p49
    %p51 = scmp.ne.s32.totalorder %s40, %s43
    %p52 = scmp.eq.s32.totalorder %s14, 9
    %p53 = por %p51, %p52
    %p54 = scmp.ne.s32.totalorder %s43, %s44
    %p55 = scmp.eq.s32.totalorder %s14, 0
    %p56 = por %p54, %p55
    %p57 = scmp.ne.s32.totalorder %s43, %s44
    %p58 = scmp.eq.s32.totalorder %s15, 9
    %p59 = por %p57, %p58
    %p61 = scmp.ne.s32.totalorder %s44, %s60
    %p62 = scmp.eq.s32.totalorder %s15, 0
    %p63 = por %p61, %p62
    %s64 = ssub.s32 %s18, %s27
    %s65 = ssub.s32 %s17, %s31
    %s66 = sor.u32 %s64, %s65
    %p67 = scmp.eq.s32.totalorder %s66, 0
    %s69 = sadd.s32 %s68, 1
    %s70 = scalar_select %p67, %s68, %s69
    %p73 = pneg %p67
    %p74 = scmp.eq.s32.totalorder %s9, 9
    %p75 = por %p73, %p74
    %p76 = scmp.ne.s32.totalorder %s68, %s71
    %p77 = scmp.eq.s32.totalorder %s9, 0
    %p78 = por %p76, %p77
    %p79 = scmp.ne.s32.totalorder %s68, %s71
    %p80 = scmp.eq.s32.totalorder %s14, 9
    %p81 = por %p79, %p80
    %p82 = scmp.ne.s32.totalorder %s71, %s72
    %p83 = scmp.eq.s32.totalorder %s14, 0
    %p84 = por %p82, %p83
    %p85 = scmp.ne.s32.totalorder %s71, %s72
    %p86 = scmp.eq.s32.totalorder %s15, 9
    %p87 = por %p85, %p86
    %p89 = scmp.ne.s32.totalorder %s72, %s88
    %p90 = scmp.eq.s32.totalorder %s15, 0
    %p91 = por %p89, %p90
    %s92 = ssub.s32 %s17, %s31
    %p93 = scmp.eq.s32.totalorder %s92, 0
    %s95 = sadd.s32 %s94, 1
    %s96 = scalar_select %p93, %s94, %s95
    %p99 = pneg %p93
    %p100 = scmp.eq.s32.totalorder %s9, 9
    %p101 = por %p99, %p100
    %p102 = scmp.ne.s32.totalorder %s94, %s97
    %p103 = scmp.eq.s32.totalorder %s9, 0
    %p104 = por %p102, %p103
    %p105 = scmp.ne.s32.totalorder %s94, %s97
    %p106 = scmp.eq.s32.totalorder %s14, 9
    %p107 = por %p105, %p106
    %p108 = scmp.ne.s32.totalorder %s97, %s98
    %p109 = scmp.eq.s32.totalorder %s14, 0
    %p110 = por %p108, %p109
    %p111 = scmp.ne.s32.totalorder %s97, %s98
    %p112 = scmp.eq.s32.totalorder %s15, 9
    %p113 = por %p111, %p112
    %p115 = scmp.ne.s32.totalorder %s98, %s114
    %p116 = scmp.eq.s32.totalorder %s15, 0
    %p117 = por %p115, %p116
    %s118 = ssub.s32 %s16, %s35
    %s119 = ssub.s32 %s17, %s31
    %s120 = sor.u32 %s118, %s119
    %p121 = scmp.eq.s32.totalorder %s120, 0
    %s123 = sadd.s32 %s122, 1
    %s124 = scalar_select %p121, %s122, %s123
    %p127 = pneg %p121
    %p128 = scmp.eq.s32.totalorder %s9, 9
    %p129 = por %p127, %p128
    %p130 = scmp.ne.s32.totalorder %s122, %s125
    %p131 = scmp.eq.s32.totalorder %s9, 0
    %p132 = por %p130, %p131
    %p133 = scmp.ne.s32.totalorder %s122, %s125
    %p134 = scmp.eq.s32.totalorder %s14, 9
    %p135 = por %p133, %p134
    %p136 = scmp.ne.s32.totalorder %s125, %s126
    %p137 = scmp.eq.s32.totalorder %s14, 0
    %p138 = por %p136, %p137
    %p139 = scmp.ne.s32.totalorder %s125, %s126
    %p140 = scmp.eq.s32.totalorder %s15, 9
    %p141 = por %p139, %p140
    %p143 = scmp.ne.s32.totalorder %s126, %s142
    %p144 = scmp.eq.s32.totalorder %s15, 0
    %p145 = por %p143, %p144
    %p146 = scmp.le.s32.totalorder 1, %s9
    %p147 = scmp.lt.s32.totalorder %s9, 11
    %p148 = pnand %p146, %p147
    %p149 = pneg %p148
    // Predicated region
    $region9: #{forward.12} parent=5 // pred_check
      _
    $region10: #{forward.12} parent=5 // pred_check_branch
      %151 = sbr.rel (%p148) target = $region12
    $region11: #{forward.12} parent=5 // pred_region
      %s152 = ssub.s32 %s9, 1
      // Predicated region
      $region13: #{forward.12} parent=11 // pred_check
        %p153 = pneg %p84
      $region14: #{forward.12} parent=11 // pred_check_branch
        %155 = sbr.rel (%p153) target = $region16
      $region15: #{forward.12} parent=11 // pred_region
        %s156 = smul.u32 48, %s21
        %p157 = scmp.lt.s32.totalorder %s156, 47
        %s158 = scalar_select %p157, %s156, 47
        %p159 = scmp.lt.s32.totalorder %s20, 0
        %s160 = scalar_select %p159, %s20, 0
        %s161 = sadd.s32 %s160, %s158
        %s162 = smul.addr %s161, 4
        %s163 = scalar_lea.vmem %s1, %s162
        %s164 = smul.u32 48, %s21
      $region16: #{forward.12} parent=11 // pred_fallthru
        _
      // Predicated region
      $region17: #{forward.12} parent=11 // pred_check
        %p165 = pneg %p110
      $region18: #{forward.12} parent=11 // pred_check_branch
        %167 = sbr.rel (%p165) target = $region20
      $region19: #{forward.12} parent=11 // pred_region
        %p168 = scmp.lt.s32.totalorder %s20, 0
        %s169 = scalar_select %p168, %s20, 0
        %s170 = scalar_lea.vmem %s2, %s169
      $region20: #{forward.12} parent=11 // pred_fallthru
        _
    $region12: #{forward.12} parent=5 // pred_fallthru
      _
    %p171 = scmp.lt.s32.totalorder %s9, 10
    // Predicated region
    $region21: #{forward.12} parent=5 // pred_check
      %p172 = pneg %p171
    $region22: #{forward.12} parent=5 // pred_check_branch
      %174 = sbr.rel (%p172) target = $region24
    $region23: #{forward.12} parent=5 // pred_region
      // Predicated region
      $region25: #{forward.12} parent=23 // pred_check
        %p175 = pneg %p50
      $region26: #{forward.12} parent=23 // pred_check_branch
        %177 = sbr.rel (%p175) target = $region28
      $region27: #{forward.12} parent=23 // pred_region
        %s178 = smul.u32 32, %s16
        %s179 = smul.u32 3, %s18
        %p180 = scmp.lt.s32.totalorder %s178, 319
        %s181 = scalar_select %p180, %s178, 319
        %p182 = scmp.lt.s32.totalorder %s179, 2
        %s183 = scalar_select %p182, %s179, 2
        %s184 = smul.addr %s181, 3
        %s185 = sadd.s32 %s183, %s184
        %s186 = smul.addr %s185, 4
        %s187 = scalar_lea.vmem %s0, %s186
        %s188 = smul.u32 32, %s16
        %s189 = smul.u32 3, %s18
      $region28: #{forward.12} parent=23 // pred_fallthru
        _
    $region24: #{forward.12} parent=5 // pred_fallthru
      _
    %p190 = scmp.le.s32.totalorder 1, %s9
    %p191 = scmp.lt.s32.totalorder %s9, 11
    %p192 = pnand %p190, %p191
    %p193 = pneg %p192
    // Predicated region
    $region29: #{forward.12} parent=5 // pred_check
      _
    $region30: #{forward.12} parent=5 // pred_check_branch
      %195 = sbr.rel (%p192) target = $region32
    $region31: #{forward.12} parent=5 // pred_region
      %s196 = ssub.s32 %s9, 1
      %s197 = smul.u32 32, %s19
      %s198 = smul.u32 3, %s21
      %p199 = scmp.lt.s32.totalorder %s197, 319
      %s200 = scalar_select %p199, %s197, 319
      %p201 = scmp.lt.s32.totalorder %s198, 2
      %s202 = scalar_select %p201, %s198, 2
      %s203 = smul.addr %s200, 3
      %s204 = sadd.s32 %s202, %s203
      %s205 = smul.addr %s204, 4
      %s206 = scalar_lea.vmem %s0, %s205
      %p207 = pneg %p56
      %p208 = pneg %p53
      %s209 = smul.u32 48, %s21
      %p210 = scmp.lt.s32.totalorder %s209, 47
      %s211 = scalar_select %p210, %s209, 47
      %p212 = scmp.lt.s32.totalorder %s20, 0
      %s213 = scalar_select %p212, %s20, 0
      %s214 = sadd.s32 %s213, %s211
      %s215 = smul.addr %s214, 4
      %s216 = scalar_lea.vmem %s1, %s215
      %p217 = pneg %p84
      %p218 = pneg %p81
      %p219 = scmp.lt.s32.totalorder %s20, 0
      %s220 = scalar_select %p219, %s20, 0
      %s221 = scalar_lea.vmem %s2, %s220
      %p222 = pneg %p110
      %p223 = pneg %p107
      %p224 = pneg %p138
      %p225 = pneg %p135
      %s226 = smul.u32 32, %s19
      %p227 = scmp.lt.s32.totalorder %s226, 319
      %s228 = scalar_select %p227, %s226, 319
      %p229 = scmp.lt.s32.totalorder %s20, 0
      %s230 = scalar_select %p229, %s20, 0
      %s231 = sadd.s32 %s230, %s228
      %s232 = smul.addr %s231, 4
      %s233 = scalar_lea.vmem %s3, %s232
      %s234 = smul.u32 32, %s19
      %s235 = smul.u32 3, %s21
      %p236 = scmp.lt.s32.totalorder %s234, 319
      %s237 = scalar_select %p236, %s234, 319
      %p238 = scmp.lt.s32.totalorder %s235, 2
      %s239 = scalar_select %p238, %s235, 2
      %s240 = smul.addr %s237, 3
      %s241 = sadd.s32 %s239, %s240
      %s242 = smul.addr %s241, 4
      %s243 = scalar_lea.vmem %s0, %s242
      %s244 = smul.u32 32, %s19
      %s245 = smul.u32 3, %s21
      %s246 = smul.u32 48, %s21
      %p247 = scmp.lt.s32.totalorder %s246, 47
      %s248 = scalar_select %p247, %s246, 47
      %p249 = scmp.lt.s32.totalorder %s20, 0
      %s250 = scalar_select %p249, %s20, 0
      %s251 = sadd.s32 %s250, %s248
      %s252 = smul.addr %s251, 4
      %s253 = scalar_lea.vmem %s1, %s252
      %s254 = smul.u32 48, %s21
      %p255 = scmp.lt.s32.totalorder %s20, 0
      %s256 = scalar_select %p255, %s20, 0
      %s257 = scalar_lea.vmem %s2, %s256
      %s258 = smul.u32 32, %s19
      %p259 = scmp.lt.s32.totalorder %s258, 319
      %s260 = scalar_select %p259, %s258, 319
      %p261 = scmp.lt.s32.totalorder %s20, 0
      %s262 = scalar_select %p261, %s20, 0
      %s263 = sadd.s32 %s262, %s260
      %s264 = smul.addr %s263, 4
      %s265 = scalar_lea.vmem %s3, %s264
      %s266 = smul.u32 32, %s19
      %p268 = scmp.eq.s32.totalorder %s21, 0
      // Predicated region
      $region33: #{forward.12} parent=31 // pred_check
        %p269 = pneg %p268
      $region34: #{forward.12} parent=31 // pred_check_branch
        %271 = sbr.rel (%p269) target = $region36
      $region35: #{forward.12} parent=31 // pred_region
        %272 = vst [vmem:[#allocation2] sm:$0xff] 0.0
        %273 = vst [vmem:[#allocation2 + $0x8] sm:$0xff] 0.0
        %274 = vst [vmem:[#allocation2 + $0x10] sm:$0xff] 0.0
        %275 = vst [vmem:[#allocation2 + $0x18] sm:$0xff] 0.0
        %276 = vst [vmem:[#allocation2 + $0x20] sm:$0xff] 0.0
        %277 = vst [vmem:[#allocation2 + $0x28] sm:$0xff] 0.0
        %278 = vst [vmem:[#allocation2 + $0x30] sm:$0xff] 0.0
        %279 = vst [vmem:[#allocation2 + $0x38] sm:$0xff] 0.0
        %280 = vst [vmem:[#allocation2 + $0x40] sm:$0xff] 0.0
        %281 = vst [vmem:[#allocation2 + $0x48] sm:$0xff] 0.0
        %282 = vst [vmem:[#allocation2 + $0x50] sm:$0xff] 0.0
        %283 = vst [vmem:[#allocation2 + $0x58] sm:$0xff] 0.0
        %284 = vst [vmem:[#allocation2 + $0x60] sm:$0xff] 0.0
        %285 = vst [vmem:[#allocation2 + $0x68] sm:$0xff] 0.0
        %286 = vst [vmem:[#allocation2 + $0x70] sm:$0xff] 0.0
        %287 = vst [vmem:[#allocation2 + $0x78] sm:$0xff] 0.0
        %288 = vst [vmem:[#allocation2 + $0x80] sm:$0xff] 0.0
        %289 = vst [vmem:[#allocation2 + $0x88] sm:$0xff] 0.0
        %290 = vst [vmem:[#allocation2 + $0x90] sm:$0xff] 0.0
        %291 = vst [vmem:[#allocation2 + $0x98] sm:$0xff] 0.0
        %292 = vst [vmem:[#allocation2 + $0xa0] sm:$0xff] 0.0
        %293 = vst [vmem:[#allocation2 + $0xa8] sm:$0xff] 0.0
        %294 = vst [vmem:[#allocation2 + $0xb0] sm:$0xff] 0.0
        %295 = vst [vmem:[#allocation2 + $0xb8] sm:$0xff] 0.0
        %296 = vst [vmem:[#allocation2 + $0xc0] sm:$0xff] 0.0
        %297 = vst [vmem:[#allocation2 + $0xc8] sm:$0xff] 0.0
        %298 = vst [vmem:[#allocation2 + $0xd0] sm:$0xff] 0.0
        %299 = vst [vmem:[#allocation2 + $0xd8] sm:$0xff] 0.0
        %300 = vst [vmem:[#allocation2 + $0xe0] sm:$0xff] 0.0
        %301 = vst [vmem:[#allocation2 + $0xe8] sm:$0xff] 0.0
        %302 = vst [vmem:[#allocation2 + $0xf0] sm:$0xff] 0.0
        %303 = vst [vmem:[#allocation2 + $0xf8] sm:$0xff] 0.0
      $region36: #{forward.12} parent=31 // pred_fallthru
        _
      %v304 = vld [vmem:[#allocation2] sm:$0xff]
      %v305 = vld [vmem:[#allocation2 + $0x8] sm:$0xff]
      %v306 = vld [vmem:[#allocation2 + $0x10] sm:$0xff]
      %v307 = vld [vmem:[#allocation2 + $0x18] sm:$0xff]
      %v308 = vld [vmem:[#allocation2 + $0x20] sm:$0xff]
      %v309 = vld [vmem:[#allocation2 + $0x28] sm:$0xff]
      %v310 = vld [vmem:[#allocation2 + $0x30] sm:$0xff]
      %v311 = vld [vmem:[#allocation2 + $0x38] sm:$0xff]
      %v312 = vld [vmem:[#allocation2 + $0x40] sm:$0xff]
      %v313 = vld [vmem:[#allocation2 + $0x48] sm:$0xff]
      %v314 = vld [vmem:[#allocation2 + $0x50] sm:$0xff]
      %v315 = vld [vmem:[#allocation2 + $0x58] sm:$0xff]
      %v316 = vld [vmem:[#allocation2 + $0x60] sm:$0xff]
      %v317 = vld [vmem:[#allocation2 + $0x68] sm:$0xff]
      %v318 = vld [vmem:[#allocation2 + $0x70] sm:$0xff]
      %v319 = vld [vmem:[#allocation2 + $0x78] sm:$0xff]
      %v320 = vld [vmem:[#allocation2 + $0x80] sm:$0xff]
      %v321 = vld [vmem:[#allocation2 + $0x88] sm:$0xff]
      %v322 = vld [vmem:[#allocation2 + $0x90] sm:$0xff]
      %v323 = vld [vmem:[#allocation2 + $0x98] sm:$0xff]
      %v324 = vld [vmem:[#allocation2 + $0xa0] sm:$0xff]
      %v325 = vld [vmem:[#allocation2 + $0xa8] sm:$0xff]
      %v326 = vld [vmem:[#allocation2 + $0xb0] sm:$0xff]
      %v327 = vld [vmem:[#allocation2 + $0xb8] sm:$0xff]
      %v328 = vld [vmem:[#allocation2 + $0xc0] sm:$0xff]
      %v329 = vld [vmem:[#allocation2 + $0xc8] sm:$0xff]
      %v330 = vld [vmem:[#allocation2 + $0xd0] sm:$0xff]
      %v331 = vld [vmem:[#allocation2 + $0xd8] sm:$0xff]
      %v332 = vld [vmem:[#allocation2 + $0xe0] sm:$0xff]
      %v333 = vld [vmem:[#allocation2 + $0xe8] sm:$0xff]
      %v334 = vld [vmem:[#allocation2 + $0xf0] sm:$0xff]
      %v335 = vld [vmem:[#allocation2 + $0xf8] sm:$0xff]
      %v336 = vld [vmem:[%s243] sm:$0xff]
      %v337 = vld [vmem:[%s243 + $0x8] sm:$0xf]
      %v338 = vld [vmem:[%s243 + $0xc] sm:$0xff]
      %v339 = vld [vmem:[%s243 + $0x14] sm:$0xf]
      %v340 = vld [vmem:[%s243 + $0x18] sm:$0xff]
      %v341 = vld [vmem:[%s243 + $0x20] sm:$0xf]
      %v342 = vld [vmem:[%s243 + $0x24] sm:$0xff]
      %v343 = vld [vmem:[%s243 + $0x2c] sm:$0xf]
      %v344 = vld [vmem:[%s243 + $0x30] sm:$0xff]
      %v345 = vld [vmem:[%s243 + $0x38] sm:$0xf]
      %v346 = vld [vmem:[%s243 + $0x3c] sm:$0xff]
      %v347 = vld [vmem:[%s243 + $0x44] sm:$0xf]
      %v348 = vld [vmem:[%s243 + $0x48] sm:$0xff]
      %v349 = vld [vmem:[%s243 + $0x50] sm:$0xf]
      %v350 = vld [vmem:[%s243 + $0x54] sm:$0xff]
      %v351 = vld [vmem:[%s243 + $0x5c] sm:$0xf]
      %v352 = vld [vmem:[%s243 + $0x60] sm:$0xff]
      %v353 = vld [vmem:[%s243 + $0x68] sm:$0xf]
      %v354 = vld [vmem:[%s243 + $0x6c] sm:$0xff]
      %v355 = vld [vmem:[%s243 + $0x74] sm:$0xf]
      %v356 = vld [vmem:[%s243 + $0x78] sm:$0xff]
      %v357 = vld [vmem:[%s243 + $0x80] sm:$0xf]
      %v358 = vld [vmem:[%s243 + $0x84] sm:$0xff]
      %v359 = vld [vmem:[%s243 + $0x8c] sm:$0xf]
      %v360 = vld [vmem:[%s243 + $0x90] sm:$0xff]
      %v361 = vld [vmem:[%s243 + $0x98] sm:$0xf]
      %v362 = vld [vmem:[%s243 + $0x9c] sm:$0xff]
      %v363 = vld [vmem:[%s243 + $0xa4] sm:$0xf]
      %v364 = vld [vmem:[%s243 + $0xa8] sm:$0xff]
      %v365 = vld [vmem:[%s243 + $0xb0] sm:$0xf]
      %v366 = vld [vmem:[%s243 + $0xb4] sm:$0xff]
      %v367 = vld [vmem:[%s243 + $0xbc] sm:$0xf]
      %v368 = vld [vmem:[%s243 + $0xc0] sm:$0xff]
      %v369 = vld [vmem:[%s243 + $0xc8] sm:$0xf]
      %v370 = vld [vmem:[%s243 + $0xcc] sm:$0xff]
      %v371 = vld [vmem:[%s243 + $0xd4] sm:$0xf]
      %v372 = vld [vmem:[%s243 + $0xd8] sm:$0xff]
      %v373 = vld [vmem:[%s243 + $0xe0] sm:$0xf]
      %v374 = vld [vmem:[%s243 + $0xe4] sm:$0xff]
      %v375 = vld [vmem:[%s243 + $0xec] sm:$0xf]
      %v376 = vld [vmem:[%s243 + $0xf0] sm:$0xff]
      %v377 = vld [vmem:[%s243 + $0xf8] sm:$0xf]
      %v378 = vld [vmem:[%s243 + $0xfc] sm:$0xff]
      %v379 = vld [vmem:[%s243 + $0x104] sm:$0xf]
      %v380 = vld [vmem:[%s243 + $0x108] sm:$0xff]
      %v381 = vld [vmem:[%s243 + $0x110] sm:$0xf]
      %v382 = vld [vmem:[%s243 + $0x114] sm:$0xff]
      %v383 = vld [vmem:[%s243 + $0x11c] sm:$0xf]
      %v384 = vld [vmem:[%s243 + $0x120] sm:$0xff]
      %v385 = vld [vmem:[%s243 + $0x128] sm:$0xf]
      %v386 = vld [vmem:[%s243 + $0x12c] sm:$0xff]
      %v387 = vld [vmem:[%s243 + $0x134] sm:$0xf]
      %v388 = vld [vmem:[%s243 + $0x138] sm:$0xff]
      %v389 = vld [vmem:[%s243 + $0x140] sm:$0xf]
      %v390 = vld [vmem:[%s243 + $0x144] sm:$0xff]
      %v391 = vld [vmem:[%s243 + $0x14c] sm:$0xf]
      %v392 = vld [vmem:[%s243 + $0x150] sm:$0xff]
      %v393 = vld [vmem:[%s243 + $0x158] sm:$0xf]
      %v394 = vld [vmem:[%s243 + $0x15c] sm:$0xff]
      %v395 = vld [vmem:[%s243 + $0x164] sm:$0xf]
      %v396 = vld [vmem:[%s243 + $0x168] sm:$0xff]
      %v397 = vld [vmem:[%s243 + $0x170] sm:$0xf]
      %v398 = vld [vmem:[%s243 + $0x174] sm:$0xff]
      %v399 = vld [vmem:[%s243 + $0x17c] sm:$0xf]
      %v400 = vld [vmem:[%s253] sm:$0xf]
      %v401 = vld [vmem:[%s253 + $0x4] sm:$0xf]
      %v402 = vld [vmem:[%s253 + $0x8] sm:$0xf]
      %v403 = vld [vmem:[%s253 + $0xc] sm:$0xf]
      %v404 = vld [vmem:[%s253 + $0x10] sm:$0xf]
      %v405 = vld [vmem:[%s253 + $0x14] sm:$0xf]
      %v406 = vld [vmem:[%s253 + $0x18] sm:$0xf]
      %v407 = vld [vmem:[%s253 + $0x1c] sm:$0xf]
      %v408 = vld [vmem:[%s253 + $0x20] sm:$0xf]
      %v409 = vld [vmem:[%s253 + $0x24] sm:$0xf]
      %v410 = vld [vmem:[%s253 + $0x28] sm:$0xf]
      %v411 = vld [vmem:[%s253 + $0x2c] sm:$0xf]
      %v412 = vld [vmem:[%s253 + $0x30] sm:$0xf]
      %v413 = vld [vmem:[%s253 + $0x34] sm:$0xf]
      %v414 = vld [vmem:[%s253 + $0x38] sm:$0xf]
      %v415 = vld [vmem:[%s253 + $0x3c] sm:$0xf]
      %v416 = vld [vmem:[%s253 + $0x40] sm:$0xf]
      %v417 = vld [vmem:[%s253 + $0x44] sm:$0xf]
      %v418 = vld [vmem:[%s253 + $0x48] sm:$0xf]
      %v419 = vld [vmem:[%s253 + $0x4c] sm:$0xf]
      %v420 = vld [vmem:[%s253 + $0x50] sm:$0xf]
      %v421 = vld [vmem:[%s253 + $0x54] sm:$0xf]
      %v422 = vld [vmem:[%s253 + $0x58] sm:$0xf]
      %v423 = vld [vmem:[%s253 + $0x5c] sm:$0xf]
      %v424 = vld [vmem:[%s253 + $0x60] sm:$0xf]
      %v425 = vld [vmem:[%s253 + $0x64] sm:$0xf]
      %v426 = vld [vmem:[%s253 + $0x68] sm:$0xf]
      %v427 = vld [vmem:[%s253 + $0x6c] sm:$0xf]
      %v428 = vld [vmem:[%s253 + $0x70] sm:$0xf]
      %v429 = vld [vmem:[%s253 + $0x74] sm:$0xf]
      %v430 = vld [vmem:[%s253 + $0x78] sm:$0xf]
      %v431 = vld [vmem:[%s253 + $0x7c] sm:$0xf]
      %v432 = vld [vmem:[%s253 + $0x80] sm:$0xf]
      %v433 = vld [vmem:[%s253 + $0x84] sm:$0xf]
      %v434 = vld [vmem:[%s253 + $0x88] sm:$0xf]
      %v435 = vld [vmem:[%s253 + $0x8c] sm:$0xf]
      %v436 = vld [vmem:[%s253 + $0x90] sm:$0xf]
      %v437 = vld [vmem:[%s253 + $0x94] sm:$0xf]
      %v438 = vld [vmem:[%s253 + $0x98] sm:$0xf]
      %v439 = vld [vmem:[%s253 + $0x9c] sm:$0xf]
      %v440 = vld [vmem:[%s253 + $0xa0] sm:$0xf]
      %v441 = vld [vmem:[%s253 + $0xa4] sm:$0xf]
      %v442 = vld [vmem:[%s253 + $0xa8] sm:$0xf]
      %v443 = vld [vmem:[%s253 + $0xac] sm:$0xf]
      %v444 = vld [vmem:[%s253 + $0xb0] sm:$0xf]
      %v445 = vld [vmem:[%s253 + $0xb4] sm:$0xf]
      %v446 = vld [vmem:[%s253 + $0xb8] sm:$0xf]
      %v447 = vld [vmem:[%s253 + $0xbc] sm:$0xf]
      %v512 = vunpack.c.l.b16 %v336
      %v513 = vunpack.c.h.b16 %v336
      %v514 = vunpack.c.l.b16 %v337
      %v515 = vunpack.c.l.b16 %v338
      %v516 = vunpack.c.h.b16 %v338
      %v517 = vunpack.c.l.b16 %v339
      %v518 = vunpack.c.l.b16 %v340
      %v519 = vunpack.c.h.b16 %v340
      %v520 = vunpack.c.l.b16 %v341
      %v521 = vunpack.c.l.b16 %v342
      %v522 = vunpack.c.h.b16 %v342
      %v523 = vunpack.c.l.b16 %v343
      %v524 = vunpack.c.l.b16 %v344
      %v525 = vunpack.c.h.b16 %v344
      %v526 = vunpack.c.l.b16 %v345
      %v527 = vunpack.c.l.b16 %v346
      %v528 = vunpack.c.h.b16 %v346
      %v529 = vunpack.c.l.b16 %v347
      %v530 = vunpack.c.l.b16 %v348
      %v531 = vunpack.c.h.b16 %v348
      %v532 = vunpack.c.l.b16 %v349
      %v533 = vunpack.c.l.b16 %v350
      %v534 = vunpack.c.h.b16 %v350
      %v535 = vunpack.c.l.b16 %v351
      %v536 = vunpack.c.l.b16 %v352
      %v537 = vunpack.c.h.b16 %v352
      %v538 = vunpack.c.l.b16 %v353
      %v539 = vunpack.c.l.b16 %v354
      %v540 = vunpack.c.h.b16 %v354
      %v541 = vunpack.c.l.b16 %v355
      %v542 = vunpack.c.l.b16 %v356
      %v543 = vunpack.c.h.b16 %v356
      %v544 = vunpack.c.l.b16 %v357
      %v545 = vunpack.c.l.b16 %v358
      %v546 = vunpack.c.h.b16 %v358
      %v547 = vunpack.c.l.b16 %v359
      %v548 = vunpack.c.l.b16 %v360
      %v549 = vunpack.c.h.b16 %v360
      %v550 = vunpack.c.l.b16 %v361
      %v551 = vunpack.c.l.b16 %v362
      %v552 = vunpack.c.h.b16 %v362
      %v553 = vunpack.c.l.b16 %v363
      %v554 = vunpack.c.l.b16 %v364
      %v555 = vunpack.c.h.b16 %v364
      %v556 = vunpack.c.l.b16 %v365
      %v557 = vunpack.c.l.b16 %v366
      %v558 = vunpack.c.h.b16 %v366
      %v559 = vunpack.c.l.b16 %v367
      %v560 = vunpack.c.l.b16 %v368
      %v561 = vunpack.c.h.b16 %v368
      %v562 = vunpack.c.l.b16 %v369
      %v563 = vunpack.c.l.b16 %v370
      %v564 = vunpack.c.h.b16 %v370
      %v565 = vunpack.c.l.b16 %v371
      %v566 = vunpack.c.l.b16 %v372
      %v567 = vunpack.c.h.b16 %v372
      %v568 = vunpack.c.l.b16 %v373
      %v569 = vunpack.c.l.b16 %v374
      %v570 = vunpack.c.h.b16 %v374
      %v571 = vunpack.c.l.b16 %v375
      %v572 = vunpack.c.l.b16 %v376
      %v573 = vunpack.c.h.b16 %v376
      %v574 = vunpack.c.l.b16 %v377
      %v575 = vunpack.c.l.b16 %v378
      %v576 = vunpack.c.h.b16 %v378
      %v577 = vunpack.c.l.b16 %v379
      %v578 = vunpack.c.l.b16 %v380
      %v579 = vunpack.c.h.b16 %v380
      %v580 = vunpack.c.l.b16 %v381
      %v581 = vunpack.c.l.b16 %v382
      %v582 = vunpack.c.h.b16 %v382
      %v583 = vunpack.c.l.b16 %v383
      %v584 = vunpack.c.l.b16 %v384
      %v585 = vunpack.c.h.b16 %v384
      %v586 = vunpack.c.l.b16 %v385
      %v587 = vunpack.c.l.b16 %v386
      %v588 = vunpack.c.h.b16 %v386
      %v589 = vunpack.c.l.b16 %v387
      %v590 = vunpack.c.l.b16 %v388
      %v591 = vunpack.c.h.b16 %v388
      %v592 = vunpack.c.l.b16 %v389
      %v593 = vunpack.c.l.b16 %v390
      %v594 = vunpack.c.h.b16 %v390
      %v595 = vunpack.c.l.b16 %v391
      %v596 = vunpack.c.l.b16 %v392
      %v597 = vunpack.c.h.b16 %v392
      %v598 = vunpack.c.l.b16 %v393
      %v599 = vunpack.c.l.b16 %v394
      %v600 = vunpack.c.h.b16 %v394
      %v601 = vunpack.c.l.b16 %v395
      %v602 = vunpack.c.l.b16 %v396
      %v603 = vunpack.c.h.b16 %v396
      %v604 = vunpack.c.l.b16 %v397
      %v605 = vunpack.c.l.b16 %v398
      %v606 = vunpack.c.h.b16 %v398
      %v607 = vunpack.c.l.b16 %v399
      %v608 = vpack.c.b16 %v515, %v512
      %v609 = vpack.c.b16 %v516, %v513
      %v610 = vpack.c.b16 %v517, %v514
      %v611 = vpack.c.b16 %v521, %v518
      %v612 = vpack.c.b16 %v522, %v519
      %v613 = vpack.c.b16 %v523, %v520
      %v614 = vpack.c.b16 %v527, %v524
      %v615 = vpack.c.b16 %v528, %v525
      %v616 = vpack.c.b16 %v529, %v526
      %v617 = vpack.c.b16 %v533, %v530
      %v618 = vpack.c.b16 %v534, %v531
      %v619 = vpack.c.b16 %v535, %v532
      %v620 = vpack.c.b16 %v539, %v536
      %v621 = vpack.c.b16 %v540, %v537
      %v622 = vpack.c.b16 %v541, %v538
      %v623 = vpack.c.b16 %v545, %v542
      %v624 = vpack.c.b16 %v546, %v543
      %v625 = vpack.c.b16 %v547, %v544
      %v626 = vpack.c.b16 %v551, %v548
      %v627 = vpack.c.b16 %v552, %v549
      %v628 = vpack.c.b16 %v553, %v550
      %v629 = vpack.c.b16 %v557, %v554
      %v630 = vpack.c.b16 %v558, %v555
      %v631 = vpack.c.b16 %v559, %v556
      %v632 = vpack.c.b16 %v563, %v560
      %v633 = vpack.c.b16 %v564, %v561
      %v634 = vpack.c.b16 %v565, %v562
      %v635 = vpack.c.b16 %v569, %v566
      %v636 = vpack.c.b16 %v570, %v567
      %v637 = vpack.c.b16 %v571, %v568
      %v638 = vpack.c.b16 %v575, %v572
      %v639 = vpack.c.b16 %v576, %v573
      %v640 = vpack.c.b16 %v577, %v574
      %v641 = vpack.c.b16 %v581, %v578
      %v642 = vpack.c.b16 %v582, %v579
      %v643 = vpack.c.b16 %v583, %v580
      %v644 = vpack.c.b16 %v587, %v584
      %v645 = vpack.c.b16 %v588, %v585
      %v646 = vpack.c.b16 %v589, %v586
      %v647 = vpack.c.b16 %v593, %v590
      %v648 = vpack.c.b16 %v594, %v591
      %v649 = vpack.c.b16 %v595, %v592
      %v650 = vpack.c.b16 %v599, %v596
      %v651 = vpack.c.b16 %v600, %v597
      %v652 = vpack.c.b16 %v601, %v598
      %v653 = vpack.c.b16 %v605, %v602
      %v654 = vpack.c.b16 %v606, %v603
      %v655 = vpack.c.b16 %v607, %v604
      %v752 = vunpack.c.l.b16 %v400
      %v753 = vunpack.c.l.b16 %v401
      %v754 = vunpack.c.l.b16 %v402
      %v755 = vunpack.c.l.b16 %v403
      %v756 = vunpack.c.l.b16 %v404
      %v757 = vunpack.c.l.b16 %v405
      %v758 = vunpack.c.l.b16 %v406
      %v759 = vunpack.c.l.b16 %v407
      %v760 = vunpack.c.l.b16 %v408
      %v761 = vunpack.c.l.b16 %v409
      %v762 = vunpack.c.l.b16 %v410
      %v763 = vunpack.c.l.b16 %v411
      %v764 = vunpack.c.l.b16 %v412
      %v765 = vunpack.c.l.b16 %v413
      %v766 = vunpack.c.l.b16 %v414
      %v767 = vunpack.c.l.b16 %v415
      %v768 = vunpack.c.l.b16 %v416
      %v769 = vunpack.c.l.b16 %v417
      %v770 = vunpack.c.l.b16 %v418
      %v771 = vunpack.c.l.b16 %v419
      %v772 = vunpack.c.l.b16 %v420
      %v773 = vunpack.c.l.b16 %v421
      %v774 = vunpack.c.l.b16 %v422
      %v775 = vunpack.c.l.b16 %v423
      %v776 = vunpack.c.l.b16 %v424
      %v777 = vunpack.c.l.b16 %v425
      %v778 = vunpack.c.l.b16 %v426
      %v779 = vunpack.c.l.b16 %v427
      %v780 = vunpack.c.l.b16 %v428
      %v781 = vunpack.c.l.b16 %v429
      %v782 = vunpack.c.l.b16 %v430
      %v783 = vunpack.c.l.b16 %v431
      %v784 = vunpack.c.l.b16 %v432
      %v785 = vunpack.c.l.b16 %v433
      %v786 = vunpack.c.l.b16 %v434
      %v787 = vunpack.c.l.b16 %v435
      %v788 = vunpack.c.l.b16 %v436
      %v789 = vunpack.c.l.b16 %v437
      %v790 = vunpack.c.l.b16 %v438
      %v791 = vunpack.c.l.b16 %v439
      %v792 = vunpack.c.l.b16 %v440
      %v793 = vunpack.c.l.b16 %v441
      %v794 = vunpack.c.l.b16 %v442
      %v795 = vunpack.c.l.b16 %v443
      %v796 = vunpack.c.l.b16 %v444
      %v797 = vunpack.c.l.b16 %v445
      %v798 = vunpack.c.l.b16 %v446
      %v799 = vunpack.c.l.b16 %v447
      %v800 = vpack.c.b16 %v753, %v752
      %v801 = vpack.c.b16 %v755, %v754
      %v802 = vpack.c.b16 %v757, %v756
      %v803 = vpack.c.b16 %v759, %v758
      %v804 = vpack.c.b16 %v761, %v760
      %v805 = vpack.c.b16 %v763, %v762
      %v806 = vpack.c.b16 %v765, %v764
      %v807 = vpack.c.b16 %v767, %v766
      %v808 = vpack.c.b16 %v769, %v768
      %v809 = vpack.c.b16 %v771, %v770
      %v810 = vpack.c.b16 %v773, %v772
      %v811 = vpack.c.b16 %v775, %v774
      %v812 = vpack.c.b16 %v777, %v776
      %v813 = vpack.c.b16 %v779, %v778
      %v814 = vpack.c.b16 %v781, %v780
      %v815 = vpack.c.b16 %v783, %v782
      %v816 = vpack.c.b16 %v785, %v784
      %v817 = vpack.c.b16 %v787, %v786
      %v818 = vpack.c.b16 %v789, %v788
      %v819 = vpack.c.b16 %v791, %v790
      %v820 = vpack.c.b16 %v793, %v792
      %v821 = vpack.c.b16 %v795, %v794
      %v822 = vpack.c.b16 %v797, %v796
      %v823 = vpack.c.b16 %v799, %v798
      %848 = vmatprep.subr.bf16.mxu0 0
      %849 = vmatpush1.bf16.msra.mxu0 %v807
      %850 = vmatprep.subr.bf16.mxu0 0
      %851 = vmatpush1.bf16.msra.mxu0 %v806
      %852 = vmatprep.subr.bf16.mxu0 0
      %853 = vmatpush1.bf16.msra.mxu0 %v805
      %854 = vmatprep.subr.bf16.mxu0 0
      %855 = vmatpush1.bf16.msra.mxu0 %v804
      %856 = vmatprep.subr.bf16.mxu0 0
      %857 = vmatpush1.bf16.msra.mxu0 %v803
      %858 = vmatprep.subr.bf16.mxu0 0
      %859 = vmatpush1.bf16.msra.mxu0 %v802
      %860 = vmatprep.subr.bf16.mxu0 0
      %861 = vmatpush1.bf16.msra.mxu0 %v801
      %862 = vmatprep.subr.bf16.mxu0 0
      %863 = vmatpush1.bf16.msra.mxu0 %v800
      %864 = vmatprep.subr.bf16.mxu0 0
      %865 = vmatpush2.bf16.msra.mxu0 %v815
      %866 = vmatprep.subr.bf16.mxu0 0
      %867 = vmatpush2.bf16.msra.mxu0 %v814
      %868 = vmatprep.subr.bf16.mxu0 0
      %869 = vmatpush2.bf16.msra.mxu0 %v813
      %870 = vmatprep.subr.bf16.mxu0 0
      %871 = vmatpush2.bf16.msra.mxu0 %v812
      %872 = vmatprep.subr.bf16.mxu0 0
      %873 = vmatpush2.bf16.msra.mxu0 %v811
      %874 = vmatprep.subr.bf16.mxu0 0
      %875 = vmatpush2.bf16.msra.mxu0 %v810
      %876 = vmatprep.subr.bf16.mxu0 0
      %877 = vmatpush2.bf16.msra.mxu0 %v809
      %878 = vmatprep.subr.bf16.mxu0 0
      %879 = vmatpush2.bf16.msra.mxu0 %v808
      %880 = vmatprep.mubr.bf16.mxu0 %v609
      %881 = vmatmul.mubr.bf16.gmra.mxu0 %v608
      %v882 = vpop.f32.mrf.mxu0
      %v883 = vadd.f32 0.0, %v882
      %v884 = vpop.f32.mrf.mxu0
      %v885 = vpop.f32.mrf.mxu0
      %v886 = vadd.f32 0.0, %v885
      %v887 = vpop.f32.mrf.mxu0
      %888 = vmatprep.mubr.bf16.mxu0 %v612
      %889 = vmatmul.mubr.bf16.gmra.mxu0 %v611
      %v890 = vpop.f32.mrf.mxu0
      %v891 = vadd.f32 0.0, %v890
      %v892 = vpop.f32.mrf.mxu0
      %v893 = vpop.f32.mrf.mxu0
      %v894 = vadd.f32 0.0, %v893
      %v895 = vpop.f32.mrf.mxu0
      %896 = vmatprep.mubr.bf16.mxu0 %v615
      %897 = vmatmul.mubr.bf16.gmra.mxu0 %v614
      %v898 = vpop.f32.mrf.mxu0
      %v899 = vadd.f32 0.0, %v898
      %v900 = vpop.f32.mrf.mxu0
      %v901 = vpop.f32.mrf.mxu0
      %v902 = vadd.f32 0.0, %v901
      %v903 = vpop.f32.mrf.mxu0
      %904 = vmatprep.mubr.bf16.mxu0 %v618
      %905 = vmatmul.mubr.bf16.gmra.mxu0 %v617
      %v906 = vpop.f32.mrf.mxu0
      %v907 = vadd.f32 0.0, %v906
      %v908 = vpop.f32.mrf.mxu0
      %v909 = vpop.f32.mrf.mxu0
      %v910 = vadd.f32 0.0, %v909
      %v911 = vpop.f32.mrf.mxu0
      %912 = vmatprep.mubr.bf16.mxu0 %v621
      %913 = vmatmul.mubr.bf16.gmra.mxu0 %v620
      %v914 = vpop.f32.mrf.mxu0
      %v915 = vadd.f32 0.0, %v914
      %v916 = vpop.f32.mrf.mxu0
      %v917 = vpop.f32.mrf.mxu0
      %v918 = vadd.f32 0.0, %v917
      %v919 = vpop.f32.mrf.mxu0
      %920 = vmatprep.mubr.bf16.mxu0 %v624
      %921 = vmatmul.mubr.bf16.gmra.mxu0 %v623
      %v922 = vpop.f32.mrf.mxu0
      %v923 = vadd.f32 0.0, %v922
      %v924 = vpop.f32.mrf.mxu0
      %v925 = vpop.f32.mrf.mxu0
      %v926 = vadd.f32 0.0, %v925
      %v927 = vpop.f32.mrf.mxu0
      %928 = vmatprep.mubr.bf16.mxu0 %v627
      %929 = vmatmul.mubr.bf16.gmra.mxu0 %v626
      %v930 = vpop.f32.mrf.mxu0
      %v931 = vadd.f32 0.0, %v930
      %v932 = vpop.f32.mrf.mxu0
      %v933 = vpop.f32.mrf.mxu0
      %v934 = vadd.f32 0.0, %v933
      %v935 = vpop.f32.mrf.mxu0
      %936 = vmatprep.mubr.bf16.mxu0 %v630
      %937 = vmatmul.mubr.bf16.gmra.mxu0 %v629
      %v938 = vpop.f32.mrf.mxu0
      %v939 = vadd.f32 0.0, %v938
      %v940 = vpop.f32.mrf.mxu0
      %v941 = vpop.f32.mrf.mxu0
      %v942 = vadd.f32 0.0, %v941
      %v943 = vpop.f32.mrf.mxu0
      %944 = vmatprep.mubr.bf16.mxu0 %v633
      %945 = vmatmul.mubr.bf16.gmra.mxu0 %v632
      %v946 = vpop.f32.mrf.mxu0
      %v947 = vadd.f32 0.0, %v946
      %v948 = vpop.f32.mrf.mxu0
      %v949 = vpop.f32.mrf.mxu0
      %v950 = vadd.f32 0.0, %v949
      %v951 = vpop.f32.mrf.mxu0
      %952 = vmatprep.mubr.bf16.mxu0 %v636
      %953 = vmatmul.mubr.bf16.gmra.mxu0 %v635
      %v954 = vpop.f32.mrf.mxu0
      %v955 = vadd.f32 0.0, %v954
      %v956 = vpop.f32.mrf.mxu0
      %v957 = vpop.f32.mrf.mxu0
      %v958 = vadd.f32 0.0, %v957
      %v959 = vpop.f32.mrf.mxu0
      %960 = vmatprep.mubr.bf16.mxu0 %v639
      %961 = vmatmul.mubr.bf16.gmra.mxu0 %v638
      %v962 = vpop.f32.mrf.mxu0
      %v963 = vadd.f32 0.0, %v962
      %v964 = vpop.f32.mrf.mxu0
      %v965 = vpop.f32.mrf.mxu0
      %v966 = vadd.f32 0.0, %v965
      %v967 = vpop.f32.mrf.mxu0
      %968 = vmatprep.mubr.bf16.mxu0 %v642
      %969 = vmatmul.mubr.bf16.gmra.mxu0 %v641
      %v970 = vpop.f32.mrf.mxu0
      %v971 = vadd.f32 0.0, %v970
      %v972 = vpop.f32.mrf.mxu0
      %v973 = vpop.f32.mrf.mxu0
      %v974 = vadd.f32 0.0, %v973
      %v975 = vpop.f32.mrf.mxu0
      %976 = vmatprep.mubr.bf16.mxu0 %v645
      %977 = vmatmul.mubr.bf16.gmra.mxu0 %v644
      %v978 = vpop.f32.mrf.mxu0
      %v979 = vadd.f32 0.0, %v978
      %v980 = vpop.f32.mrf.mxu0
      %v981 = vpop.f32.mrf.mxu0
      %v982 = vadd.f32 0.0, %v981
      %v983 = vpop.f32.mrf.mxu0
      %984 = vmatprep.mubr.bf16.mxu0 %v648
      %985 = vmatmul.mubr.bf16.gmra.mxu0 %v647
      %v986 = vpop.f32.mrf.mxu0
      %v987 = vadd.f32 0.0, %v986
      %v988 = vpop.f32.mrf.mxu0
      %v989 = vpop.f32.mrf.mxu0
      %v990 = vadd.f32 0.0, %v989
      %v991 = vpop.f32.mrf.mxu0
      %992 = vmatprep.mubr.bf16.mxu0 %v651
      %993 = vmatmul.mubr.bf16.gmra.mxu0 %v650
      %v994 = vpop.f32.mrf.mxu0
      %v995 = vadd.f32 0.0, %v994
      %v996 = vpop.f32.mrf.mxu0
      %v997 = vpop.f32.mrf.mxu0
      %v998 = vadd.f32 0.0, %v997
      %v999 = vpop.f32.mrf.mxu0
      %1000 = vmatprep.mubr.bf16.mxu0 %v654
      %1001 = vmatmul.mubr.bf16.gmra.mxu0 %v653
      %v1002 = vpop.f32.mrf.mxu0
      %v1003 = vadd.f32 0.0, %v1002
      %v1004 = vpop.f32.mrf.mxu0
      %v1005 = vpop.f32.mrf.mxu0
      %v1006 = vadd.f32 0.0, %v1005
      %v1007 = vpop.f32.mrf.mxu0
      %1008 = vdwg.mxu0
      %1009 = vmatprep.subr.bf16.mxu0 0
      %1010 = vmatpush1.bf16.msra.mxu0 %v823
      %1011 = vmatprep.subr.bf16.mxu0 0
      %1012 = vmatpush1.bf16.msra.mxu0 %v822
      %1013 = vmatprep.subr.bf16.mxu0 0
      %1014 = vmatpush1.bf16.msra.mxu0 %v821
      %1015 = vmatprep.subr.bf16.mxu0 0
      %1016 = vmatpush1.bf16.msra.mxu0 %v820
      %1017 = vmatprep.subr.bf16.mxu0 0
      %1018 = vmatpush1.bf16.msra.mxu0 %v819
      %1019 = vmatprep.subr.bf16.mxu0 0
      %1020 = vmatpush1.bf16.msra.mxu0 %v818
      %1021 = vmatprep.subr.bf16.mxu0 0
      %1022 = vmatpush1.bf16.msra.mxu0 %v817
      %1023 = vmatprep.subr.bf16.mxu0 0
      %1024 = vmatpush1.bf16.msra.mxu0 %v816
      %1025 = vmatprep.subr.bf16.mxu0 0
      %1026 = vmatpush2.bf16.msra.mxu0 0
      %1027 = vmatprep.subr.bf16.mxu0 0
      %1028 = vmatpush2.bf16.msra.mxu0 0
      %1029 = vmatprep.subr.bf16.mxu0 0
      %1030 = vmatpush2.bf16.msra.mxu0 0
      %1031 = vmatprep.subr.bf16.mxu0 0
      %1032 = vmatpush2.bf16.msra.mxu0 0
      %1033 = vmatprep.subr.bf16.mxu0 0
      %1034 = vmatpush2.bf16.msra.mxu0 0
      %1035 = vmatprep.subr.bf16.mxu0 0
      %1036 = vmatpush2.bf16.msra.mxu0 0
      %1037 = vmatprep.subr.bf16.mxu0 0
      %1038 = vmatpush2.bf16.msra.mxu0 0
      %1039 = vmatprep.subr.bf16.mxu0 0
      %1040 = vmatpush2.bf16.msra.mxu0 0
      %1041 = vmatprep.mubr.bf16.mxu0 0
      %1042 = vmatmul.mubr.bf16.gmra.mxu0 %v610
      %v1043 = vpop.f32.mrf.mxu0
      %v1044 = vadd.f32 %v883, %v1043
      %v1045 = vpop.f32.mrf.mxu0
      %v1046 = vpop.f32.mrf.mxu0
      %v1047 = vadd.f32 %v886, %v1046
      %v1048 = vpop.f32.mrf.mxu0
      %1049 = vmatprep.mubr.bf16.mxu0 0
      %1050 = vmatmul.mubr.bf16.gmra.mxu0 %v613
      %v1051 = vpop.f32.mrf.mxu0
      %v1052 = vadd.f32 %v891, %v1051
      %v1053 = vpop.f32.mrf.mxu0
      %v1054 = vpop.f32.mrf.mxu0
      %v1055 = vadd.f32 %v894, %v1054
      %v1056 = vpop.f32.mrf.mxu0
      %1057 = vmatprep.mubr.bf16.mxu0 0
      %1058 = vmatmul.mubr.bf16.gmra.mxu0 %v616
      %v1059 = vpop.f32.mrf.mxu0
      %v1060 = vadd.f32 %v899, %v1059
      %v1061 = vpop.f32.mrf.mxu0
      %v1062 = vpop.f32.mrf.mxu0
      %v1063 = vadd.f32 %v902, %v1062
      %v1064 = vpop.f32.mrf.mxu0
      %1065 = vmatprep.mubr.bf16.mxu0 0
      %1066 = vmatmul.mubr.bf16.gmra.mxu0 %v619
      %v1067 = vpop.f32.mrf.mxu0
      %v1068 = vadd.f32 %v907, %v1067
      %v1069 = vpop.f32.mrf.mxu0
      %v1070 = vpop.f32.mrf.mxu0
      %v1071 = vadd.f32 %v910, %v1070
      %v1072 = vpop.f32.mrf.mxu0
      %1073 = vmatprep.mubr.bf16.mxu0 0
      %1074 = vmatmul.mubr.bf16.gmra.mxu0 %v622
      %v1075 = vpop.f32.mrf.mxu0
      %v1076 = vadd.f32 %v915, %v1075
      %v1077 = vpop.f32.mrf.mxu0
      %v1078 = vpop.f32.mrf.mxu0
      %v1079 = vadd.f32 %v918, %v1078
      %v1080 = vpop.f32.mrf.mxu0
      %1081 = vmatprep.mubr.bf16.mxu0 0
      %1082 = vmatmul.mubr.bf16.gmra.mxu0 %v625
      %v1083 = vpop.f32.mrf.mxu0
      %v1084 = vadd.f32 %v923, %v1083
      %v1085 = vpop.f32.mrf.mxu0
      %v1086 = vpop.f32.mrf.mxu0
      %v1087 = vadd.f32 %v926, %v1086
      %v1088 = vpop.f32.mrf.mxu0
      %1089 = vmatprep.mubr.bf16.mxu0 0
      %1090 = vmatmul.mubr.bf16.gmra.mxu0 %v628
      %v1091 = vpop.f32.mrf.mxu0
      %v1092 = vadd.f32 %v931, %v1091
      %v1093 = vpop.f32.mrf.mxu0
      %v1094 = vpop.f32.mrf.mxu0
      %v1095 = vadd.f32 %v934, %v1094
      %v1096 = vpop.f32.mrf.mxu0
      %1097 = vmatprep.mubr.bf16.mxu0 0
      %1098 = vmatmul.mubr.bf16.gmra.mxu0 %v631
      %v1099 = vpop.f32.mrf.mxu0
      %v1100 = vadd.f32 %v939, %v1099
      %v1101 = vpop.f32.mrf.mxu0
      %v1102 = vpop.f32.mrf.mxu0
      %v1103 = vadd.f32 %v942, %v1102
      %v1104 = vpop.f32.mrf.mxu0
      %1105 = vmatprep.mubr.bf16.mxu0 0
      %1106 = vmatmul.mubr.bf16.gmra.mxu0 %v634
      %v1107 = vpop.f32.mrf.mxu0
      %v1108 = vadd.f32 %v947, %v1107
      %v1109 = vpop.f32.mrf.mxu0
      %v1110 = vpop.f32.mrf.mxu0
      %v1111 = vadd.f32 %v950, %v1110
      %v1112 = vpop.f32.mrf.mxu0
      %1113 = vmatprep.mubr.bf16.mxu0 0
      %1114 = vmatmul.mubr.bf16.gmra.mxu0 %v637
      %v1115 = vpop.f32.mrf.mxu0
      %v1116 = vadd.f32 %v955, %v1115
      %v1117 = vpop.f32.mrf.mxu0
      %v1118 = vpop.f32.mrf.mxu0
      %v1119 = vadd.f32 %v958, %v1118
      %v1120 = vpop.f32.mrf.mxu0
      %1121 = vmatprep.mubr.bf16.mxu0 0
      %1122 = vmatmul.mubr.bf16.gmra.mxu0 %v640
      %v1123 = vpop.f32.mrf.mxu0
      %v1124 = vadd.f32 %v963, %v1123
      %v1125 = vpop.f32.mrf.mxu0
      %v1126 = vpop.f32.mrf.mxu0
      %v1127 = vadd.f32 %v966, %v1126
      %v1128 = vpop.f32.mrf.mxu0
      %1129 = vmatprep.mubr.bf16.mxu0 0
      %1130 = vmatmul.mubr.bf16.gmra.mxu0 %v643
      %v1131 = vpop.f32.mrf.mxu0
      %v1132 = vadd.f32 %v971, %v1131
      %v1133 = vpop.f32.mrf.mxu0
      %v1134 = vpop.f32.mrf.mxu0
      %v1135 = vadd.f32 %v974, %v1134
      %v1136 = vpop.f32.mrf.mxu0
      %1137 = vmatprep.mubr.bf16.mxu0 0
      %1138 = vmatmul.mubr.bf16.gmra.mxu0 %v646
      %v1139 = vpop.f32.mrf.mxu0
      %v1140 = vadd.f32 %v979, %v1139
      %v1141 = vpop.f32.mrf.mxu0
      %v1142 = vpop.f32.mrf.mxu0
      %v1143 = vadd.f32 %v982, %v1142
      %v1144 = vpop.f32.mrf.mxu0
      %1145 = vmatprep.mubr.bf16.mxu0 0
      %1146 = vmatmul.mubr.bf16.gmra.mxu0 %v649
      %v1147 = vpop.f32.mrf.mxu0
      %v1148 = vadd.f32 %v987, %v1147
      %v1149 = vpop.f32.mrf.mxu0
      %v1150 = vpop.f32.mrf.mxu0
      %v1151 = vadd.f32 %v990, %v1150
      %v1152 = vpop.f32.mrf.mxu0
      %1153 = vmatprep.mubr.bf16.mxu0 0
      %1154 = vmatmul.mubr.bf16.gmra.mxu0 %v652
      %v1155 = vpop.f32.mrf.mxu0
      %v1156 = vadd.f32 %v995, %v1155
      %v1157 = vpop.f32.mrf.mxu0
      %v1158 = vpop.f32.mrf.mxu0
      %v1159 = vadd.f32 %v998, %v1158
      %v1160 = vpop.f32.mrf.mxu0
      %1161 = vmatprep.mubr.bf16.mxu0 0
      %1162 = vmatmul.mubr.bf16.gmra.mxu0 %v655
      %v1163 = vpop.f32.mrf.mxu0
      %v1164 = vadd.f32 %v1003, %v1163
      %v1165 = vpop.f32.mrf.mxu0
      %v1166 = vpop.f32.mrf.mxu0
      %v1167 = vadd.f32 %v1006, %v1166
      %v1168 = vpop.f32.mrf.mxu0
      %1169 = vdwg.mxu0
      %v1170 = vadd.f32 %v304, %v1044
      %v1171 = vadd.f32 %v305, %v1047
      %v1172 = vadd.f32 %v306, %v1052
      %v1173 = vadd.f32 %v307, %v1055
      %v1174 = vadd.f32 %v308, %v1060
      %v1175 = vadd.f32 %v309, %v1063
      %v1176 = vadd.f32 %v310, %v1068
      %v1177 = vadd.f32 %v311, %v1071
      %v1178 = vadd.f32 %v312, %v1076
      %v1179 = vadd.f32 %v313, %v1079
      %v1180 = vadd.f32 %v314, %v1084
      %v1181 = vadd.f32 %v315, %v1087
      %v1182 = vadd.f32 %v316, %v1092
      %v1183 = vadd.f32 %v317, %v1095
      %v1184 = vadd.f32 %v318, %v1100
      %v1185 = vadd.f32 %v319, %v1103
      %v1186 = vadd.f32 %v320, %v1108
      %v1187 = vadd.f32 %v321, %v1111
      %v1188 = vadd.f32 %v322, %v1116
      %v1189 = vadd.f32 %v323, %v1119
      %v1190 = vadd.f32 %v324, %v1124
      %v1191 = vadd.f32 %v325, %v1127
      %v1192 = vadd.f32 %v326, %v1132
      %v1193 = vadd.f32 %v327, %v1135
      %v1194 = vadd.f32 %v328, %v1140
      %v1195 = vadd.f32 %v329, %v1143
      %v1196 = vadd.f32 %v330, %v1148
      %v1197 = vadd.f32 %v331, %v1151
      %v1198 = vadd.f32 %v332, %v1156
      %v1199 = vadd.f32 %v333, %v1159
      %v1200 = vadd.f32 %v334, %v1164
      %v1201 = vadd.f32 %v335, %v1167
      %1202 = vst [vmem:[#allocation2] sm:$0xff] %v1170
      %1203 = vst [vmem:[#allocation2 + $0x8] sm:$0xff] %v1171
      %1204 = vst [vmem:[#allocation2 + $0x10] sm:$0xff] %v1172
      %1205 = vst [vmem:[#allocation2 + $0x18] sm:$0xff] %v1173
      %1206 = vst [vmem:[#allocation2 + $0x20] sm:$0xff] %v1174
      %1207 = vst [vmem:[#allocation2 + $0x28] sm:$0xff] %v1175
      %1208 = vst [vmem:[#allocation2 + $0x30] sm:$0xff] %v1176
      %1209 = vst [vmem:[#allocation2 + $0x38] sm:$0xff] %v1177
      %1210 = vst [vmem:[#allocation2 + $0x40] sm:$0xff] %v1178
      %1211 = vst [vmem:[#allocation2 + $0x48] sm:$0xff] %v1179
      %1212 = vst [vmem:[#allocation2 + $0x50] sm:$0xff] %v1180
      %1213 = vst [vmem:[#allocation2 + $0x58] sm:$0xff] %v1181
      %1214 = vst [vmem:[#allocation2 + $0x60] sm:$0xff] %v1182
      %1215 = vst [vmem:[#allocation2 + $0x68] sm:$0xff] %v1183
      %1216 = vst [vmem:[#allocation2 + $0x70] sm:$0xff] %v1184
      %1217 = vst [vmem:[#allocation2 + $0x78] sm:$0xff] %v1185
      %1218 = vst [vmem:[#allocation2 + $0x80] sm:$0xff] %v1186
      %1219 = vst [vmem:[#allocation2 + $0x88] sm:$0xff] %v1187
      %1220 = vst [vmem:[#allocation2 + $0x90] sm:$0xff] %v1188
      %1221 = vst [vmem:[#allocation2 + $0x98] sm:$0xff] %v1189
      %1222 = vst [vmem:[#allocation2 + $0xa0] sm:$0xff] %v1190
      %1223 = vst [vmem:[#allocation2 + $0xa8] sm:$0xff] %v1191
      %1224 = vst [vmem:[#allocation2 + $0xb0] sm:$0xff] %v1192
      %1225 = vst [vmem:[#allocation2 + $0xb8] sm:$0xff] %v1193
      %1226 = vst [vmem:[#allocation2 + $0xc0] sm:$0xff] %v1194
      %1227 = vst [vmem:[#allocation2 + $0xc8] sm:$0xff] %v1195
      %1228 = vst [vmem:[#allocation2 + $0xd0] sm:$0xff] %v1196
      %1229 = vst [vmem:[#allocation2 + $0xd8] sm:$0xff] %v1197
      %1230 = vst [vmem:[#allocation2 + $0xe0] sm:$0xff] %v1198
      %1231 = vst [vmem:[#allocation2 + $0xe8] sm:$0xff] %v1199
      %1232 = vst [vmem:[#allocation2 + $0xf0] sm:$0xff] %v1200
      %1233 = vst [vmem:[#allocation2 + $0xf8] sm:$0xff] %v1201
      // Predicated region
      $region37: #{forward.12} parent=31 // pred_check
        %p1234 = pneg %p268
      $region38: #{forward.12} parent=31 // pred_check_branch
        %1236 = sbr.rel (%p1234) target = $region40
      $region39: #{forward.12} parent=31 // pred_region
        %v1237 = vld [vmem:[#allocation2] sm:$0xff]
        %v1238 = vld [vmem:[#allocation2 + $0x8] sm:$0xff]
        %v1239 = vld [vmem:[#allocation2 + $0x10] sm:$0xff]
        %v1240 = vld [vmem:[#allocation2 + $0x18] sm:$0xff]
        %v1241 = vld [vmem:[#allocation2 + $0x20] sm:$0xff]
        %v1242 = vld [vmem:[#allocation2 + $0x28] sm:$0xff]
        %v1243 = vld [vmem:[#allocation2 + $0x30] sm:$0xff]
        %v1244 = vld [vmem:[#allocation2 + $0x38] sm:$0xff]
        %v1245 = vld [vmem:[#allocation2 + $0x40] sm:$0xff]
        %v1246 = vld [vmem:[#allocation2 + $0x48] sm:$0xff]
        %v1247 = vld [vmem:[#allocation2 + $0x50] sm:$0xff]
        %v1248 = vld [vmem:[#allocation2 + $0x58] sm:$0xff]
        %v1249 = vld [vmem:[#allocation2 + $0x60] sm:$0xff]
        %v1250 = vld [vmem:[#allocation2 + $0x68] sm:$0xff]
        %v1251 = vld [vmem:[#allocation2 + $0x70] sm:$0xff]
        %v1252 = vld [vmem:[#allocation2 + $0x78] sm:$0xff]
        %v1253 = vld [vmem:[#allocation2 + $0x80] sm:$0xff]
        %v1254 = vld [vmem:[#allocation2 + $0x88] sm:$0xff]
        %v1255 = vld [vmem:[#allocation2 + $0x90] sm:$0xff]
        %v1256 = vld [vmem:[#allocation2 + $0x98] sm:$0xff]
        %v1257 = vld [vmem:[#allocation2 + $0xa0] sm:$0xff]
        %v1258 = vld [vmem:[#allocation2 + $0xa8] sm:$0xff]
        %v1259 = vld [vmem:[#allocation2 + $0xb0] sm:$0xff]
        %v1260 = vld [vmem:[#allocation2 + $0xb8] sm:$0xff]
        %v1261 = vld [vmem:[#allocation2 + $0xc0] sm:$0xff]
        %v1262 = vld [vmem:[#allocation2 + $0xc8] sm:$0xff]
        %v1263 = vld [vmem:[#allocation2 + $0xd0] sm:$0xff]
        %v1264 = vld [vmem:[#allocation2 + $0xd8] sm:$0xff]
        %v1265 = vld [vmem:[#allocation2 + $0xe0] sm:$0xff]
        %v1266 = vld [vmem:[#allocation2 + $0xe8] sm:$0xff]
        %v1267 = vld [vmem:[#allocation2 + $0xf0] sm:$0xff]
        %v1268 = vld [vmem:[#allocation2 + $0xf8] sm:$0xff]
        %v1269 = vld [vmem:[%s257] sm:$0x1]
        %v1271 = vlaneseq
        %v1272 = vshrl.u32 %v1271, 7
        %v1273 = vsub.s32 0, %v1272
        %v1274 = vrot.slane %v1269, %v1273
        %v1276 = vadd.f32 %v1237, %v1274
        %v1277 = vadd.f32 %v1238, %v1274
        %v1278 = vadd.f32 %v1239, %v1274
        %v1279 = vadd.f32 %v1240, %v1274
        %v1280 = vadd.f32 %v1241, %v1274
        %v1281 = vadd.f32 %v1242, %v1274
        %v1282 = vadd.f32 %v1243, %v1274
        %v1283 = vadd.f32 %v1244, %v1274
        %v1284 = vadd.f32 %v1245, %v1274
        %v1285 = vadd.f32 %v1246, %v1274
        %v1286 = vadd.f32 %v1247, %v1274
        %v1287 = vadd.f32 %v1248, %v1274
        %v1288 = vadd.f32 %v1249, %v1274
        %v1289 = vadd.f32 %v1250, %v1274
        %v1290 = vadd.f32 %v1251, %v1274
        %v1291 = vadd.f32 %v1252, %v1274
        %v1292 = vadd.f32 %v1253, %v1274
        %v1293 = vadd.f32 %v1254, %v1274
        %v1294 = vadd.f32 %v1255, %v1274
        %v1295 = vadd.f32 %v1256, %v1274
        %v1296 = vadd.f32 %v1257, %v1274
        %v1297 = vadd.f32 %v1258, %v1274
        %v1298 = vadd.f32 %v1259, %v1274
        %v1299 = vadd.f32 %v1260, %v1274
        %v1300 = vadd.f32 %v1261, %v1274
        %v1301 = vadd.f32 %v1262, %v1274
        %v1302 = vadd.f32 %v1263, %v1274
        %v1303 = vadd.f32 %v1264, %v1274
        %v1304 = vadd.f32 %v1265, %v1274
        %v1305 = vadd.f32 %v1266, %v1274
        %v1306 = vadd.f32 %v1267, %v1274
        %v1307 = vadd.f32 %v1268, %v1274
        %v1308 = vmax.f32 %v1276, 0.0
        %v1309 = vmax.f32 %v1277, 0.0
        %v1310 = vmax.f32 %v1278, 0.0
        %v1311 = vmax.f32 %v1279, 0.0
        %v1312 = vmax.f32 %v1280, 0.0
        %v1313 = vmax.f32 %v1281, 0.0
        %v1314 = vmax.f32 %v1282, 0.0
        %v1315 = vmax.f32 %v1283, 0.0
        %v1316 = vmax.f32 %v1284, 0.0
        %v1317 = vmax.f32 %v1285, 0.0
        %v1318 = vmax.f32 %v1286, 0.0
        %v1319 = vmax.f32 %v1287, 0.0
        %v1320 = vmax.f32 %v1288, 0.0
        %v1321 = vmax.f32 %v1289, 0.0
        %v1322 = vmax.f32 %v1290, 0.0
        %v1323 = vmax.f32 %v1291, 0.0
        %v1324 = vmax.f32 %v1292, 0.0
        %v1325 = vmax.f32 %v1293, 0.0
        %v1326 = vmax.f32 %v1294, 0.0
        %v1327 = vmax.f32 %v1295, 0.0
        %v1328 = vmax.f32 %v1296, 0.0
        %v1329 = vmax.f32 %v1297, 0.0
        %v1330 = vmax.f32 %v1298, 0.0
        %v1331 = vmax.f32 %v1299, 0.0
        %v1332 = vmax.f32 %v1300, 0.0
        %v1333 = vmax.f32 %v1301, 0.0
        %v1334 = vmax.f32 %v1302, 0.0
        %v1335 = vmax.f32 %v1303, 0.0
        %v1336 = vmax.f32 %v1304, 0.0
        %v1337 = vmax.f32 %v1305, 0.0
        %v1338 = vmax.f32 %v1306, 0.0
        %v1339 = vmax.f32 %v1307, 0.0
        %v1340 = vpack.c.bf16 %v1309, %v1308
        %v1341 = vpack.c.bf16 %v1311, %v1310
        %v1342 = vpack.c.bf16 %v1313, %v1312
        %v1343 = vpack.c.bf16 %v1315, %v1314
        %v1344 = vpack.c.bf16 %v1317, %v1316
        %v1345 = vpack.c.bf16 %v1319, %v1318
        %v1346 = vpack.c.bf16 %v1321, %v1320
        %v1347 = vpack.c.bf16 %v1323, %v1322
        %v1348 = vpack.c.bf16 %v1325, %v1324
        %v1349 = vpack.c.bf16 %v1327, %v1326
        %v1350 = vpack.c.bf16 %v1329, %v1328
        %v1351 = vpack.c.bf16 %v1331, %v1330
        %v1352 = vpack.c.bf16 %v1333, %v1332
        %v1353 = vpack.c.bf16 %v1335, %v1334
        %v1354 = vpack.c.bf16 %v1337, %v1336
        %v1355 = vpack.c.bf16 %v1339, %v1338
        %v1372 = vunpack.c.l.b16 %v1340
        %v1373 = vunpack.c.h.b16 %v1340
        %v1374 = vunpack.c.l.b16 %v1341
        %v1375 = vunpack.c.h.b16 %v1341
        %v1376 = vunpack.c.l.b16 %v1342
        %v1377 = vunpack.c.h.b16 %v1342
        %v1378 = vunpack.c.l.b16 %v1343
        %v1379 = vunpack.c.h.b16 %v1343
        %v1380 = vunpack.c.l.b16 %v1344
        %v1381 = vunpack.c.h.b16 %v1344
        %v1382 = vunpack.c.l.b16 %v1345
        %v1383 = vunpack.c.h.b16 %v1345
        %v1384 = vunpack.c.l.b16 %v1346
        %v1385 = vunpack.c.h.b16 %v1346
        %v1386 = vunpack.c.l.b16 %v1347
        %v1387 = vunpack.c.h.b16 %v1347
        %v1388 = vunpack.c.l.b16 %v1348
        %v1389 = vunpack.c.h.b16 %v1348
        %v1390 = vunpack.c.l.b16 %v1349
        %v1391 = vunpack.c.h.b16 %v1349
        %v1392 = vunpack.c.l.b16 %v1350
        %v1393 = vunpack.c.h.b16 %v1350
        %v1394 = vunpack.c.l.b16 %v1351
        %v1395 = vunpack.c.h.b16 %v1351
        %v1396 = vunpack.c.l.b16 %v1352
        %v1397 = vunpack.c.h.b16 %v1352
        %v1398 = vunpack.c.l.b16 %v1353
        %v1399 = vunpack.c.h.b16 %v1353
        %v1400 = vunpack.c.l.b16 %v1354
        %v1401 = vunpack.c.h.b16 %v1354
        %v1402 = vunpack.c.l.b16 %v1355
        %v1403 = vunpack.c.h.b16 %v1355
        %v1404 = vpack.c.b16 %v1372, %v1372
        %v1405 = vpack.c.b16 %v1373, %v1373
        %v1406 = vpack.c.b16 %v1374, %v1374
        %v1407 = vpack.c.b16 %v1375, %v1375
        %v1408 = vpack.c.b16 %v1376, %v1376
        %v1409 = vpack.c.b16 %v1377, %v1377
        %v1410 = vpack.c.b16 %v1378, %v1378
        %v1411 = vpack.c.b16 %v1379, %v1379
        %v1412 = vpack.c.b16 %v1380, %v1380
        %v1413 = vpack.c.b16 %v1381, %v1381
        %v1414 = vpack.c.b16 %v1382, %v1382
        %v1415 = vpack.c.b16 %v1383, %v1383
        %v1416 = vpack.c.b16 %v1384, %v1384
        %v1417 = vpack.c.b16 %v1385, %v1385
        %v1418 = vpack.c.b16 %v1386, %v1386
        %v1419 = vpack.c.b16 %v1387, %v1387
        %v1420 = vpack.c.b16 %v1388, %v1388
        %v1421 = vpack.c.b16 %v1389, %v1389
        %v1422 = vpack.c.b16 %v1390, %v1390
        %v1423 = vpack.c.b16 %v1391, %v1391
        %v1424 = vpack.c.b16 %v1392, %v1392
        %v1425 = vpack.c.b16 %v1393, %v1393
        %v1426 = vpack.c.b16 %v1394, %v1394
        %v1427 = vpack.c.b16 %v1395, %v1395
        %v1428 = vpack.c.b16 %v1396, %v1396
        %v1429 = vpack.c.b16 %v1397, %v1397
        %v1430 = vpack.c.b16 %v1398, %v1398
        %v1431 = vpack.c.b16 %v1399, %v1399
        %v1432 = vpack.c.b16 %v1400, %v1400
        %v1433 = vpack.c.b16 %v1401, %v1401
        %v1434 = vpack.c.b16 %v1402, %v1402
        %v1435 = vpack.c.b16 %v1403, %v1403
        %1468 = vst [vmem:[%s265] sm:$0xf] %v1404
        %1469 = vst [vmem:[%s265 + $0x4] sm:$0xf] %v1405
        %1470 = vst [vmem:[%s265 + $0x8] sm:$0xf] %v1406
        %1471 = vst [vmem:[%s265 + $0xc] sm:$0xf] %v1407
        %1472 = vst [vmem:[%s265 + $0x10] sm:$0xf] %v1408
        %1473 = vst [vmem:[%s265 + $0x14] sm:$0xf] %v1409
        %1474 = vst [vmem:[%s265 + $0x18] sm:$0xf] %v1410
        %1475 = vst [vmem:[%s265 + $0x1c] sm:$0xf] %v1411
        %1476 = vst [vmem:[%s265 + $0x20] sm:$0xf] %v1412
        %1477 = vst [vmem:[%s265 + $0x24] sm:$0xf] %v1413
        %1478 = vst [vmem:[%s265 + $0x28] sm:$0xf] %v1414
        %1479 = vst [vmem:[%s265 + $0x2c] sm:$0xf] %v1415
        %1480 = vst [vmem:[%s265 + $0x30] sm:$0xf] %v1416
        %1481 = vst [vmem:[%s265 + $0x34] sm:$0xf] %v1417
        %1482 = vst [vmem:[%s265 + $0x38] sm:$0xf] %v1418
        %1483 = vst [vmem:[%s265 + $0x3c] sm:$0xf] %v1419
        %1484 = vst [vmem:[%s265 + $0x40] sm:$0xf] %v1420
        %1485 = vst [vmem:[%s265 + $0x44] sm:$0xf] %v1421
        %1486 = vst [vmem:[%s265 + $0x48] sm:$0xf] %v1422
        %1487 = vst [vmem:[%s265 + $0x4c] sm:$0xf] %v1423
        %1488 = vst [vmem:[%s265 + $0x50] sm:$0xf] %v1424
        %1489 = vst [vmem:[%s265 + $0x54] sm:$0xf] %v1425
        %1490 = vst [vmem:[%s265 + $0x58] sm:$0xf] %v1426
        %1491 = vst [vmem:[%s265 + $0x5c] sm:$0xf] %v1427
        %1492 = vst [vmem:[%s265 + $0x60] sm:$0xf] %v1428
        %1493 = vst [vmem:[%s265 + $0x64] sm:$0xf] %v1429
        %1494 = vst [vmem:[%s265 + $0x68] sm:$0xf] %v1430
        %1495 = vst [vmem:[%s265 + $0x6c] sm:$0xf] %v1431
        %1496 = vst [vmem:[%s265 + $0x70] sm:$0xf] %v1432
        %1497 = vst [vmem:[%s265 + $0x74] sm:$0xf] %v1433
        %1498 = vst [vmem:[%s265 + $0x78] sm:$0xf] %v1434
        %1499 = vst [vmem:[%s265 + $0x7c] sm:$0xf] %v1435
      $region40: #{forward.12} parent=31 // pred_fallthru
        _
      %s1500 = smul.u32 32, %s19
      %p1501 = scmp.lt.s32.totalorder %s1500, 319
      %s1502 = scalar_select %p1501, %s1500, 319
      %p1503 = scmp.lt.s32.totalorder %s20, 0
      %s1504 = scalar_select %p1503, %s20, 0
      %s1505 = sadd.s32 %s1504, %s1502
      %s1506 = smul.addr %s1505, 4
      %s1507 = scalar_lea.vmem %s3, %s1506
      // Predicated region
      $region41: #{forward.12} parent=31 // pred_check
        %p1508 = pneg %p135
      $region42: #{forward.12} parent=31 // pred_check_branch
        %1510 = sbr.rel (%p1508) target = $region44
      $region43: #{forward.12} parent=31 // pred_region
        %s1511 = smul.u32 32, %s19
      $region44: #{forward.12} parent=31 // pred_fallthru
        _
    $region32: #{forward.12} parent=5 // pred_fallthru
      _
    %p1512 = scmp.le.s32.totalorder 2, %s9
    // Predicated region
    $region45: #{forward.12} parent=5 // pred_check
      %p1513 = pneg %p1512
    $region46: #{forward.12} parent=5 // pred_check_branch
      %1515 = sbr.rel (%p1513) target = $region48
    $region47: #{forward.12} parent=5 // pred_region
      %s1516 = ssub.s32 %s9, 2
      // Predicated region
      $region49: #{forward.12} parent=47 // pred_check
        %p1517 = pneg %p141
      $region50: #{forward.12} parent=47 // pred_check_branch
        %1519 = sbr.rel (%p1517) target = $region52
      $region51: #{forward.12} parent=47 // pred_region
        %s1520 = smul.u32 32, %s22
        %p1521 = scmp.lt.s32.totalorder %s1520, 319
        %s1522 = scalar_select %p1521, %s1520, 319
        %p1523 = scmp.lt.s32.totalorder %s23, 0
        %s1524 = scalar_select %p1523, %s23, 0
        %s1525 = sadd.s32 %s1524, %s1522
        %s1526 = smul.addr %s1525, 4
        %s1527 = scalar_lea.vmem %s3, %s1526
      $region52: #{forward.12} parent=47 // pred_fallthru
        _
    $region48: #{forward.12} parent=5 // pred_fallthru
      _
  $region6: #{forward.12} parent=0 // loop_footer
    %s13 = sadd.s32 1, %s9
  $region7: #{forward.12} parent=0 // loop_footer_branch
    %8 = sbr.rel target = $region3
  $region8: #{forward.12} parent=0 // loop_exit
    _

// kernel: forward.14
$region0: #{forward.14}
  #allocation0 [shape = 'u32[]', space=smem, size = 0x4, offset = 0x4, fixed_abs, tag = 'smem constant byte address 0x4 - core index']
  #allocation1 [shape = 'u32[144,128]{1,0:T(1,128)}', space=vmem, size = 0x12000, scoped, tag = 'internal scratch']
  #allocation2 [shape = 'f32[256,128]{1,0:T(8,128)}', space=vmem, size = 0x20000, scoped, tag = 'scratch operand']
  %s0 = inlined_call_operand.vmem [shape: bf16[768,640], index: 0, kind: input, shape index: {}]
  %s1 = inlined_call_operand.vmem [shape: bf16[640,128], index: 1, kind: input, shape index: {}]
  %s2 = inlined_call_operand.vmem [shape: f32[1,128], index: 2, kind: input, shape index: {}]
  %s3 = inlined_call_operand.vmem [shape: bf16[768,128], index: 3, kind: output, shape index: {}]
  %s4 = sld [smem:[#allocation0]]
  $region53: #{forward.14} parent=0
    _
  %s6 = ssub.s32 1, %s4
  %s7 = scalar_select 0, %s6, %s4
  loop: start=0, step=1, limit=5
  $region2: #{forward.14} parent=0 // loop_pre_header
    _
  $region3: #{forward.14} parent=0 // loop_header
    %s9 = sphi 0, %s13
    %p10 = scmp.ge.s32.totalorder %s9, 5
    %s16 = sphi 0, %s35
    %s17 = sphi 0, %s31
    %s18 = sphi 0, %s27
    %s19 = sphi 0, %s16
    %s20 = sphi 0, %s17
    %s21 = sphi 0, %s18
    %s22 = sphi 0, %s19
    %s23 = sphi 0, %s20
    %s24 = sphi 0, %s21
    %s40 = sphi 0, %s42
    %s43 = sphi 0, %s40
    %s44 = sphi 0, %s43
    %s60 = sphi 0, %s44
    %s68 = sphi 0, %s70
    %s71 = sphi 0, %s68
    %s72 = sphi 0, %s71
    %s88 = sphi 0, %s72
    %s94 = sphi 0, %s96
    %s97 = sphi 0, %s94
    %s98 = sphi 0, %s97
    %s114 = sphi 0, %s98
    %s122 = sphi 0, %s124
    %s125 = sphi 0, %s122
    %s126 = sphi 0, %s125
    %s142 = sphi 0, %s126
  $region4: #{forward.14} parent=0 // loop_header_branch
    %12 = sbr.rel (%p10) target = $region8
  $region5: #{forward.14} parent=0 // loop_body
    %s14 = ssub.s32 %s9, 1
    %s15 = ssub.s32 %s9, 2
    %s25 = sadd.s32 1, %s18
    %p26 = scmp.ge.s32.totalorder %s25, 1
    %s27 = scalar_select %p26, 0, %s25
    %s28 = sadd.s32 1, %s17
    %s29 = scalar_select %p26, %s28, %s17
    %p30 = scmp.ge.s32.totalorder %s29, 1
    %s31 = scalar_select %p30, 0, %s29
    %s32 = sadd.s32 1, %s16
    %s33 = scalar_select %p30, %s32, %s16
    %p34 = scmp.ge.s32.totalorder %s33, 3
    %s35 = scalar_select %p34, 0, %s33
    %s36 = ssub.s32 %s16, %s35
    %s37 = ssub.s32 %s18, %s27
    %s38 = sor.u32 %s36, %s37
    %p39 = scmp.eq.s32.totalorder %s38, 0
    %s41 = sadd.s32 %s40, 1
    %s42 = scalar_select %p39, %s40, %s41
    %p45 = pneg %p39
    %p46 = scmp.eq.s32.totalorder %s9, 2
    %p47 = por %p45, %p46
    %p48 = scmp.ne.s32.totalorder %s40, %s43
    %p49 = scmp.eq.s32.totalorder %s9, 0
    %p50 = por %p48, %p49
    %p51 = scmp.ne.s32.totalorder %s40, %s43
    %p52 = scmp.eq.s32.totalorder %s14, 2
    %p53 = por %p51, %p52
    %p54 = scmp.ne.s32.totalorder %s43, %s44
    %p55 = scmp.eq.s32.totalorder %s14, 0
    %p56 = por %p54, %p55
    %p57 = scmp.ne.s32.totalorder %s43, %s44
    %p58 = scmp.eq.s32.totalorder %s15, 2
    %p59 = por %p57, %p58
    %p61 = scmp.ne.s32.totalorder %s44, %s60
    %p62 = scmp.eq.s32.totalorder %s15, 0
    %p63 = por %p61, %p62
    %s64 = ssub.s32 %s18, %s27
    %s65 = ssub.s32 %s17, %s31
    %s66 = sor.u32 %s64, %s65
    %p67 = scmp.eq.s32.totalorder %s66, 0
    %s69 = sadd.s32 %s68, 1
    %s70 = scalar_select %p67, %s68, %s69
    %p73 = pneg %p67
    %p74 = scmp.eq.s32.totalorder %s9, 2
    %p75 = por %p73, %p74
    %p76 = scmp.ne.s32.totalorder %s68, %s71
    %p77 = scmp.eq.s32.totalorder %s9, 0
    %p78 = por %p76, %p77
    %p79 = scmp.ne.s32.totalorder %s68, %s71
    %p80 = scmp.eq.s32.totalorder %s14, 2
    %p81 = por %p79, %p80
    %p82 = scmp.ne.s32.totalorder %s71, %s72
    %p83 = scmp.eq.s32.totalorder %s14, 0
    %p84 = por %p82, %p83
    %p85 = scmp.ne.s32.totalorder %s71, %s72
    %p86 = scmp.eq.s32.totalorder %s15, 2
    %p87 = por %p85, %p86
    %p89 = scmp.ne.s32.totalorder %s72, %s88
    %p90 = scmp.eq.s32.totalorder %s15, 0
    %p91 = por %p89, %p90
    %s92 = ssub.s32 %s17, %s31
    %p93 = scmp.eq.s32.totalorder %s92, 0
    %s95 = sadd.s32 %s94, 1
    %s96 = scalar_select %p93, %s94, %s95
    %p99 = pneg %p93
    %p100 = scmp.eq.s32.totalorder %s9, 2
    %p101 = por %p99, %p100
    %p102 = scmp.ne.s32.totalorder %s94, %s97
    %p103 = scmp.eq.s32.totalorder %s9, 0
    %p104 = por %p102, %p103
    %p105 = scmp.ne.s32.totalorder %s94, %s97
    %p106 = scmp.eq.s32.totalorder %s14, 2
    %p107 = por %p105, %p106
    %p108 = scmp.ne.s32.totalorder %s97, %s98
    %p109 = scmp.eq.s32.totalorder %s14, 0
    %p110 = por %p108, %p109
    %p111 = scmp.ne.s32.totalorder %s97, %s98
    %p112 = scmp.eq.s32.totalorder %s15, 2
    %p113 = por %p111, %p112
    %p115 = scmp.ne.s32.totalorder %s98, %s114
    %p116 = scmp.eq.s32.totalorder %s15, 0
    %p117 = por %p115, %p116
    %s118 = ssub.s32 %s16, %s35
    %s119 = ssub.s32 %s17, %s31
    %s120 = sor.u32 %s118, %s119
    %p121 = scmp.eq.s32.totalorder %s120, 0
    %s123 = sadd.s32 %s122, 1
    %s124 = scalar_select %p121, %s122, %s123
    %p127 = pneg %p121
    %p128 = scmp.eq.s32.totalorder %s9, 2
    %p129 = por %p127, %p128
    %p130 = scmp.ne.s32.totalorder %s122, %s125
    %p131 = scmp.eq.s32.totalorder %s9, 0
    %p132 = por %p130, %p131
    %p133 = scmp.ne.s32.totalorder %s122, %s125
    %p134 = scmp.eq.s32.totalorder %s14, 2
    %p135 = por %p133, %p134
    %p136 = scmp.ne.s32.totalorder %s125, %s126
    %p137 = scmp.eq.s32.totalorder %s14, 0
    %p138 = por %p136, %p137
    %p139 = scmp.ne.s32.totalorder %s125, %s126
    %p140 = scmp.eq.s32.totalorder %s15, 2
    %p141 = por %p139, %p140
    %p143 = scmp.ne.s32.totalorder %s126, %s142
    %p144 = scmp.eq.s32.totalorder %s15, 0
    %p145 = por %p143, %p144
    %p146 = scmp.le.s32.totalorder 1, %s9
    %p147 = scmp.lt.s32.totalorder %s9, 4
    %p148 = pnand %p146, %p147
    %p149 = pneg %p148
    // Predicated region
    $region9: #{forward.14} parent=5 // pred_check
      _
    $region10: #{forward.14} parent=5 // pred_check_branch
      %151 = sbr.rel (%p148) target = $region12
    $region11: #{forward.14} parent=5 // pred_region
      %s152 = ssub.s32 %s9, 1
      // Predicated region
      $region13: #{forward.14} parent=11 // pred_check
        %p153 = pneg %p84
      $region14: #{forward.14} parent=11 // pred_check_branch
        %155 = sbr.rel (%p153) target = $region16
      $region15: #{forward.14} parent=11 // pred_region
        %s156 = smul.u32 80, %s21
        %p157 = scmp.lt.s32.totalorder %s156, 79
        %s158 = scalar_select %p157, %s156, 79
        %p159 = scmp.lt.s32.totalorder %s20, 0
        %s160 = scalar_select %p159, %s20, 0
        %s161 = sadd.s32 %s160, %s158
        %s162 = smul.addr %s161, 4
        %s163 = scalar_lea.vmem %s1, %s162
        %s164 = smul.u32 80, %s21
      $region16: #{forward.14} parent=11 // pred_fallthru
        _
      // Predicated region
      $region17: #{forward.14} parent=11 // pred_check
        %p165 = pneg %p110
      $region18: #{forward.14} parent=11 // pred_check_branch
        %167 = sbr.rel (%p165) target = $region20
      $region19: #{forward.14} parent=11 // pred_region
        %p168 = scmp.lt.s32.totalorder %s20, 0
        %s169 = scalar_select %p168, %s20, 0
        %s170 = scalar_lea.vmem %s2, %s169
      $region20: #{forward.14} parent=11 // pred_fallthru
        _
    $region12: #{forward.14} parent=5 // pred_fallthru
      _
    %p171 = scmp.lt.s32.totalorder %s9, 3
    // Predicated region
    $region21: #{forward.14} parent=5 // pred_check
      %p172 = pneg %p171
    $region22: #{forward.14} parent=5 // pred_check_branch
      %174 = sbr.rel (%p172) target = $region24
    $region23: #{forward.14} parent=5 // pred_region
      // Predicated region
      $region25: #{forward.14} parent=23 // pred_check
        %p175 = pneg %p50
      $region26: #{forward.14} parent=23 // pred_check_branch
        %177 = sbr.rel (%p175) target = $region28
      $region27: #{forward.14} parent=23 // pred_region
        %s178 = smul.u32 32, %s16
        %s179 = smul.u32 5, %s18
        %p180 = scmp.lt.s32.totalorder %s178, 95
        %s181 = scalar_select %p180, %s178, 95
        %p182 = scmp.lt.s32.totalorder %s179, 4
        %s183 = scalar_select %p182, %s179, 4
        %s184 = smul.addr %s181, 5
        %s185 = sadd.s32 %s183, %s184
        %s186 = smul.addr %s185, 4
        %s187 = scalar_lea.vmem %s0, %s186
        %s188 = smul.u32 32, %s16
        %s189 = smul.u32 5, %s18
      $region28: #{forward.14} parent=23 // pred_fallthru
        _
    $region24: #{forward.14} parent=5 // pred_fallthru
      _
    %p190 = scmp.le.s32.totalorder 1, %s9
    %p191 = scmp.lt.s32.totalorder %s9, 4
    %p192 = pnand %p190, %p191
    %p193 = pneg %p192
    // Predicated region
    $region29: #{forward.14} parent=5 // pred_check
      _
    $region30: #{forward.14} parent=5 // pred_check_branch
      %195 = sbr.rel (%p192) target = $region32
    $region31: #{forward.14} parent=5 // pred_region
      %s196 = ssub.s32 %s9, 1
      %s197 = smul.u32 32, %s19
      %s198 = smul.u32 5, %s21
      %p199 = scmp.lt.s32.totalorder %s197, 95
      %s200 = scalar_select %p199, %s197, 95
      %p201 = scmp.lt.s32.totalorder %s198, 4
      %s202 = scalar_select %p201, %s198, 4
      %s203 = smul.addr %s200, 5
      %s204 = sadd.s32 %s202, %s203
      %s205 = smul.addr %s204, 4
      %s206 = scalar_lea.vmem %s0, %s205
      %p207 = pneg %p56
      %p208 = pneg %p53
      %s209 = smul.u32 80, %s21
      %p210 = scmp.lt.s32.totalorder %s209, 79
      %s211 = scalar_select %p210, %s209, 79
      %p212 = scmp.lt.s32.totalorder %s20, 0
      %s213 = scalar_select %p212, %s20, 0
      %s214 = sadd.s32 %s213, %s211
      %s215 = smul.addr %s214, 4
      %s216 = scalar_lea.vmem %s1, %s215
      %p217 = pneg %p84
      %p218 = pneg %p81
      %p219 = scmp.lt.s32.totalorder %s20, 0
      %s220 = scalar_select %p219, %s20, 0
      %s221 = scalar_lea.vmem %s2, %s220
      %p222 = pneg %p110
      %p223 = pneg %p107
      %p224 = pneg %p138
      %p225 = pneg %p135
      %s226 = smul.u32 32, %s19
      %p227 = scmp.lt.s32.totalorder %s226, 95
      %s228 = scalar_select %p227, %s226, 95
      %p229 = scmp.lt.s32.totalorder %s20, 0
      %s230 = scalar_select %p229, %s20, 0
      %s231 = sadd.s32 %s230, %s228
      %s232 = smul.addr %s231, 4
      %s233 = scalar_lea.vmem %s3, %s232
      %s234 = smul.u32 32, %s19
      %s235 = smul.u32 5, %s21
      %p236 = scmp.lt.s32.totalorder %s234, 95
      %s237 = scalar_select %p236, %s234, 95
      %p238 = scmp.lt.s32.totalorder %s235, 4
      %s239 = scalar_select %p238, %s235, 4
      %s240 = smul.addr %s237, 5
      %s241 = sadd.s32 %s239, %s240
      %s242 = smul.addr %s241, 4
      %s243 = scalar_lea.vmem %s0, %s242
      %s244 = smul.u32 32, %s19
      %s245 = smul.u32 5, %s21
      %s246 = smul.u32 80, %s21
      %p247 = scmp.lt.s32.totalorder %s246, 79
      %s248 = scalar_select %p247, %s246, 79
      %p249 = scmp.lt.s32.totalorder %s20, 0
      %s250 = scalar_select %p249, %s20, 0
      %s251 = sadd.s32 %s250, %s248
      %s252 = smul.addr %s251, 4
      %s253 = scalar_lea.vmem %s1, %s252
      %s254 = smul.u32 80, %s21
      %p255 = scmp.lt.s32.totalorder %s20, 0
      %s256 = scalar_select %p255, %s20, 0
      %s257 = scalar_lea.vmem %s2, %s256
      %s258 = smul.u32 32, %s19
      %p259 = scmp.lt.s32.totalorder %s258, 95
      %s260 = scalar_select %p259, %s258, 95
      %p261 = scmp.lt.s32.totalorder %s20, 0
      %s262 = scalar_select %p261, %s20, 0
      %s263 = sadd.s32 %s262, %s260
      %s264 = smul.addr %s263, 4
      %s265 = scalar_lea.vmem %s3, %s264
      %s266 = smul.u32 32, %s19
      %p268 = scmp.eq.s32.totalorder %s21, 0
      // Predicated region
      $region33: #{forward.14} parent=31 // pred_check
        %p269 = pneg %p268
      $region34: #{forward.14} parent=31 // pred_check_branch
        %271 = sbr.rel (%p269) target = $region36
      $region35: #{forward.14} parent=31 // pred_region
        %272 = vst [vmem:[#allocation2] sm:$0xff] 0.0
        %273 = vst [vmem:[#allocation2 + $0x8] sm:$0xff] 0.0
        %274 = vst [vmem:[#allocation2 + $0x10] sm:$0xff] 0.0
        %275 = vst [vmem:[#allocation2 + $0x18] sm:$0xff] 0.0
        %276 = vst [vmem:[#allocation2 + $0x20] sm:$0xff] 0.0
        %277 = vst [vmem:[#allocation2 + $0x28] sm:$0xff] 0.0
        %278 = vst [vmem:[#allocation2 + $0x30] sm:$0xff] 0.0
        %279 = vst [vmem:[#allocation2 + $0x38] sm:$0xff] 0.0
        %280 = vst [vmem:[#allocation2 + $0x40] sm:$0xff] 0.0
        %281 = vst [vmem:[#allocation2 + $0x48] sm:$0xff] 0.0
        %282 = vst [vmem:[#allocation2 + $0x50] sm:$0xff] 0.0
        %283 = vst [vmem:[#allocation2 + $0x58] sm:$0xff] 0.0
        %284 = vst [vmem:[#allocation2 + $0x60] sm:$0xff] 0.0
        %285 = vst [vmem:[#allocation2 + $0x68] sm:$0xff] 0.0
        %286 = vst [vmem:[#allocation2 + $0x70] sm:$0xff] 0.0
        %287 = vst [vmem:[#allocation2 + $0x78] sm:$0xff] 0.0
        %288 = vst [vmem:[#allocation2 + $0x80] sm:$0xff] 0.0
        %289 = vst [vmem:[#allocation2 + $0x88] sm:$0xff] 0.0
        %290 = vst [vmem:[#allocation2 + $0x90] sm:$0xff] 0.0
        %291 = vst [vmem:[#allocation2 + $0x98] sm:$0xff] 0.0
        %292 = vst [vmem:[#allocation2 + $0xa0] sm:$0xff] 0.0
        %293 = vst [vmem:[#allocation2 + $0xa8] sm:$0xff] 0.0
        %294 = vst [vmem:[#allocation2 + $0xb0] sm:$0xff] 0.0
        %295 = vst [vmem:[#allocation2 + $0xb8] sm:$0xff] 0.0
        %296 = vst [vmem:[#allocation2 + $0xc0] sm:$0xff] 0.0
        %297 = vst [vmem:[#allocation2 + $0xc8] sm:$0xff] 0.0
        %298 = vst [vmem:[#allocation2 + $0xd0] sm:$0xff] 0.0
        %299 = vst [vmem:[#allocation2 + $0xd8] sm:$0xff] 0.0
        %300 = vst [vmem:[#allocation2 + $0xe0] sm:$0xff] 0.0
        %301 = vst [vmem:[#allocation2 + $0xe8] sm:$0xff] 0.0
        %302 = vst [vmem:[#allocation2 + $0xf0] sm:$0xff] 0.0
        %303 = vst [vmem:[#allocation2 + $0xf8] sm:$0xff] 0.0
      $region36: #{forward.14} parent=31 // pred_fallthru
        _
      %v304 = vld [vmem:[#allocation2] sm:$0xff]
      %v305 = vld [vmem:[#allocation2 + $0x8] sm:$0xff]
      %v306 = vld [vmem:[#allocation2 + $0x10] sm:$0xff]
      %v307 = vld [vmem:[#allocation2 + $0x18] sm:$0xff]
      %v308 = vld [vmem:[#allocation2 + $0x20] sm:$0xff]
      %v309 = vld [vmem:[#allocation2 + $0x28] sm:$0xff]
      %v310 = vld [vmem:[#allocation2 + $0x30] sm:$0xff]
      %v311 = vld [vmem:[#allocation2 + $0x38] sm:$0xff]
      %v312 = vld [vmem:[#allocation2 + $0x40] sm:$0xff]
      %v313 = vld [vmem:[#allocation2 + $0x48] sm:$0xff]
      %v314 = vld [vmem:[#allocation2 + $0x50] sm:$0xff]
      %v315 = vld [vmem:[#allocation2 + $0x58] sm:$0xff]
      %v316 = vld [vmem:[#allocation2 + $0x60] sm:$0xff]
      %v317 = vld [vmem:[#allocation2 + $0x68] sm:$0xff]
      %v318 = vld [vmem:[#allocation2 + $0x70] sm:$0xff]
      %v319 = vld [vmem:[#allocation2 + $0x78] sm:$0xff]
      %v320 = vld [vmem:[#allocation2 + $0x80] sm:$0xff]
      %v321 = vld [vmem:[#allocation2 + $0x88] sm:$0xff]
      %v322 = vld [vmem:[#allocation2 + $0x90] sm:$0xff]
      %v323 = vld [vmem:[#allocation2 + $0x98] sm:$0xff]
      %v324 = vld [vmem:[#allocation2 + $0xa0] sm:$0xff]
      %v325 = vld [vmem:[#allocation2 + $0xa8] sm:$0xff]
      %v326 = vld [vmem:[#allocation2 + $0xb0] sm:$0xff]
      %v327 = vld [vmem:[#allocation2 + $0xb8] sm:$0xff]
      %v328 = vld [vmem:[#allocation2 + $0xc0] sm:$0xff]
      %v329 = vld [vmem:[#allocation2 + $0xc8] sm:$0xff]
      %v330 = vld [vmem:[#allocation2 + $0xd0] sm:$0xff]
      %v331 = vld [vmem:[#allocation2 + $0xd8] sm:$0xff]
      %v332 = vld [vmem:[#allocation2 + $0xe0] sm:$0xff]
      %v333 = vld [vmem:[#allocation2 + $0xe8] sm:$0xff]
      %v334 = vld [vmem:[#allocation2 + $0xf0] sm:$0xff]
      %v335 = vld [vmem:[#allocation2 + $0xf8] sm:$0xff]
      %v336 = vld [vmem:[%s243] sm:$0xff]
      %v337 = vld [vmem:[%s243 + $0x8] sm:$0xff]
      %v338 = vld [vmem:[%s243 + $0x10] sm:$0xf]
      %v339 = vld [vmem:[%s243 + $0x14] sm:$0xff]
      %v340 = vld [vmem:[%s243 + $0x1c] sm:$0xff]
      %v341 = vld [vmem:[%s243 + $0x24] sm:$0xf]
      %v342 = vld [vmem:[%s243 + $0x28] sm:$0xff]
      %v343 = vld [vmem:[%s243 + $0x30] sm:$0xff]
      %v344 = vld [vmem:[%s243 + $0x38] sm:$0xf]
      %v345 = vld [vmem:[%s243 + $0x3c] sm:$0xff]
      %v346 = vld [vmem:[%s243 + $0x44] sm:$0xff]
      %v347 = vld [vmem:[%s243 + $0x4c] sm:$0xf]
      %v348 = vld [vmem:[%s243 + $0x50] sm:$0xff]
      %v349 = vld [vmem:[%s243 + $0x58] sm:$0xff]
      %v350 = vld [vmem:[%s243 + $0x60] sm:$0xf]
      %v351 = vld [vmem:[%s243 + $0x64] sm:$0xff]
      %v352 = vld [vmem:[%s243 + $0x6c] sm:$0xff]
      %v353 = vld [vmem:[%s243 + $0x74] sm:$0xf]
      %v354 = vld [vmem:[%s243 + $0x78] sm:$0xff]
      %v355 = vld [vmem:[%s243 + $0x80] sm:$0xff]
      %v356 = vld [vmem:[%s243 + $0x88] sm:$0xf]
      %v357 = vld [vmem:[%s243 + $0x8c] sm:$0xff]
      %v358 = vld [vmem:[%s243 + $0x94] sm:$0xff]
      %v359 = vld [vmem:[%s243 + $0x9c] sm:$0xf]
      %v360 = vld [vmem:[%s243 + $0xa0] sm:$0xff]
      %v361 = vld [vmem:[%s243 + $0xa8] sm:$0xff]
      %v362 = vld [vmem:[%s243 + $0xb0] sm:$0xf]
      %v363 = vld [vmem:[%s243 + $0xb4] sm:$0xff]
      %v364 = vld [vmem:[%s243 + $0xbc] sm:$0xff]
      %v365 = vld [vmem:[%s243 + $0xc4] sm:$0xf]
      %v366 = vld [vmem:[%s243 + $0xc8] sm:$0xff]
      %v367 = vld [vmem:[%s243 + $0xd0] sm:$0xff]
      %v368 = vld [vmem:[%s243 + $0xd8] sm:$0xf]
      %v369 = vld [vmem:[%s243 + $0xdc] sm:$0xff]
      %v370 = vld [vmem:[%s243 + $0xe4] sm:$0xff]
      %v371 = vld [vmem:[%s243 + $0xec] sm:$0xf]
      %v372 = vld [vmem:[%s243 + $0xf0] sm:$0xff]
      %v373 = vld [vmem:[%s243 + $0xf8] sm:$0xff]
      %v374 = vld [vmem:[%s243 + $0x100] sm:$0xf]
      %v375 = vld [vmem:[%s243 + $0x104] sm:$0xff]
      %v376 = vld [vmem:[%s243 + $0x10c] sm:$0xff]
      %v377 = vld [vmem:[%s243 + $0x114] sm:$0xf]
      %v378 = vld [vmem:[%s243 + $0x118] sm:$0xff]
      %v379 = vld [vmem:[%s243 + $0x120] sm:$0xff]
      %v380 = vld [vmem:[%s243 + $0x128] sm:$0xf]
      %v381 = vld [vmem:[%s243 + $0x12c] sm:$0xff]
      %v382 = vld [vmem:[%s243 + $0x134] sm:$0xff]
      %v383 = vld [vmem:[%s243 + $0x13c] sm:$0xf]
      %v384 = vld [vmem:[%s243 + $0x140] sm:$0xff]
      %v385 = vld [vmem:[%s243 + $0x148] sm:$0xff]
      %v386 = vld [vmem:[%s243 + $0x150] sm:$0xf]
      %v387 = vld [vmem:[%s243 + $0x154] sm:$0xff]
      %v388 = vld [vmem:[%s243 + $0x15c] sm:$0xff]
      %v389 = vld [vmem:[%s243 + $0x164] sm:$0xf]
      %v390 = vld [vmem:[%s243 + $0x168] sm:$0xff]
      %v391 = vld [vmem:[%s243 + $0x170] sm:$0xff]
      %v392 = vld [vmem:[%s243 + $0x178] sm:$0xf]
      %v393 = vld [vmem:[%s243 + $0x17c] sm:$0xff]
      %v394 = vld [vmem:[%s243 + $0x184] sm:$0xff]
      %v395 = vld [vmem:[%s243 + $0x18c] sm:$0xf]
      %v396 = vld [vmem:[%s243 + $0x190] sm:$0xff]
      %v397 = vld [vmem:[%s243 + $0x198] sm:$0xff]
      %v398 = vld [vmem:[%s243 + $0x1a0] sm:$0xf]
      %v399 = vld [vmem:[%s243 + $0x1a4] sm:$0xff]
      %v400 = vld [vmem:[%s243 + $0x1ac] sm:$0xff]
      %v401 = vld [vmem:[%s243 + $0x1b4] sm:$0xf]
      %v402 = vld [vmem:[%s243 + $0x1b8] sm:$0xff]
      %v403 = vld [vmem:[%s243 + $0x1c0] sm:$0xff]
      %v404 = vld [vmem:[%s243 + $0x1c8] sm:$0xf]
      %v405 = vld [vmem:[%s243 + $0x1cc] sm:$0xff]
      %v406 = vld [vmem:[%s243 + $0x1d4] sm:$0xff]
      %v407 = vld [vmem:[%s243 + $0x1dc] sm:$0xf]
      %v408 = vld [vmem:[%s243 + $0x1e0] sm:$0xff]
      %v409 = vld [vmem:[%s243 + $0x1e8] sm:$0xff]
      %v410 = vld [vmem:[%s243 + $0x1f0] sm:$0xf]
      %v411 = vld [vmem:[%s243 + $0x1f4] sm:$0xff]
      %v412 = vld [vmem:[%s243 + $0x1fc] sm:$0xff]
      %v413 = vld [vmem:[%s243 + $0x204] sm:$0xf]
      %v414 = vld [vmem:[%s243 + $0x208] sm:$0xff]
      %v415 = vld [vmem:[%s243 + $0x210] sm:$0xff]
      %v416 = vld [vmem:[%s243 + $0x218] sm:$0xf]
      %v417 = vld [vmem:[%s243 + $0x21c] sm:$0xff]
      %v418 = vld [vmem:[%s243 + $0x224] sm:$0xff]
      %v419 = vld [vmem:[%s243 + $0x22c] sm:$0xf]
      %v420 = vld [vmem:[%s243 + $0x230] sm:$0xff]
      %v421 = vld [vmem:[%s243 + $0x238] sm:$0xff]
      %v422 = vld [vmem:[%s243 + $0x240] sm:$0xf]
      %v423 = vld [vmem:[%s243 + $0x244] sm:$0xff]
      %v424 = vld [vmem:[%s243 + $0x24c] sm:$0xff]
      %v425 = vld [vmem:[%s243 + $0x254] sm:$0xf]
      %v426 = vld [vmem:[%s243 + $0x258] sm:$0xff]
      %v427 = vld [vmem:[%s243 + $0x260] sm:$0xff]
      %v428 = vld [vmem:[%s243 + $0x268] sm:$0xf]
      %v429 = vld [vmem:[%s243 + $0x26c] sm:$0xff]
      %v430 = vld [vmem:[%s243 + $0x274] sm:$0xff]
      %v431 = vld [vmem:[%s243 + $0x27c] sm:$0xf]
      %v432 = vld [vmem:[%s253] sm:$0xf]
      %v433 = vld [vmem:[%s253 + $0x4] sm:$0xf]
      %v434 = vld [vmem:[%s253 + $0x8] sm:$0xf]
      %v435 = vld [vmem:[%s253 + $0xc] sm:$0xf]
      %v436 = vld [vmem:[%s253 + $0x10] sm:$0xf]
      %v437 = vld [vmem:[%s253 + $0x14] sm:$0xf]
      %v438 = vld [vmem:[%s253 + $0x18] sm:$0xf]
      %v439 = vld [vmem:[%s253 + $0x1c] sm:$0xf]
      %v440 = vld [vmem:[%s253 + $0x20] sm:$0xf]
      %v441 = vld [vmem:[%s253 + $0x24] sm:$0xf]
      %v442 = vld [vmem:[%s253 + $0x28] sm:$0xf]
      %v443 = vld [vmem:[%s253 + $0x2c] sm:$0xf]
      %v444 = vld [vmem:[%s253 + $0x30] sm:$0xf]
      %v445 = vld [vmem:[%s253 + $0x34] sm:$0xf]
      %v446 = vld [vmem:[%s253 + $0x38] sm:$0xf]
      %v447 = vld [vmem:[%s253 + $0x3c] sm:$0xf]
      %v448 = vld [vmem:[%s253 + $0x40] sm:$0xf]
      %v449 = vld [vmem:[%s253 + $0x44] sm:$0xf]
      %v450 = vld [vmem:[%s253 + $0x48] sm:$0xf]
      %v451 = vld [vmem:[%s253 + $0x4c] sm:$0xf]
      %v452 = vld [vmem:[%s253 + $0x50] sm:$0xf]
      %v453 = vld [vmem:[%s253 + $0x54] sm:$0xf]
      %v454 = vld [vmem:[%s253 + $0x58] sm:$0xf]
      %v455 = vld [vmem:[%s253 + $0x5c] sm:$0xf]
      %v456 = vld [vmem:[%s253 + $0x60] sm:$0xf]
      %v457 = vld [vmem:[%s253 + $0x64] sm:$0xf]
      %v458 = vld [vmem:[%s253 + $0x68] sm:$0xf]
      %v459 = vld [vmem:[%s253 + $0x6c] sm:$0xf]
      %v460 = vld [vmem:[%s253 + $0x70] sm:$0xf]
      %v461 = vld [vmem:[%s253 + $0x74] sm:$0xf]
      %v462 = vld [vmem:[%s253 + $0x78] sm:$0xf]
      %v463 = vld [vmem:[%s253 + $0x7c] sm:$0xf]
      %v464 = vld [vmem:[%s253 + $0x80] sm:$0xf]
      %v465 = vld [vmem:[%s253 + $0x84] sm:$0xf]
      %v466 = vld [vmem:[%s253 + $0x88] sm:$0xf]
      %v467 = vld [vmem:[%s253 + $0x8c] sm:$0xf]
      %v468 = vld [vmem:[%s253 + $0x90] sm:$0xf]
      %v469 = vld [vmem:[%s253 + $0x94] sm:$0xf]
      %v470 = vld [vmem:[%s253 + $0x98] sm:$0xf]
      %v471 = vld [vmem:[%s253 + $0x9c] sm:$0xf]
      %v472 = vld [vmem:[%s253 + $0xa0] sm:$0xf]
      %v473 = vld [vmem:[%s253 + $0xa4] sm:$0xf]
      %v474 = vld [vmem:[%s253 + $0xa8] sm:$0xf]
      %v475 = vld [vmem:[%s253 + $0xac] sm:$0xf]
      %v476 = vld [vmem:[%s253 + $0xb0] sm:$0xf]
      %v477 = vld [vmem:[%s253 + $0xb4] sm:$0xf]
      %v478 = vld [vmem:[%s253 + $0xb8] sm:$0xf]
      %v479 = vld [vmem:[%s253 + $0xbc] sm:$0xf]
      %v480 = vld [vmem:[%s253 + $0xc0] sm:$0xf]
      %v481 = vld [vmem:[%s253 + $0xc4] sm:$0xf]
      %v482 = vld [vmem:[%s253 + $0xc8] sm:$0xf]
      %v483 = vld [vmem:[%s253 + $0xcc] sm:$0xf]
      %v484 = vld [vmem:[%s253 + $0xd0] sm:$0xf]
      %v485 = vld [vmem:[%s253 + $0xd4] sm:$0xf]
      %v486 = vld [vmem:[%s253 + $0xd8] sm:$0xf]
      %v487 = vld [vmem:[%s253 + $0xdc] sm:$0xf]
      %v488 = vld [vmem:[%s253 + $0xe0] sm:$0xf]
      %v489 = vld [vmem:[%s253 + $0xe4] sm:$0xf]
      %v490 = vld [vmem:[%s253 + $0xe8] sm:$0xf]
      %v491 = vld [vmem:[%s253 + $0xec] sm:$0xf]
      %v492 = vld [vmem:[%s253 + $0xf0] sm:$0xf]
      %v493 = vld [vmem:[%s253 + $0xf4] sm:$0xf]
      %v494 = vld [vmem:[%s253 + $0xf8] sm:$0xf]
      %v495 = vld [vmem:[%s253 + $0xfc] sm:$0xf]
      %v496 = vld [vmem:[%s253 + $0x100] sm:$0xf]
      %v497 = vld [vmem:[%s253 + $0x104] sm:$0xf]
      %v498 = vld [vmem:[%s253 + $0x108] sm:$0xf]
      %v499 = vld [vmem:[%s253 + $0x10c] sm:$0xf]
      %v500 = vld [vmem:[%s253 + $0x110] sm:$0xf]
      %v501 = vld [vmem:[%s253 + $0x114] sm:$0xf]
      %v502 = vld [vmem:[%s253 + $0x118] sm:$0xf]
      %v503 = vld [vmem:[%s253 + $0x11c] sm:$0xf]
      %v504 = vld [vmem:[%s253 + $0x120] sm:$0xf]
      %v505 = vld [vmem:[%s253 + $0x124] sm:$0xf]
      %v506 = vld [vmem:[%s253 + $0x128] sm:$0xf]
      %v507 = vld [vmem:[%s253 + $0x12c] sm:$0xf]
      %v508 = vld [vmem:[%s253 + $0x130] sm:$0xf]
      %v509 = vld [vmem:[%s253 + $0x134] sm:$0xf]
      %v510 = vld [vmem:[%s253 + $0x138] sm:$0xf]
      %v511 = vld [vmem:[%s253 + $0x13c] sm:$0xf]
      %v608 = vunpack.c.l.b16 %v336
      %v609 = vunpack.c.h.b16 %v336
      %v610 = vunpack.c.l.b16 %v337
      %v611 = vunpack.c.h.b16 %v337
      %v612 = vunpack.c.l.b16 %v338
      %v613 = vunpack.c.l.b16 %v339
      %v614 = vunpack.c.h.b16 %v339
      %v615 = vunpack.c.l.b16 %v340
      %v616 = vunpack.c.h.b16 %v340
      %v617 = vunpack.c.l.b16 %v341
      %v618 = vunpack.c.l.b16 %v342
      %v619 = vunpack.c.h.b16 %v342
      %v620 = vunpack.c.l.b16 %v343
      %v621 = vunpack.c.h.b16 %v343
      %v622 = vunpack.c.l.b16 %v344
      %v623 = vunpack.c.l.b16 %v345
      %v624 = vunpack.c.h.b16 %v345
      %v625 = vunpack.c.l.b16 %v346
      %v626 = vunpack.c.h.b16 %v346
      %v627 = vunpack.c.l.b16 %v347
      %v628 = vunpack.c.l.b16 %v348
      %v629 = vunpack.c.h.b16 %v348
      %v630 = vunpack.c.l.b16 %v349
      %v631 = vunpack.c.h.b16 %v349
      %v632 = vunpack.c.l.b16 %v350
      %v633 = vunpack.c.l.b16 %v351
      %v634 = vunpack.c.h.b16 %v351
      %v635 = vunpack.c.l.b16 %v352
      %v636 = vunpack.c.h.b16 %v352
      %v637 = vunpack.c.l.b16 %v353
      %v638 = vunpack.c.l.b16 %v354
      %v639 = vunpack.c.h.b16 %v354
      %v640 = vunpack.c.l.b16 %v355
      %v641 = vunpack.c.h.b16 %v355
      %v642 = vunpack.c.l.b16 %v356
      %v643 = vunpack.c.l.b16 %v357
      %v644 = vunpack.c.h.b16 %v357
      %v645 = vunpack.c.l.b16 %v358
      %v646 = vunpack.c.h.b16 %v358
      %v647 = vunpack.c.l.b16 %v359
      %v648 = vunpack.c.l.b16 %v360
      %v649 = vunpack.c.h.b16 %v360
      %v650 = vunpack.c.l.b16 %v361
      %v651 = vunpack.c.h.b16 %v361
      %v652 = vunpack.c.l.b16 %v362
      %v653 = vunpack.c.l.b16 %v363
      %v654 = vunpack.c.h.b16 %v363
      %v655 = vunpack.c.l.b16 %v364
      %v656 = vunpack.c.h.b16 %v364
      %v657 = vunpack.c.l.b16 %v365
      %v658 = vunpack.c.l.b16 %v366
      %v659 = vunpack.c.h.b16 %v366
      %v660 = vunpack.c.l.b16 %v367
      %v661 = vunpack.c.h.b16 %v367
      %v662 = vunpack.c.l.b16 %v368
      %v663 = vunpack.c.l.b16 %v369
      %v664 = vunpack.c.h.b16 %v369
      %v665 = vunpack.c.l.b16 %v370
      %v666 = vunpack.c.h.b16 %v370
      %v667 = vunpack.c.l.b16 %v371
      %v668 = vunpack.c.l.b16 %v372
      %v669 = vunpack.c.h.b16 %v372
      %v670 = vunpack.c.l.b16 %v373
      %v671 = vunpack.c.h.b16 %v373
      %v672 = vunpack.c.l.b16 %v374
      %v673 = vunpack.c.l.b16 %v375
      %v674 = vunpack.c.h.b16 %v375
      %v675 = vunpack.c.l.b16 %v376
      %v676 = vunpack.c.h.b16 %v376
      %v677 = vunpack.c.l.b16 %v377
      %v678 = vunpack.c.l.b16 %v378
      %v679 = vunpack.c.h.b16 %v378
      %v680 = vunpack.c.l.b16 %v379
      %v681 = vunpack.c.h.b16 %v379
      %v682 = vunpack.c.l.b16 %v380
      %v683 = vunpack.c.l.b16 %v381
      %v684 = vunpack.c.h.b16 %v381
      %v685 = vunpack.c.l.b16 %v382
      %v686 = vunpack.c.h.b16 %v382
      %v687 = vunpack.c.l.b16 %v383
      %v688 = vunpack.c.l.b16 %v384
      %v689 = vunpack.c.h.b16 %v384
      %v690 = vunpack.c.l.b16 %v385
      %v691 = vunpack.c.h.b16 %v385
      %v692 = vunpack.c.l.b16 %v386
      %v693 = vunpack.c.l.b16 %v387
      %v694 = vunpack.c.h.b16 %v387
      %v695 = vunpack.c.l.b16 %v388
      %v696 = vunpack.c.h.b16 %v388
      %v697 = vunpack.c.l.b16 %v389
      %v698 = vunpack.c.l.b16 %v390
      %v699 = vunpack.c.h.b16 %v390
      %v700 = vunpack.c.l.b16 %v391
      %v701 = vunpack.c.h.b16 %v391
      %v702 = vunpack.c.l.b16 %v392
      %v703 = vunpack.c.l.b16 %v393
      %v704 = vunpack.c.h.b16 %v393
      %v705 = vunpack.c.l.b16 %v394
      %v706 = vunpack.c.h.b16 %v394
      %v707 = vunpack.c.l.b16 %v395
      %v708 = vunpack.c.l.b16 %v396
      %v709 = vunpack.c.h.b16 %v396
      %v710 = vunpack.c.l.b16 %v397
      %v711 = vunpack.c.h.b16 %v397
      %v712 = vunpack.c.l.b16 %v398
      %v713 = vunpack.c.l.b16 %v399
      %v714 = vunpack.c.h.b16 %v399
      %v715 = vunpack.c.l.b16 %v400
      %v716 = vunpack.c.h.b16 %v400
      %v717 = vunpack.c.l.b16 %v401
      %v718 = vunpack.c.l.b16 %v402
      %v719 = vunpack.c.h.b16 %v402
      %v720 = vunpack.c.l.b16 %v403
      %v721 = vunpack.c.h.b16 %v403
      %v722 = vunpack.c.l.b16 %v404
      %v723 = vunpack.c.l.b16 %v405
      %v724 = vunpack.c.h.b16 %v405
      %v725 = vunpack.c.l.b16 %v406
      %v726 = vunpack.c.h.b16 %v406
      %v727 = vunpack.c.l.b16 %v407
      %v728 = vunpack.c.l.b16 %v408
      %v729 = vunpack.c.h.b16 %v408
      %v730 = vunpack.c.l.b16 %v409
      %v731 = vunpack.c.h.b16 %v409
      %v732 = vunpack.c.l.b16 %v410
      %v733 = vunpack.c.l.b16 %v411
      %v734 = vunpack.c.h.b16 %v411
      %v735 = vunpack.c.l.b16 %v412
      %v736 = vunpack.c.h.b16 %v412
      %v737 = vunpack.c.l.b16 %v413
      %v738 = vunpack.c.l.b16 %v414
      %v739 = vunpack.c.h.b16 %v414
      %v740 = vunpack.c.l.b16 %v415
      %v741 = vunpack.c.h.b16 %v415
      %v742 = vunpack.c.l.b16 %v416
      %v743 = vunpack.c.l.b16 %v417
      %v744 = vunpack.c.h.b16 %v417
      %v745 = vunpack.c.l.b16 %v418
      %v746 = vunpack.c.h.b16 %v418
      %v747 = vunpack.c.l.b16 %v419
      %v748 = vunpack.c.l.b16 %v420
      %v749 = vunpack.c.h.b16 %v420
      %v750 = vunpack.c.l.b16 %v421
      %v751 = vunpack.c.h.b16 %v421
      %v752 = vunpack.c.l.b16 %v422
      %v753 = vunpack.c.l.b16 %v423
      %v754 = vunpack.c.h.b16 %v423
      %v755 = vunpack.c.l.b16 %v424
      %v756 = vunpack.c.h.b16 %v424
      %v757 = vunpack.c.l.b16 %v425
      %v758 = vunpack.c.l.b16 %v426
      %v759 = vunpack.c.h.b16 %v426
      %v760 = vunpack.c.l.b16 %v427
      %v761 = vunpack.c.h.b16 %v427
      %v762 = vunpack.c.l.b16 %v428
      %v763 = vunpack.c.l.b16 %v429
      %v764 = vunpack.c.h.b16 %v429
      %v765 = vunpack.c.l.b16 %v430
      %v766 = vunpack.c.h.b16 %v430
      %v767 = vunpack.c.l.b16 %v431
      %v768 = vpack.c.b16 %v613, %v608
      %v769 = vpack.c.b16 %v614, %v609
      %v770 = vpack.c.b16 %v615, %v610
      %v771 = vpack.c.b16 %v616, %v611
      %v772 = vpack.c.b16 %v617, %v612
      %v773 = vpack.c.b16 %v623, %v618
      %v774 = vpack.c.b16 %v624, %v619
      %v775 = vpack.c.b16 %v625, %v620
      %v776 = vpack.c.b16 %v626, %v621
      %v777 = vpack.c.b16 %v627, %v622
      %v778 = vpack.c.b16 %v633, %v628
      %v779 = vpack.c.b16 %v634, %v629
      %v780 = vpack.c.b16 %v635, %v630
      %v781 = vpack.c.b16 %v636, %v631
      %v782 = vpack.c.b16 %v637, %v632
      %v783 = vpack.c.b16 %v643, %v638
      %v784 = vpack.c.b16 %v644, %v639
      %v785 = vpack.c.b16 %v645, %v640
      %v786 = vpack.c.b16 %v646, %v641
      %v787 = vpack.c.b16 %v647, %v642
      %v788 = vpack.c.b16 %v653, %v648
      %v789 = vpack.c.b16 %v654, %v649
      %v790 = vpack.c.b16 %v655, %v650
      %v791 = vpack.c.b16 %v656, %v651
      %v792 = vpack.c.b16 %v657, %v652
      %v793 = vpack.c.b16 %v663, %v658
      %v794 = vpack.c.b16 %v664, %v659
      %v795 = vpack.c.b16 %v665, %v660
      %v796 = vpack.c.b16 %v666, %v661
      %v797 = vpack.c.b16 %v667, %v662
      %v798 = vpack.c.b16 %v673, %v668
      %v799 = vpack.c.b16 %v674, %v669
      %v800 = vpack.c.b16 %v675, %v670
      %v801 = vpack.c.b16 %v676, %v671
      %v802 = vpack.c.b16 %v677, %v672
      %v803 = vpack.c.b16 %v683, %v678
      %v804 = vpack.c.b16 %v684, %v679
      %v805 = vpack.c.b16 %v685, %v680
      %v806 = vpack.c.b16 %v686, %v681
      %v807 = vpack.c.b16 %v687, %v682
      %v808 = vpack.c.b16 %v693, %v688
      %v809 = vpack.c.b16 %v694, %v689
      %v810 = vpack.c.b16 %v695, %v690
      %v811 = vpack.c.b16 %v696, %v691
      %v812 = vpack.c.b16 %v697, %v692
      %v813 = vpack.c.b16 %v703, %v698
      %v814 = vpack.c.b16 %v704, %v699
      %v815 = vpack.c.b16 %v705, %v700
      %v816 = vpack.c.b16 %v706, %v701
      %v817 = vpack.c.b16 %v707, %v702
      %v818 = vpack.c.b16 %v713, %v708
      %v819 = vpack.c.b16 %v714, %v709
      %v820 = vpack.c.b16 %v715, %v710
      %v821 = vpack.c.b16 %v716, %v711
      %v822 = vpack.c.b16 %v717, %v712
      %v823 = vpack.c.b16 %v723, %v718
      %v824 = vpack.c.b16 %v724, %v719
      %v825 = vpack.c.b16 %v725, %v720
      %v826 = vpack.c.b16 %v726, %v721
      %v827 = vpack.c.b16 %v727, %v722
      %v828 = vpack.c.b16 %v733, %v728
      %v829 = vpack.c.b16 %v734, %v729
      %v830 = vpack.c.b16 %v735, %v730
      %v831 = vpack.c.b16 %v736, %v731
      %v832 = vpack.c.b16 %v737, %v732
      %v833 = vpack.c.b16 %v743, %v738
      %v834 = vpack.c.b16 %v744, %v739
      %v835 = vpack.c.b16 %v745, %v740
      %v836 = vpack.c.b16 %v746, %v741
      %v837 = vpack.c.b16 %v747, %v742
      %v838 = vpack.c.b16 %v753, %v748
      %v839 = vpack.c.b16 %v754, %v749
      %v840 = vpack.c.b16 %v755, %v750
      %v841 = vpack.c.b16 %v756, %v751
      %v842 = vpack.c.b16 %v757, %v752
      %v843 = vpack.c.b16 %v763, %v758
      %v844 = vpack.c.b16 %v764, %v759
      %v845 = vpack.c.b16 %v765, %v760
      %v846 = vpack.c.b16 %v766, %v761
      %v847 = vpack.c.b16 %v767, %v762
      %v1008 = vunpack.c.l.b16 %v432
      %v1009 = vunpack.c.l.b16 %v433
      %v1010 = vunpack.c.l.b16 %v434
      %v1011 = vunpack.c.l.b16 %v435
      %v1012 = vunpack.c.l.b16 %v436
      %v1013 = vunpack.c.l.b16 %v437
      %v1014 = vunpack.c.l.b16 %v438
      %v1015 = vunpack.c.l.b16 %v439
      %v1016 = vunpack.c.l.b16 %v440
      %v1017 = vunpack.c.l.b16 %v441
      %v1018 = vunpack.c.l.b16 %v442
      %v1019 = vunpack.c.l.b16 %v443
      %v1020 = vunpack.c.l.b16 %v444
      %v1021 = vunpack.c.l.b16 %v445
      %v1022 = vunpack.c.l.b16 %v446
      %v1023 = vunpack.c.l.b16 %v447
      %v1024 = vunpack.c.l.b16 %v448
      %v1025 = vunpack.c.l.b16 %v449
      %v1026 = vunpack.c.l.b16 %v450
      %v1027 = vunpack.c.l.b16 %v451
      %v1028 = vunpack.c.l.b16 %v452
      %v1029 = vunpack.c.l.b16 %v453
      %v1030 = vunpack.c.l.b16 %v454
      %v1031 = vunpack.c.l.b16 %v455
      %v1032 = vunpack.c.l.b16 %v456
      %v1033 = vunpack.c.l.b16 %v457
      %v1034 = vunpack.c.l.b16 %v458
      %v1035 = vunpack.c.l.b16 %v459
      %v1036 = vunpack.c.l.b16 %v460
      %v1037 = vunpack.c.l.b16 %v461
      %v1038 = vunpack.c.l.b16 %v462
      %v1039 = vunpack.c.l.b16 %v463
      %v1040 = vunpack.c.l.b16 %v464
      %v1041 = vunpack.c.l.b16 %v465
      %v1042 = vunpack.c.l.b16 %v466
      %v1043 = vunpack.c.l.b16 %v467
      %v1044 = vunpack.c.l.b16 %v468
      %v1045 = vunpack.c.l.b16 %v469
      %v1046 = vunpack.c.l.b16 %v470
      %v1047 = vunpack.c.l.b16 %v471
      %v1048 = vunpack.c.l.b16 %v472
      %v1049 = vunpack.c.l.b16 %v473
      %v1050 = vunpack.c.l.b16 %v474
      %v1051 = vunpack.c.l.b16 %v475
      %v1052 = vunpack.c.l.b16 %v476
      %v1053 = vunpack.c.l.b16 %v477
      %v1054 = vunpack.c.l.b16 %v478
      %v1055 = vunpack.c.l.b16 %v479
      %v1056 = vunpack.c.l.b16 %v480
      %v1057 = vunpack.c.l.b16 %v481
      %v1058 = vunpack.c.l.b16 %v482
      %v1059 = vunpack.c.l.b16 %v483
      %v1060 = vunpack.c.l.b16 %v484
      %v1061 = vunpack.c.l.b16 %v485
      %v1062 = vunpack.c.l.b16 %v486
      %v1063 = vunpack.c.l.b16 %v487
      %v1064 = vunpack.c.l.b16 %v488
      %v1065 = vunpack.c.l.b16 %v489
      %v1066 = vunpack.c.l.b16 %v490
      %v1067 = vunpack.c.l.b16 %v491
      %v1068 = vunpack.c.l.b16 %v492
      %v1069 = vunpack.c.l.b16 %v493
      %v1070 = vunpack.c.l.b16 %v494
      %v1071 = vunpack.c.l.b16 %v495
      %v1072 = vunpack.c.l.b16 %v496
      %v1073 = vunpack.c.l.b16 %v497
      %v1074 = vunpack.c.l.b16 %v498
      %v1075 = vunpack.c.l.b16 %v499
      %v1076 = vunpack.c.l.b16 %v500
      %v1077 = vunpack.c.l.b16 %v501
      %v1078 = vunpack.c.l.b16 %v502
      %v1079 = vunpack.c.l.b16 %v503
      %v1080 = vunpack.c.l.b16 %v504
      %v1081 = vunpack.c.l.b16 %v505
      %v1082 = vunpack.c.l.b16 %v506
      %v1083 = vunpack.c.l.b16 %v507
      %v1084 = vunpack.c.l.b16 %v508
      %v1085 = vunpack.c.l.b16 %v509
      %v1086 = vunpack.c.l.b16 %v510
      %v1087 = vunpack.c.l.b16 %v511
      %v1088 = vpack.c.b16 %v1009, %v1008
      %v1089 = vpack.c.b16 %v1011, %v1010
      %v1090 = vpack.c.b16 %v1013, %v1012
      %v1091 = vpack.c.b16 %v1015, %v1014
      %v1092 = vpack.c.b16 %v1017, %v1016
      %v1093 = vpack.c.b16 %v1019, %v1018
      %v1094 = vpack.c.b16 %v1021, %v1020
      %v1095 = vpack.c.b16 %v1023, %v1022
      %v1096 = vpack.c.b16 %v1025, %v1024
      %v1097 = vpack.c.b16 %v1027, %v1026
      %v1098 = vpack.c.b16 %v1029, %v1028
      %v1099 = vpack.c.b16 %v1031, %v1030
      %v1100 = vpack.c.b16 %v1033, %v1032
      %v1101 = vpack.c.b16 %v1035, %v1034
      %v1102 = vpack.c.b16 %v1037, %v1036
      %v1103 = vpack.c.b16 %v1039, %v1038
      %v1104 = vpack.c.b16 %v1041, %v1040
      %v1105 = vpack.c.b16 %v1043, %v1042
      %v1106 = vpack.c.b16 %v1045, %v1044
      %v1107 = vpack.c.b16 %v1047, %v1046
      %v1108 = vpack.c.b16 %v1049, %v1048
      %v1109 = vpack.c.b16 %v1051, %v1050
      %v1110 = vpack.c.b16 %v1053, %v1052
      %v1111 = vpack.c.b16 %v1055, %v1054
      %v1112 = vpack.c.b16 %v1057, %v1056
      %v1113 = vpack.c.b16 %v1059, %v1058
      %v1114 = vpack.c.b16 %v1061, %v1060
      %v1115 = vpack.c.b16 %v1063, %v1062
      %v1116 = vpack.c.b16 %v1065, %v1064
      %v1117 = vpack.c.b16 %v1067, %v1066
      %v1118 = vpack.c.b16 %v1069, %v1068
      %v1119 = vpack.c.b16 %v1071, %v1070
      %v1120 = vpack.c.b16 %v1073, %v1072
      %v1121 = vpack.c.b16 %v1075, %v1074
      %v1122 = vpack.c.b16 %v1077, %v1076
      %v1123 = vpack.c.b16 %v1079, %v1078
      %v1124 = vpack.c.b16 %v1081, %v1080
      %v1125 = vpack.c.b16 %v1083, %v1082
      %v1126 = vpack.c.b16 %v1085, %v1084
      %v1127 = vpack.c.b16 %v1087, %v1086
      %1168 = vmatprep.subr.bf16.mxu0 0
      %1169 = vmatpush1.bf16.msra.mxu0 %v1095
      %1170 = vmatprep.subr.bf16.mxu0 0
      %1171 = vmatpush1.bf16.msra.mxu0 %v1094
      %1172 = vmatprep.subr.bf16.mxu0 0
      %1173 = vmatpush1.bf16.msra.mxu0 %v1093
      %1174 = vmatprep.subr.bf16.mxu0 0
      %1175 = vmatpush1.bf16.msra.mxu0 %v1092
      %1176 = vmatprep.subr.bf16.mxu0 0
      %1177 = vmatpush1.bf16.msra.mxu0 %v1091
      %1178 = vmatprep.subr.bf16.mxu0 0
      %1179 = vmatpush1.bf16.msra.mxu0 %v1090
      %1180 = vmatprep.subr.bf16.mxu0 0
      %1181 = vmatpush1.bf16.msra.mxu0 %v1089
      %1182 = vmatprep.subr.bf16.mxu0 0
      %1183 = vmatpush1.bf16.msra.mxu0 %v1088
      %1184 = vmatprep.subr.bf16.mxu0 0
      %1185 = vmatpush2.bf16.msra.mxu0 %v1103
      %1186 = vmatprep.subr.bf16.mxu0 0
      %1187 = vmatpush2.bf16.msra.mxu0 %v1102
      %1188 = vmatprep.subr.bf16.mxu0 0
      %1189 = vmatpush2.bf16.msra.mxu0 %v1101
      %1190 = vmatprep.subr.bf16.mxu0 0
      %1191 = vmatpush2.bf16.msra.mxu0 %v1100
      %1192 = vmatprep.subr.bf16.mxu0 0
      %1193 = vmatpush2.bf16.msra.mxu0 %v1099
      %1194 = vmatprep.subr.bf16.mxu0 0
      %1195 = vmatpush2.bf16.msra.mxu0 %v1098
      %1196 = vmatprep.subr.bf16.mxu0 0
      %1197 = vmatpush2.bf16.msra.mxu0 %v1097
      %1198 = vmatprep.subr.bf16.mxu0 0
      %1199 = vmatpush2.bf16.msra.mxu0 %v1096
      %1200 = vmatprep.mubr.bf16.mxu0 %v769
      %1201 = vmatmul.mubr.bf16.gmra.mxu0 %v768
      %v1202 = vpop.f32.mrf.mxu0
      %v1203 = vadd.f32 0.0, %v1202
      %v1204 = vpop.f32.mrf.mxu0
      %v1205 = vpop.f32.mrf.mxu0
      %v1206 = vadd.f32 0.0, %v1205
      %v1207 = vpop.f32.mrf.mxu0
      %1208 = vmatprep.mubr.bf16.mxu0 %v774
      %1209 = vmatmul.mubr.bf16.gmra.mxu0 %v773
      %v1210 = vpop.f32.mrf.mxu0
      %v1211 = vadd.f32 0.0, %v1210
      %v1212 = vpop.f32.mrf.mxu0
      %v1213 = vpop.f32.mrf.mxu0
      %v1214 = vadd.f32 0.0, %v1213
      %v1215 = vpop.f32.mrf.mxu0
      %1216 = vmatprep.mubr.bf16.mxu0 %v779
      %1217 = vmatmul.mubr.bf16.gmra.mxu0 %v778
      %v1218 = vpop.f32.mrf.mxu0
      %v1219 = vadd.f32 0.0, %v1218
      %v1220 = vpop.f32.mrf.mxu0
      %v1221 = vpop.f32.mrf.mxu0
      %v1222 = vadd.f32 0.0, %v1221
      %v1223 = vpop.f32.mrf.mxu0
      %1224 = vmatprep.mubr.bf16.mxu0 %v784
      %1225 = vmatmul.mubr.bf16.gmra.mxu0 %v783
      %v1226 = vpop.f32.mrf.mxu0
      %v1227 = vadd.f32 0.0, %v1226
      %v1228 = vpop.f32.mrf.mxu0
      %v1229 = vpop.f32.mrf.mxu0
      %v1230 = vadd.f32 0.0, %v1229
      %v1231 = vpop.f32.mrf.mxu0
      %1232 = vmatprep.mubr.bf16.mxu0 %v789
      %1233 = vmatmul.mubr.bf16.gmra.mxu0 %v788
      %v1234 = vpop.f32.mrf.mxu0
      %v1235 = vadd.f32 0.0, %v1234
      %v1236 = vpop.f32.mrf.mxu0
      %v1237 = vpop.f32.mrf.mxu0
      %v1238 = vadd.f32 0.0, %v1237
      %v1239 = vpop.f32.mrf.mxu0
      %1240 = vmatprep.mubr.bf16.mxu0 %v794
      %1241 = vmatmul.mubr.bf16.gmra.mxu0 %v793
      %v1242 = vpop.f32.mrf.mxu0
      %v1243 = vadd.f32 0.0, %v1242
      %v1244 = vpop.f32.mrf.mxu0
      %v1245 = vpop.f32.mrf.mxu0
      %v1246 = vadd.f32 0.0, %v1245
      %v1247 = vpop.f32.mrf.mxu0
      %1248 = vmatprep.mubr.bf16.mxu0 %v799
      %1249 = vmatmul.mubr.bf16.gmra.mxu0 %v798
      %v1250 = vpop.f32.mrf.mxu0
      %v1251 = vadd.f32 0.0, %v1250
      %v1252 = vpop.f32.mrf.mxu0
      %v1253 = vpop.f32.mrf.mxu0
      %v1254 = vadd.f32 0.0, %v1253
      %v1255 = vpop.f32.mrf.mxu0
      %1256 = vmatprep.mubr.bf16.mxu0 %v804
      %1257 = vmatmul.mubr.bf16.gmra.mxu0 %v803
      %v1258 = vpop.f32.mrf.mxu0
      %v1259 = vadd.f32 0.0, %v1258
      %v1260 = vpop.f32.mrf.mxu0
      %v1261 = vpop.f32.mrf.mxu0
      %v1262 = vadd.f32 0.0, %v1261
      %v1263 = vpop.f32.mrf.mxu0
      %1264 = vmatprep.mubr.bf16.mxu0 %v809
      %1265 = vmatmul.mubr.bf16.gmra.mxu0 %v808
      %v1266 = vpop.f32.mrf.mxu0
      %v1267 = vadd.f32 0.0, %v1266
      %v1268 = vpop.f32.mrf.mxu0
      %v1269 = vpop.f32.mrf.mxu0
      %v1270 = vadd.f32 0.0, %v1269
      %v1271 = vpop.f32.mrf.mxu0
      %1272 = vmatprep.mubr.bf16.mxu0 %v814
      %1273 = vmatmul.mubr.bf16.gmra.mxu0 %v813
      %v1274 = vpop.f32.mrf.mxu0
      %v1275 = vadd.f32 0.0, %v1274
      %v1276 = vpop.f32.mrf.mxu0
      %v1277 = vpop.f32.mrf.mxu0
      %v1278 = vadd.f32 0.0, %v1277
      %v1279 = vpop.f32.mrf.mxu0
      %1280 = vmatprep.mubr.bf16.mxu0 %v819
      %1281 = vmatmul.mubr.bf16.gmra.mxu0 %v818
      %v1282 = vpop.f32.mrf.mxu0
      %v1283 = vadd.f32 0.0, %v1282
      %v1284 = vpop.f32.mrf.mxu0
      %v1285 = vpop.f32.mrf.mxu0
      %v1286 = vadd.f32 0.0, %v1285
      %v1287 = vpop.f32.mrf.mxu0
      %1288 = vmatprep.mubr.bf16.mxu0 %v824
      %1289 = vmatmul.mubr.bf16.gmra.mxu0 %v823
      %v1290 = vpop.f32.mrf.mxu0
      %v1291 = vadd.f32 0.0, %v1290
      %v1292 = vpop.f32.mrf.mxu0
      %v1293 = vpop.f32.mrf.mxu0
      %v1294 = vadd.f32 0.0, %v1293
      %v1295 = vpop.f32.mrf.mxu0
      %1296 = vmatprep.mubr.bf16.mxu0 %v829
      %1297 = vmatmul.mubr.bf16.gmra.mxu0 %v828
      %v1298 = vpop.f32.mrf.mxu0
      %v1299 = vadd.f32 0.0, %v1298
      %v1300 = vpop.f32.mrf.mxu0
      %v1301 = vpop.f32.mrf.mxu0
      %v1302 = vadd.f32 0.0, %v1301
      %v1303 = vpop.f32.mrf.mxu0
      %1304 = vmatprep.mubr.bf16.mxu0 %v834
      %1305 = vmatmul.mubr.bf16.gmra.mxu0 %v833
      %v1306 = vpop.f32.mrf.mxu0
      %v1307 = vadd.f32 0.0, %v1306
      %v1308 = vpop.f32.mrf.mxu0
      %v1309 = vpop.f32.mrf.mxu0
      %v1310 = vadd.f32 0.0, %v1309
      %v1311 = vpop.f32.mrf.mxu0
      %1312 = vmatprep.mubr.bf16.mxu0 %v839
      %1313 = vmatmul.mubr.bf16.gmra.mxu0 %v838
      %v1314 = vpop.f32.mrf.mxu0
      %v1315 = vadd.f32 0.0, %v1314
      %v1316 = vpop.f32.mrf.mxu0
      %v1317 = vpop.f32.mrf.mxu0
      %v1318 = vadd.f32 0.0, %v1317
      %v1319 = vpop.f32.mrf.mxu0
      %1320 = vmatprep.mubr.bf16.mxu0 %v844
      %1321 = vmatmul.mubr.bf16.gmra.mxu0 %v843
      %v1322 = vpop.f32.mrf.mxu0
      %v1323 = vadd.f32 0.0, %v1322
      %v1324 = vpop.f32.mrf.mxu0
      %v1325 = vpop.f32.mrf.mxu0
      %v1326 = vadd.f32 0.0, %v1325
      %v1327 = vpop.f32.mrf.mxu0
      %1328 = vdwg.mxu0
      %1329 = vmatprep.subr.bf16.mxu0 0
      %1330 = vmatpush1.bf16.msra.mxu0 %v1111
      %1331 = vmatprep.subr.bf16.mxu0 0
      %1332 = vmatpush1.bf16.msra.mxu0 %v1110
      %1333 = vmatprep.subr.bf16.mxu0 0
      %1334 = vmatpush1.bf16.msra.mxu0 %v1109
      %1335 = vmatprep.subr.bf16.mxu0 0
      %1336 = vmatpush1.bf16.msra.mxu0 %v1108
      %1337 = vmatprep.subr.bf16.mxu0 0
      %1338 = vmatpush1.bf16.msra.mxu0 %v1107
      %1339 = vmatprep.subr.bf16.mxu0 0
      %1340 = vmatpush1.bf16.msra.mxu0 %v1106
      %1341 = vmatprep.subr.bf16.mxu0 0
      %1342 = vmatpush1.bf16.msra.mxu0 %v1105
      %1343 = vmatprep.subr.bf16.mxu0 0
      %1344 = vmatpush1.bf16.msra.mxu0 %v1104
      %1345 = vmatprep.subr.bf16.mxu0 0
      %1346 = vmatpush2.bf16.msra.mxu0 %v1119
      %1347 = vmatprep.subr.bf16.mxu0 0
      %1348 = vmatpush2.bf16.msra.mxu0 %v1118
      %1349 = vmatprep.subr.bf16.mxu0 0
      %1350 = vmatpush2.bf16.msra.mxu0 %v1117
      %1351 = vmatprep.subr.bf16.mxu0 0
      %1352 = vmatpush2.bf16.msra.mxu0 %v1116
      %1353 = vmatprep.subr.bf16.mxu0 0
      %1354 = vmatpush2.bf16.msra.mxu0 %v1115
      %1355 = vmatprep.subr.bf16.mxu0 0
      %1356 = vmatpush2.bf16.msra.mxu0 %v1114
      %1357 = vmatprep.subr.bf16.mxu0 0
      %1358 = vmatpush2.bf16.msra.mxu0 %v1113
      %1359 = vmatprep.subr.bf16.mxu0 0
      %1360 = vmatpush2.bf16.msra.mxu0 %v1112
      %1361 = vmatprep.mubr.bf16.mxu0 %v771
      %1362 = vmatmul.mubr.bf16.gmra.mxu0 %v770
      %v1363 = vpop.f32.mrf.mxu0
      %v1364 = vadd.f32 %v1203, %v1363
      %v1365 = vpop.f32.mrf.mxu0
      %v1366 = vpop.f32.mrf.mxu0
      %v1367 = vadd.f32 %v1206, %v1366
      %v1368 = vpop.f32.mrf.mxu0
      %1369 = vmatprep.mubr.bf16.mxu0 %v776
      %1370 = vmatmul.mubr.bf16.gmra.mxu0 %v775
      %v1371 = vpop.f32.mrf.mxu0
      %v1372 = vadd.f32 %v1211, %v1371
      %v1373 = vpop.f32.mrf.mxu0
      %v1374 = vpop.f32.mrf.mxu0
      %v1375 = vadd.f32 %v1214, %v1374
      %v1376 = vpop.f32.mrf.mxu0
      %1377 = vmatprep.mubr.bf16.mxu0 %v781
      %1378 = vmatmul.mubr.bf16.gmra.mxu0 %v780
      %v1379 = vpop.f32.mrf.mxu0
      %v1380 = vadd.f32 %v1219, %v1379
      %v1381 = vpop.f32.mrf.mxu0
      %v1382 = vpop.f32.mrf.mxu0
      %v1383 = vadd.f32 %v1222, %v1382
      %v1384 = vpop.f32.mrf.mxu0
      %1385 = vmatprep.mubr.bf16.mxu0 %v786
      %1386 = vmatmul.mubr.bf16.gmra.mxu0 %v785
      %v1387 = vpop.f32.mrf.mxu0
      %v1388 = vadd.f32 %v1227, %v1387
      %v1389 = vpop.f32.mrf.mxu0
      %v1390 = vpop.f32.mrf.mxu0
      %v1391 = vadd.f32 %v1230, %v1390
      %v1392 = vpop.f32.mrf.mxu0
      %1393 = vmatprep.mubr.bf16.mxu0 %v791
      %1394 = vmatmul.mubr.bf16.gmra.mxu0 %v790
      %v1395 = vpop.f32.mrf.mxu0
      %v1396 = vadd.f32 %v1235, %v1395
      %v1397 = vpop.f32.mrf.mxu0
      %v1398 = vpop.f32.mrf.mxu0
      %v1399 = vadd.f32 %v1238, %v1398
      %v1400 = vpop.f32.mrf.mxu0
      %1401 = vmatprep.mubr.bf16.mxu0 %v796
      %1402 = vmatmul.mubr.bf16.gmra.mxu0 %v795
      %v1403 = vpop.f32.mrf.mxu0
      %v1404 = vadd.f32 %v1243, %v1403
      %v1405 = vpop.f32.mrf.mxu0
      %v1406 = vpop.f32.mrf.mxu0
      %v1407 = vadd.f32 %v1246, %v1406
      %v1408 = vpop.f32.mrf.mxu0
      %1409 = vmatprep.mubr.bf16.mxu0 %v801
      %1410 = vmatmul.mubr.bf16.gmra.mxu0 %v800
      %v1411 = vpop.f32.mrf.mxu0
      %v1412 = vadd.f32 %v1251, %v1411
      %v1413 = vpop.f32.mrf.mxu0
      %v1414 = vpop.f32.mrf.mxu0
      %v1415 = vadd.f32 %v1254, %v1414
      %v1416 = vpop.f32.mrf.mxu0
      %1417 = vmatprep.mubr.bf16.mxu0 %v806
      %1418 = vmatmul.mubr.bf16.gmra.mxu0 %v805
      %v1419 = vpop.f32.mrf.mxu0
      %v1420 = vadd.f32 %v1259, %v1419
      %v1421 = vpop.f32.mrf.mxu0
      %v1422 = vpop.f32.mrf.mxu0
      %v1423 = vadd.f32 %v1262, %v1422
      %v1424 = vpop.f32.mrf.mxu0
      %1425 = vmatprep.mubr.bf16.mxu0 %v811
      %1426 = vmatmul.mubr.bf16.gmra.mxu0 %v810
      %v1427 = vpop.f32.mrf.mxu0
      %v1428 = vadd.f32 %v1267, %v1427
      %v1429 = vpop.f32.mrf.mxu0
      %v1430 = vpop.f32.mrf.mxu0
      %v1431 = vadd.f32 %v1270, %v1430
      %v1432 = vpop.f32.mrf.mxu0
      %1433 = vmatprep.mubr.bf16.mxu0 %v816
      %1434 = vmatmul.mubr.bf16.gmra.mxu0 %v815
      %v1435 = vpop.f32.mrf.mxu0
      %v1436 = vadd.f32 %v1275, %v1435
      %v1437 = vpop.f32.mrf.mxu0
      %v1438 = vpop.f32.mrf.mxu0
      %v1439 = vadd.f32 %v1278, %v1438
      %v1440 = vpop.f32.mrf.mxu0
      %1441 = vmatprep.mubr.bf16.mxu0 %v821
      %1442 = vmatmul.mubr.bf16.gmra.mxu0 %v820
      %v1443 = vpop.f32.mrf.mxu0
      %v1444 = vadd.f32 %v1283, %v1443
      %v1445 = vpop.f32.mrf.mxu0
      %v1446 = vpop.f32.mrf.mxu0
      %v1447 = vadd.f32 %v1286, %v1446
      %v1448 = vpop.f32.mrf.mxu0
      %1449 = vmatprep.mubr.bf16.mxu0 %v826
      %1450 = vmatmul.mubr.bf16.gmra.mxu0 %v825
      %v1451 = vpop.f32.mrf.mxu0
      %v1452 = vadd.f32 %v1291, %v1451
      %v1453 = vpop.f32.mrf.mxu0
      %v1454 = vpop.f32.mrf.mxu0
      %v1455 = vadd.f32 %v1294, %v1454
      %v1456 = vpop.f32.mrf.mxu0
      %1457 = vmatprep.mubr.bf16.mxu0 %v831
      %1458 = vmatmul.mubr.bf16.gmra.mxu0 %v830
      %v1459 = vpop.f32.mrf.mxu0
      %v1460 = vadd.f32 %v1299, %v1459
      %v1461 = vpop.f32.mrf.mxu0
      %v1462 = vpop.f32.mrf.mxu0
      %v1463 = vadd.f32 %v1302, %v1462
      %v1464 = vpop.f32.mrf.mxu0
      %1465 = vmatprep.mubr.bf16.mxu0 %v836
      %1466 = vmatmul.mubr.bf16.gmra.mxu0 %v835
      %v1467 = vpop.f32.mrf.mxu0
      %v1468 = vadd.f32 %v1307, %v1467
      %v1469 = vpop.f32.mrf.mxu0
      %v1470 = vpop.f32.mrf.mxu0
      %v1471 = vadd.f32 %v1310, %v1470
      %v1472 = vpop.f32.mrf.mxu0
      %1473 = vmatprep.mubr.bf16.mxu0 %v841
      %1474 = vmatmul.mubr.bf16.gmra.mxu0 %v840
      %v1475 = vpop.f32.mrf.mxu0
      %v1476 = vadd.f32 %v1315, %v1475
      %v1477 = vpop.f32.mrf.mxu0
      %v1478 = vpop.f32.mrf.mxu0
      %v1479 = vadd.f32 %v1318, %v1478
      %v1480 = vpop.f32.mrf.mxu0
      %1481 = vmatprep.mubr.bf16.mxu0 %v846
      %1482 = vmatmul.mubr.bf16.gmra.mxu0 %v845
      %v1483 = vpop.f32.mrf.mxu0
      %v1484 = vadd.f32 %v1323, %v1483
      %v1485 = vpop.f32.mrf.mxu0
      %v1486 = vpop.f32.mrf.mxu0
      %v1487 = vadd.f32 %v1326, %v1486
      %v1488 = vpop.f32.mrf.mxu0
      %1489 = vdwg.mxu0
      %1490 = vmatprep.subr.bf16.mxu0 0
      %1491 = vmatpush1.bf16.msra.mxu0 %v1127
      %1492 = vmatprep.subr.bf16.mxu0 0
      %1493 = vmatpush1.bf16.msra.mxu0 %v1126
      %1494 = vmatprep.subr.bf16.mxu0 0
      %1495 = vmatpush1.bf16.msra.mxu0 %v1125
      %1496 = vmatprep.subr.bf16.mxu0 0
      %1497 = vmatpush1.bf16.msra.mxu0 %v1124
      %1498 = vmatprep.subr.bf16.mxu0 0
      %1499 = vmatpush1.bf16.msra.mxu0 %v1123
      %1500 = vmatprep.subr.bf16.mxu0 0
      %1501 = vmatpush1.bf16.msra.mxu0 %v1122
      %1502 = vmatprep.subr.bf16.mxu0 0
      %1503 = vmatpush1.bf16.msra.mxu0 %v1121
      %1504 = vmatprep.subr.bf16.mxu0 0
      %1505 = vmatpush1.bf16.msra.mxu0 %v1120
      %1506 = vmatprep.subr.bf16.mxu0 0
      %1507 = vmatpush2.bf16.msra.mxu0 0
      %1508 = vmatprep.subr.bf16.mxu0 0
      %1509 = vmatpush2.bf16.msra.mxu0 0
      %1510 = vmatprep.subr.bf16.mxu0 0
      %1511 = vmatpush2.bf16.msra.mxu0 0
      %1512 = vmatprep.subr.bf16.mxu0 0
      %1513 = vmatpush2.bf16.msra.mxu0 0
      %1514 = vmatprep.subr.bf16.mxu0 0
      %1515 = vmatpush2.bf16.msra.mxu0 0
      %1516 = vmatprep.subr.bf16.mxu0 0
      %1517 = vmatpush2.bf16.msra.mxu0 0
      %1518 = vmatprep.subr.bf16.mxu0 0
      %1519 = vmatpush2.bf16.msra.mxu0 0
      %1520 = vmatprep.subr.bf16.mxu0 0
      %1521 = vmatpush2.bf16.msra.mxu0 0
      %1522 = vmatprep.mubr.bf16.mxu0 0
      %1523 = vmatmul.mubr.bf16.gmra.mxu0 %v772
      %v1524 = vpop.f32.mrf.mxu0
      %v1525 = vadd.f32 %v1364, %v1524
      %v1526 = vpop.f32.mrf.mxu0
      %v1527 = vpop.f32.mrf.mxu0
      %v1528 = vadd.f32 %v1367, %v1527
      %v1529 = vpop.f32.mrf.mxu0
      %1530 = vmatprep.mubr.bf16.mxu0 0
      %1531 = vmatmul.mubr.bf16.gmra.mxu0 %v777
      %v1532 = vpop.f32.mrf.mxu0
      %v1533 = vadd.f32 %v1372, %v1532
      %v1534 = vpop.f32.mrf.mxu0
      %v1535 = vpop.f32.mrf.mxu0
      %v1536 = vadd.f32 %v1375, %v1535
      %v1537 = vpop.f32.mrf.mxu0
      %1538 = vmatprep.mubr.bf16.mxu0 0
      %1539 = vmatmul.mubr.bf16.gmra.mxu0 %v782
      %v1540 = vpop.f32.mrf.mxu0
      %v1541 = vadd.f32 %v1380, %v1540
      %v1542 = vpop.f32.mrf.mxu0
      %v1543 = vpop.f32.mrf.mxu0
      %v1544 = vadd.f32 %v1383, %v1543
      %v1545 = vpop.f32.mrf.mxu0
      %1546 = vmatprep.mubr.bf16.mxu0 0
      %1547 = vmatmul.mubr.bf16.gmra.mxu0 %v787
      %v1548 = vpop.f32.mrf.mxu0
      %v1549 = vadd.f32 %v1388, %v1548
      %v1550 = vpop.f32.mrf.mxu0
      %v1551 = vpop.f32.mrf.mxu0
      %v1552 = vadd.f32 %v1391, %v1551
      %v1553 = vpop.f32.mrf.mxu0
      %1554 = vmatprep.mubr.bf16.mxu0 0
      %1555 = vmatmul.mubr.bf16.gmra.mxu0 %v792
      %v1556 = vpop.f32.mrf.mxu0
      %v1557 = vadd.f32 %v1396, %v1556
      %v1558 = vpop.f32.mrf.mxu0
      %v1559 = vpop.f32.mrf.mxu0
      %v1560 = vadd.f32 %v1399, %v1559
      %v1561 = vpop.f32.mrf.mxu0
      %1562 = vmatprep.mubr.bf16.mxu0 0
      %1563 = vmatmul.mubr.bf16.gmra.mxu0 %v797
      %v1564 = vpop.f32.mrf.mxu0
      %v1565 = vadd.f32 %v1404, %v1564
      %v1566 = vpop.f32.mrf.mxu0
      %v1567 = vpop.f32.mrf.mxu0
      %v1568 = vadd.f32 %v1407, %v1567
      %v1569 = vpop.f32.mrf.mxu0
      %1570 = vmatprep.mubr.bf16.mxu0 0
      %1571 = vmatmul.mubr.bf16.gmra.mxu0 %v802
      %v1572 = vpop.f32.mrf.mxu0
      %v1573 = vadd.f32 %v1412, %v1572
      %v1574 = vpop.f32.mrf.mxu0
      %v1575 = vpop.f32.mrf.mxu0
      %v1576 = vadd.f32 %v1415, %v1575
      %v1577 = vpop.f32.mrf.mxu0
      %1578 = vmatprep.mubr.bf16.mxu0 0
      %1579 = vmatmul.mubr.bf16.gmra.mxu0 %v807
      %v1580 = vpop.f32.mrf.mxu0
      %v1581 = vadd.f32 %v1420, %v1580
      %v1582 = vpop.f32.mrf.mxu0
      %v1583 = vpop.f32.mrf.mxu0
      %v1584 = vadd.f32 %v1423, %v1583
      %v1585 = vpop.f32.mrf.mxu0
      %1586 = vmatprep.mubr.bf16.mxu0 0
      %1587 = vmatmul.mubr.bf16.gmra.mxu0 %v812
      %v1588 = vpop.f32.mrf.mxu0
      %v1589 = vadd.f32 %v1428, %v1588
      %v1590 = vpop.f32.mrf.mxu0
      %v1591 = vpop.f32.mrf.mxu0
      %v1592 = vadd.f32 %v1431, %v1591
      %v1593 = vpop.f32.mrf.mxu0
      %1594 = vmatprep.mubr.bf16.mxu0 0
      %1595 = vmatmul.mubr.bf16.gmra.mxu0 %v817
      %v1596 = vpop.f32.mrf.mxu0
      %v1597 = vadd.f32 %v1436, %v1596
      %v1598 = vpop.f32.mrf.mxu0
      %v1599 = vpop.f32.mrf.mxu0
      %v1600 = vadd.f32 %v1439, %v1599
      %v1601 = vpop.f32.mrf.mxu0
      %1602 = vmatprep.mubr.bf16.mxu0 0
      %1603 = vmatmul.mubr.bf16.gmra.mxu0 %v822
      %v1604 = vpop.f32.mrf.mxu0
      %v1605 = vadd.f32 %v1444, %v1604
      %v1606 = vpop.f32.mrf.mxu0
      %v1607 = vpop.f32.mrf.mxu0
      %v1608 = vadd.f32 %v1447, %v1607
      %v1609 = vpop.f32.mrf.mxu0
      %1610 = vmatprep.mubr.bf16.mxu0 0
      %1611 = vmatmul.mubr.bf16.gmra.mxu0 %v827
      %v1612 = vpop.f32.mrf.mxu0
      %v1613 = vadd.f32 %v1452, %v1612
      %v1614 = vpop.f32.mrf.mxu0
      %v1615 = vpop.f32.mrf.mxu0
      %v1616 = vadd.f32 %v1455, %v1615
      %v1617 = vpop.f32.mrf.mxu0
      %1618 = vmatprep.mubr.bf16.mxu0 0
      %1619 = vmatmul.mubr.bf16.gmra.mxu0 %v832
      %v1620 = vpop.f32.mrf.mxu0
      %v1621 = vadd.f32 %v1460, %v1620
      %v1622 = vpop.f32.mrf.mxu0
      %v1623 = vpop.f32.mrf.mxu0
      %v1624 = vadd.f32 %v1463, %v1623
      %v1625 = vpop.f32.mrf.mxu0
      %1626 = vmatprep.mubr.bf16.mxu0 0
      %1627 = vmatmul.mubr.bf16.gmra.mxu0 %v837
      %v1628 = vpop.f32.mrf.mxu0
      %v1629 = vadd.f32 %v1468, %v1628
      %v1630 = vpop.f32.mrf.mxu0
      %v1631 = vpop.f32.mrf.mxu0
      %v1632 = vadd.f32 %v1471, %v1631
      %v1633 = vpop.f32.mrf.mxu0
      %1634 = vmatprep.mubr.bf16.mxu0 0
      %1635 = vmatmul.mubr.bf16.gmra.mxu0 %v842
      %v1636 = vpop.f32.mrf.mxu0
      %v1637 = vadd.f32 %v1476, %v1636
      %v1638 = vpop.f32.mrf.mxu0
      %v1639 = vpop.f32.mrf.mxu0
      %v1640 = vadd.f32 %v1479, %v1639
      %v1641 = vpop.f32.mrf.mxu0
      %1642 = vmatprep.mubr.bf16.mxu0 0
      %1643 = vmatmul.mubr.bf16.gmra.mxu0 %v847
      %v1644 = vpop.f32.mrf.mxu0
      %v1645 = vadd.f32 %v1484, %v1644
      %v1646 = vpop.f32.mrf.mxu0
      %v1647 = vpop.f32.mrf.mxu0
      %v1648 = vadd.f32 %v1487, %v1647
      %v1649 = vpop.f32.mrf.mxu0
      %1650 = vdwg.mxu0
      %v1651 = vadd.f32 %v304, %v1525
      %v1652 = vadd.f32 %v305, %v1528
      %v1653 = vadd.f32 %v306, %v1533
      %v1654 = vadd.f32 %v307, %v1536
      %v1655 = vadd.f32 %v308, %v1541
      %v1656 = vadd.f32 %v309, %v1544
      %v1657 = vadd.f32 %v310, %v1549
      %v1658 = vadd.f32 %v311, %v1552
      %v1659 = vadd.f32 %v312, %v1557
      %v1660 = vadd.f32 %v313, %v1560
      %v1661 = vadd.f32 %v314, %v1565
      %v1662 = vadd.f32 %v315, %v1568
      %v1663 = vadd.f32 %v316, %v1573
      %v1664 = vadd.f32 %v317, %v1576
      %v1665 = vadd.f32 %v318, %v1581
      %v1666 = vadd.f32 %v319, %v1584
      %v1667 = vadd.f32 %v320, %v1589
      %v1668 = vadd.f32 %v321, %v1592
      %v1669 = vadd.f32 %v322, %v1597
      %v1670 = vadd.f32 %v323, %v1600
      %v1671 = vadd.f32 %v324, %v1605
      %v1672 = vadd.f32 %v325, %v1608
      %v1673 = vadd.f32 %v326, %v1613
      %v1674 = vadd.f32 %v327, %v1616
      %v1675 = vadd.f32 %v328, %v1621
      %v1676 = vadd.f32 %v329, %v1624
      %v1677 = vadd.f32 %v330, %v1629
      %v1678 = vadd.f32 %v331, %v1632
      %v1679 = vadd.f32 %v332, %v1637
      %v1680 = vadd.f32 %v333, %v1640
      %v1681 = vadd.f32 %v334, %v1645
      %v1682 = vadd.f32 %v335, %v1648
      %1683 = vst [vmem:[#allocation2] sm:$0xff] %v1651
      %1684 = vst [vmem:[#allocation2 + $0x8] sm:$0xff] %v1652
      %1685 = vst [vmem:[#allocation2 + $0x10] sm:$0xff] %v1653
      %1686 = vst [vmem:[#allocation2 + $0x18] sm:$0xff] %v1654
      %1687 = vst [vmem:[#allocation2 + $0x20] sm:$0xff] %v1655
      %1688 = vst [vmem:[#allocation2 + $0x28] sm:$0xff] %v1656
      %1689 = vst [vmem:[#allocation2 + $0x30] sm:$0xff] %v1657
      %1690 = vst [vmem:[#allocation2 + $0x38] sm:$0xff] %v1658
      %1691 = vst [vmem:[#allocation2 + $0x40] sm:$0xff] %v1659
      %1692 = vst [vmem:[#allocation2 + $0x48] sm:$0xff] %v1660
      %1693 = vst [vmem:[#allocation2 + $0x50] sm:$0xff] %v1661
      %1694 = vst [vmem:[#allocation2 + $0x58] sm:$0xff] %v1662
      %1695 = vst [vmem:[#allocation2 + $0x60] sm:$0xff] %v1663
      %1696 = vst [vmem:[#allocation2 + $0x68] sm:$0xff] %v1664
      %1697 = vst [vmem:[#allocation2 + $0x70] sm:$0xff] %v1665
      %1698 = vst [vmem:[#allocation2 + $0x78] sm:$0xff] %v1666
      %1699 = vst [vmem:[#allocation2 + $0x80] sm:$0xff] %v1667
      %1700 = vst [vmem:[#allocation2 + $0x88] sm:$0xff] %v1668
      %1701 = vst [vmem:[#allocation2 + $0x90] sm:$0xff] %v1669
      %1702 = vst [vmem:[#allocation2 + $0x98] sm:$0xff] %v1670
      %1703 = vst [vmem:[#allocation2 + $0xa0] sm:$0xff] %v1671
      %1704 = vst [vmem:[#allocation2 + $0xa8] sm:$0xff] %v1672
      %1705 = vst [vmem:[#allocation2 + $0xb0] sm:$0xff] %v1673
      %1706 = vst [vmem:[#allocation2 + $0xb8] sm:$0xff] %v1674
      %1707 = vst [vmem:[#allocation2 + $0xc0] sm:$0xff] %v1675
      %1708 = vst [vmem:[#allocation2 + $0xc8] sm:$0xff] %v1676
      %1709 = vst [vmem:[#allocation2 + $0xd0] sm:$0xff] %v1677
      %1710 = vst [vmem:[#allocation2 + $0xd8] sm:$0xff] %v1678
      %1711 = vst [vmem:[#allocation2 + $0xe0] sm:$0xff] %v1679
      %1712 = vst [vmem:[#allocation2 + $0xe8] sm:$0xff] %v1680
      %1713 = vst [vmem:[#allocation2 + $0xf0] sm:$0xff] %v1681
      %1714 = vst [vmem:[#allocation2 + $0xf8] sm:$0xff] %v1682
      // Predicated region
      $region37: #{forward.14} parent=31 // pred_check
        %p1715 = pneg %p268
      $region38: #{forward.14} parent=31 // pred_check_branch
        %1717 = sbr.rel (%p1715) target = $region40
      $region39: #{forward.14} parent=31 // pred_region
        %v1718 = vld [vmem:[#allocation2] sm:$0xff]
        %v1719 = vld [vmem:[#allocation2 + $0x8] sm:$0xff]
        %v1720 = vld [vmem:[#allocation2 + $0x10] sm:$0xff]
        %v1721 = vld [vmem:[#allocation2 + $0x18] sm:$0xff]
        %v1722 = vld [vmem:[#allocation2 + $0x20] sm:$0xff]
        %v1723 = vld [vmem:[#allocation2 + $0x28] sm:$0xff]
        %v1724 = vld [vmem:[#allocation2 + $0x30] sm:$0xff]
        %v1725 = vld [vmem:[#allocation2 + $0x38] sm:$0xff]
        %v1726 = vld [vmem:[#allocation2 + $0x40] sm:$0xff]
        %v1727 = vld [vmem:[#allocation2 + $0x48] sm:$0xff]
        %v1728 = vld [vmem:[#allocation2 + $0x50] sm:$0xff]
        %v1729 = vld [vmem:[#allocation2 + $0x58] sm:$0xff]
        %v1730 = vld [vmem:[#allocation2 + $0x60] sm:$0xff]
        %v1731 = vld [vmem:[#allocation2 + $0x68] sm:$0xff]
        %v1732 = vld [vmem:[#allocation2 + $0x70] sm:$0xff]
        %v1733 = vld [vmem:[#allocation2 + $0x78] sm:$0xff]
        %v1734 = vld [vmem:[#allocation2 + $0x80] sm:$0xff]
        %v1735 = vld [vmem:[#allocation2 + $0x88] sm:$0xff]
        %v1736 = vld [vmem:[#allocation2 + $0x90] sm:$0xff]
        %v1737 = vld [vmem:[#allocation2 + $0x98] sm:$0xff]
        %v1738 = vld [vmem:[#allocation2 + $0xa0] sm:$0xff]
        %v1739 = vld [vmem:[#allocation2 + $0xa8] sm:$0xff]
        %v1740 = vld [vmem:[#allocation2 + $0xb0] sm:$0xff]
        %v1741 = vld [vmem:[#allocation2 + $0xb8] sm:$0xff]
        %v1742 = vld [vmem:[#allocation2 + $0xc0] sm:$0xff]
        %v1743 = vld [vmem:[#allocation2 + $0xc8] sm:$0xff]
        %v1744 = vld [vmem:[#allocation2 + $0xd0] sm:$0xff]
        %v1745 = vld [vmem:[#allocation2 + $0xd8] sm:$0xff]
        %v1746 = vld [vmem:[#allocation2 + $0xe0] sm:$0xff]
        %v1747 = vld [vmem:[#allocation2 + $0xe8] sm:$0xff]
        %v1748 = vld [vmem:[#allocation2 + $0xf0] sm:$0xff]
        %v1749 = vld [vmem:[#allocation2 + $0xf8] sm:$0xff]
        %v1750 = vld [vmem:[%s257] sm:$0x1]
        %v1752 = vlaneseq
        %v1753 = vshrl.u32 %v1752, 7
        %v1754 = vsub.s32 0, %v1753
        %v1755 = vrot.slane %v1750, %v1754
        %v1757 = vadd.f32 %v1718, %v1755
        %v1758 = vadd.f32 %v1719, %v1755
        %v1759 = vadd.f32 %v1720, %v1755
        %v1760 = vadd.f32 %v1721, %v1755
        %v1761 = vadd.f32 %v1722, %v1755
        %v1762 = vadd.f32 %v1723, %v1755
        %v1763 = vadd.f32 %v1724, %v1755
        %v1764 = vadd.f32 %v1725, %v1755
        %v1765 = vadd.f32 %v1726, %v1755
        %v1766 = vadd.f32 %v1727, %v1755
        %v1767 = vadd.f32 %v1728, %v1755
        %v1768 = vadd.f32 %v1729, %v1755
        %v1769 = vadd.f32 %v1730, %v1755
        %v1770 = vadd.f32 %v1731, %v1755
        %v1771 = vadd.f32 %v1732, %v1755
        %v1772 = vadd.f32 %v1733, %v1755
        %v1773 = vadd.f32 %v1734, %v1755
        %v1774 = vadd.f32 %v1735, %v1755
        %v1775 = vadd.f32 %v1736, %v1755
        %v1776 = vadd.f32 %v1737, %v1755
        %v1777 = vadd.f32 %v1738, %v1755
        %v1778 = vadd.f32 %v1739, %v1755
        %v1779 = vadd.f32 %v1740, %v1755
        %v1780 = vadd.f32 %v1741, %v1755
        %v1781 = vadd.f32 %v1742, %v1755
        %v1782 = vadd.f32 %v1743, %v1755
        %v1783 = vadd.f32 %v1744, %v1755
        %v1784 = vadd.f32 %v1745, %v1755
        %v1785 = vadd.f32 %v1746, %v1755
        %v1786 = vadd.f32 %v1747, %v1755
        %v1787 = vadd.f32 %v1748, %v1755
        %v1788 = vadd.f32 %v1749, %v1755
        %v1789 = vmax.f32 %v1757, 0.0
        %v1790 = vmax.f32 %v1758, 0.0
        %v1791 = vmax.f32 %v1759, 0.0
        %v1792 = vmax.f32 %v1760, 0.0
        %v1793 = vmax.f32 %v1761, 0.0
        %v1794 = vmax.f32 %v1762, 0.0
        %v1795 = vmax.f32 %v1763, 0.0
        %v1796 = vmax.f32 %v1764, 0.0
        %v1797 = vmax.f32 %v1765, 0.0
        %v1798 = vmax.f32 %v1766, 0.0
        %v1799 = vmax.f32 %v1767, 0.0
        %v1800 = vmax.f32 %v1768, 0.0
        %v1801 = vmax.f32 %v1769, 0.0
        %v1802 = vmax.f32 %v1770, 0.0
        %v1803 = vmax.f32 %v1771, 0.0
        %v1804 = vmax.f32 %v1772, 0.0
        %v1805 = vmax.f32 %v1773, 0.0
        %v1806 = vmax.f32 %v1774, 0.0
        %v1807 = vmax.f32 %v1775, 0.0
        %v1808 = vmax.f32 %v1776, 0.0
        %v1809 = vmax.f32 %v1777, 0.0
        %v1810 = vmax.f32 %v1778, 0.0
        %v1811 = vmax.f32 %v1779, 0.0
        %v1812 = vmax.f32 %v1780, 0.0
        %v1813 = vmax.f32 %v1781, 0.0
        %v1814 = vmax.f32 %v1782, 0.0
        %v1815 = vmax.f32 %v1783, 0.0
        %v1816 = vmax.f32 %v1784, 0.0
        %v1817 = vmax.f32 %v1785, 0.0
        %v1818 = vmax.f32 %v1786, 0.0
        %v1819 = vmax.f32 %v1787, 0.0
        %v1820 = vmax.f32 %v1788, 0.0
        %v1821 = vpack.c.bf16 %v1790, %v1789
        %v1822 = vpack.c.bf16 %v1792, %v1791
        %v1823 = vpack.c.bf16 %v1794, %v1793
        %v1824 = vpack.c.bf16 %v1796, %v1795
        %v1825 = vpack.c.bf16 %v1798, %v1797
        %v1826 = vpack.c.bf16 %v1800, %v1799
        %v1827 = vpack.c.bf16 %v1802, %v1801
        %v1828 = vpack.c.bf16 %v1804, %v1803
        %v1829 = vpack.c.bf16 %v1806, %v1805
        %v1830 = vpack.c.bf16 %v1808, %v1807
        %v1831 = vpack.c.bf16 %v1810, %v1809
        %v1832 = vpack.c.bf16 %v1812, %v1811
        %v1833 = vpack.c.bf16 %v1814, %v1813
        %v1834 = vpack.c.bf16 %v1816, %v1815
        %v1835 = vpack.c.bf16 %v1818, %v1817
        %v1836 = vpack.c.bf16 %v1820, %v1819
        %v1853 = vunpack.c.l.b16 %v1821
        %v1854 = vunpack.c.h.b16 %v1821
        %v1855 = vunpack.c.l.b16 %v1822
        %v1856 = vunpack.c.h.b16 %v1822
        %v1857 = vunpack.c.l.b16 %v1823
        %v1858 = vunpack.c.h.b16 %v1823
        %v1859 = vunpack.c.l.b16 %v1824
        %v1860 = vunpack.c.h.b16 %v1824
        %v1861 = vunpack.c.l.b16 %v1825
        %v1862 = vunpack.c.h.b16 %v1825
        %v1863 = vunpack.c.l.b16 %v1826
        %v1864 = vunpack.c.h.b16 %v1826
        %v1865 = vunpack.c.l.b16 %v1827
        %v1866 = vunpack.c.h.b16 %v1827
        %v1867 = vunpack.c.l.b16 %v1828
        %v1868 = vunpack.c.h.b16 %v1828
        %v1869 = vunpack.c.l.b16 %v1829
        %v1870 = vunpack.c.h.b16 %v1829
        %v1871 = vunpack.c.l.b16 %v1830
        %v1872 = vunpack.c.h.b16 %v1830
        %v1873 = vunpack.c.l.b16 %v1831
        %v1874 = vunpack.c.h.b16 %v1831
        %v1875 = vunpack.c.l.b16 %v1832
        %v1876 = vunpack.c.h.b16 %v1832
        %v1877 = vunpack.c.l.b16 %v1833
        %v1878 = vunpack.c.h.b16 %v1833
        %v1879 = vunpack.c.l.b16 %v1834
        %v1880 = vunpack.c.h.b16 %v1834
        %v1881 = vunpack.c.l.b16 %v1835
        %v1882 = vunpack.c.h.b16 %v1835
        %v1883 = vunpack.c.l.b16 %v1836
        %v1884 = vunpack.c.h.b16 %v1836
        %v1885 = vpack.c.b16 %v1853, %v1853
        %v1886 = vpack.c.b16 %v1854, %v1854
        %v1887 = vpack.c.b16 %v1855, %v1855
        %v1888 = vpack.c.b16 %v1856, %v1856
        %v1889 = vpack.c.b16 %v1857, %v1857
        %v1890 = vpack.c.b16 %v1858, %v1858
        %v1891 = vpack.c.b16 %v1859, %v1859
        %v1892 = vpack.c.b16 %v1860, %v1860
        %v1893 = vpack.c.b16 %v1861, %v1861
        %v1894 = vpack.c.b16 %v1862, %v1862
        %v1895 = vpack.c.b16 %v1863, %v1863
        %v1896 = vpack.c.b16 %v1864, %v1864
        %v1897 = vpack.c.b16 %v1865, %v1865
        %v1898 = vpack.c.b16 %v1866, %v1866
        %v1899 = vpack.c.b16 %v1867, %v1867
        %v1900 = vpack.c.b16 %v1868, %v1868
        %v1901 = vpack.c.b16 %v1869, %v1869
        %v1902 = vpack.c.b16 %v1870, %v1870
        %v1903 = vpack.c.b16 %v1871, %v1871
        %v1904 = vpack.c.b16 %v1872, %v1872
        %v1905 = vpack.c.b16 %v1873, %v1873
        %v1906 = vpack.c.b16 %v1874, %v1874
        %v1907 = vpack.c.b16 %v1875, %v1875
        %v1908 = vpack.c.b16 %v1876, %v1876
        %v1909 = vpack.c.b16 %v1877, %v1877
        %v1910 = vpack.c.b16 %v1878, %v1878
        %v1911 = vpack.c.b16 %v1879, %v1879
        %v1912 = vpack.c.b16 %v1880, %v1880
        %v1913 = vpack.c.b16 %v1881, %v1881
        %v1914 = vpack.c.b16 %v1882, %v1882
        %v1915 = vpack.c.b16 %v1883, %v1883
        %v1916 = vpack.c.b16 %v1884, %v1884
        %1949 = vst [vmem:[%s265] sm:$0xf] %v1885
        %1950 = vst [vmem:[%s265 + $0x4] sm:$0xf] %v1886
        %1951 = vst [vmem:[%s265 + $0x8] sm:$0xf] %v1887
        %1952 = vst [vmem:[%s265 + $0xc] sm:$0xf] %v1888
        %1953 = vst [vmem:[%s265 + $0x10] sm:$0xf] %v1889
        %1954 = vst [vmem:[%s265 + $0x14] sm:$0xf] %v1890
        %1955 = vst [vmem:[%s265 + $0x18] sm:$0xf] %v1891
        %1956 = vst [vmem:[%s265 + $0x1c] sm:$0xf] %v1892
        %1957 = vst [vmem:[%s265 + $0x20] sm:$0xf] %v1893
        %1958 = vst [vmem:[%s265 + $0x24] sm:$0xf] %v1894
        %1959 = vst [vmem:[%s265 + $0x28] sm:$0xf] %v1895
        %1960 = vst [vmem:[%s265 + $0x2c] sm:$0xf] %v1896
        %1961 = vst [vmem:[%s265 + $0x30] sm:$0xf] %v1897
        %1962 = vst [vmem:[%s265 + $0x34] sm:$0xf] %v1898
        %1963 = vst [vmem:[%s265 + $0x38] sm:$0xf] %v1899
        %1964 = vst [vmem:[%s265 + $0x3c] sm:$0xf] %v1900
        %1965 = vst [vmem:[%s265 + $0x40] sm:$0xf] %v1901
        %1966 = vst [vmem:[%s265 + $0x44] sm:$0xf] %v1902
        %1967 = vst [vmem:[%s265 + $0x48] sm:$0xf] %v1903
        %1968 = vst [vmem:[%s265 + $0x4c] sm:$0xf] %v1904
        %1969 = vst [vmem:[%s265 + $0x50] sm:$0xf] %v1905
        %1970 = vst [vmem:[%s265 + $0x54] sm:$0xf] %v1906
        %1971 = vst [vmem:[%s265 + $0x58] sm:$0xf] %v1907
        %1972 = vst [vmem:[%s265 + $0x5c] sm:$0xf] %v1908
        %1973 = vst [vmem:[%s265 + $0x60] sm:$0xf] %v1909
        %1974 = vst [vmem:[%s265 + $0x64] sm:$0xf] %v1910
        %1975 = vst [vmem:[%s265 + $0x68] sm:$0xf] %v1911
        %1976 = vst [vmem:[%s265 + $0x6c] sm:$0xf] %v1912
        %1977 = vst [vmem:[%s265 + $0x70] sm:$0xf] %v1913
        %1978 = vst [vmem:[%s265 + $0x74] sm:$0xf] %v1914
        %1979 = vst [vmem:[%s265 + $0x78] sm:$0xf] %v1915
        %1980 = vst [vmem:[%s265 + $0x7c] sm:$0xf] %v1916
      $region40: #{forward.14} parent=31 // pred_fallthru
        _
      %s1981 = smul.u32 32, %s19
      %p1982 = scmp.lt.s32.totalorder %s1981, 95
      %s1983 = scalar_select %p1982, %s1981, 95
      %p1984 = scmp.lt.s32.totalorder %s20, 0
      %s1985 = scalar_select %p1984, %s20, 0
      %s1986 = sadd.s32 %s1985, %s1983
      %s1987 = smul.addr %s1986, 4
      %s1988 = scalar_lea.vmem %s3, %s1987
      // Predicated region
      $region41: #{forward.14} parent=31 // pred_check
        %p1989 = pneg %p135
      $region42: #{forward.14} parent=31 // pred_check_branch
        %1991 = sbr.rel (%p1989) target = $region44
      $region43: #{forward.14} parent=31 // pred_region
        %s1992 = smul.u32 32, %s19
      $region44: #{forward.14} parent=31 // pred_fallthru
        _
    $region32: #{forward.14} parent=5 // pred_fallthru
      _
    %p1993 = scmp.le.s32.totalorder 2, %s9
    // Predicated region
    $region45: #{forward.14} parent=5 // pred_check
      %p1994 = pneg %p1993
    $region46: #{forward.14} parent=5 // pred_check_branch
      %1996 = sbr.rel (%p1994) target = $region48
    $region47: #{forward.14} parent=5 // pred_region
      %s1997 = ssub.s32 %s9, 2
      // Predicated region
      $region49: #{forward.14} parent=47 // pred_check
        %p1998 = pneg %p141
      $region50: #{forward.14} parent=47 // pred_check_branch
        %2000 = sbr.rel (%p1998) target = $region52
      $region51: #{forward.14} parent=47 // pred_region
        %s2001 = smul.u32 32, %s22
        %p2002 = scmp.lt.s32.totalorder %s2001, 95
        %s2003 = scalar_select %p2002, %s2001, 95
        %p2004 = scmp.lt.s32.totalorder %s23, 0
        %s2005 = scalar_select %p2004, %s23, 0
        %s2006 = sadd.s32 %s2005, %s2003
        %s2007 = smul.addr %s2006, 4
        %s2008 = scalar_lea.vmem %s3, %s2007
      $region52: #{forward.14} parent=47 // pred_fallthru
        _
    $region48: #{forward.14} parent=5 // pred_fallthru
      _
  $region6: #{forward.14} parent=0 // loop_footer
    %s13 = sadd.s32 1, %s9
  $region7: #{forward.14} parent=0 // loop_footer_branch
    %8 = sbr.rel target = $region3
  $region8: #{forward.14} parent=0 // loop_exit
    _

// kernel: forward.15
$region0: #{forward.15}
  #allocation0 [shape = 'u32[]', space=smem, size = 0x4, offset = 0x4, fixed_abs, tag = 'smem constant byte address 0x4 - core index']
  #allocation1 [shape = 'u32[144,128]{1,0:T(1,128)}', space=vmem, size = 0x12000, scoped, tag = 'internal scratch']
  #allocation2 [shape = 'f32[256,128]{1,0:T(8,128)}', space=vmem, size = 0x20000, scoped, tag = 'scratch operand']
  %s0 = inlined_call_operand.vmem [shape: bf16[768,256], index: 0, kind: input, shape index: {}]
  %s1 = inlined_call_operand.vmem [shape: bf16[256,128], index: 1, kind: input, shape index: {}]
  %s2 = inlined_call_operand.vmem [shape: f32[1,128], index: 2, kind: input, shape index: {}]
  %s3 = inlined_call_operand.vmem [shape: bf16[768,128], index: 3, kind: output, shape index: {}]
  %s4 = sld [smem:[#allocation0]]
  $region53: #{forward.15} parent=0
    _
  %s6 = ssub.s32 1, %s4
  %s7 = scalar_select 0, %s6, %s4
  loop: start=0, step=1, limit=5
  $region2: #{forward.15} parent=0 // loop_pre_header
    _
  $region3: #{forward.15} parent=0 // loop_header
    %s9 = sphi 0, %s13
    %p10 = scmp.ge.s32.totalorder %s9, 5
    %s16 = sphi 0, %s35
    %s17 = sphi 0, %s31
    %s18 = sphi 0, %s27
    %s19 = sphi 0, %s16
    %s20 = sphi 0, %s17
    %s21 = sphi 0, %s18
    %s22 = sphi 0, %s19
    %s23 = sphi 0, %s20
    %s24 = sphi 0, %s21
    %s40 = sphi 0, %s42
    %s43 = sphi 0, %s40
    %s44 = sphi 0, %s43
    %s60 = sphi 0, %s44
    %s68 = sphi 0, %s70
    %s71 = sphi 0, %s68
    %s72 = sphi 0, %s71
    %s88 = sphi 0, %s72
    %s94 = sphi 0, %s96
    %s97 = sphi 0, %s94
    %s98 = sphi 0, %s97
    %s114 = sphi 0, %s98
    %s122 = sphi 0, %s124
    %s125 = sphi 0, %s122
    %s126 = sphi 0, %s125
    %s142 = sphi 0, %s126
  $region4: #{forward.15} parent=0 // loop_header_branch
    %12 = sbr.rel (%p10) target = $region8
  $region5: #{forward.15} parent=0 // loop_body
    %s14 = ssub.s32 %s9, 1
    %s15 = ssub.s32 %s9, 2
    %s25 = sadd.s32 1, %s18
    %p26 = scmp.ge.s32.totalorder %s25, 1
    %s27 = scalar_select %p26, 0, %s25
    %s28 = sadd.s32 1, %s17
    %s29 = scalar_select %p26, %s28, %s17
    %p30 = scmp.ge.s32.totalorder %s29, 1
    %s31 = scalar_select %p30, 0, %s29
    %s32 = sadd.s32 1, %s16
    %s33 = scalar_select %p30, %s32, %s16
    %p34 = scmp.ge.s32.totalorder %s33, 3
    %s35 = scalar_select %p34, 0, %s33
    %s36 = ssub.s32 %s16, %s35
    %s37 = ssub.s32 %s18, %s27
    %s38 = sor.u32 %s36, %s37
    %p39 = scmp.eq.s32.totalorder %s38, 0
    %s41 = sadd.s32 %s40, 1
    %s42 = scalar_select %p39, %s40, %s41
    %p45 = pneg %p39
    %p46 = scmp.eq.s32.totalorder %s9, 2
    %p47 = por %p45, %p46
    %p48 = scmp.ne.s32.totalorder %s40, %s43
    %p49 = scmp.eq.s32.totalorder %s9, 0
    %p50 = por %p48, %p49
    %p51 = scmp.ne.s32.totalorder %s40, %s43
    %p52 = scmp.eq.s32.totalorder %s14, 2
    %p53 = por %p51, %p52
    %p54 = scmp.ne.s32.totalorder %s43, %s44
    %p55 = scmp.eq.s32.totalorder %s14, 0
    %p56 = por %p54, %p55
    %p57 = scmp.ne.s32.totalorder %s43, %s44
    %p58 = scmp.eq.s32.totalorder %s15, 2
    %p59 = por %p57, %p58
    %p61 = scmp.ne.s32.totalorder %s44, %s60
    %p62 = scmp.eq.s32.totalorder %s15, 0
    %p63 = por %p61, %p62
    %s64 = ssub.s32 %s18, %s27
    %s65 = ssub.s32 %s17, %s31
    %s66 = sor.u32 %s64, %s65
    %p67 = scmp.eq.s32.totalorder %s66, 0
    %s69 = sadd.s32 %s68, 1
    %s70 = scalar_select %p67, %s68, %s69
    %p73 = pneg %p67
    %p74 = scmp.eq.s32.totalorder %s9, 2
    %p75 = por %p73, %p74
    %p76 = scmp.ne.s32.totalorder %s68, %s71
    %p77 = scmp.eq.s32.totalorder %s9, 0
    %p78 = por %p76, %p77
    %p79 = scmp.ne.s32.totalorder %s68, %s71
    %p80 = scmp.eq.s32.totalorder %s14, 2
    %p81 = por %p79, %p80
    %p82 = scmp.ne.s32.totalorder %s71, %s72
    %p83 = scmp.eq.s32.totalorder %s14, 0
    %p84 = por %p82, %p83
    %p85 = scmp.ne.s32.totalorder %s71, %s72
    %p86 = scmp.eq.s32.totalorder %s15, 2
    %p87 = por %p85, %p86
    %p89 = scmp.ne.s32.totalorder %s72, %s88
    %p90 = scmp.eq.s32.totalorder %s15, 0
    %p91 = por %p89, %p90
    %s92 = ssub.s32 %s17, %s31
    %p93 = scmp.eq.s32.totalorder %s92, 0
    %s95 = sadd.s32 %s94, 1
    %s96 = scalar_select %p93, %s94, %s95
    %p99 = pneg %p93
    %p100 = scmp.eq.s32.totalorder %s9, 2
    %p101 = por %p99, %p100
    %p102 = scmp.ne.s32.totalorder %s94, %s97
    %p103 = scmp.eq.s32.totalorder %s9, 0
    %p104 = por %p102, %p103
    %p105 = scmp.ne.s32.totalorder %s94, %s97
    %p106 = scmp.eq.s32.totalorder %s14, 2
    %p107 = por %p105, %p106
    %p108 = scmp.ne.s32.totalorder %s97, %s98
    %p109 = scmp.eq.s32.totalorder %s14, 0
    %p110 = por %p108, %p109
    %p111 = scmp.ne.s32.totalorder %s97, %s98
    %p112 = scmp.eq.s32.totalorder %s15, 2
    %p113 = por %p111, %p112
    %p115 = scmp.ne.s32.totalorder %s98, %s114
    %p116 = scmp.eq.s32.totalorder %s15, 0
    %p117 = por %p115, %p116
    %s118 = ssub.s32 %s16, %s35
    %s119 = ssub.s32 %s17, %s31
    %s120 = sor.u32 %s118, %s119
    %p121 = scmp.eq.s32.totalorder %s120, 0
    %s123 = sadd.s32 %s122, 1
    %s124 = scalar_select %p121, %s122, %s123
    %p127 = pneg %p121
    %p128 = scmp.eq.s32.totalorder %s9, 2
    %p129 = por %p127, %p128
    %p130 = scmp.ne.s32.totalorder %s122, %s125
    %p131 = scmp.eq.s32.totalorder %s9, 0
    %p132 = por %p130, %p131
    %p133 = scmp.ne.s32.totalorder %s122, %s125
    %p134 = scmp.eq.s32.totalorder %s14, 2
    %p135 = por %p133, %p134
    %p136 = scmp.ne.s32.totalorder %s125, %s126
    %p137 = scmp.eq.s32.totalorder %s14, 0
    %p138 = por %p136, %p137
    %p139 = scmp.ne.s32.totalorder %s125, %s126
    %p140 = scmp.eq.s32.totalorder %s15, 2
    %p141 = por %p139, %p140
    %p143 = scmp.ne.s32.totalorder %s126, %s142
    %p144 = scmp.eq.s32.totalorder %s15, 0
    %p145 = por %p143, %p144
    %p146 = scmp.le.s32.totalorder 1, %s9
    %p147 = scmp.lt.s32.totalorder %s9, 4
    %p148 = pnand %p146, %p147
    %p149 = pneg %p148
    // Predicated region
    $region9: #{forward.15} parent=5 // pred_check
      _
    $region10: #{forward.15} parent=5 // pred_check_branch
      %151 = sbr.rel (%p148) target = $region12
    $region11: #{forward.15} parent=5 // pred_region
      %s152 = ssub.s32 %s9, 1
      // Predicated region
      $region13: #{forward.15} parent=11 // pred_check
        %p153 = pneg %p84
      $region14: #{forward.15} parent=11 // pred_check_branch
        %155 = sbr.rel (%p153) target = $region16
      $region15: #{forward.15} parent=11 // pred_region
        %s156 = smul.u32 32, %s21
        %p157 = scmp.lt.s32.totalorder %s156, 31
        %s158 = scalar_select %p157, %s156, 31
        %p159 = scmp.lt.s32.totalorder %s20, 0
        %s160 = scalar_select %p159, %s20, 0
        %s161 = sadd.s32 %s160, %s158
        %s162 = smul.addr %s161, 4
        %s163 = scalar_lea.vmem %s1, %s162
        %s164 = smul.u32 32, %s21
      $region16: #{forward.15} parent=11 // pred_fallthru
        _
      // Predicated region
      $region17: #{forward.15} parent=11 // pred_check
        %p165 = pneg %p110
      $region18: #{forward.15} parent=11 // pred_check_branch
        %167 = sbr.rel (%p165) target = $region20
      $region19: #{forward.15} parent=11 // pred_region
        %p168 = scmp.lt.s32.totalorder %s20, 0
        %s169 = scalar_select %p168, %s20, 0
        %s170 = scalar_lea.vmem %s2, %s169
      $region20: #{forward.15} parent=11 // pred_fallthru
        _
    $region12: #{forward.15} parent=5 // pred_fallthru
      _
    %p171 = scmp.lt.s32.totalorder %s9, 3
    // Predicated region
    $region21: #{forward.15} parent=5 // pred_check
      %p172 = pneg %p171
    $region22: #{forward.15} parent=5 // pred_check_branch
      %174 = sbr.rel (%p172) target = $region24
    $region23: #{forward.15} parent=5 // pred_region
      // Predicated region
      $region25: #{forward.15} parent=23 // pred_check
        %p175 = pneg %p50
      $region26: #{forward.15} parent=23 // pred_check_branch
        %177 = sbr.rel (%p175) target = $region28
      $region27: #{forward.15} parent=23 // pred_region
        %s178 = smul.u32 32, %s16
        %s179 = smul.u32 2, %s18
        %p180 = scmp.lt.s32.totalorder %s178, 95
        %s181 = scalar_select %p180, %s178, 95
        %p182 = scmp.lt.s32.totalorder %s179, 1
        %s183 = scalar_select %p182, %s179, 1
        %s184 = smul.addr %s181, 2
        %s185 = sadd.s32 %s183, %s184
        %s186 = smul.addr %s185, 4
        %s187 = scalar_lea.vmem %s0, %s186
        %s188 = smul.u32 32, %s16
        %s189 = smul.u32 2, %s18
      $region28: #{forward.15} parent=23 // pred_fallthru
        _
    $region24: #{forward.15} parent=5 // pred_fallthru
      _
    %p190 = scmp.le.s32.totalorder 1, %s9
    %p191 = scmp.lt.s32.totalorder %s9, 4
    %p192 = pnand %p190, %p191
    %p193 = pneg %p192
    // Predicated region
    $region29: #{forward.15} parent=5 // pred_check
      _
    $region30: #{forward.15} parent=5 // pred_check_branch
      %195 = sbr.rel (%p192) target = $region32
    $region31: #{forward.15} parent=5 // pred_region
      %s196 = ssub.s32 %s9, 1
      %s197 = smul.u32 32, %s19
      %s198 = smul.u32 2, %s21
      %p199 = scmp.lt.s32.totalorder %s197, 95
      %s200 = scalar_select %p199, %s197, 95
      %p201 = scmp.lt.s32.totalorder %s198, 1
      %s202 = scalar_select %p201, %s198, 1
      %s203 = smul.addr %s200, 2
      %s204 = sadd.s32 %s202, %s203
      %s205 = smul.addr %s204, 4
      %s206 = scalar_lea.vmem %s0, %s205
      %p207 = pneg %p56
      %p208 = pneg %p53
      %s209 = smul.u32 32, %s21
      %p210 = scmp.lt.s32.totalorder %s209, 31
      %s211 = scalar_select %p210, %s209, 31
      %p212 = scmp.lt.s32.totalorder %s20, 0
      %s213 = scalar_select %p212, %s20, 0
      %s214 = sadd.s32 %s213, %s211
      %s215 = smul.addr %s214, 4
      %s216 = scalar_lea.vmem %s1, %s215
      %p217 = pneg %p84
      %p218 = pneg %p81
      %p219 = scmp.lt.s32.totalorder %s20, 0
      %s220 = scalar_select %p219, %s20, 0
      %s221 = scalar_lea.vmem %s2, %s220
      %p222 = pneg %p110
      %p223 = pneg %p107
      %p224 = pneg %p138
      %p225 = pneg %p135
      %s226 = smul.u32 32, %s19
      %p227 = scmp.lt.s32.totalorder %s226, 95
      %s228 = scalar_select %p227, %s226, 95
      %p229 = scmp.lt.s32.totalorder %s20, 0
      %s230 = scalar_select %p229, %s20, 0
      %s231 = sadd.s32 %s230, %s228
      %s232 = smul.addr %s231, 4
      %s233 = scalar_lea.vmem %s3, %s232
      %s234 = smul.u32 32, %s19
      %s235 = smul.u32 2, %s21
      %p236 = scmp.lt.s32.totalorder %s234, 95
      %s237 = scalar_select %p236, %s234, 95
      %p238 = scmp.lt.s32.totalorder %s235, 1
      %s239 = scalar_select %p238, %s235, 1
      %s240 = smul.addr %s237, 2
      %s241 = sadd.s32 %s239, %s240
      %s242 = smul.addr %s241, 4
      %s243 = scalar_lea.vmem %s0, %s242
      %s244 = smul.u32 32, %s19
      %s245 = smul.u32 2, %s21
      %s246 = smul.u32 32, %s21
      %p247 = scmp.lt.s32.totalorder %s246, 31
      %s248 = scalar_select %p247, %s246, 31
      %p249 = scmp.lt.s32.totalorder %s20, 0
      %s250 = scalar_select %p249, %s20, 0
      %s251 = sadd.s32 %s250, %s248
      %s252 = smul.addr %s251, 4
      %s253 = scalar_lea.vmem %s1, %s252
      %s254 = smul.u32 32, %s21
      %p255 = scmp.lt.s32.totalorder %s20, 0
      %s256 = scalar_select %p255, %s20, 0
      %s257 = scalar_lea.vmem %s2, %s256
      %s258 = smul.u32 32, %s19
      %p259 = scmp.lt.s32.totalorder %s258, 95
      %s260 = scalar_select %p259, %s258, 95
      %p261 = scmp.lt.s32.totalorder %s20, 0
      %s262 = scalar_select %p261, %s20, 0
      %s263 = sadd.s32 %s262, %s260
      %s264 = smul.addr %s263, 4
      %s265 = scalar_lea.vmem %s3, %s264
      %s266 = smul.u32 32, %s19
      %p268 = scmp.eq.s32.totalorder %s21, 0
      // Predicated region
      $region33: #{forward.15} parent=31 // pred_check
        %p269 = pneg %p268
      $region34: #{forward.15} parent=31 // pred_check_branch
        %271 = sbr.rel (%p269) target = $region36
      $region35: #{forward.15} parent=31 // pred_region
        %272 = vst [vmem:[#allocation2] sm:$0xff] 0.0
        %273 = vst [vmem:[#allocation2 + $0x8] sm:$0xff] 0.0
        %274 = vst [vmem:[#allocation2 + $0x10] sm:$0xff] 0.0
        %275 = vst [vmem:[#allocation2 + $0x18] sm:$0xff] 0.0
        %276 = vst [vmem:[#allocation2 + $0x20] sm:$0xff] 0.0
        %277 = vst [vmem:[#allocation2 + $0x28] sm:$0xff] 0.0
        %278 = vst [vmem:[#allocation2 + $0x30] sm:$0xff] 0.0
        %279 = vst [vmem:[#allocation2 + $0x38] sm:$0xff] 0.0
        %280 = vst [vmem:[#allocation2 + $0x40] sm:$0xff] 0.0
        %281 = vst [vmem:[#allocation2 + $0x48] sm:$0xff] 0.0
        %282 = vst [vmem:[#allocation2 + $0x50] sm:$0xff] 0.0
        %283 = vst [vmem:[#allocation2 + $0x58] sm:$0xff] 0.0
        %284 = vst [vmem:[#allocation2 + $0x60] sm:$0xff] 0.0
        %285 = vst [vmem:[#allocation2 + $0x68] sm:$0xff] 0.0
        %286 = vst [vmem:[#allocation2 + $0x70] sm:$0xff] 0.0
        %287 = vst [vmem:[#allocation2 + $0x78] sm:$0xff] 0.0
        %288 = vst [vmem:[#allocation2 + $0x80] sm:$0xff] 0.0
        %289 = vst [vmem:[#allocation2 + $0x88] sm:$0xff] 0.0
        %290 = vst [vmem:[#allocation2 + $0x90] sm:$0xff] 0.0
        %291 = vst [vmem:[#allocation2 + $0x98] sm:$0xff] 0.0
        %292 = vst [vmem:[#allocation2 + $0xa0] sm:$0xff] 0.0
        %293 = vst [vmem:[#allocation2 + $0xa8] sm:$0xff] 0.0
        %294 = vst [vmem:[#allocation2 + $0xb0] sm:$0xff] 0.0
        %295 = vst [vmem:[#allocation2 + $0xb8] sm:$0xff] 0.0
        %296 = vst [vmem:[#allocation2 + $0xc0] sm:$0xff] 0.0
        %297 = vst [vmem:[#allocation2 + $0xc8] sm:$0xff] 0.0
        %298 = vst [vmem:[#allocation2 + $0xd0] sm:$0xff] 0.0
        %299 = vst [vmem:[#allocation2 + $0xd8] sm:$0xff] 0.0
        %300 = vst [vmem:[#allocation2 + $0xe0] sm:$0xff] 0.0
        %301 = vst [vmem:[#allocation2 + $0xe8] sm:$0xff] 0.0
        %302 = vst [vmem:[#allocation2 + $0xf0] sm:$0xff] 0.0
        %303 = vst [vmem:[#allocation2 + $0xf8] sm:$0xff] 0.0
      $region36: #{forward.15} parent=31 // pred_fallthru
        _
      %v304 = vld [vmem:[#allocation2] sm:$0xff]
      %v305 = vld [vmem:[#allocation2 + $0x8] sm:$0xff]
      %v306 = vld [vmem:[#allocation2 + $0x10] sm:$0xff]
      %v307 = vld [vmem:[#allocation2 + $0x18] sm:$0xff]
      %v308 = vld [vmem:[#allocation2 + $0x20] sm:$0xff]
      %v309 = vld [vmem:[#allocation2 + $0x28] sm:$0xff]
      %v310 = vld [vmem:[#allocation2 + $0x30] sm:$0xff]
      %v311 = vld [vmem:[#allocation2 + $0x38] sm:$0xff]
      %v312 = vld [vmem:[#allocation2 + $0x40] sm:$0xff]
      %v313 = vld [vmem:[#allocation2 + $0x48] sm:$0xff]
      %v314 = vld [vmem:[#allocation2 + $0x50] sm:$0xff]
      %v315 = vld [vmem:[#allocation2 + $0x58] sm:$0xff]
      %v316 = vld [vmem:[#allocation2 + $0x60] sm:$0xff]
      %v317 = vld [vmem:[#allocation2 + $0x68] sm:$0xff]
      %v318 = vld [vmem:[#allocation2 + $0x70] sm:$0xff]
      %v319 = vld [vmem:[#allocation2 + $0x78] sm:$0xff]
      %v320 = vld [vmem:[#allocation2 + $0x80] sm:$0xff]
      %v321 = vld [vmem:[#allocation2 + $0x88] sm:$0xff]
      %v322 = vld [vmem:[#allocation2 + $0x90] sm:$0xff]
      %v323 = vld [vmem:[#allocation2 + $0x98] sm:$0xff]
      %v324 = vld [vmem:[#allocation2 + $0xa0] sm:$0xff]
      %v325 = vld [vmem:[#allocation2 + $0xa8] sm:$0xff]
      %v326 = vld [vmem:[#allocation2 + $0xb0] sm:$0xff]
      %v327 = vld [vmem:[#allocation2 + $0xb8] sm:$0xff]
      %v328 = vld [vmem:[#allocation2 + $0xc0] sm:$0xff]
      %v329 = vld [vmem:[#allocation2 + $0xc8] sm:$0xff]
      %v330 = vld [vmem:[#allocation2 + $0xd0] sm:$0xff]
      %v331 = vld [vmem:[#allocation2 + $0xd8] sm:$0xff]
      %v332 = vld [vmem:[#allocation2 + $0xe0] sm:$0xff]
      %v333 = vld [vmem:[#allocation2 + $0xe8] sm:$0xff]
      %v334 = vld [vmem:[#allocation2 + $0xf0] sm:$0xff]
      %v335 = vld [vmem:[#allocation2 + $0xf8] sm:$0xff]
      %v336 = vld [vmem:[%s243] sm:$0xff]
      %v337 = vld [vmem:[%s243 + $0x8] sm:$0xff]
      %v338 = vld [vmem:[%s243 + $0x10] sm:$0xff]
      %v339 = vld [vmem:[%s243 + $0x18] sm:$0xff]
      %v340 = vld [vmem:[%s243 + $0x20] sm:$0xff]
      %v341 = vld [vmem:[%s243 + $0x28] sm:$0xff]
      %v342 = vld [vmem:[%s243 + $0x30] sm:$0xff]
      %v343 = vld [vmem:[%s243 + $0x38] sm:$0xff]
      %v344 = vld [vmem:[%s243 + $0x40] sm:$0xff]
      %v345 = vld [vmem:[%s243 + $0x48] sm:$0xff]
      %v346 = vld [vmem:[%s243 + $0x50] sm:$0xff]
      %v347 = vld [vmem:[%s243 + $0x58] sm:$0xff]
      %v348 = vld [vmem:[%s243 + $0x60] sm:$0xff]
      %v349 = vld [vmem:[%s243 + $0x68] sm:$0xff]
      %v350 = vld [vmem:[%s243 + $0x70] sm:$0xff]
      %v351 = vld [vmem:[%s243 + $0x78] sm:$0xff]
      %v352 = vld [vmem:[%s243 + $0x80] sm:$0xff]
      %v353 = vld [vmem:[%s243 + $0x88] sm:$0xff]
      %v354 = vld [vmem:[%s243 + $0x90] sm:$0xff]
      %v355 = vld [vmem:[%s243 + $0x98] sm:$0xff]
      %v356 = vld [vmem:[%s243 + $0xa0] sm:$0xff]
      %v357 = vld [vmem:[%s243 + $0xa8] sm:$0xff]
      %v358 = vld [vmem:[%s243 + $0xb0] sm:$0xff]
      %v359 = vld [vmem:[%s243 + $0xb8] sm:$0xff]
      %v360 = vld [vmem:[%s243 + $0xc0] sm:$0xff]
      %v361 = vld [vmem:[%s243 + $0xc8] sm:$0xff]
      %v362 = vld [vmem:[%s243 + $0xd0] sm:$0xff]
      %v363 = vld [vmem:[%s243 + $0xd8] sm:$0xff]
      %v364 = vld [vmem:[%s243 + $0xe0] sm:$0xff]
      %v365 = vld [vmem:[%s243 + $0xe8] sm:$0xff]
      %v366 = vld [vmem:[%s243 + $0xf0] sm:$0xff]
      %v367 = vld [vmem:[%s243 + $0xf8] sm:$0xff]
      %v368 = vld [vmem:[%s253] sm:$0xf]
      %v369 = vld [vmem:[%s253 + $0x4] sm:$0xf]
      %v370 = vld [vmem:[%s253 + $0x8] sm:$0xf]
      %v371 = vld [vmem:[%s253 + $0xc] sm:$0xf]
      %v372 = vld [vmem:[%s253 + $0x10] sm:$0xf]
      %v373 = vld [vmem:[%s253 + $0x14] sm:$0xf]
      %v374 = vld [vmem:[%s253 + $0x18] sm:$0xf]
      %v375 = vld [vmem:[%s253 + $0x1c] sm:$0xf]
      %v376 = vld [vmem:[%s253 + $0x20] sm:$0xf]
      %v377 = vld [vmem:[%s253 + $0x24] sm:$0xf]
      %v378 = vld [vmem:[%s253 + $0x28] sm:$0xf]
      %v379 = vld [vmem:[%s253 + $0x2c] sm:$0xf]
      %v380 = vld [vmem:[%s253 + $0x30] sm:$0xf]
      %v381 = vld [vmem:[%s253 + $0x34] sm:$0xf]
      %v382 = vld [vmem:[%s253 + $0x38] sm:$0xf]
      %v383 = vld [vmem:[%s253 + $0x3c] sm:$0xf]
      %v384 = vld [vmem:[%s253 + $0x40] sm:$0xf]
      %v385 = vld [vmem:[%s253 + $0x44] sm:$0xf]
      %v386 = vld [vmem:[%s253 + $0x48] sm:$0xf]
      %v387 = vld [vmem:[%s253 + $0x4c] sm:$0xf]
      %v388 = vld [vmem:[%s253 + $0x50] sm:$0xf]
      %v389 = vld [vmem:[%s253 + $0x54] sm:$0xf]
      %v390 = vld [vmem:[%s253 + $0x58] sm:$0xf]
      %v391 = vld [vmem:[%s253 + $0x5c] sm:$0xf]
      %v392 = vld [vmem:[%s253 + $0x60] sm:$0xf]
      %v393 = vld [vmem:[%s253 + $0x64] sm:$0xf]
      %v394 = vld [vmem:[%s253 + $0x68] sm:$0xf]
      %v395 = vld [vmem:[%s253 + $0x6c] sm:$0xf]
      %v396 = vld [vmem:[%s253 + $0x70] sm:$0xf]
      %v397 = vld [vmem:[%s253 + $0x74] sm:$0xf]
      %v398 = vld [vmem:[%s253 + $0x78] sm:$0xf]
      %v399 = vld [vmem:[%s253 + $0x7c] sm:$0xf]
      %v432 = vunpack.c.l.b16 %v336
      %v433 = vunpack.c.h.b16 %v336
      %v434 = vunpack.c.l.b16 %v337
      %v435 = vunpack.c.h.b16 %v337
      %v436 = vunpack.c.l.b16 %v338
      %v437 = vunpack.c.h.b16 %v338
      %v438 = vunpack.c.l.b16 %v339
      %v439 = vunpack.c.h.b16 %v339
      %v440 = vunpack.c.l.b16 %v340
      %v441 = vunpack.c.h.b16 %v340
      %v442 = vunpack.c.l.b16 %v341
      %v443 = vunpack.c.h.b16 %v341
      %v444 = vunpack.c.l.b16 %v342
      %v445 = vunpack.c.h.b16 %v342
      %v446 = vunpack.c.l.b16 %v343
      %v447 = vunpack.c.h.b16 %v343
      %v448 = vunpack.c.l.b16 %v344
      %v449 = vunpack.c.h.b16 %v344
      %v450 = vunpack.c.l.b16 %v345
      %v451 = vunpack.c.h.b16 %v345
      %v452 = vunpack.c.l.b16 %v346
      %v453 = vunpack.c.h.b16 %v346
      %v454 = vunpack.c.l.b16 %v347
      %v455 = vunpack.c.h.b16 %v347
      %v456 = vunpack.c.l.b16 %v348
      %v457 = vunpack.c.h.b16 %v348
      %v458 = vunpack.c.l.b16 %v349
      %v459 = vunpack.c.h.b16 %v349
      %v460 = vunpack.c.l.b16 %v350
      %v461 = vunpack.c.h.b16 %v350
      %v462 = vunpack.c.l.b16 %v351
      %v463 = vunpack.c.h.b16 %v351
      %v464 = vunpack.c.l.b16 %v352
      %v465 = vunpack.c.h.b16 %v352
      %v466 = vunpack.c.l.b16 %v353
      %v467 = vunpack.c.h.b16 %v353
      %v468 = vunpack.c.l.b16 %v354
      %v469 = vunpack.c.h.b16 %v354
      %v470 = vunpack.c.l.b16 %v355
      %v471 = vunpack.c.h.b16 %v355
      %v472 = vunpack.c.l.b16 %v356
      %v473 = vunpack.c.h.b16 %v356
      %v474 = vunpack.c.l.b16 %v357
      %v475 = vunpack.c.h.b16 %v357
      %v476 = vunpack.c.l.b16 %v358
      %v477 = vunpack.c.h.b16 %v358
      %v478 = vunpack.c.l.b16 %v359
      %v479 = vunpack.c.h.b16 %v359
      %v480 = vunpack.c.l.b16 %v360
      %v481 = vunpack.c.h.b16 %v360
      %v482 = vunpack.c.l.b16 %v361
      %v483 = vunpack.c.h.b16 %v361
      %v484 = vunpack.c.l.b16 %v362
      %v485 = vunpack.c.h.b16 %v362
      %v486 = vunpack.c.l.b16 %v363
      %v487 = vunpack.c.h.b16 %v363
      %v488 = vunpack.c.l.b16 %v364
      %v489 = vunpack.c.h.b16 %v364
      %v490 = vunpack.c.l.b16 %v365
      %v491 = vunpack.c.h.b16 %v365
      %v492 = vunpack.c.l.b16 %v366
      %v493 = vunpack.c.h.b16 %v366
      %v494 = vunpack.c.l.b16 %v367
      %v495 = vunpack.c.h.b16 %v367
      %v496 = vpack.c.b16 %v434, %v432
      %v497 = vpack.c.b16 %v435, %v433
      %v498 = vpack.c.b16 %v438, %v436
      %v499 = vpack.c.b16 %v439, %v437
      %v500 = vpack.c.b16 %v442, %v440
      %v501 = vpack.c.b16 %v443, %v441
      %v502 = vpack.c.b16 %v446, %v444
      %v503 = vpack.c.b16 %v447, %v445
      %v504 = vpack.c.b16 %v450, %v448
      %v505 = vpack.c.b16 %v451, %v449
      %v506 = vpack.c.b16 %v454, %v452
      %v507 = vpack.c.b16 %v455, %v453
      %v508 = vpack.c.b16 %v458, %v456
      %v509 = vpack.c.b16 %v459, %v457
      %v510 = vpack.c.b16 %v462, %v460
      %v511 = vpack.c.b16 %v463, %v461
      %v512 = vpack.c.b16 %v466, %v464
      %v513 = vpack.c.b16 %v467, %v465
      %v514 = vpack.c.b16 %v470, %v468
      %v515 = vpack.c.b16 %v471, %v469
      %v516 = vpack.c.b16 %v474, %v472
      %v517 = vpack.c.b16 %v475, %v473
      %v518 = vpack.c.b16 %v478, %v476
      %v519 = vpack.c.b16 %v479, %v477
      %v520 = vpack.c.b16 %v482, %v480
      %v521 = vpack.c.b16 %v483, %v481
      %v522 = vpack.c.b16 %v486, %v484
      %v523 = vpack.c.b16 %v487, %v485
      %v524 = vpack.c.b16 %v490, %v488
      %v525 = vpack.c.b16 %v491, %v489
      %v526 = vpack.c.b16 %v494, %v492
      %v527 = vpack.c.b16 %v495, %v493
      %v592 = vunpack.c.l.b16 %v368
      %v593 = vunpack.c.l.b16 %v369
      %v594 = vunpack.c.l.b16 %v370
      %v595 = vunpack.c.l.b16 %v371
      %v596 = vunpack.c.l.b16 %v372
      %v597 = vunpack.c.l.b16 %v373
      %v598 = vunpack.c.l.b16 %v374
      %v599 = vunpack.c.l.b16 %v375
      %v600 = vunpack.c.l.b16 %v376
      %v601 = vunpack.c.l.b16 %v377
      %v602 = vunpack.c.l.b16 %v378
      %v603 = vunpack.c.l.b16 %v379
      %v604 = vunpack.c.l.b16 %v380
      %v605 = vunpack.c.l.b16 %v381
      %v606 = vunpack.c.l.b16 %v382
      %v607 = vunpack.c.l.b16 %v383
      %v608 = vunpack.c.l.b16 %v384
      %v609 = vunpack.c.l.b16 %v385
      %v610 = vunpack.c.l.b16 %v386
      %v611 = vunpack.c.l.b16 %v387
      %v612 = vunpack.c.l.b16 %v388
      %v613 = vunpack.c.l.b16 %v389
      %v614 = vunpack.c.l.b16 %v390
      %v615 = vunpack.c.l.b16 %v391
      %v616 = vunpack.c.l.b16 %v392
      %v617 = vunpack.c.l.b16 %v393
      %v618 = vunpack.c.l.b16 %v394
      %v619 = vunpack.c.l.b16 %v395
      %v620 = vunpack.c.l.b16 %v396
      %v621 = vunpack.c.l.b16 %v397
      %v622 = vunpack.c.l.b16 %v398
      %v623 = vunpack.c.l.b16 %v399
      %v624 = vpack.c.b16 %v593, %v592
      %v625 = vpack.c.b16 %v595, %v594
      %v626 = vpack.c.b16 %v597, %v596
      %v627 = vpack.c.b16 %v599, %v598
      %v628 = vpack.c.b16 %v601, %v600
      %v629 = vpack.c.b16 %v603, %v602
      %v630 = vpack.c.b16 %v605, %v604
      %v631 = vpack.c.b16 %v607, %v606
      %v632 = vpack.c.b16 %v609, %v608
      %v633 = vpack.c.b16 %v611, %v610
      %v634 = vpack.c.b16 %v613, %v612
      %v635 = vpack.c.b16 %v615, %v614
      %v636 = vpack.c.b16 %v617, %v616
      %v637 = vpack.c.b16 %v619, %v618
      %v638 = vpack.c.b16 %v621, %v620
      %v639 = vpack.c.b16 %v623, %v622
      %656 = vmatprep.subr.bf16.mxu0 0
      %657 = vmatpush1.bf16.msra.mxu0 %v631
      %658 = vmatprep.subr.bf16.mxu0 0
      %659 = vmatpush1.bf16.msra.mxu0 %v630
      %660 = vmatprep.subr.bf16.mxu0 0
      %661 = vmatpush1.bf16.msra.mxu0 %v629
      %662 = vmatprep.subr.bf16.mxu0 0
      %663 = vmatpush1.bf16.msra.mxu0 %v628
      %664 = vmatprep.subr.bf16.mxu0 0
      %665 = vmatpush1.bf16.msra.mxu0 %v627
      %666 = vmatprep.subr.bf16.mxu0 0
      %667 = vmatpush1.bf16.msra.mxu0 %v626
      %668 = vmatprep.subr.bf16.mxu0 0
      %669 = vmatpush1.bf16.msra.mxu0 %v625
      %670 = vmatprep.subr.bf16.mxu0 0
      %671 = vmatpush1.bf16.msra.mxu0 %v624
      %672 = vmatprep.subr.bf16.mxu0 0
      %673 = vmatpush2.bf16.msra.mxu0 %v639
      %674 = vmatprep.subr.bf16.mxu0 0
      %675 = vmatpush2.bf16.msra.mxu0 %v638
      %676 = vmatprep.subr.bf16.mxu0 0
      %677 = vmatpush2.bf16.msra.mxu0 %v637
      %678 = vmatprep.subr.bf16.mxu0 0
      %679 = vmatpush2.bf16.msra.mxu0 %v636
      %680 = vmatprep.subr.bf16.mxu0 0
      %681 = vmatpush2.bf16.msra.mxu0 %v635
      %682 = vmatprep.subr.bf16.mxu0 0
      %683 = vmatpush2.bf16.msra.mxu0 %v634
      %684 = vmatprep.subr.bf16.mxu0 0
      %685 = vmatpush2.bf16.msra.mxu0 %v633
      %686 = vmatprep.subr.bf16.mxu0 0
      %687 = vmatpush2.bf16.msra.mxu0 %v632
      %688 = vmatprep.mubr.bf16.mxu0 %v497
      %689 = vmatmul.mubr.bf16.gmra.mxu0 %v496
      %v690 = vpop.f32.mrf.mxu0
      %v691 = vadd.f32 0.0, %v690
      %v692 = vpop.f32.mrf.mxu0
      %v693 = vpop.f32.mrf.mxu0
      %v694 = vadd.f32 0.0, %v693
      %v695 = vpop.f32.mrf.mxu0
      %696 = vmatprep.mubr.bf16.mxu0 %v499
      %697 = vmatmul.mubr.bf16.gmra.mxu0 %v498
      %v698 = vpop.f32.mrf.mxu0
      %v699 = vadd.f32 0.0, %v698
      %v700 = vpop.f32.mrf.mxu0
      %v701 = vpop.f32.mrf.mxu0
      %v702 = vadd.f32 0.0, %v701
      %v703 = vpop.f32.mrf.mxu0
      %704 = vmatprep.mubr.bf16.mxu0 %v501
      %705 = vmatmul.mubr.bf16.gmra.mxu0 %v500
      %v706 = vpop.f32.mrf.mxu0
      %v707 = vadd.f32 0.0, %v706
      %v708 = vpop.f32.mrf.mxu0
      %v709 = vpop.f32.mrf.mxu0
      %v710 = vadd.f32 0.0, %v709
      %v711 = vpop.f32.mrf.mxu0
      %712 = vmatprep.mubr.bf16.mxu0 %v503
      %713 = vmatmul.mubr.bf16.gmra.mxu0 %v502
      %v714 = vpop.f32.mrf.mxu0
      %v715 = vadd.f32 0.0, %v714
      %v716 = vpop.f32.mrf.mxu0
      %v717 = vpop.f32.mrf.mxu0
      %v718 = vadd.f32 0.0, %v717
      %v719 = vpop.f32.mrf.mxu0
      %720 = vmatprep.mubr.bf16.mxu0 %v505
      %721 = vmatmul.mubr.bf16.gmra.mxu0 %v504
      %v722 = vpop.f32.mrf.mxu0
      %v723 = vadd.f32 0.0, %v722
      %v724 = vpop.f32.mrf.mxu0
      %v725 = vpop.f32.mrf.mxu0
      %v726 = vadd.f32 0.0, %v725
      %v727 = vpop.f32.mrf.mxu0
      %728 = vmatprep.mubr.bf16.mxu0 %v507
      %729 = vmatmul.mubr.bf16.gmra.mxu0 %v506
      %v730 = vpop.f32.mrf.mxu0
      %v731 = vadd.f32 0.0, %v730
      %v732 = vpop.f32.mrf.mxu0
      %v733 = vpop.f32.mrf.mxu0
      %v734 = vadd.f32 0.0, %v733
      %v735 = vpop.f32.mrf.mxu0
      %736 = vmatprep.mubr.bf16.mxu0 %v509
      %737 = vmatmul.mubr.bf16.gmra.mxu0 %v508
      %v738 = vpop.f32.mrf.mxu0
      %v739 = vadd.f32 0.0, %v738
      %v740 = vpop.f32.mrf.mxu0
      %v741 = vpop.f32.mrf.mxu0
      %v742 = vadd.f32 0.0, %v741
      %v743 = vpop.f32.mrf.mxu0
      %744 = vmatprep.mubr.bf16.mxu0 %v511
      %745 = vmatmul.mubr.bf16.gmra.mxu0 %v510
      %v746 = vpop.f32.mrf.mxu0
      %v747 = vadd.f32 0.0, %v746
      %v748 = vpop.f32.mrf.mxu0
      %v749 = vpop.f32.mrf.mxu0
      %v750 = vadd.f32 0.0, %v749
      %v751 = vpop.f32.mrf.mxu0
      %752 = vmatprep.mubr.bf16.mxu0 %v513
      %753 = vmatmul.mubr.bf16.gmra.mxu0 %v512
      %v754 = vpop.f32.mrf.mxu0
      %v755 = vadd.f32 0.0, %v754
      %v756 = vpop.f32.mrf.mxu0
      %v757 = vpop.f32.mrf.mxu0
      %v758 = vadd.f32 0.0, %v757
      %v759 = vpop.f32.mrf.mxu0
      %760 = vmatprep.mubr.bf16.mxu0 %v515
      %761 = vmatmul.mubr.bf16.gmra.mxu0 %v514
      %v762 = vpop.f32.mrf.mxu0
      %v763 = vadd.f32 0.0, %v762
      %v764 = vpop.f32.mrf.mxu0
      %v765 = vpop.f32.mrf.mxu0
      %v766 = vadd.f32 0.0, %v765
      %v767 = vpop.f32.mrf.mxu0
      %768 = vmatprep.mubr.bf16.mxu0 %v517
      %769 = vmatmul.mubr.bf16.gmra.mxu0 %v516
      %v770 = vpop.f32.mrf.mxu0
      %v771 = vadd.f32 0.0, %v770
      %v772 = vpop.f32.mrf.mxu0
      %v773 = vpop.f32.mrf.mxu0
      %v774 = vadd.f32 0.0, %v773
      %v775 = vpop.f32.mrf.mxu0
      %776 = vmatprep.mubr.bf16.mxu0 %v519
      %777 = vmatmul.mubr.bf16.gmra.mxu0 %v518
      %v778 = vpop.f32.mrf.mxu0
      %v779 = vadd.f32 0.0, %v778
      %v780 = vpop.f32.mrf.mxu0
      %v781 = vpop.f32.mrf.mxu0
      %v782 = vadd.f32 0.0, %v781
      %v783 = vpop.f32.mrf.mxu0
      %784 = vmatprep.mubr.bf16.mxu0 %v521
      %785 = vmatmul.mubr.bf16.gmra.mxu0 %v520
      %v786 = vpop.f32.mrf.mxu0
      %v787 = vadd.f32 0.0, %v786
      %v788 = vpop.f32.mrf.mxu0
      %v789 = vpop.f32.mrf.mxu0
      %v790 = vadd.f32 0.0, %v789
      %v791 = vpop.f32.mrf.mxu0
      %792 = vmatprep.mubr.bf16.mxu0 %v523
      %793 = vmatmul.mubr.bf16.gmra.mxu0 %v522
      %v794 = vpop.f32.mrf.mxu0
      %v795 = vadd.f32 0.0, %v794
      %v796 = vpop.f32.mrf.mxu0
      %v797 = vpop.f32.mrf.mxu0
      %v798 = vadd.f32 0.0, %v797
      %v799 = vpop.f32.mrf.mxu0
      %800 = vmatprep.mubr.bf16.mxu0 %v525
      %801 = vmatmul.mubr.bf16.gmra.mxu0 %v524
      %v802 = vpop.f32.mrf.mxu0
      %v803 = vadd.f32 0.0, %v802
      %v804 = vpop.f32.mrf.mxu0
      %v805 = vpop.f32.mrf.mxu0
      %v806 = vadd.f32 0.0, %v805
      %v807 = vpop.f32.mrf.mxu0
      %808 = vmatprep.mubr.bf16.mxu0 %v527
      %809 = vmatmul.mubr.bf16.gmra.mxu0 %v526
      %v810 = vpop.f32.mrf.mxu0
      %v811 = vadd.f32 0.0, %v810
      %v812 = vpop.f32.mrf.mxu0
      %v813 = vpop.f32.mrf.mxu0
      %v814 = vadd.f32 0.0, %v813
      %v815 = vpop.f32.mrf.mxu0
      %816 = vdwg.mxu0
      %v817 = vadd.f32 %v304, %v691
      %v818 = vadd.f32 %v305, %v694
      %v819 = vadd.f32 %v306, %v699
      %v820 = vadd.f32 %v307, %v702
      %v821 = vadd.f32 %v308, %v707
      %v822 = vadd.f32 %v309, %v710
      %v823 = vadd.f32 %v310, %v715
      %v824 = vadd.f32 %v311, %v718
      %v825 = vadd.f32 %v312, %v723
      %v826 = vadd.f32 %v313, %v726
      %v827 = vadd.f32 %v314, %v731
      %v828 = vadd.f32 %v315, %v734
      %v829 = vadd.f32 %v316, %v739
      %v830 = vadd.f32 %v317, %v742
      %v831 = vadd.f32 %v318, %v747
      %v832 = vadd.f32 %v319, %v750
      %v833 = vadd.f32 %v320, %v755
      %v834 = vadd.f32 %v321, %v758
      %v835 = vadd.f32 %v322, %v763
      %v836 = vadd.f32 %v323, %v766
      %v837 = vadd.f32 %v324, %v771
      %v838 = vadd.f32 %v325, %v774
      %v839 = vadd.f32 %v326, %v779
      %v840 = vadd.f32 %v327, %v782
      %v841 = vadd.f32 %v328, %v787
      %v842 = vadd.f32 %v329, %v790
      %v843 = vadd.f32 %v330, %v795
      %v844 = vadd.f32 %v331, %v798
      %v845 = vadd.f32 %v332, %v803
      %v846 = vadd.f32 %v333, %v806
      %v847 = vadd.f32 %v334, %v811
      %v848 = vadd.f32 %v335, %v814
      %849 = vst [vmem:[#allocation2] sm:$0xff] %v817
      %850 = vst [vmem:[#allocation2 + $0x8] sm:$0xff] %v818
      %851 = vst [vmem:[#allocation2 + $0x10] sm:$0xff] %v819
      %852 = vst [vmem:[#allocation2 + $0x18] sm:$0xff] %v820
      %853 = vst [vmem:[#allocation2 + $0x20] sm:$0xff] %v821
      %854 = vst [vmem:[#allocation2 + $0x28] sm:$0xff] %v822
      %855 = vst [vmem:[#allocation2 + $0x30] sm:$0xff] %v823
      %856 = vst [vmem:[#allocation2 + $0x38] sm:$0xff] %v824
      %857 = vst [vmem:[#allocation2 + $0x40] sm:$0xff] %v825
      %858 = vst [vmem:[#allocation2 + $0x48] sm:$0xff] %v826
      %859 = vst [vmem:[#allocation2 + $0x50] sm:$0xff] %v827
      %860 = vst [vmem:[#allocation2 + $0x58] sm:$0xff] %v828
      %861 = vst [vmem:[#allocation2 + $0x60] sm:$0xff] %v829
      %862 = vst [vmem:[#allocation2 + $0x68] sm:$0xff] %v830
      %863 = vst [vmem:[#allocation2 + $0x70] sm:$0xff] %v831
      %864 = vst [vmem:[#allocation2 + $0x78] sm:$0xff] %v832
      %865 = vst [vmem:[#allocation2 + $0x80] sm:$0xff] %v833
      %866 = vst [vmem:[#allocation2 + $0x88] sm:$0xff] %v834
      %867 = vst [vmem:[#allocation2 + $0x90] sm:$0xff] %v835
      %868 = vst [vmem:[#allocation2 + $0x98] sm:$0xff] %v836
      %869 = vst [vmem:[#allocation2 + $0xa0] sm:$0xff] %v837
      %870 = vst [vmem:[#allocation2 + $0xa8] sm:$0xff] %v838
      %871 = vst [vmem:[#allocation2 + $0xb0] sm:$0xff] %v839
      %872 = vst [vmem:[#allocation2 + $0xb8] sm:$0xff] %v840
      %873 = vst [vmem:[#allocation2 + $0xc0] sm:$0xff] %v841
      %874 = vst [vmem:[#allocation2 + $0xc8] sm:$0xff] %v842
      %875 = vst [vmem:[#allocation2 + $0xd0] sm:$0xff] %v843
      %876 = vst [vmem:[#allocation2 + $0xd8] sm:$0xff] %v844
      %877 = vst [vmem:[#allocation2 + $0xe0] sm:$0xff] %v845
      %878 = vst [vmem:[#allocation2 + $0xe8] sm:$0xff] %v846
      %879 = vst [vmem:[#allocation2 + $0xf0] sm:$0xff] %v847
      %880 = vst [vmem:[#allocation2 + $0xf8] sm:$0xff] %v848
      // Predicated region
      $region37: #{forward.15} parent=31 // pred_check
        %p881 = pneg %p268
      $region38: #{forward.15} parent=31 // pred_check_branch
        %883 = sbr.rel (%p881) target = $region40
      $region39: #{forward.15} parent=31 // pred_region
        %v884 = vld [vmem:[#allocation2] sm:$0xff]
        %v885 = vld [vmem:[#allocation2 + $0x8] sm:$0xff]
        %v886 = vld [vmem:[#allocation2 + $0x10] sm:$0xff]
        %v887 = vld [vmem:[#allocation2 + $0x18] sm:$0xff]
        %v888 = vld [vmem:[#allocation2 + $0x20] sm:$0xff]
        %v889 = vld [vmem:[#allocation2 + $0x28] sm:$0xff]
        %v890 = vld [vmem:[#allocation2 + $0x30] sm:$0xff]
        %v891 = vld [vmem:[#allocation2 + $0x38] sm:$0xff]
        %v892 = vld [vmem:[#allocation2 + $0x40] sm:$0xff]
        %v893 = vld [vmem:[#allocation2 + $0x48] sm:$0xff]
        %v894 = vld [vmem:[#allocation2 + $0x50] sm:$0xff]
        %v895 = vld [vmem:[#allocation2 + $0x58] sm:$0xff]
        %v896 = vld [vmem:[#allocation2 + $0x60] sm:$0xff]
        %v897 = vld [vmem:[#allocation2 + $0x68] sm:$0xff]
        %v898 = vld [vmem:[#allocation2 + $0x70] sm:$0xff]
        %v899 = vld [vmem:[#allocation2 + $0x78] sm:$0xff]
        %v900 = vld [vmem:[#allocation2 + $0x80] sm:$0xff]
        %v901 = vld [vmem:[#allocation2 + $0x88] sm:$0xff]
        %v902 = vld [vmem:[#allocation2 + $0x90] sm:$0xff]
        %v903 = vld [vmem:[#allocation2 + $0x98] sm:$0xff]
        %v904 = vld [vmem:[#allocation2 + $0xa0] sm:$0xff]
        %v905 = vld [vmem:[#allocation2 + $0xa8] sm:$0xff]
        %v906 = vld [vmem:[#allocation2 + $0xb0] sm:$0xff]
        %v907 = vld [vmem:[#allocation2 + $0xb8] sm:$0xff]
        %v908 = vld [vmem:[#allocation2 + $0xc0] sm:$0xff]
        %v909 = vld [vmem:[#allocation2 + $0xc8] sm:$0xff]
        %v910 = vld [vmem:[#allocation2 + $0xd0] sm:$0xff]
        %v911 = vld [vmem:[#allocation2 + $0xd8] sm:$0xff]
        %v912 = vld [vmem:[#allocation2 + $0xe0] sm:$0xff]
        %v913 = vld [vmem:[#allocation2 + $0xe8] sm:$0xff]
        %v914 = vld [vmem:[#allocation2 + $0xf0] sm:$0xff]
        %v915 = vld [vmem:[#allocation2 + $0xf8] sm:$0xff]
        %v916 = vld [vmem:[%s257] sm:$0x1]
        %v918 = vlaneseq
        %v919 = vshrl.u32 %v918, 7
        %v920 = vsub.s32 0, %v919
        %v921 = vrot.slane %v916, %v920
        %v923 = vadd.f32 %v884, %v921
        %v924 = vadd.f32 %v885, %v921
        %v925 = vadd.f32 %v886, %v921
        %v926 = vadd.f32 %v887, %v921
        %v927 = vadd.f32 %v888, %v921
        %v928 = vadd.f32 %v889, %v921
        %v929 = vadd.f32 %v890, %v921
        %v930 = vadd.f32 %v891, %v921
        %v931 = vadd.f32 %v892, %v921
        %v932 = vadd.f32 %v893, %v921
        %v933 = vadd.f32 %v894, %v921
        %v934 = vadd.f32 %v895, %v921
        %v935 = vadd.f32 %v896, %v921
        %v936 = vadd.f32 %v897, %v921
        %v937 = vadd.f32 %v898, %v921
        %v938 = vadd.f32 %v899, %v921
        %v939 = vadd.f32 %v900, %v921
        %v940 = vadd.f32 %v901, %v921
        %v941 = vadd.f32 %v902, %v921
        %v942 = vadd.f32 %v903, %v921
        %v943 = vadd.f32 %v904, %v921
        %v944 = vadd.f32 %v905, %v921
        %v945 = vadd.f32 %v906, %v921
        %v946 = vadd.f32 %v907, %v921
        %v947 = vadd.f32 %v908, %v921
        %v948 = vadd.f32 %v909, %v921
        %v949 = vadd.f32 %v910, %v921
        %v950 = vadd.f32 %v911, %v921
        %v951 = vadd.f32 %v912, %v921
        %v952 = vadd.f32 %v913, %v921
        %v953 = vadd.f32 %v914, %v921
        %v954 = vadd.f32 %v915, %v921
        %v955 = vmax.f32 %v923, 0.0
        %v956 = vmax.f32 %v924, 0.0
        %v957 = vmax.f32 %v925, 0.0
        %v958 = vmax.f32 %v926, 0.0
        %v959 = vmax.f32 %v927, 0.0
        %v960 = vmax.f32 %v928, 0.0
        %v961 = vmax.f32 %v929, 0.0
        %v962 = vmax.f32 %v930, 0.0
        %v963 = vmax.f32 %v931, 0.0
        %v964 = vmax.f32 %v932, 0.0
        %v965 = vmax.f32 %v933, 0.0
        %v966 = vmax.f32 %v934, 0.0
        %v967 = vmax.f32 %v935, 0.0
        %v968 = vmax.f32 %v936, 0.0
        %v969 = vmax.f32 %v937, 0.0
        %v970 = vmax.f32 %v938, 0.0
        %v971 = vmax.f32 %v939, 0.0
        %v972 = vmax.f32 %v940, 0.0
        %v973 = vmax.f32 %v941, 0.0
        %v974 = vmax.f32 %v942, 0.0
        %v975 = vmax.f32 %v943, 0.0
        %v976 = vmax.f32 %v944, 0.0
        %v977 = vmax.f32 %v945, 0.0
        %v978 = vmax.f32 %v946, 0.0
        %v979 = vmax.f32 %v947, 0.0
        %v980 = vmax.f32 %v948, 0.0
        %v981 = vmax.f32 %v949, 0.0
        %v982 = vmax.f32 %v950, 0.0
        %v983 = vmax.f32 %v951, 0.0
        %v984 = vmax.f32 %v952, 0.0
        %v985 = vmax.f32 %v953, 0.0
        %v986 = vmax.f32 %v954, 0.0
        %v987 = vpack.c.bf16 %v956, %v955
        %v988 = vpack.c.bf16 %v958, %v957
        %v989 = vpack.c.bf16 %v960, %v959
        %v990 = vpack.c.bf16 %v962, %v961
        %v991 = vpack.c.bf16 %v964, %v963
        %v992 = vpack.c.bf16 %v966, %v965
        %v993 = vpack.c.bf16 %v968, %v967
        %v994 = vpack.c.bf16 %v970, %v969
        %v995 = vpack.c.bf16 %v972, %v971
        %v996 = vpack.c.bf16 %v974, %v973
        %v997 = vpack.c.bf16 %v976, %v975
        %v998 = vpack.c.bf16 %v978, %v977
        %v999 = vpack.c.bf16 %v980, %v979
        %v1000 = vpack.c.bf16 %v982, %v981
        %v1001 = vpack.c.bf16 %v984, %v983
        %v1002 = vpack.c.bf16 %v986, %v985
        %v1019 = vunpack.c.l.b16 %v987
        %v1020 = vunpack.c.h.b16 %v987
        %v1021 = vunpack.c.l.b16 %v988
        %v1022 = vunpack.c.h.b16 %v988
        %v1023 = vunpack.c.l.b16 %v989
        %v1024 = vunpack.c.h.b16 %v989
        %v1025 = vunpack.c.l.b16 %v990
        %v1026 = vunpack.c.h.b16 %v990
        %v1027 = vunpack.c.l.b16 %v991
        %v1028 = vunpack.c.h.b16 %v991
        %v1029 = vunpack.c.l.b16 %v992
        %v1030 = vunpack.c.h.b16 %v992
        %v1031 = vunpack.c.l.b16 %v993
        %v1032 = vunpack.c.h.b16 %v993
        %v1033 = vunpack.c.l.b16 %v994
        %v1034 = vunpack.c.h.b16 %v994
        %v1035 = vunpack.c.l.b16 %v995
        %v1036 = vunpack.c.h.b16 %v995
        %v1037 = vunpack.c.l.b16 %v996
        %v1038 = vunpack.c.h.b16 %v996
        %v1039 = vunpack.c.l.b16 %v997
        %v1040 = vunpack.c.h.b16 %v997
        %v1041 = vunpack.c.l.b16 %v998
        %v1042 = vunpack.c.h.b16 %v998
        %v1043 = vunpack.c.l.b16 %v999
        %v1044 = vunpack.c.h.b16 %v999
        %v1045 = vunpack.c.l.b16 %v1000
        %v1046 = vunpack.c.h.b16 %v1000
        %v1047 = vunpack.c.l.b16 %v1001
        %v1048 = vunpack.c.h.b16 %v1001
        %v1049 = vunpack.c.l.b16 %v1002
        %v1050 = vunpack.c.h.b16 %v1002
        %v1051 = vpack.c.b16 %v1019, %v1019
        %v1052 = vpack.c.b16 %v1020, %v1020
        %v1053 = vpack.c.b16 %v1021, %v1021
        %v1054 = vpack.c.b16 %v1022, %v1022
        %v1055 = vpack.c.b16 %v1023, %v1023
        %v1056 = vpack.c.b16 %v1024, %v1024
        %v1057 = vpack.c.b16 %v1025, %v1025
        %v1058 = vpack.c.b16 %v1026, %v1026
        %v1059 = vpack.c.b16 %v1027, %v1027
        %v1060 = vpack.c.b16 %v1028, %v1028
        %v1061 = vpack.c.b16 %v1029, %v1029
        %v1062 = vpack.c.b16 %v1030, %v1030
        %v1063 = vpack.c.b16 %v1031, %v1031
        %v1064 = vpack.c.b16 %v1032, %v1032
        %v1065 = vpack.c.b16 %v1033, %v1033
        %v1066 = vpack.c.b16 %v1034, %v1034
        %v1067 = vpack.c.b16 %v1035, %v1035
        %v1068 = vpack.c.b16 %v1036, %v1036
        %v1069 = vpack.c.b16 %v1037, %v1037
        %v1070 = vpack.c.b16 %v1038, %v1038
        %v1071 = vpack.c.b16 %v1039, %v1039
        %v1072 = vpack.c.b16 %v1040, %v1040
        %v1073 = vpack.c.b16 %v1041, %v1041
        %v1074 = vpack.c.b16 %v1042, %v1042
        %v1075 = vpack.c.b16 %v1043, %v1043
        %v1076 = vpack.c.b16 %v1044, %v1044
        %v1077 = vpack.c.b16 %v1045, %v1045
        %v1078 = vpack.c.b16 %v1046, %v1046
        %v1079 = vpack.c.b16 %v1047, %v1047
        %v1080 = vpack.c.b16 %v1048, %v1048
        %v1081 = vpack.c.b16 %v1049, %v1049
        %v1082 = vpack.c.b16 %v1050, %v1050
        %1115 = vst [vmem:[%s265] sm:$0xf] %v1051
        %1116 = vst [vmem:[%s265 + $0x4] sm:$0xf] %v1052
        %1117 = vst [vmem:[%s265 + $0x8] sm:$0xf] %v1053
        %1118 = vst [vmem:[%s265 + $0xc] sm:$0xf] %v1054
        %1119 = vst [vmem:[%s265 + $0x10] sm:$0xf] %v1055
        %1120 = vst [vmem:[%s265 + $0x14] sm:$0xf] %v1056
        %1121 = vst [vmem:[%s265 + $0x18] sm:$0xf] %v1057
        %1122 = vst [vmem:[%s265 + $0x1c] sm:$0xf] %v1058
        %1123 = vst [vmem:[%s265 + $0x20] sm:$0xf] %v1059
        %1124 = vst [vmem:[%s265 + $0x24] sm:$0xf] %v1060
        %1125 = vst [vmem:[%s265 + $0x28] sm:$0xf] %v1061
        %1126 = vst [vmem:[%s265 + $0x2c] sm:$0xf] %v1062
        %1127 = vst [vmem:[%s265 + $0x30] sm:$0xf] %v1063
        %1128 = vst [vmem:[%s265 + $0x34] sm:$0xf] %v1064
        %1129 = vst [vmem:[%s265 + $0x38] sm:$0xf] %v1065
        %1130 = vst [vmem:[%s265 + $0x3c] sm:$0xf] %v1066
        %1131 = vst [vmem:[%s265 + $0x40] sm:$0xf] %v1067
        %1132 = vst [vmem:[%s265 + $0x44] sm:$0xf] %v1068
        %1133 = vst [vmem:[%s265 + $0x48] sm:$0xf] %v1069
        %1134 = vst [vmem:[%s265 + $0x4c] sm:$0xf] %v1070
        %1135 = vst [vmem:[%s265 + $0x50] sm:$0xf] %v1071
        %1136 = vst [vmem:[%s265 + $0x54] sm:$0xf] %v1072
        %1137 = vst [vmem:[%s265 + $0x58] sm:$0xf] %v1073
        %1138 = vst [vmem:[%s265 + $0x5c] sm:$0xf] %v1074
        %1139 = vst [vmem:[%s265 + $0x60] sm:$0xf] %v1075
        %1140 = vst [vmem:[%s265 + $0x64] sm:$0xf] %v1076
        %1141 = vst [vmem:[%s265 + $0x68] sm:$0xf] %v1077
        %1142 = vst [vmem:[%s265 + $0x6c] sm:$0xf] %v1078
        %1143 = vst [vmem:[%s265 + $0x70] sm:$0xf] %v1079
        %1144 = vst [vmem:[%s265 + $0x74] sm:$0xf] %v1080
        %1145 = vst [vmem:[%s265 + $0x78] sm:$0xf] %v1081
        %1146 = vst [vmem:[%s265 + $0x7c] sm:$0xf] %v1082
      $region40: #{forward.15} parent=31 // pred_fallthru
        _
      %s1147 = smul.u32 32, %s19
      %p1148 = scmp.lt.s32.totalorder %s1147, 95
      %s1149 = scalar_select %p1148, %s1147, 95
      %p1150 = scmp.lt.s32.totalorder %s20, 0
      %s1151 = scalar_select %p1150, %s20, 0
      %s1152 = sadd.s32 %s1151, %s1149
      %s1153 = smul.addr %s1152, 4
      %s1154 = scalar_lea.vmem %s3, %s1153
      // Predicated region
      $region41: #{forward.15} parent=31 // pred_check
        %p1155 = pneg %p135
      $region42: #{forward.15} parent=31 // pred_check_branch
        %1157 = sbr.rel (%p1155) target = $region44
      $region43: #{forward.15} parent=31 // pred_region
        %s1158 = smul.u32 32, %s19
      $region44: #{forward.15} parent=31 // pred_fallthru
        _
    $region32: #{forward.15} parent=5 // pred_fallthru
      _
    %p1159 = scmp.le.s32.totalorder 2, %s9
    // Predicated region
    $region45: #{forward.15} parent=5 // pred_check
      %p1160 = pneg %p1159
    $region46: #{forward.15} parent=5 // pred_check_branch
      %1162 = sbr.rel (%p1160) target = $region48
    $region47: #{forward.15} parent=5 // pred_region
      %s1163 = ssub.s32 %s9, 2
      // Predicated region
      $region49: #{forward.15} parent=47 // pred_check
        %p1164 = pneg %p141
      $region50: #{forward.15} parent=47 // pred_check_branch
        %1166 = sbr.rel (%p1164) target = $region52
      $region51: #{forward.15} parent=47 // pred_region
        %s1167 = smul.u32 32, %s22
        %p1168 = scmp.lt.s32.totalorder %s1167, 95
        %s1169 = scalar_select %p1168, %s1167, 95
        %p1170 = scmp.lt.s32.totalorder %s23, 0
        %s1171 = scalar_select %p1170, %s23, 0
        %s1172 = sadd.s32 %s1171, %s1169
        %s1173 = smul.addr %s1172, 4
        %s1174 = scalar_lea.vmem %s3, %s1173
      $region52: #{forward.15} parent=47 // pred_fallthru
        _
    $region48: #{forward.15} parent=5 // pred_fallthru
      _
  $region6: #{forward.15} parent=0 // loop_footer
    %s13 = sadd.s32 1, %s9
  $region7: #{forward.15} parent=0 // loop_footer_branch
    %8 = sbr.rel target = $region3
  $region8: #{forward.15} parent=0 // loop_exit
    _

// kernel: forward.16
$region0: #{forward.16}
  #allocation0 [shape = 'u32[]', space=smem, size = 0x4, offset = 0x4, fixed_abs, tag = 'smem constant byte address 0x4 - core index']
  #allocation1 [shape = 'u32[144,128]{1,0:T(1,128)}', space=vmem, size = 0x12000, scoped, tag = 'internal scratch']
  #allocation2 [shape = 'f32[256,128]{1,0:T(8,128)}', space=vmem, size = 0x20000, scoped, tag = 'scratch operand']
  %s0 = inlined_call_operand.vmem [shape: bf16[768,512], index: 0, kind: input, shape index: {}]
  %s1 = inlined_call_operand.vmem [shape: bf16[512,128], index: 1, kind: input, shape index: {}]
  %s2 = inlined_call_operand.vmem [shape: f32[1,128], index: 2, kind: input, shape index: {}]
  %s3 = inlined_call_operand.vmem [shape: bf16[768,128], index: 3, kind: output, shape index: {}]
  %s4 = sld [smem:[#allocation0]]
  $region53: #{forward.16} parent=0
    _
  %s6 = ssub.s32 1, %s4
  %s7 = scalar_select 0, %s6, %s4
  loop: start=0, step=1, limit=5
  $region2: #{forward.16} parent=0 // loop_pre_header
    _
  $region3: #{forward.16} parent=0 // loop_header
    %s9 = sphi 0, %s13
    %p10 = scmp.ge.s32.totalorder %s9, 5
    %s16 = sphi 0, %s35
    %s17 = sphi 0, %s31
    %s18 = sphi 0, %s27
    %s19 = sphi 0, %s16
    %s20 = sphi 0, %s17
    %s21 = sphi 0, %s18
    %s22 = sphi 0, %s19
    %s23 = sphi 0, %s20
    %s24 = sphi 0, %s21
    %s40 = sphi 0, %s42
    %s43 = sphi 0, %s40
    %s44 = sphi 0, %s43
    %s60 = sphi 0, %s44
    %s68 = sphi 0, %s70
    %s71 = sphi 0, %s68
    %s72 = sphi 0, %s71
    %s88 = sphi 0, %s72
    %s94 = sphi 0, %s96
    %s97 = sphi 0, %s94
    %s98 = sphi 0, %s97
    %s114 = sphi 0, %s98
    %s122 = sphi 0, %s124
    %s125 = sphi 0, %s122
    %s126 = sphi 0, %s125
    %s142 = sphi 0, %s126
  $region4: #{forward.16} parent=0 // loop_header_branch
    %12 = sbr.rel (%p10) target = $region8
  $region5: #{forward.16} parent=0 // loop_body
    %s14 = ssub.s32 %s9, 1
    %s15 = ssub.s32 %s9, 2
    %s25 = sadd.s32 1, %s18
    %p26 = scmp.ge.s32.totalorder %s25, 1
    %s27 = scalar_select %p26, 0, %s25
    %s28 = sadd.s32 1, %s17
    %s29 = scalar_select %p26, %s28, %s17
    %p30 = scmp.ge.s32.totalorder %s29, 1
    %s31 = scalar_select %p30, 0, %s29
    %s32 = sadd.s32 1, %s16
    %s33 = scalar_select %p30, %s32, %s16
    %p34 = scmp.ge.s32.totalorder %s33, 3
    %s35 = scalar_select %p34, 0, %s33
    %s36 = ssub.s32 %s16, %s35
    %s37 = ssub.s32 %s18, %s27
    %s38 = sor.u32 %s36, %s37
    %p39 = scmp.eq.s32.totalorder %s38, 0
    %s41 = sadd.s32 %s40, 1
    %s42 = scalar_select %p39, %s40, %s41
    %p45 = pneg %p39
    %p46 = scmp.eq.s32.totalorder %s9, 2
    %p47 = por %p45, %p46
    %p48 = scmp.ne.s32.totalorder %s40, %s43
    %p49 = scmp.eq.s32.totalorder %s9, 0
    %p50 = por %p48, %p49
    %p51 = scmp.ne.s32.totalorder %s40, %s43
    %p52 = scmp.eq.s32.totalorder %s14, 2
    %p53 = por %p51, %p52
    %p54 = scmp.ne.s32.totalorder %s43, %s44
    %p55 = scmp.eq.s32.totalorder %s14, 0
    %p56 = por %p54, %p55
    %p57 = scmp.ne.s32.totalorder %s43, %s44
    %p58 = scmp.eq.s32.totalorder %s15, 2
    %p59 = por %p57, %p58
    %p61 = scmp.ne.s32.totalorder %s44, %s60
    %p62 = scmp.eq.s32.totalorder %s15, 0
    %p63 = por %p61, %p62
    %s64 = ssub.s32 %s18, %s27
    %s65 = ssub.s32 %s17, %s31
    %s66 = sor.u32 %s64, %s65
    %p67 = scmp.eq.s32.totalorder %s66, 0
    %s69 = sadd.s32 %s68, 1
    %s70 = scalar_select %p67, %s68, %s69
    %p73 = pneg %p67
    %p74 = scmp.eq.s32.totalorder %s9, 2
    %p75 = por %p73, %p74
    %p76 = scmp.ne.s32.totalorder %s68, %s71
    %p77 = scmp.eq.s32.totalorder %s9, 0
    %p78 = por %p76, %p77
    %p79 = scmp.ne.s32.totalorder %s68, %s71
    %p80 = scmp.eq.s32.totalorder %s14, 2
    %p81 = por %p79, %p80
    %p82 = scmp.ne.s32.totalorder %s71, %s72
    %p83 = scmp.eq.s32.totalorder %s14, 0
    %p84 = por %p82, %p83
    %p85 = scmp.ne.s32.totalorder %s71, %s72
    %p86 = scmp.eq.s32.totalorder %s15, 2
    %p87 = por %p85, %p86
    %p89 = scmp.ne.s32.totalorder %s72, %s88
    %p90 = scmp.eq.s32.totalorder %s15, 0
    %p91 = por %p89, %p90
    %s92 = ssub.s32 %s17, %s31
    %p93 = scmp.eq.s32.totalorder %s92, 0
    %s95 = sadd.s32 %s94, 1
    %s96 = scalar_select %p93, %s94, %s95
    %p99 = pneg %p93
    %p100 = scmp.eq.s32.totalorder %s9, 2
    %p101 = por %p99, %p100
    %p102 = scmp.ne.s32.totalorder %s94, %s97
    %p103 = scmp.eq.s32.totalorder %s9, 0
    %p104 = por %p102, %p103
    %p105 = scmp.ne.s32.totalorder %s94, %s97
    %p106 = scmp.eq.s32.totalorder %s14, 2
    %p107 = por %p105, %p106
    %p108 = scmp.ne.s32.totalorder %s97, %s98
    %p109 = scmp.eq.s32.totalorder %s14, 0
    %p110 = por %p108, %p109
    %p111 = scmp.ne.s32.totalorder %s97, %s98
    %p112 = scmp.eq.s32.totalorder %s15, 2
    %p113 = por %p111, %p112
    %p115 = scmp.ne.s32.totalorder %s98, %s114
    %p116 = scmp.eq.s32.totalorder %s15, 0
    %p117 = por %p115, %p116
    %s118 = ssub.s32 %s16, %s35
    %s119 = ssub.s32 %s17, %s31
    %s120 = sor.u32 %s118, %s119
    %p121 = scmp.eq.s32.totalorder %s120, 0
    %s123 = sadd.s32 %s122, 1
    %s124 = scalar_select %p121, %s122, %s123
    %p127 = pneg %p121
    %p128 = scmp.eq.s32.totalorder %s9, 2
    %p129 = por %p127, %p128
    %p130 = scmp.ne.s32.totalorder %s122, %s125
    %p131 = scmp.eq.s32.totalorder %s9, 0
    %p132 = por %p130, %p131
    %p133 = scmp.ne.s32.totalorder %s122, %s125
    %p134 = scmp.eq.s32.totalorder %s14, 2
    %p135 = por %p133, %p134
    %p136 = scmp.ne.s32.totalorder %s125, %s126
    %p137 = scmp.eq.s32.totalorder %s14, 0
    %p138 = por %p136, %p137
    %p139 = scmp.ne.s32.totalorder %s125, %s126
    %p140 = scmp.eq.s32.totalorder %s15, 2
    %p141 = por %p139, %p140
    %p143 = scmp.ne.s32.totalorder %s126, %s142
    %p144 = scmp.eq.s32.totalorder %s15, 0
    %p145 = por %p143, %p144
    %p146 = scmp.le.s32.totalorder 1, %s9
    %p147 = scmp.lt.s32.totalorder %s9, 4
    %p148 = pnand %p146, %p147
    %p149 = pneg %p148
    // Predicated region
    $region9: #{forward.16} parent=5 // pred_check
      _
    $region10: #{forward.16} parent=5 // pred_check_branch
      %151 = sbr.rel (%p148) target = $region12
    $region11: #{forward.16} parent=5 // pred_region
      %s152 = ssub.s32 %s9, 1
      // Predicated region
      $region13: #{forward.16} parent=11 // pred_check
        %p153 = pneg %p84
      $region14: #{forward.16} parent=11 // pred_check_branch
        %155 = sbr.rel (%p153) target = $region16
      $region15: #{forward.16} parent=11 // pred_region
        %s156 = smul.u32 64, %s21
        %p157 = scmp.lt.s32.totalorder %s156, 63
        %s158 = scalar_select %p157, %s156, 63
        %p159 = scmp.lt.s32.totalorder %s20, 0
        %s160 = scalar_select %p159, %s20, 0
        %s161 = sadd.s32 %s160, %s158
        %s162 = smul.addr %s161, 4
        %s163 = scalar_lea.vmem %s1, %s162
        %s164 = smul.u32 64, %s21
      $region16: #{forward.16} parent=11 // pred_fallthru
        _
      // Predicated region
      $region17: #{forward.16} parent=11 // pred_check
        %p165 = pneg %p110
      $region18: #{forward.16} parent=11 // pred_check_branch
        %167 = sbr.rel (%p165) target = $region20
      $region19: #{forward.16} parent=11 // pred_region
        %p168 = scmp.lt.s32.totalorder %s20, 0
        %s169 = scalar_select %p168, %s20, 0
        %s170 = scalar_lea.vmem %s2, %s169
      $region20: #{forward.16} parent=11 // pred_fallthru
        _
    $region12: #{forward.16} parent=5 // pred_fallthru
      _
    %p171 = scmp.lt.s32.totalorder %s9, 3
    // Predicated region
    $region21: #{forward.16} parent=5 // pred_check
      %p172 = pneg %p171
    $region22: #{forward.16} parent=5 // pred_check_branch
      %174 = sbr.rel (%p172) target = $region24
    $region23: #{forward.16} parent=5 // pred_region
      // Predicated region
      $region25: #{forward.16} parent=23 // pred_check
        %p175 = pneg %p50
      $region26: #{forward.16} parent=23 // pred_check_branch
        %177 = sbr.rel (%p175) target = $region28
      $region27: #{forward.16} parent=23 // pred_region
        %s178 = smul.u32 32, %s16
        %s179 = smul.u32 4, %s18
        %p180 = scmp.lt.s32.totalorder %s178, 95
        %s181 = scalar_select %p180, %s178, 95
        %p182 = scmp.lt.s32.totalorder %s179, 3
        %s183 = scalar_select %p182, %s179, 3
        %s184 = smul.addr %s181, 4
        %s185 = sadd.s32 %s183, %s184
        %s186 = smul.addr %s185, 4
        %s187 = scalar_lea.vmem %s0, %s186
        %s188 = smul.u32 32, %s16
        %s189 = smul.u32 4, %s18
      $region28: #{forward.16} parent=23 // pred_fallthru
        _
    $region24: #{forward.16} parent=5 // pred_fallthru
      _
    %p190 = scmp.le.s32.totalorder 1, %s9
    %p191 = scmp.lt.s32.totalorder %s9, 4
    %p192 = pnand %p190, %p191
    %p193 = pneg %p192
    // Predicated region
    $region29: #{forward.16} parent=5 // pred_check
      _
    $region30: #{forward.16} parent=5 // pred_check_branch
      %195 = sbr.rel (%p192) target = $region32
    $region31: #{forward.16} parent=5 // pred_region
      %s196 = ssub.s32 %s9, 1
      %s197 = smul.u32 32, %s19
      %s198 = smul.u32 4, %s21
      %p199 = scmp.lt.s32.totalorder %s197, 95
      %s200 = scalar_select %p199, %s197, 95
      %p201 = scmp.lt.s32.totalorder %s198, 3
      %s202 = scalar_select %p201, %s198, 3
      %s203 = smul.addr %s200, 4
      %s204 = sadd.s32 %s202, %s203
      %s205 = smul.addr %s204, 4
      %s206 = scalar_lea.vmem %s0, %s205
      %p207 = pneg %p56
      %p208 = pneg %p53
      %s209 = smul.u32 64, %s21
      %p210 = scmp.lt.s32.totalorder %s209, 63
      %s211 = scalar_select %p210, %s209, 63
      %p212 = scmp.lt.s32.totalorder %s20, 0
      %s213 = scalar_select %p212, %s20, 0
      %s214 = sadd.s32 %s213, %s211
      %s215 = smul.addr %s214, 4
      %s216 = scalar_lea.vmem %s1, %s215
      %p217 = pneg %p84
      %p218 = pneg %p81
      %p219 = scmp.lt.s32.totalorder %s20, 0
      %s220 = scalar_select %p219, %s20, 0
      %s221 = scalar_lea.vmem %s2, %s220
      %p222 = pneg %p110
      %p223 = pneg %p107
      %p224 = pneg %p138
      %p225 = pneg %p135
      %s226 = smul.u32 32, %s19
      %p227 = scmp.lt.s32.totalorder %s226, 95
      %s228 = scalar_select %p227, %s226, 95
      %p229 = scmp.lt.s32.totalorder %s20, 0
      %s230 = scalar_select %p229, %s20, 0
      %s231 = sadd.s32 %s230, %s228
      %s232 = smul.addr %s231, 4
      %s233 = scalar_lea.vmem %s3, %s232
      %s234 = smul.u32 32, %s19
      %s235 = smul.u32 4, %s21
      %p236 = scmp.lt.s32.totalorder %s234, 95
      %s237 = scalar_select %p236, %s234, 95
      %p238 = scmp.lt.s32.totalorder %s235, 3
      %s239 = scalar_select %p238, %s235, 3
      %s240 = smul.addr %s237, 4
      %s241 = sadd.s32 %s239, %s240
      %s242 = smul.addr %s241, 4
      %s243 = scalar_lea.vmem %s0, %s242
      %s244 = smul.u32 32, %s19
      %s245 = smul.u32 4, %s21
      %s246 = smul.u32 64, %s21
      %p247 = scmp.lt.s32.totalorder %s246, 63
      %s248 = scalar_select %p247, %s246, 63
      %p249 = scmp.lt.s32.totalorder %s20, 0
      %s250 = scalar_select %p249, %s20, 0
      %s251 = sadd.s32 %s250, %s248
      %s252 = smul.addr %s251, 4
      %s253 = scalar_lea.vmem %s1, %s252
      %s254 = smul.u32 64, %s21
      %p255 = scmp.lt.s32.totalorder %s20, 0
      %s256 = scalar_select %p255, %s20, 0
      %s257 = scalar_lea.vmem %s2, %s256
      %s258 = smul.u32 32, %s19
      %p259 = scmp.lt.s32.totalorder %s258, 95
      %s260 = scalar_select %p259, %s258, 95
      %p261 = scmp.lt.s32.totalorder %s20, 0
      %s262 = scalar_select %p261, %s20, 0
      %s263 = sadd.s32 %s262, %s260
      %s264 = smul.addr %s263, 4
      %s265 = scalar_lea.vmem %s3, %s264
      %s266 = smul.u32 32, %s19
      %p268 = scmp.eq.s32.totalorder %s21, 0
      // Predicated region
      $region33: #{forward.16} parent=31 // pred_check
        %p269 = pneg %p268
      $region34: #{forward.16} parent=31 // pred_check_branch
        %271 = sbr.rel (%p269) target = $region36
      $region35: #{forward.16} parent=31 // pred_region
        %272 = vst [vmem:[#allocation2] sm:$0xff] 0.0
        %273 = vst [vmem:[#allocation2 + $0x8] sm:$0xff] 0.0
        %274 = vst [vmem:[#allocation2 + $0x10] sm:$0xff] 0.0
        %275 = vst [vmem:[#allocation2 + $0x18] sm:$0xff] 0.0
        %276 = vst [vmem:[#allocation2 + $0x20] sm:$0xff] 0.0
        %277 = vst [vmem:[#allocation2 + $0x28] sm:$0xff] 0.0
        %278 = vst [vmem:[#allocation2 + $0x30] sm:$0xff] 0.0
        %279 = vst [vmem:[#allocation2 + $0x38] sm:$0xff] 0.0
        %280 = vst [vmem:[#allocation2 + $0x40] sm:$0xff] 0.0
        %281 = vst [vmem:[#allocation2 + $0x48] sm:$0xff] 0.0
        %282 = vst [vmem:[#allocation2 + $0x50] sm:$0xff] 0.0
        %283 = vst [vmem:[#allocation2 + $0x58] sm:$0xff] 0.0
        %284 = vst [vmem:[#allocation2 + $0x60] sm:$0xff] 0.0
        %285 = vst [vmem:[#allocation2 + $0x68] sm:$0xff] 0.0
        %286 = vst [vmem:[#allocation2 + $0x70] sm:$0xff] 0.0
        %287 = vst [vmem:[#allocation2 + $0x78] sm:$0xff] 0.0
        %288 = vst [vmem:[#allocation2 + $0x80] sm:$0xff] 0.0
        %289 = vst [vmem:[#allocation2 + $0x88] sm:$0xff] 0.0
        %290 = vst [vmem:[#allocation2 + $0x90] sm:$0xff] 0.0
        %291 = vst [vmem:[#allocation2 + $0x98] sm:$0xff] 0.0
        %292 = vst [vmem:[#allocation2 + $0xa0] sm:$0xff] 0.0
        %293 = vst [vmem:[#allocation2 + $0xa8] sm:$0xff] 0.0
        %294 = vst [vmem:[#allocation2 + $0xb0] sm:$0xff] 0.0
        %295 = vst [vmem:[#allocation2 + $0xb8] sm:$0xff] 0.0
        %296 = vst [vmem:[#allocation2 + $0xc0] sm:$0xff] 0.0
        %297 = vst [vmem:[#allocation2 + $0xc8] sm:$0xff] 0.0
        %298 = vst [vmem:[#allocation2 + $0xd0] sm:$0xff] 0.0
        %299 = vst [vmem:[#allocation2 + $0xd8] sm:$0xff] 0.0
        %300 = vst [vmem:[#allocation2 + $0xe0] sm:$0xff] 0.0
        %301 = vst [vmem:[#allocation2 + $0xe8] sm:$0xff] 0.0
        %302 = vst [vmem:[#allocation2 + $0xf0] sm:$0xff] 0.0
        %303 = vst [vmem:[#allocation2 + $0xf8] sm:$0xff] 0.0
      $region36: #{forward.16} parent=31 // pred_fallthru
        _
      %v304 = vld [vmem:[#allocation2] sm:$0xff]
      %v305 = vld [vmem:[#allocation2 + $0x8] sm:$0xff]
      %v306 = vld [vmem:[#allocation2 + $0x10] sm:$0xff]
      %v307 = vld [vmem:[#allocation2 + $0x18] sm:$0xff]
      %v308 = vld [vmem:[#allocation2 + $0x20] sm:$0xff]
      %v309 = vld [vmem:[#allocation2 + $0x28] sm:$0xff]
      %v310 = vld [vmem:[#allocation2 + $0x30] sm:$0xff]
      %v311 = vld [vmem:[#allocation2 + $0x38] sm:$0xff]
      %v312 = vld [vmem:[#allocation2 + $0x40] sm:$0xff]
      %v313 = vld [vmem:[#allocation2 + $0x48] sm:$0xff]
      %v314 = vld [vmem:[#allocation2 + $0x50] sm:$0xff]
      %v315 = vld [vmem:[#allocation2 + $0x58] sm:$0xff]
      %v316 = vld [vmem:[#allocation2 + $0x60] sm:$0xff]
      %v317 = vld [vmem:[#allocation2 + $0x68] sm:$0xff]
      %v318 = vld [vmem:[#allocation2 + $0x70] sm:$0xff]
      %v319 = vld [vmem:[#allocation2 + $0x78] sm:$0xff]
      %v320 = vld [vmem:[#allocation2 + $0x80] sm:$0xff]
      %v321 = vld [vmem:[#allocation2 + $0x88] sm:$0xff]
      %v322 = vld [vmem:[#allocation2 + $0x90] sm:$0xff]
      %v323 = vld [vmem:[#allocation2 + $0x98] sm:$0xff]
      %v324 = vld [vmem:[#allocation2 + $0xa0] sm:$0xff]
      %v325 = vld [vmem:[#allocation2 + $0xa8] sm:$0xff]
      %v326 = vld [vmem:[#allocation2 + $0xb0] sm:$0xff]
      %v327 = vld [vmem:[#allocation2 + $0xb8] sm:$0xff]
      %v328 = vld [vmem:[#allocation2 + $0xc0] sm:$0xff]
      %v329 = vld [vmem:[#allocation2 + $0xc8] sm:$0xff]
      %v330 = vld [vmem:[#allocation2 + $0xd0] sm:$0xff]
      %v331 = vld [vmem:[#allocation2 + $0xd8] sm:$0xff]
      %v332 = vld [vmem:[#allocation2 + $0xe0] sm:$0xff]
      %v333 = vld [vmem:[#allocation2 + $0xe8] sm:$0xff]
      %v334 = vld [vmem:[#allocation2 + $0xf0] sm:$0xff]
      %v335 = vld [vmem:[#allocation2 + $0xf8] sm:$0xff]
      %v336 = vld [vmem:[%s243] sm:$0xff]
      %v337 = vld [vmem:[%s243 + $0x8] sm:$0xff]
      %v338 = vld [vmem:[%s243 + $0x10] sm:$0xff]
      %v339 = vld [vmem:[%s243 + $0x18] sm:$0xff]
      %v340 = vld [vmem:[%s243 + $0x20] sm:$0xff]
      %v341 = vld [vmem:[%s243 + $0x28] sm:$0xff]
      %v342 = vld [vmem:[%s243 + $0x30] sm:$0xff]
      %v343 = vld [vmem:[%s243 + $0x38] sm:$0xff]
      %v344 = vld [vmem:[%s243 + $0x40] sm:$0xff]
      %v345 = vld [vmem:[%s243 + $0x48] sm:$0xff]
      %v346 = vld [vmem:[%s243 + $0x50] sm:$0xff]
      %v347 = vld [vmem:[%s243 + $0x58] sm:$0xff]
      %v348 = vld [vmem:[%s243 + $0x60] sm:$0xff]
      %v349 = vld [vmem:[%s243 + $0x68] sm:$0xff]
      %v350 = vld [vmem:[%s243 + $0x70] sm:$0xff]
      %v351 = vld [vmem:[%s243 + $0x78] sm:$0xff]
      %v352 = vld [vmem:[%s243 + $0x80] sm:$0xff]
      %v353 = vld [vmem:[%s243 + $0x88] sm:$0xff]
      %v354 = vld [vmem:[%s243 + $0x90] sm:$0xff]
      %v355 = vld [vmem:[%s243 + $0x98] sm:$0xff]
      %v356 = vld [vmem:[%s243 + $0xa0] sm:$0xff]
      %v357 = vld [vmem:[%s243 + $0xa8] sm:$0xff]
      %v358 = vld [vmem:[%s243 + $0xb0] sm:$0xff]
      %v359 = vld [vmem:[%s243 + $0xb8] sm:$0xff]
      %v360 = vld [vmem:[%s243 + $0xc0] sm:$0xff]
      %v361 = vld [vmem:[%s243 + $0xc8] sm:$0xff]
      %v362 = vld [vmem:[%s243 + $0xd0] sm:$0xff]
      %v363 = vld [vmem:[%s243 + $0xd8] sm:$0xff]
      %v364 = vld [vmem:[%s243 + $0xe0] sm:$0xff]
      %v365 = vld [vmem:[%s243 + $0xe8] sm:$0xff]
      %v366 = vld [vmem:[%s243 + $0xf0] sm:$0xff]
      %v367 = vld [vmem:[%s243 + $0xf8] sm:$0xff]
      %v368 = vld [vmem:[%s243 + $0x100] sm:$0xff]
      %v369 = vld [vmem:[%s243 + $0x108] sm:$0xff]
      %v370 = vld [vmem:[%s243 + $0x110] sm:$0xff]
      %v371 = vld [vmem:[%s243 + $0x118] sm:$0xff]
      %v372 = vld [vmem:[%s243 + $0x120] sm:$0xff]
      %v373 = vld [vmem:[%s243 + $0x128] sm:$0xff]
      %v374 = vld [vmem:[%s243 + $0x130] sm:$0xff]
      %v375 = vld [vmem:[%s243 + $0x138] sm:$0xff]
      %v376 = vld [vmem:[%s243 + $0x140] sm:$0xff]
      %v377 = vld [vmem:[%s243 + $0x148] sm:$0xff]
      %v378 = vld [vmem:[%s243 + $0x150] sm:$0xff]
      %v379 = vld [vmem:[%s243 + $0x158] sm:$0xff]
      %v380 = vld [vmem:[%s243 + $0x160] sm:$0xff]
      %v381 = vld [vmem:[%s243 + $0x168] sm:$0xff]
      %v382 = vld [vmem:[%s243 + $0x170] sm:$0xff]
      %v383 = vld [vmem:[%s243 + $0x178] sm:$0xff]
      %v384 = vld [vmem:[%s243 + $0x180] sm:$0xff]
      %v385 = vld [vmem:[%s243 + $0x188] sm:$0xff]
      %v386 = vld [vmem:[%s243 + $0x190] sm:$0xff]
      %v387 = vld [vmem:[%s243 + $0x198] sm:$0xff]
      %v388 = vld [vmem:[%s243 + $0x1a0] sm:$0xff]
      %v389 = vld [vmem:[%s243 + $0x1a8] sm:$0xff]
      %v390 = vld [vmem:[%s243 + $0x1b0] sm:$0xff]
      %v391 = vld [vmem:[%s243 + $0x1b8] sm:$0xff]
      %v392 = vld [vmem:[%s243 + $0x1c0] sm:$0xff]
      %v393 = vld [vmem:[%s243 + $0x1c8] sm:$0xff]
      %v394 = vld [vmem:[%s243 + $0x1d0] sm:$0xff]
      %v395 = vld [vmem:[%s243 + $0x1d8] sm:$0xff]
      %v396 = vld [vmem:[%s243 + $0x1e0] sm:$0xff]
      %v397 = vld [vmem:[%s243 + $0x1e8] sm:$0xff]
      %v398 = vld [vmem:[%s243 + $0x1f0] sm:$0xff]
      %v399 = vld [vmem:[%s243 + $0x1f8] sm:$0xff]
      %v400 = vld [vmem:[%s253] sm:$0xf]
      %v401 = vld [vmem:[%s253 + $0x4] sm:$0xf]
      %v402 = vld [vmem:[%s253 + $0x8] sm:$0xf]
      %v403 = vld [vmem:[%s253 + $0xc] sm:$0xf]
      %v404 = vld [vmem:[%s253 + $0x10] sm:$0xf]
      %v405 = vld [vmem:[%s253 + $0x14] sm:$0xf]
      %v406 = vld [vmem:[%s253 + $0x18] sm:$0xf]
      %v407 = vld [vmem:[%s253 + $0x1c] sm:$0xf]
      %v408 = vld [vmem:[%s253 + $0x20] sm:$0xf]
      %v409 = vld [vmem:[%s253 + $0x24] sm:$0xf]
      %v410 = vld [vmem:[%s253 + $0x28] sm:$0xf]
      %v411 = vld [vmem:[%s253 + $0x2c] sm:$0xf]
      %v412 = vld [vmem:[%s253 + $0x30] sm:$0xf]
      %v413 = vld [vmem:[%s253 + $0x34] sm:$0xf]
      %v414 = vld [vmem:[%s253 + $0x38] sm:$0xf]
      %v415 = vld [vmem:[%s253 + $0x3c] sm:$0xf]
      %v416 = vld [vmem:[%s253 + $0x40] sm:$0xf]
      %v417 = vld [vmem:[%s253 + $0x44] sm:$0xf]
      %v418 = vld [vmem:[%s253 + $0x48] sm:$0xf]
      %v419 = vld [vmem:[%s253 + $0x4c] sm:$0xf]
      %v420 = vld [vmem:[%s253 + $0x50] sm:$0xf]
      %v421 = vld [vmem:[%s253 + $0x54] sm:$0xf]
      %v422 = vld [vmem:[%s253 + $0x58] sm:$0xf]
      %v423 = vld [vmem:[%s253 + $0x5c] sm:$0xf]
      %v424 = vld [vmem:[%s253 + $0x60] sm:$0xf]
      %v425 = vld [vmem:[%s253 + $0x64] sm:$0xf]
      %v426 = vld [vmem:[%s253 + $0x68] sm:$0xf]
      %v427 = vld [vmem:[%s253 + $0x6c] sm:$0xf]
      %v428 = vld [vmem:[%s253 + $0x70] sm:$0xf]
      %v429 = vld [vmem:[%s253 + $0x74] sm:$0xf]
      %v430 = vld [vmem:[%s253 + $0x78] sm:$0xf]
      %v431 = vld [vmem:[%s253 + $0x7c] sm:$0xf]
      %v432 = vld [vmem:[%s253 + $0x80] sm:$0xf]
      %v433 = vld [vmem:[%s253 + $0x84] sm:$0xf]
      %v434 = vld [vmem:[%s253 + $0x88] sm:$0xf]
      %v435 = vld [vmem:[%s253 + $0x8c] sm:$0xf]
      %v436 = vld [vmem:[%s253 + $0x90] sm:$0xf]
      %v437 = vld [vmem:[%s253 + $0x94] sm:$0xf]
      %v438 = vld [vmem:[%s253 + $0x98] sm:$0xf]
      %v439 = vld [vmem:[%s253 + $0x9c] sm:$0xf]
      %v440 = vld [vmem:[%s253 + $0xa0] sm:$0xf]
      %v441 = vld [vmem:[%s253 + $0xa4] sm:$0xf]
      %v442 = vld [vmem:[%s253 + $0xa8] sm:$0xf]
      %v443 = vld [vmem:[%s253 + $0xac] sm:$0xf]
      %v444 = vld [vmem:[%s253 + $0xb0] sm:$0xf]
      %v445 = vld [vmem:[%s253 + $0xb4] sm:$0xf]
      %v446 = vld [vmem:[%s253 + $0xb8] sm:$0xf]
      %v447 = vld [vmem:[%s253 + $0xbc] sm:$0xf]
      %v448 = vld [vmem:[%s253 + $0xc0] sm:$0xf]
      %v449 = vld [vmem:[%s253 + $0xc4] sm:$0xf]
      %v450 = vld [vmem:[%s253 + $0xc8] sm:$0xf]
      %v451 = vld [vmem:[%s253 + $0xcc] sm:$0xf]
      %v452 = vld [vmem:[%s253 + $0xd0] sm:$0xf]
      %v453 = vld [vmem:[%s253 + $0xd4] sm:$0xf]
      %v454 = vld [vmem:[%s253 + $0xd8] sm:$0xf]
      %v455 = vld [vmem:[%s253 + $0xdc] sm:$0xf]
      %v456 = vld [vmem:[%s253 + $0xe0] sm:$0xf]
      %v457 = vld [vmem:[%s253 + $0xe4] sm:$0xf]
      %v458 = vld [vmem:[%s253 + $0xe8] sm:$0xf]
      %v459 = vld [vmem:[%s253 + $0xec] sm:$0xf]
      %v460 = vld [vmem:[%s253 + $0xf0] sm:$0xf]
      %v461 = vld [vmem:[%s253 + $0xf4] sm:$0xf]
      %v462 = vld [vmem:[%s253 + $0xf8] sm:$0xf]
      %v463 = vld [vmem:[%s253 + $0xfc] sm:$0xf]
      %v528 = vunpack.c.l.b16 %v336
      %v529 = vunpack.c.h.b16 %v336
      %v530 = vunpack.c.l.b16 %v337
      %v531 = vunpack.c.h.b16 %v337
      %v532 = vunpack.c.l.b16 %v338
      %v533 = vunpack.c.h.b16 %v338
      %v534 = vunpack.c.l.b16 %v339
      %v535 = vunpack.c.h.b16 %v339
      %v536 = vunpack.c.l.b16 %v340
      %v537 = vunpack.c.h.b16 %v340
      %v538 = vunpack.c.l.b16 %v341
      %v539 = vunpack.c.h.b16 %v341
      %v540 = vunpack.c.l.b16 %v342
      %v541 = vunpack.c.h.b16 %v342
      %v542 = vunpack.c.l.b16 %v343
      %v543 = vunpack.c.h.b16 %v343
      %v544 = vunpack.c.l.b16 %v344
      %v545 = vunpack.c.h.b16 %v344
      %v546 = vunpack.c.l.b16 %v345
      %v547 = vunpack.c.h.b16 %v345
      %v548 = vunpack.c.l.b16 %v346
      %v549 = vunpack.c.h.b16 %v346
      %v550 = vunpack.c.l.b16 %v347
      %v551 = vunpack.c.h.b16 %v347
      %v552 = vunpack.c.l.b16 %v348
      %v553 = vunpack.c.h.b16 %v348
      %v554 = vunpack.c.l.b16 %v349
      %v555 = vunpack.c.h.b16 %v349
      %v556 = vunpack.c.l.b16 %v350
      %v557 = vunpack.c.h.b16 %v350
      %v558 = vunpack.c.l.b16 %v351
      %v559 = vunpack.c.h.b16 %v351
      %v560 = vunpack.c.l.b16 %v352
      %v561 = vunpack.c.h.b16 %v352
      %v562 = vunpack.c.l.b16 %v353
      %v563 = vunpack.c.h.b16 %v353
      %v564 = vunpack.c.l.b16 %v354
      %v565 = vunpack.c.h.b16 %v354
      %v566 = vunpack.c.l.b16 %v355
      %v567 = vunpack.c.h.b16 %v355
      %v568 = vunpack.c.l.b16 %v356
      %v569 = vunpack.c.h.b16 %v356
      %v570 = vunpack.c.l.b16 %v357
      %v571 = vunpack.c.h.b16 %v357
      %v572 = vunpack.c.l.b16 %v358
      %v573 = vunpack.c.h.b16 %v358
      %v574 = vunpack.c.l.b16 %v359
      %v575 = vunpack.c.h.b16 %v359
      %v576 = vunpack.c.l.b16 %v360
      %v577 = vunpack.c.h.b16 %v360
      %v578 = vunpack.c.l.b16 %v361
      %v579 = vunpack.c.h.b16 %v361
      %v580 = vunpack.c.l.b16 %v362
      %v581 = vunpack.c.h.b16 %v362
      %v582 = vunpack.c.l.b16 %v363
      %v583 = vunpack.c.h.b16 %v363
      %v584 = vunpack.c.l.b16 %v364
      %v585 = vunpack.c.h.b16 %v364
      %v586 = vunpack.c.l.b16 %v365
      %v587 = vunpack.c.h.b16 %v365
      %v588 = vunpack.c.l.b16 %v366
      %v589 = vunpack.c.h.b16 %v366
      %v590 = vunpack.c.l.b16 %v367
      %v591 = vunpack.c.h.b16 %v367
      %v592 = vunpack.c.l.b16 %v368
      %v593 = vunpack.c.h.b16 %v368
      %v594 = vunpack.c.l.b16 %v369
      %v595 = vunpack.c.h.b16 %v369
      %v596 = vunpack.c.l.b16 %v370
      %v597 = vunpack.c.h.b16 %v370
      %v598 = vunpack.c.l.b16 %v371
      %v599 = vunpack.c.h.b16 %v371
      %v600 = vunpack.c.l.b16 %v372
      %v601 = vunpack.c.h.b16 %v372
      %v602 = vunpack.c.l.b16 %v373
      %v603 = vunpack.c.h.b16 %v373
      %v604 = vunpack.c.l.b16 %v374
      %v605 = vunpack.c.h.b16 %v374
      %v606 = vunpack.c.l.b16 %v375
      %v607 = vunpack.c.h.b16 %v375
      %v608 = vunpack.c.l.b16 %v376
      %v609 = vunpack.c.h.b16 %v376
      %v610 = vunpack.c.l.b16 %v377
      %v611 = vunpack.c.h.b16 %v377
      %v612 = vunpack.c.l.b16 %v378
      %v613 = vunpack.c.h.b16 %v378
      %v614 = vunpack.c.l.b16 %v379
      %v615 = vunpack.c.h.b16 %v379
      %v616 = vunpack.c.l.b16 %v380
      %v617 = vunpack.c.h.b16 %v380
      %v618 = vunpack.c.l.b16 %v381
      %v619 = vunpack.c.h.b16 %v381
      %v620 = vunpack.c.l.b16 %v382
      %v621 = vunpack.c.h.b16 %v382
      %v622 = vunpack.c.l.b16 %v383
      %v623 = vunpack.c.h.b16 %v383
      %v624 = vunpack.c.l.b16 %v384
      %v625 = vunpack.c.h.b16 %v384
      %v626 = vunpack.c.l.b16 %v385
      %v627 = vunpack.c.h.b16 %v385
      %v628 = vunpack.c.l.b16 %v386
      %v629 = vunpack.c.h.b16 %v386
      %v630 = vunpack.c.l.b16 %v387
      %v631 = vunpack.c.h.b16 %v387
      %v632 = vunpack.c.l.b16 %v388
      %v633 = vunpack.c.h.b16 %v388
      %v634 = vunpack.c.l.b16 %v389
      %v635 = vunpack.c.h.b16 %v389
      %v636 = vunpack.c.l.b16 %v390
      %v637 = vunpack.c.h.b16 %v390
      %v638 = vunpack.c.l.b16 %v391
      %v639 = vunpack.c.h.b16 %v391
      %v640 = vunpack.c.l.b16 %v392
      %v641 = vunpack.c.h.b16 %v392
      %v642 = vunpack.c.l.b16 %v393
      %v643 = vunpack.c.h.b16 %v393
      %v644 = vunpack.c.l.b16 %v394
      %v645 = vunpack.c.h.b16 %v394
      %v646 = vunpack.c.l.b16 %v395
      %v647 = vunpack.c.h.b16 %v395
      %v648 = vunpack.c.l.b16 %v396
      %v649 = vunpack.c.h.b16 %v396
      %v650 = vunpack.c.l.b16 %v397
      %v651 = vunpack.c.h.b16 %v397
      %v652 = vunpack.c.l.b16 %v398
      %v653 = vunpack.c.h.b16 %v398
      %v654 = vunpack.c.l.b16 %v399
      %v655 = vunpack.c.h.b16 %v399
      %v656 = vpack.c.b16 %v532, %v528
      %v657 = vpack.c.b16 %v533, %v529
      %v658 = vpack.c.b16 %v534, %v530
      %v659 = vpack.c.b16 %v535, %v531
      %v660 = vpack.c.b16 %v540, %v536
      %v661 = vpack.c.b16 %v541, %v537
      %v662 = vpack.c.b16 %v542, %v538
      %v663 = vpack.c.b16 %v543, %v539
      %v664 = vpack.c.b16 %v548, %v544
      %v665 = vpack.c.b16 %v549, %v545
      %v666 = vpack.c.b16 %v550, %v546
      %v667 = vpack.c.b16 %v551, %v547
      %v668 = vpack.c.b16 %v556, %v552
      %v669 = vpack.c.b16 %v557, %v553
      %v670 = vpack.c.b16 %v558, %v554
      %v671 = vpack.c.b16 %v559, %v555
      %v672 = vpack.c.b16 %v564, %v560
      %v673 = vpack.c.b16 %v565, %v561
      %v674 = vpack.c.b16 %v566, %v562
      %v675 = vpack.c.b16 %v567, %v563
      %v676 = vpack.c.b16 %v572, %v568
      %v677 = vpack.c.b16 %v573, %v569
      %v678 = vpack.c.b16 %v574, %v570
      %v679 = vpack.c.b16 %v575, %v571
      %v680 = vpack.c.b16 %v580, %v576
      %v681 = vpack.c.b16 %v581, %v577
      %v682 = vpack.c.b16 %v582, %v578
      %v683 = vpack.c.b16 %v583, %v579
      %v684 = vpack.c.b16 %v588, %v584
      %v685 = vpack.c.b16 %v589, %v585
      %v686 = vpack.c.b16 %v590, %v586
      %v687 = vpack.c.b16 %v591, %v587
      %v688 = vpack.c.b16 %v596, %v592
      %v689 = vpack.c.b16 %v597, %v593
      %v690 = vpack.c.b16 %v598, %v594
      %v691 = vpack.c.b16 %v599, %v595
      %v692 = vpack.c.b16 %v604, %v600
      %v693 = vpack.c.b16 %v605, %v601
      %v694 = vpack.c.b16 %v606, %v602
      %v695 = vpack.c.b16 %v607, %v603
      %v696 = vpack.c.b16 %v612, %v608
      %v697 = vpack.c.b16 %v613, %v609
      %v698 = vpack.c.b16 %v614, %v610
      %v699 = vpack.c.b16 %v615, %v611
      %v700 = vpack.c.b16 %v620, %v616
      %v701 = vpack.c.b16 %v621, %v617
      %v702 = vpack.c.b16 %v622, %v618
      %v703 = vpack.c.b16 %v623, %v619
      %v704 = vpack.c.b16 %v628, %v624
      %v705 = vpack.c.b16 %v629, %v625
      %v706 = vpack.c.b16 %v630, %v626
      %v707 = vpack.c.b16 %v631, %v627
      %v708 = vpack.c.b16 %v636, %v632
      %v709 = vpack.c.b16 %v637, %v633
      %v710 = vpack.c.b16 %v638, %v634
      %v711 = vpack.c.b16 %v639, %v635
      %v712 = vpack.c.b16 %v644, %v640
      %v713 = vpack.c.b16 %v645, %v641
      %v714 = vpack.c.b16 %v646, %v642
      %v715 = vpack.c.b16 %v647, %v643
      %v716 = vpack.c.b16 %v652, %v648
      %v717 = vpack.c.b16 %v653, %v649
      %v718 = vpack.c.b16 %v654, %v650
      %v719 = vpack.c.b16 %v655, %v651
      %v848 = vunpack.c.l.b16 %v400
      %v849 = vunpack.c.l.b16 %v401
      %v850 = vunpack.c.l.b16 %v402
      %v851 = vunpack.c.l.b16 %v403
      %v852 = vunpack.c.l.b16 %v404
      %v853 = vunpack.c.l.b16 %v405
      %v854 = vunpack.c.l.b16 %v406
      %v855 = vunpack.c.l.b16 %v407
      %v856 = vunpack.c.l.b16 %v408
      %v857 = vunpack.c.l.b16 %v409
      %v858 = vunpack.c.l.b16 %v410
      %v859 = vunpack.c.l.b16 %v411
      %v860 = vunpack.c.l.b16 %v412
      %v861 = vunpack.c.l.b16 %v413
      %v862 = vunpack.c.l.b16 %v414
      %v863 = vunpack.c.l.b16 %v415
      %v864 = vunpack.c.l.b16 %v416
      %v865 = vunpack.c.l.b16 %v417
      %v866 = vunpack.c.l.b16 %v418
      %v867 = vunpack.c.l.b16 %v419
      %v868 = vunpack.c.l.b16 %v420
      %v869 = vunpack.c.l.b16 %v421
      %v870 = vunpack.c.l.b16 %v422
      %v871 = vunpack.c.l.b16 %v423
      %v872 = vunpack.c.l.b16 %v424
      %v873 = vunpack.c.l.b16 %v425
      %v874 = vunpack.c.l.b16 %v426
      %v875 = vunpack.c.l.b16 %v427
      %v876 = vunpack.c.l.b16 %v428
      %v877 = vunpack.c.l.b16 %v429
      %v878 = vunpack.c.l.b16 %v430
      %v879 = vunpack.c.l.b16 %v431
      %v880 = vunpack.c.l.b16 %v432
      %v881 = vunpack.c.l.b16 %v433
      %v882 = vunpack.c.l.b16 %v434
      %v883 = vunpack.c.l.b16 %v435
      %v884 = vunpack.c.l.b16 %v436
      %v885 = vunpack.c.l.b16 %v437
      %v886 = vunpack.c.l.b16 %v438
      %v887 = vunpack.c.l.b16 %v439
      %v888 = vunpack.c.l.b16 %v440
      %v889 = vunpack.c.l.b16 %v441
      %v890 = vunpack.c.l.b16 %v442
      %v891 = vunpack.c.l.b16 %v443
      %v892 = vunpack.c.l.b16 %v444
      %v893 = vunpack.c.l.b16 %v445
      %v894 = vunpack.c.l.b16 %v446
      %v895 = vunpack.c.l.b16 %v447
      %v896 = vunpack.c.l.b16 %v448
      %v897 = vunpack.c.l.b16 %v449
      %v898 = vunpack.c.l.b16 %v450
      %v899 = vunpack.c.l.b16 %v451
      %v900 = vunpack.c.l.b16 %v452
      %v901 = vunpack.c.l.b16 %v453
      %v902 = vunpack.c.l.b16 %v454
      %v903 = vunpack.c.l.b16 %v455
      %v904 = vunpack.c.l.b16 %v456
      %v905 = vunpack.c.l.b16 %v457
      %v906 = vunpack.c.l.b16 %v458
      %v907 = vunpack.c.l.b16 %v459
      %v908 = vunpack.c.l.b16 %v460
      %v909 = vunpack.c.l.b16 %v461
      %v910 = vunpack.c.l.b16 %v462
      %v911 = vunpack.c.l.b16 %v463
      %v912 = vpack.c.b16 %v849, %v848
      %v913 = vpack.c.b16 %v851, %v850
      %v914 = vpack.c.b16 %v853, %v852
      %v915 = vpack.c.b16 %v855, %v854
      %v916 = vpack.c.b16 %v857, %v856
      %v917 = vpack.c.b16 %v859, %v858
      %v918 = vpack.c.b16 %v861, %v860
      %v919 = vpack.c.b16 %v863, %v862
      %v920 = vpack.c.b16 %v865, %v864
      %v921 = vpack.c.b16 %v867, %v866
      %v922 = vpack.c.b16 %v869, %v868
      %v923 = vpack.c.b16 %v871, %v870
      %v924 = vpack.c.b16 %v873, %v872
      %v925 = vpack.c.b16 %v875, %v874
      %v926 = vpack.c.b16 %v877, %v876
      %v927 = vpack.c.b16 %v879, %v878
      %v928 = vpack.c.b16 %v881, %v880
      %v929 = vpack.c.b16 %v883, %v882
      %v930 = vpack.c.b16 %v885, %v884
      %v931 = vpack.c.b16 %v887, %v886
      %v932 = vpack.c.b16 %v889, %v888
      %v933 = vpack.c.b16 %v891, %v890
      %v934 = vpack.c.b16 %v893, %v892
      %v935 = vpack.c.b16 %v895, %v894
      %v936 = vpack.c.b16 %v897, %v896
      %v937 = vpack.c.b16 %v899, %v898
      %v938 = vpack.c.b16 %v901, %v900
      %v939 = vpack.c.b16 %v903, %v902
      %v940 = vpack.c.b16 %v905, %v904
      %v941 = vpack.c.b16 %v907, %v906
      %v942 = vpack.c.b16 %v909, %v908
      %v943 = vpack.c.b16 %v911, %v910
      %976 = vmatprep.subr.bf16.mxu0 0
      %977 = vmatpush1.bf16.msra.mxu0 %v919
      %978 = vmatprep.subr.bf16.mxu0 0
      %979 = vmatpush1.bf16.msra.mxu0 %v918
      %980 = vmatprep.subr.bf16.mxu0 0
      %981 = vmatpush1.bf16.msra.mxu0 %v917
      %982 = vmatprep.subr.bf16.mxu0 0
      %983 = vmatpush1.bf16.msra.mxu0 %v916
      %984 = vmatprep.subr.bf16.mxu0 0
      %985 = vmatpush1.bf16.msra.mxu0 %v915
      %986 = vmatprep.subr.bf16.mxu0 0
      %987 = vmatpush1.bf16.msra.mxu0 %v914
      %988 = vmatprep.subr.bf16.mxu0 0
      %989 = vmatpush1.bf16.msra.mxu0 %v913
      %990 = vmatprep.subr.bf16.mxu0 0
      %991 = vmatpush1.bf16.msra.mxu0 %v912
      %992 = vmatprep.subr.bf16.mxu0 0
      %993 = vmatpush2.bf16.msra.mxu0 %v927
      %994 = vmatprep.subr.bf16.mxu0 0
      %995 = vmatpush2.bf16.msra.mxu0 %v926
      %996 = vmatprep.subr.bf16.mxu0 0
      %997 = vmatpush2.bf16.msra.mxu0 %v925
      %998 = vmatprep.subr.bf16.mxu0 0
      %999 = vmatpush2.bf16.msra.mxu0 %v924
      %1000 = vmatprep.subr.bf16.mxu0 0
      %1001 = vmatpush2.bf16.msra.mxu0 %v923
      %1002 = vmatprep.subr.bf16.mxu0 0
      %1003 = vmatpush2.bf16.msra.mxu0 %v922
      %1004 = vmatprep.subr.bf16.mxu0 0
      %1005 = vmatpush2.bf16.msra.mxu0 %v921
      %1006 = vmatprep.subr.bf16.mxu0 0
      %1007 = vmatpush2.bf16.msra.mxu0 %v920
      %1008 = vmatprep.mubr.bf16.mxu0 %v657
      %1009 = vmatmul.mubr.bf16.gmra.mxu0 %v656
      %v1010 = vpop.f32.mrf.mxu0
      %v1011 = vadd.f32 0.0, %v1010
      %v1012 = vpop.f32.mrf.mxu0
      %v1013 = vpop.f32.mrf.mxu0
      %v1014 = vadd.f32 0.0, %v1013
      %v1015 = vpop.f32.mrf.mxu0
      %1016 = vmatprep.mubr.bf16.mxu0 %v661
      %1017 = vmatmul.mubr.bf16.gmra.mxu0 %v660
      %v1018 = vpop.f32.mrf.mxu0
      %v1019 = vadd.f32 0.0, %v1018
      %v1020 = vpop.f32.mrf.mxu0
      %v1021 = vpop.f32.mrf.mxu0
      %v1022 = vadd.f32 0.0, %v1021
      %v1023 = vpop.f32.mrf.mxu0
      %1024 = vmatprep.mubr.bf16.mxu0 %v665
      %1025 = vmatmul.mubr.bf16.gmra.mxu0 %v664
      %v1026 = vpop.f32.mrf.mxu0
      %v1027 = vadd.f32 0.0, %v1026
      %v1028 = vpop.f32.mrf.mxu0
      %v1029 = vpop.f32.mrf.mxu0
      %v1030 = vadd.f32 0.0, %v1029
      %v1031 = vpop.f32.mrf.mxu0
      %1032 = vmatprep.mubr.bf16.mxu0 %v669
      %1033 = vmatmul.mubr.bf16.gmra.mxu0 %v668
      %v1034 = vpop.f32.mrf.mxu0
      %v1035 = vadd.f32 0.0, %v1034
      %v1036 = vpop.f32.mrf.mxu0
      %v1037 = vpop.f32.mrf.mxu0
      %v1038 = vadd.f32 0.0, %v1037
      %v1039 = vpop.f32.mrf.mxu0
      %1040 = vmatprep.mubr.bf16.mxu0 %v673
      %1041 = vmatmul.mubr.bf16.gmra.mxu0 %v672
      %v1042 = vpop.f32.mrf.mxu0
      %v1043 = vadd.f32 0.0, %v1042
      %v1044 = vpop.f32.mrf.mxu0
      %v1045 = vpop.f32.mrf.mxu0
      %v1046 = vadd.f32 0.0, %v1045
      %v1047 = vpop.f32.mrf.mxu0
      %1048 = vmatprep.mubr.bf16.mxu0 %v677
      %1049 = vmatmul.mubr.bf16.gmra.mxu0 %v676
      %v1050 = vpop.f32.mrf.mxu0
      %v1051 = vadd.f32 0.0, %v1050
      %v1052 = vpop.f32.mrf.mxu0
      %v1053 = vpop.f32.mrf.mxu0
      %v1054 = vadd.f32 0.0, %v1053
      %v1055 = vpop.f32.mrf.mxu0
      %1056 = vmatprep.mubr.bf16.mxu0 %v681
      %1057 = vmatmul.mubr.bf16.gmra.mxu0 %v680
      %v1058 = vpop.f32.mrf.mxu0
      %v1059 = vadd.f32 0.0, %v1058
      %v1060 = vpop.f32.mrf.mxu0
      %v1061 = vpop.f32.mrf.mxu0
      %v1062 = vadd.f32 0.0, %v1061
      %v1063 = vpop.f32.mrf.mxu0
      %1064 = vmatprep.mubr.bf16.mxu0 %v685
      %1065 = vmatmul.mubr.bf16.gmra.mxu0 %v684
      %v1066 = vpop.f32.mrf.mxu0
      %v1067 = vadd.f32 0.0, %v1066
      %v1068 = vpop.f32.mrf.mxu0
      %v1069 = vpop.f32.mrf.mxu0
      %v1070 = vadd.f32 0.0, %v1069
      %v1071 = vpop.f32.mrf.mxu0
      %1072 = vmatprep.mubr.bf16.mxu0 %v689
      %1073 = vmatmul.mubr.bf16.gmra.mxu0 %v688
      %v1074 = vpop.f32.mrf.mxu0
      %v1075 = vadd.f32 0.0, %v1074
      %v1076 = vpop.f32.mrf.mxu0
      %v1077 = vpop.f32.mrf.mxu0
      %v1078 = vadd.f32 0.0, %v1077
      %v1079 = vpop.f32.mrf.mxu0
      %1080 = vmatprep.mubr.bf16.mxu0 %v693
      %1081 = vmatmul.mubr.bf16.gmra.mxu0 %v692
      %v1082 = vpop.f32.mrf.mxu0
      %v1083 = vadd.f32 0.0, %v1082
      %v1084 = vpop.f32.mrf.mxu0
      %v1085 = vpop.f32.mrf.mxu0
      %v1086 = vadd.f32 0.0, %v1085
      %v1087 = vpop.f32.mrf.mxu0
      %1088 = vmatprep.mubr.bf16.mxu0 %v697
      %1089 = vmatmul.mubr.bf16.gmra.mxu0 %v696
      %v1090 = vpop.f32.mrf.mxu0
      %v1091 = vadd.f32 0.0, %v1090
      %v1092 = vpop.f32.mrf.mxu0
      %v1093 = vpop.f32.mrf.mxu0
      %v1094 = vadd.f32 0.0, %v1093
      %v1095 = vpop.f32.mrf.mxu0
      %1096 = vmatprep.mubr.bf16.mxu0 %v701
      %1097 = vmatmul.mubr.bf16.gmra.mxu0 %v700
      %v1098 = vpop.f32.mrf.mxu0
      %v1099 = vadd.f32 0.0, %v1098
      %v1100 = vpop.f32.mrf.mxu0
      %v1101 = vpop.f32.mrf.mxu0
      %v1102 = vadd.f32 0.0, %v1101
      %v1103 = vpop.f32.mrf.mxu0
      %1104 = vmatprep.mubr.bf16.mxu0 %v705
      %1105 = vmatmul.mubr.bf16.gmra.mxu0 %v704
      %v1106 = vpop.f32.mrf.mxu0
      %v1107 = vadd.f32 0.0, %v1106
      %v1108 = vpop.f32.mrf.mxu0
      %v1109 = vpop.f32.mrf.mxu0
      %v1110 = vadd.f32 0.0, %v1109
      %v1111 = vpop.f32.mrf.mxu0
      %1112 = vmatprep.mubr.bf16.mxu0 %v709
      %1113 = vmatmul.mubr.bf16.gmra.mxu0 %v708
      %v1114 = vpop.f32.mrf.mxu0
      %v1115 = vadd.f32 0.0, %v1114
      %v1116 = vpop.f32.mrf.mxu0
      %v1117 = vpop.f32.mrf.mxu0
      %v1118 = vadd.f32 0.0, %v1117
      %v1119 = vpop.f32.mrf.mxu0
      %1120 = vmatprep.mubr.bf16.mxu0 %v713
      %1121 = vmatmul.mubr.bf16.gmra.mxu0 %v712
      %v1122 = vpop.f32.mrf.mxu0
      %v1123 = vadd.f32 0.0, %v1122
      %v1124 = vpop.f32.mrf.mxu0
      %v1125 = vpop.f32.mrf.mxu0
      %v1126 = vadd.f32 0.0, %v1125
      %v1127 = vpop.f32.mrf.mxu0
      %1128 = vmatprep.mubr.bf16.mxu0 %v717
      %1129 = vmatmul.mubr.bf16.gmra.mxu0 %v716
      %v1130 = vpop.f32.mrf.mxu0
      %v1131 = vadd.f32 0.0, %v1130
      %v1132 = vpop.f32.mrf.mxu0
      %v1133 = vpop.f32.mrf.mxu0
      %v1134 = vadd.f32 0.0, %v1133
      %v1135 = vpop.f32.mrf.mxu0
      %1136 = vdwg.mxu0
      %1137 = vmatprep.subr.bf16.mxu0 0
      %1138 = vmatpush1.bf16.msra.mxu0 %v935
      %1139 = vmatprep.subr.bf16.mxu0 0
      %1140 = vmatpush1.bf16.msra.mxu0 %v934
      %1141 = vmatprep.subr.bf16.mxu0 0
      %1142 = vmatpush1.bf16.msra.mxu0 %v933
      %1143 = vmatprep.subr.bf16.mxu0 0
      %1144 = vmatpush1.bf16.msra.mxu0 %v932
      %1145 = vmatprep.subr.bf16.mxu0 0
      %1146 = vmatpush1.bf16.msra.mxu0 %v931
      %1147 = vmatprep.subr.bf16.mxu0 0
      %1148 = vmatpush1.bf16.msra.mxu0 %v930
      %1149 = vmatprep.subr.bf16.mxu0 0
      %1150 = vmatpush1.bf16.msra.mxu0 %v929
      %1151 = vmatprep.subr.bf16.mxu0 0
      %1152 = vmatpush1.bf16.msra.mxu0 %v928
      %1153 = vmatprep.subr.bf16.mxu0 0
      %1154 = vmatpush2.bf16.msra.mxu0 %v943
      %1155 = vmatprep.subr.bf16.mxu0 0
      %1156 = vmatpush2.bf16.msra.mxu0 %v942
      %1157 = vmatprep.subr.bf16.mxu0 0
      %1158 = vmatpush2.bf16.msra.mxu0 %v941
      %1159 = vmatprep.subr.bf16.mxu0 0
      %1160 = vmatpush2.bf16.msra.mxu0 %v940
      %1161 = vmatprep.subr.bf16.mxu0 0
      %1162 = vmatpush2.bf16.msra.mxu0 %v939
      %1163 = vmatprep.subr.bf16.mxu0 0
      %1164 = vmatpush2.bf16.msra.mxu0 %v938
      %1165 = vmatprep.subr.bf16.mxu0 0
      %1166 = vmatpush2.bf16.msra.mxu0 %v937
      %1167 = vmatprep.subr.bf16.mxu0 0
      %1168 = vmatpush2.bf16.msra.mxu0 %v936
      %1169 = vmatprep.mubr.bf16.mxu0 %v659
      %1170 = vmatmul.mubr.bf16.gmra.mxu0 %v658
      %v1171 = vpop.f32.mrf.mxu0
      %v1172 = vadd.f32 %v1011, %v1171
      %v1173 = vpop.f32.mrf.mxu0
      %v1174 = vpop.f32.mrf.mxu0
      %v1175 = vadd.f32 %v1014, %v1174
      %v1176 = vpop.f32.mrf.mxu0
      %1177 = vmatprep.mubr.bf16.mxu0 %v663
      %1178 = vmatmul.mubr.bf16.gmra.mxu0 %v662
      %v1179 = vpop.f32.mrf.mxu0
      %v1180 = vadd.f32 %v1019, %v1179
      %v1181 = vpop.f32.mrf.mxu0
      %v1182 = vpop.f32.mrf.mxu0
      %v1183 = vadd.f32 %v1022, %v1182
      %v1184 = vpop.f32.mrf.mxu0
      %1185 = vmatprep.mubr.bf16.mxu0 %v667
      %1186 = vmatmul.mubr.bf16.gmra.mxu0 %v666
      %v1187 = vpop.f32.mrf.mxu0
      %v1188 = vadd.f32 %v1027, %v1187
      %v1189 = vpop.f32.mrf.mxu0
      %v1190 = vpop.f32.mrf.mxu0
      %v1191 = vadd.f32 %v1030, %v1190
      %v1192 = vpop.f32.mrf.mxu0
      %1193 = vmatprep.mubr.bf16.mxu0 %v671
      %1194 = vmatmul.mubr.bf16.gmra.mxu0 %v670
      %v1195 = vpop.f32.mrf.mxu0
      %v1196 = vadd.f32 %v1035, %v1195
      %v1197 = vpop.f32.mrf.mxu0
      %v1198 = vpop.f32.mrf.mxu0
      %v1199 = vadd.f32 %v1038, %v1198
      %v1200 = vpop.f32.mrf.mxu0
      %1201 = vmatprep.mubr.bf16.mxu0 %v675
      %1202 = vmatmul.mubr.bf16.gmra.mxu0 %v674
      %v1203 = vpop.f32.mrf.mxu0
      %v1204 = vadd.f32 %v1043, %v1203
      %v1205 = vpop.f32.mrf.mxu0
      %v1206 = vpop.f32.mrf.mxu0
      %v1207 = vadd.f32 %v1046, %v1206
      %v1208 = vpop.f32.mrf.mxu0
      %1209 = vmatprep.mubr.bf16.mxu0 %v679
      %1210 = vmatmul.mubr.bf16.gmra.mxu0 %v678
      %v1211 = vpop.f32.mrf.mxu0
      %v1212 = vadd.f32 %v1051, %v1211
      %v1213 = vpop.f32.mrf.mxu0
      %v1214 = vpop.f32.mrf.mxu0
      %v1215 = vadd.f32 %v1054, %v1214
      %v1216 = vpop.f32.mrf.mxu0
      %1217 = vmatprep.mubr.bf16.mxu0 %v683
      %1218 = vmatmul.mubr.bf16.gmra.mxu0 %v682
      %v1219 = vpop.f32.mrf.mxu0
      %v1220 = vadd.f32 %v1059, %v1219
      %v1221 = vpop.f32.mrf.mxu0
      %v1222 = vpop.f32.mrf.mxu0
      %v1223 = vadd.f32 %v1062, %v1222
      %v1224 = vpop.f32.mrf.mxu0
      %1225 = vmatprep.mubr.bf16.mxu0 %v687
      %1226 = vmatmul.mubr.bf16.gmra.mxu0 %v686
      %v1227 = vpop.f32.mrf.mxu0
      %v1228 = vadd.f32 %v1067, %v1227
      %v1229 = vpop.f32.mrf.mxu0
      %v1230 = vpop.f32.mrf.mxu0
      %v1231 = vadd.f32 %v1070, %v1230
      %v1232 = vpop.f32.mrf.mxu0
      %1233 = vmatprep.mubr.bf16.mxu0 %v691
      %1234 = vmatmul.mubr.bf16.gmra.mxu0 %v690
      %v1235 = vpop.f32.mrf.mxu0
      %v1236 = vadd.f32 %v1075, %v1235
      %v1237 = vpop.f32.mrf.mxu0
      %v1238 = vpop.f32.mrf.mxu0
      %v1239 = vadd.f32 %v1078, %v1238
      %v1240 = vpop.f32.mrf.mxu0
      %1241 = vmatprep.mubr.bf16.mxu0 %v695
      %1242 = vmatmul.mubr.bf16.gmra.mxu0 %v694
      %v1243 = vpop.f32.mrf.mxu0
      %v1244 = vadd.f32 %v1083, %v1243
      %v1245 = vpop.f32.mrf.mxu0
      %v1246 = vpop.f32.mrf.mxu0
      %v1247 = vadd.f32 %v1086, %v1246
      %v1248 = vpop.f32.mrf.mxu0
      %1249 = vmatprep.mubr.bf16.mxu0 %v699
      %1250 = vmatmul.mubr.bf16.gmra.mxu0 %v698
      %v1251 = vpop.f32.mrf.mxu0
      %v1252 = vadd.f32 %v1091, %v1251
      %v1253 = vpop.f32.mrf.mxu0
      %v1254 = vpop.f32.mrf.mxu0
      %v1255 = vadd.f32 %v1094, %v1254
      %v1256 = vpop.f32.mrf.mxu0
      %1257 = vmatprep.mubr.bf16.mxu0 %v703
      %1258 = vmatmul.mubr.bf16.gmra.mxu0 %v702
      %v1259 = vpop.f32.mrf.mxu0
      %v1260 = vadd.f32 %v1099, %v1259
      %v1261 = vpop.f32.mrf.mxu0
      %v1262 = vpop.f32.mrf.mxu0
      %v1263 = vadd.f32 %v1102, %v1262
      %v1264 = vpop.f32.mrf.mxu0
      %1265 = vmatprep.mubr.bf16.mxu0 %v707
      %1266 = vmatmul.mubr.bf16.gmra.mxu0 %v706
      %v1267 = vpop.f32.mrf.mxu0
      %v1268 = vadd.f32 %v1107, %v1267
      %v1269 = vpop.f32.mrf.mxu0
      %v1270 = vpop.f32.mrf.mxu0
      %v1271 = vadd.f32 %v1110, %v1270
      %v1272 = vpop.f32.mrf.mxu0
      %1273 = vmatprep.mubr.bf16.mxu0 %v711
      %1274 = vmatmul.mubr.bf16.gmra.mxu0 %v710
      %v1275 = vpop.f32.mrf.mxu0
      %v1276 = vadd.f32 %v1115, %v1275
      %v1277 = vpop.f32.mrf.mxu0
      %v1278 = vpop.f32.mrf.mxu0
      %v1279 = vadd.f32 %v1118, %v1278
      %v1280 = vpop.f32.mrf.mxu0
      %1281 = vmatprep.mubr.bf16.mxu0 %v715
      %1282 = vmatmul.mubr.bf16.gmra.mxu0 %v714
      %v1283 = vpop.f32.mrf.mxu0
      %v1284 = vadd.f32 %v1123, %v1283
      %v1285 = vpop.f32.mrf.mxu0
      %v1286 = vpop.f32.mrf.mxu0
      %v1287 = vadd.f32 %v1126, %v1286
      %v1288 = vpop.f32.mrf.mxu0
      %1289 = vmatprep.mubr.bf16.mxu0 %v719
      %1290 = vmatmul.mubr.bf16.gmra.mxu0 %v718
      %v1291 = vpop.f32.mrf.mxu0
      %v1292 = vadd.f32 %v1131, %v1291
      %v1293 = vpop.f32.mrf.mxu0
      %v1294 = vpop.f32.mrf.mxu0
      %v1295 = vadd.f32 %v1134, %v1294
      %v1296 = vpop.f32.mrf.mxu0
      %1297 = vdwg.mxu0
      %v1298 = vadd.f32 %v304, %v1172
      %v1299 = vadd.f32 %v305, %v1175
      %v1300 = vadd.f32 %v306, %v1180
      %v1301 = vadd.f32 %v307, %v1183
      %v1302 = vadd.f32 %v308, %v1188
      %v1303 = vadd.f32 %v309, %v1191
      %v1304 = vadd.f32 %v310, %v1196
      %v1305 = vadd.f32 %v311, %v1199
      %v1306 = vadd.f32 %v312, %v1204
      %v1307 = vadd.f32 %v313, %v1207
      %v1308 = vadd.f32 %v314, %v1212
      %v1309 = vadd.f32 %v315, %v1215
      %v1310 = vadd.f32 %v316, %v1220
      %v1311 = vadd.f32 %v317, %v1223
      %v1312 = vadd.f32 %v318, %v1228
      %v1313 = vadd.f32 %v319, %v1231
      %v1314 = vadd.f32 %v320, %v1236
      %v1315 = vadd.f32 %v321, %v1239
      %v1316 = vadd.f32 %v322, %v1244
      %v1317 = vadd.f32 %v323, %v1247
      %v1318 = vadd.f32 %v324, %v1252
      %v1319 = vadd.f32 %v325, %v1255
      %v1320 = vadd.f32 %v326, %v1260
      %v1321 = vadd.f32 %v327, %v1263
      %v1322 = vadd.f32 %v328, %v1268
      %v1323 = vadd.f32 %v329, %v1271
      %v1324 = vadd.f32 %v330, %v1276
      %v1325 = vadd.f32 %v331, %v1279
      %v1326 = vadd.f32 %v332, %v1284
      %v1327 = vadd.f32 %v333, %v1287
      %v1328 = vadd.f32 %v334, %v1292
      %v1329 = vadd.f32 %v335, %v1295
      %1330 = vst [vmem:[#allocation2] sm:$0xff] %v1298
      %1331 = vst [vmem:[#allocation2 + $0x8] sm:$0xff] %v1299
      %1332 = vst [vmem:[#allocation2 + $0x10] sm:$0xff] %v1300
      %1333 = vst [vmem:[#allocation2 + $0x18] sm:$0xff] %v1301
      %1334 = vst [vmem:[#allocation2 + $0x20] sm:$0xff] %v1302
      %1335 = vst [vmem:[#allocation2 + $0x28] sm:$0xff] %v1303
      %1336 = vst [vmem:[#allocation2 + $0x30] sm:$0xff] %v1304
      %1337 = vst [vmem:[#allocation2 + $0x38] sm:$0xff] %v1305
      %1338 = vst [vmem:[#allocation2 + $0x40] sm:$0xff] %v1306
      %1339 = vst [vmem:[#allocation2 + $0x48] sm:$0xff] %v1307
      %1340 = vst [vmem:[#allocation2 + $0x50] sm:$0xff] %v1308
      %1341 = vst [vmem:[#allocation2 + $0x58] sm:$0xff] %v1309
      %1342 = vst [vmem:[#allocation2 + $0x60] sm:$0xff] %v1310
      %1343 = vst [vmem:[#allocation2 + $0x68] sm:$0xff] %v1311
      %1344 = vst [vmem:[#allocation2 + $0x70] sm:$0xff] %v1312
      %1345 = vst [vmem:[#allocation2 + $0x78] sm:$0xff] %v1313
      %1346 = vst [vmem:[#allocation2 + $0x80] sm:$0xff] %v1314
      %1347 = vst [vmem:[#allocation2 + $0x88] sm:$0xff] %v1315
      %1348 = vst [vmem:[#allocation2 + $0x90] sm:$0xff] %v1316
      %1349 = vst [vmem:[#allocation2 + $0x98] sm:$0xff] %v1317
      %1350 = vst [vmem:[#allocation2 + $0xa0] sm:$0xff] %v1318
      %1351 = vst [vmem:[#allocation2 + $0xa8] sm:$0xff] %v1319
      %1352 = vst [vmem:[#allocation2 + $0xb0] sm:$0xff] %v1320
      %1353 = vst [vmem:[#allocation2 + $0xb8] sm:$0xff] %v1321
      %1354 = vst [vmem:[#allocation2 + $0xc0] sm:$0xff] %v1322
      %1355 = vst [vmem:[#allocation2 + $0xc8] sm:$0xff] %v1323
      %1356 = vst [vmem:[#allocation2 + $0xd0] sm:$0xff] %v1324
      %1357 = vst [vmem:[#allocation2 + $0xd8] sm:$0xff] %v1325
      %1358 = vst [vmem:[#allocation2 + $0xe0] sm:$0xff] %v1326
      %1359 = vst [vmem:[#allocation2 + $0xe8] sm:$0xff] %v1327
      %1360 = vst [vmem:[#allocation2 + $0xf0] sm:$0xff] %v1328
      %1361 = vst [vmem:[#allocation2 + $0xf8] sm:$0xff] %v1329
      // Predicated region
      $region37: #{forward.16} parent=31 // pred_check
        %p1362 = pneg %p268
      $region38: #{forward.16} parent=31 // pred_check_branch
        %1364 = sbr.rel (%p1362) target = $region40
      $region39: #{forward.16} parent=31 // pred_region
        %v1365 = vld [vmem:[#allocation2] sm:$0xff]
        %v1366 = vld [vmem:[#allocation2 + $0x8] sm:$0xff]
        %v1367 = vld [vmem:[#allocation2 + $0x10] sm:$0xff]
        %v1368 = vld [vmem:[#allocation2 + $0x18] sm:$0xff]
        %v1369 = vld [vmem:[#allocation2 + $0x20] sm:$0xff]
        %v1370 = vld [vmem:[#allocation2 + $0x28] sm:$0xff]
        %v1371 = vld [vmem:[#allocation2 + $0x30] sm:$0xff]
        %v1372 = vld [vmem:[#allocation2 + $0x38] sm:$0xff]
        %v1373 = vld [vmem:[#allocation2 + $0x40] sm:$0xff]
        %v1374 = vld [vmem:[#allocation2 + $0x48] sm:$0xff]
        %v1375 = vld [vmem:[#allocation2 + $0x50] sm:$0xff]
        %v1376 = vld [vmem:[#allocation2 + $0x58] sm:$0xff]
        %v1377 = vld [vmem:[#allocation2 + $0x60] sm:$0xff]
        %v1378 = vld [vmem:[#allocation2 + $0x68] sm:$0xff]
        %v1379 = vld [vmem:[#allocation2 + $0x70] sm:$0xff]
        %v1380 = vld [vmem:[#allocation2 + $0x78] sm:$0xff]
        %v1381 = vld [vmem:[#allocation2 + $0x80] sm:$0xff]
        %v1382 = vld [vmem:[#allocation2 + $0x88] sm:$0xff]
        %v1383 = vld [vmem:[#allocation2 + $0x90] sm:$0xff]
        %v1384 = vld [vmem:[#allocation2 + $0x98] sm:$0xff]
        %v1385 = vld [vmem:[#allocation2 + $0xa0] sm:$0xff]
        %v1386 = vld [vmem:[#allocation2 + $0xa8] sm:$0xff]
        %v1387 = vld [vmem:[#allocation2 + $0xb0] sm:$0xff]
        %v1388 = vld [vmem:[#allocation2 + $0xb8] sm:$0xff]
        %v1389 = vld [vmem:[#allocation2 + $0xc0] sm:$0xff]
        %v1390 = vld [vmem:[#allocation2 + $0xc8] sm:$0xff]
        %v1391 = vld [vmem:[#allocation2 + $0xd0] sm:$0xff]
        %v1392 = vld [vmem:[#allocation2 + $0xd8] sm:$0xff]
        %v1393 = vld [vmem:[#allocation2 + $0xe0] sm:$0xff]
        %v1394 = vld [vmem:[#allocation2 + $0xe8] sm:$0xff]
        %v1395 = vld [vmem:[#allocation2 + $0xf0] sm:$0xff]
        %v1396 = vld [vmem:[#allocation2 + $0xf8] sm:$0xff]
        %v1397 = vld [vmem:[%s257] sm:$0x1]
        %v1399 = vlaneseq
        %v1400 = vshrl.u32 %v1399, 7
        %v1401 = vsub.s32 0, %v1400
        %v1402 = vrot.slane %v1397, %v1401
        %v1404 = vadd.f32 %v1365, %v1402
        %v1405 = vadd.f32 %v1366, %v1402
        %v1406 = vadd.f32 %v1367, %v1402
        %v1407 = vadd.f32 %v1368, %v1402
        %v1408 = vadd.f32 %v1369, %v1402
        %v1409 = vadd.f32 %v1370, %v1402
        %v1410 = vadd.f32 %v1371, %v1402
        %v1411 = vadd.f32 %v1372, %v1402
        %v1412 = vadd.f32 %v1373, %v1402
        %v1413 = vadd.f32 %v1374, %v1402
        %v1414 = vadd.f32 %v1375, %v1402
        %v1415 = vadd.f32 %v1376, %v1402
        %v1416 = vadd.f32 %v1377, %v1402
        %v1417 = vadd.f32 %v1378, %v1402
        %v1418 = vadd.f32 %v1379, %v1402
        %v1419 = vadd.f32 %v1380, %v1402
        %v1420 = vadd.f32 %v1381, %v1402
        %v1421 = vadd.f32 %v1382, %v1402
        %v1422 = vadd.f32 %v1383, %v1402
        %v1423 = vadd.f32 %v1384, %v1402
        %v1424 = vadd.f32 %v1385, %v1402
        %v1425 = vadd.f32 %v1386, %v1402
        %v1426 = vadd.f32 %v1387, %v1402
        %v1427 = vadd.f32 %v1388, %v1402
        %v1428 = vadd.f32 %v1389, %v1402
        %v1429 = vadd.f32 %v1390, %v1402
        %v1430 = vadd.f32 %v1391, %v1402
        %v1431 = vadd.f32 %v1392, %v1402
        %v1432 = vadd.f32 %v1393, %v1402
        %v1433 = vadd.f32 %v1394, %v1402
        %v1434 = vadd.f32 %v1395, %v1402
        %v1435 = vadd.f32 %v1396, %v1402
        %v1436 = vmax.f32 %v1404, 0.0
        %v1437 = vmax.f32 %v1405, 0.0
        %v1438 = vmax.f32 %v1406, 0.0
        %v1439 = vmax.f32 %v1407, 0.0
        %v1440 = vmax.f32 %v1408, 0.0
        %v1441 = vmax.f32 %v1409, 0.0
        %v1442 = vmax.f32 %v1410, 0.0
        %v1443 = vmax.f32 %v1411, 0.0
        %v1444 = vmax.f32 %v1412, 0.0
        %v1445 = vmax.f32 %v1413, 0.0
        %v1446 = vmax.f32 %v1414, 0.0
        %v1447 = vmax.f32 %v1415, 0.0
        %v1448 = vmax.f32 %v1416, 0.0
        %v1449 = vmax.f32 %v1417, 0.0
        %v1450 = vmax.f32 %v1418, 0.0
        %v1451 = vmax.f32 %v1419, 0.0
        %v1452 = vmax.f32 %v1420, 0.0
        %v1453 = vmax.f32 %v1421, 0.0
        %v1454 = vmax.f32 %v1422, 0.0
        %v1455 = vmax.f32 %v1423, 0.0
        %v1456 = vmax.f32 %v1424, 0.0
        %v1457 = vmax.f32 %v1425, 0.0
        %v1458 = vmax.f32 %v1426, 0.0
        %v1459 = vmax.f32 %v1427, 0.0
        %v1460 = vmax.f32 %v1428, 0.0
        %v1461 = vmax.f32 %v1429, 0.0
        %v1462 = vmax.f32 %v1430, 0.0
        %v1463 = vmax.f32 %v1431, 0.0
        %v1464 = vmax.f32 %v1432, 0.0
        %v1465 = vmax.f32 %v1433, 0.0
        %v1466 = vmax.f32 %v1434, 0.0
        %v1467 = vmax.f32 %v1435, 0.0
        %v1468 = vpack.c.bf16 %v1437, %v1436
        %v1469 = vpack.c.bf16 %v1439, %v1438
        %v1470 = vpack.c.bf16 %v1441, %v1440
        %v1471 = vpack.c.bf16 %v1443, %v1442
        %v1472 = vpack.c.bf16 %v1445, %v1444
        %v1473 = vpack.c.bf16 %v1447, %v1446
        %v1474 = vpack.c.bf16 %v1449, %v1448
        %v1475 = vpack.c.bf16 %v1451, %v1450
        %v1476 = vpack.c.bf16 %v1453, %v1452
        %v1477 = vpack.c.bf16 %v1455, %v1454
        %v1478 = vpack.c.bf16 %v1457, %v1456
        %v1479 = vpack.c.bf16 %v1459, %v1458
        %v1480 = vpack.c.bf16 %v1461, %v1460
        %v1481 = vpack.c.bf16 %v1463, %v1462
        %v1482 = vpack.c.bf16 %v1465, %v1464
        %v1483 = vpack.c.bf16 %v1467, %v1466
        %v1500 = vunpack.c.l.b16 %v1468
        %v1501 = vunpack.c.h.b16 %v1468
        %v1502 = vunpack.c.l.b16 %v1469
        %v1503 = vunpack.c.h.b16 %v1469
        %v1504 = vunpack.c.l.b16 %v1470
        %v1505 = vunpack.c.h.b16 %v1470
        %v1506 = vunpack.c.l.b16 %v1471
        %v1507 = vunpack.c.h.b16 %v1471
        %v1508 = vunpack.c.l.b16 %v1472
        %v1509 = vunpack.c.h.b16 %v1472
        %v1510 = vunpack.c.l.b16 %v1473
        %v1511 = vunpack.c.h.b16 %v1473
        %v1512 = vunpack.c.l.b16 %v1474
        %v1513 = vunpack.c.h.b16 %v1474
        %v1514 = vunpack.c.l.b16 %v1475
        %v1515 = vunpack.c.h.b16 %v1475
        %v1516 = vunpack.c.l.b16 %v1476
        %v1517 = vunpack.c.h.b16 %v1476
        %v1518 = vunpack.c.l.b16 %v1477
        %v1519 = vunpack.c.h.b16 %v1477
        %v1520 = vunpack.c.l.b16 %v1478
        %v1521 = vunpack.c.h.b16 %v1478
        %v1522 = vunpack.c.l.b16 %v1479
        %v1523 = vunpack.c.h.b16 %v1479
        %v1524 = vunpack.c.l.b16 %v1480
        %v1525 = vunpack.c.h.b16 %v1480
        %v1526 = vunpack.c.l.b16 %v1481
        %v1527 = vunpack.c.h.b16 %v1481
        %v1528 = vunpack.c.l.b16 %v1482
        %v1529 = vunpack.c.h.b16 %v1482
        %v1530 = vunpack.c.l.b16 %v1483
        %v1531 = vunpack.c.h.b16 %v1483
        %v1532 = vpack.c.b16 %v1500, %v1500
        %v1533 = vpack.c.b16 %v1501, %v1501
        %v1534 = vpack.c.b16 %v1502, %v1502
        %v1535 = vpack.c.b16 %v1503, %v1503
        %v1536 = vpack.c.b16 %v1504, %v1504
        %v1537 = vpack.c.b16 %v1505, %v1505
        %v1538 = vpack.c.b16 %v1506, %v1506
        %v1539 = vpack.c.b16 %v1507, %v1507
        %v1540 = vpack.c.b16 %v1508, %v1508
        %v1541 = vpack.c.b16 %v1509, %v1509
        %v1542 = vpack.c.b16 %v1510, %v1510
        %v1543 = vpack.c.b16 %v1511, %v1511
        %v1544 = vpack.c.b16 %v1512, %v1512
        %v1545 = vpack.c.b16 %v1513, %v1513
        %v1546 = vpack.c.b16 %v1514, %v1514
        %v1547 = vpack.c.b16 %v1515, %v1515
        %v1548 = vpack.c.b16 %v1516, %v1516
        %v1549 = vpack.c.b16 %v1517, %v1517
        %v1550 = vpack.c.b16 %v1518, %v1518
        %v1551 = vpack.c.b16 %v1519, %v1519
        %v1552 = vpack.c.b16 %v1520, %v1520
        %v1553 = vpack.c.b16 %v1521, %v1521
        %v1554 = vpack.c.b16 %v1522, %v1522
        %v1555 = vpack.c.b16 %v1523, %v1523
        %v1556 = vpack.c.b16 %v1524, %v1524
        %v1557 = vpack.c.b16 %v1525, %v1525
        %v1558 = vpack.c.b16 %v1526, %v1526
        %v1559 = vpack.c.b16 %v1527, %v1527
        %v1560 = vpack.c.b16 %v1528, %v1528
        %v1561 = vpack.c.b16 %v1529, %v1529
        %v1562 = vpack.c.b16 %v1530, %v1530
        %v1563 = vpack.c.b16 %v1531, %v1531
        %1596 = vst [vmem:[%s265] sm:$0xf] %v1532
        %1597 = vst [vmem:[%s265 + $0x4] sm:$0xf] %v1533
        %1598 = vst [vmem:[%s265 + $0x8] sm:$0xf] %v1534
        %1599 = vst [vmem:[%s265 + $0xc] sm:$0xf] %v1535
        %1600 = vst [vmem:[%s265 + $0x10] sm:$0xf] %v1536
        %1601 = vst [vmem:[%s265 + $0x14] sm:$0xf] %v1537
        %1602 = vst [vmem:[%s265 + $0x18] sm:$0xf] %v1538
        %1603 = vst [vmem:[%s265 + $0x1c] sm:$0xf] %v1539
        %1604 = vst [vmem:[%s265 + $0x20] sm:$0xf] %v1540
        %1605 = vst [vmem:[%s265 + $0x24] sm:$0xf] %v1541
        %1606 = vst [vmem:[%s265 + $0x28] sm:$0xf] %v1542
        %1607 = vst [vmem:[%s265 + $0x2c] sm:$0xf] %v1543
        %1608 = vst [vmem:[%s265 + $0x30] sm:$0xf] %v1544
        %1609 = vst [vmem:[%s265 + $0x34] sm:$0xf] %v1545
        %1610 = vst [vmem:[%s265 + $0x38] sm:$0xf] %v1546
        %1611 = vst [vmem:[%s265 + $0x3c] sm:$0xf] %v1547
        %1612 = vst [vmem:[%s265 + $0x40] sm:$0xf] %v1548
        %1613 = vst [vmem:[%s265 + $0x44] sm:$0xf] %v1549
        %1614 = vst [vmem:[%s265 + $0x48] sm:$0xf] %v1550
        %1615 = vst [vmem:[%s265 + $0x4c] sm:$0xf] %v1551
        %1616 = vst [vmem:[%s265 + $0x50] sm:$0xf] %v1552
        %1617 = vst [vmem:[%s265 + $0x54] sm:$0xf] %v1553
        %1618 = vst [vmem:[%s265 + $0x58] sm:$0xf] %v1554
        %1619 = vst [vmem:[%s265 + $0x5c] sm:$0xf] %v1555
        %1620 = vst [vmem:[%s265 + $0x60] sm:$0xf] %v1556
        %1621 = vst [vmem:[%s265 + $0x64] sm:$0xf] %v1557
        %1622 = vst [vmem:[%s265 + $0x68] sm:$0xf] %v1558
        %1623 = vst [vmem:[%s265 + $0x6c] sm:$0xf] %v1559
        %1624 = vst [vmem:[%s265 + $0x70] sm:$0xf] %v1560
        %1625 = vst [vmem:[%s265 + $0x74] sm:$0xf] %v1561
        %1626 = vst [vmem:[%s265 + $0x78] sm:$0xf] %v1562
        %1627 = vst [vmem:[%s265 + $0x7c] sm:$0xf] %v1563
      $region40: #{forward.16} parent=31 // pred_fallthru
        _
      %s1628 = smul.u32 32, %s19
      %p1629 = scmp.lt.s32.totalorder %s1628, 95
      %s1630 = scalar_select %p1629, %s1628, 95
      %p1631 = scmp.lt.s32.totalorder %s20, 0
      %s1632 = scalar_select %p1631, %s20, 0
      %s1633 = sadd.s32 %s1632, %s1630
      %s1634 = smul.addr %s1633, 4
      %s1635 = scalar_lea.vmem %s3, %s1634
      // Predicated region
      $region41: #{forward.16} parent=31 // pred_check
        %p1636 = pneg %p135
      $region42: #{forward.16} parent=31 // pred_check_branch
        %1638 = sbr.rel (%p1636) target = $region44
      $region43: #{forward.16} parent=31 // pred_region
        %s1639 = smul.u32 32, %s19
      $region44: #{forward.16} parent=31 // pred_fallthru
        _
    $region32: #{forward.16} parent=5 // pred_fallthru
      _
    %p1640 = scmp.le.s32.totalorder 2, %s9
    // Predicated region
    $region45: #{forward.16} parent=5 // pred_check
      %p1641 = pneg %p1640
    $region46: #{forward.16} parent=5 // pred_check_branch
      %1643 = sbr.rel (%p1641) target = $region48
    $region47: #{forward.16} parent=5 // pred_region
      %s1644 = ssub.s32 %s9, 2
      // Predicated region
      $region49: #{forward.16} parent=47 // pred_check
        %p1645 = pneg %p141
      $region50: #{forward.16} parent=47 // pred_check_branch
        %1647 = sbr.rel (%p1645) target = $region52
      $region51: #{forward.16} parent=47 // pred_region
        %s1648 = smul.u32 32, %s22
        %p1649 = scmp.lt.s32.totalorder %s1648, 95
        %s1650 = scalar_select %p1649, %s1648, 95
        %p1651 = scmp.lt.s32.totalorder %s23, 0
        %s1652 = scalar_select %p1651, %s23, 0
        %s1653 = sadd.s32 %s1652, %s1650
        %s1654 = smul.addr %s1653, 4
        %s1655 = scalar_lea.vmem %s3, %s1654
      $region52: #{forward.16} parent=47 // pred_fallthru
        _
    $region48: #{forward.16} parent=5 // pred_fallthru
      _
  $region6: #{forward.16} parent=0 // loop_footer
    %s13 = sadd.s32 1, %s9
  $region7: #{forward.16} parent=0 // loop_footer_branch
    %8 = sbr.rel target = $region3
  $region8: #{forward.16} parent=0 // loop_exit
    _

// kernel: forward.18
$region0: #{forward.18}
  #allocation0 [shape = 'u32[]', space=smem, size = 0x4, offset = 0x4, fixed_abs, tag = 'smem constant byte address 0x4 - core index']
  #allocation1 [shape = 'u32[144,128]{1,0:T(1,128)}', space=vmem, size = 0x12000, scoped, tag = 'internal scratch']
  #allocation2 [shape = 'f32[256,128]{1,0:T(8,128)}', space=vmem, size = 0x20000, scoped, tag = 'scratch operand']
  %s0 = inlined_call_operand.vmem [shape: bf16[512,640], index: 0, kind: input, shape index: {}]
  %s1 = inlined_call_operand.vmem [shape: bf16[640,128], index: 1, kind: input, shape index: {}]
  %s2 = inlined_call_operand.vmem [shape: f32[1,128], index: 2, kind: input, shape index: {}]
  %s3 = inlined_call_operand.vmem [shape: bf16[512,128], index: 3, kind: output, shape index: {}]
  %s4 = sld [smem:[#allocation0]]
  $region53: #{forward.18} parent=0
    _
  %s6 = ssub.s32 1, %s4
  %s7 = scalar_select 0, %s6, %s4
  loop: start=0, step=1, limit=4
  $region2: #{forward.18} parent=0 // loop_pre_header
    _
  $region3: #{forward.18} parent=0 // loop_header
    %s9 = sphi 0, %s13
    %p10 = scmp.ge.s32.totalorder %s9, 4
    %s16 = sphi 0, %s35
    %s17 = sphi 0, %s31
    %s18 = sphi 0, %s27
    %s19 = sphi 0, %s16
    %s20 = sphi 0, %s17
    %s21 = sphi 0, %s18
    %s22 = sphi 0, %s19
    %s23 = sphi 0, %s20
    %s24 = sphi 0, %s21
    %s40 = sphi 0, %s42
    %s43 = sphi 0, %s40
    %s44 = sphi 0, %s43
    %s60 = sphi 0, %s44
    %s68 = sphi 0, %s70
    %s71 = sphi 0, %s68
    %s72 = sphi 0, %s71
    %s88 = sphi 0, %s72
    %s94 = sphi 0, %s96
    %s97 = sphi 0, %s94
    %s98 = sphi 0, %s97
    %s114 = sphi 0, %s98
    %s122 = sphi 0, %s124
    %s125 = sphi 0, %s122
    %s126 = sphi 0, %s125
    %s142 = sphi 0, %s126
  $region4: #{forward.18} parent=0 // loop_header_branch
    %12 = sbr.rel (%p10) target = $region8
  $region5: #{forward.18} parent=0 // loop_body
    %s14 = ssub.s32 %s9, 1
    %s15 = ssub.s32 %s9, 2
    %s25 = sadd.s32 1, %s18
    %p26 = scmp.ge.s32.totalorder %s25, 1
    %s27 = scalar_select %p26, 0, %s25
    %s28 = sadd.s32 1, %s17
    %s29 = scalar_select %p26, %s28, %s17
    %p30 = scmp.ge.s32.totalorder %s29, 1
    %s31 = scalar_select %p30, 0, %s29
    %s32 = sadd.s32 1, %s16
    %s33 = scalar_select %p30, %s32, %s16
    %p34 = scmp.ge.s32.totalorder %s33, 2
    %s35 = scalar_select %p34, 0, %s33
    %s36 = ssub.s32 %s16, %s35
    %s37 = ssub.s32 %s18, %s27
    %s38 = sor.u32 %s36, %s37
    %p39 = scmp.eq.s32.totalorder %s38, 0
    %s41 = sadd.s32 %s40, 1
    %s42 = scalar_select %p39, %s40, %s41
    %p45 = pneg %p39
    %p46 = scmp.eq.s32.totalorder %s9, 1
    %p47 = por %p45, %p46
    %p48 = scmp.ne.s32.totalorder %s40, %s43
    %p49 = scmp.eq.s32.totalorder %s9, 0
    %p50 = por %p48, %p49
    %p51 = scmp.ne.s32.totalorder %s40, %s43
    %p52 = scmp.eq.s32.totalorder %s14, 1
    %p53 = por %p51, %p52
    %p54 = scmp.ne.s32.totalorder %s43, %s44
    %p55 = scmp.eq.s32.totalorder %s14, 0
    %p56 = por %p54, %p55
    %p57 = scmp.ne.s32.totalorder %s43, %s44
    %p58 = scmp.eq.s32.totalorder %s15, 1
    %p59 = por %p57, %p58
    %p61 = scmp.ne.s32.totalorder %s44, %s60
    %p62 = scmp.eq.s32.totalorder %s15, 0
    %p63 = por %p61, %p62
    %s64 = ssub.s32 %s18, %s27
    %s65 = ssub.s32 %s17, %s31
    %s66 = sor.u32 %s64, %s65
    %p67 = scmp.eq.s32.totalorder %s66, 0
    %s69 = sadd.s32 %s68, 1
    %s70 = scalar_select %p67, %s68, %s69
    %p73 = pneg %p67
    %p74 = scmp.eq.s32.totalorder %s9, 1
    %p75 = por %p73, %p74
    %p76 = scmp.ne.s32.totalorder %s68, %s71
    %p77 = scmp.eq.s32.totalorder %s9, 0
    %p78 = por %p76, %p77
    %p79 = scmp.ne.s32.totalorder %s68, %s71
    %p80 = scmp.eq.s32.totalorder %s14, 1
    %p81 = por %p79, %p80
    %p82 = scmp.ne.s32.totalorder %s71, %s72
    %p83 = scmp.eq.s32.totalorder %s14, 0
    %p84 = por %p82, %p83
    %p85 = scmp.ne.s32.totalorder %s71, %s72
    %p86 = scmp.eq.s32.totalorder %s15, 1
    %p87 = por %p85, %p86
    %p89 = scmp.ne.s32.totalorder %s72, %s88
    %p90 = scmp.eq.s32.totalorder %s15, 0
    %p91 = por %p89, %p90
    %s92 = ssub.s32 %s17, %s31
    %p93 = scmp.eq.s32.totalorder %s92, 0
    %s95 = sadd.s32 %s94, 1
    %s96 = scalar_select %p93, %s94, %s95
    %p99 = pneg %p93
    %p100 = scmp.eq.s32.totalorder %s9, 1
    %p101 = por %p99, %p100
    %p102 = scmp.ne.s32.totalorder %s94, %s97
    %p103 = scmp.eq.s32.totalorder %s9, 0
    %p104 = por %p102, %p103
    %p105 = scmp.ne.s32.totalorder %s94, %s97
    %p106 = scmp.eq.s32.totalorder %s14, 1
    %p107 = por %p105, %p106
    %p108 = scmp.ne.s32.totalorder %s97, %s98
    %p109 = scmp.eq.s32.totalorder %s14, 0
    %p110 = por %p108, %p109
    %p111 = scmp.ne.s32.totalorder %s97, %s98
    %p112 = scmp.eq.s32.totalorder %s15, 1
    %p113 = por %p111, %p112
    %p115 = scmp.ne.s32.totalorder %s98, %s114
    %p116 = scmp.eq.s32.totalorder %s15, 0
    %p117 = por %p115, %p116
    %s118 = ssub.s32 %s16, %s35
    %s119 = ssub.s32 %s17, %s31
    %s120 = sor.u32 %s118, %s119
    %p121 = scmp.eq.s32.totalorder %s120, 0
    %s123 = sadd.s32 %s122, 1
    %s124 = scalar_select %p121, %s122, %s123
    %p127 = pneg %p121
    %p128 = scmp.eq.s32.totalorder %s9, 1
    %p129 = por %p127, %p128
    %p130 = scmp.ne.s32.totalorder %s122, %s125
    %p131 = scmp.eq.s32.totalorder %s9, 0
    %p132 = por %p130, %p131
    %p133 = scmp.ne.s32.totalorder %s122, %s125
    %p134 = scmp.eq.s32.totalorder %s14, 1
    %p135 = por %p133, %p134
    %p136 = scmp.ne.s32.totalorder %s125, %s126
    %p137 = scmp.eq.s32.totalorder %s14, 0
    %p138 = por %p136, %p137
    %p139 = scmp.ne.s32.totalorder %s125, %s126
    %p140 = scmp.eq.s32.totalorder %s15, 1
    %p141 = por %p139, %p140
    %p143 = scmp.ne.s32.totalorder %s126, %s142
    %p144 = scmp.eq.s32.totalorder %s15, 0
    %p145 = por %p143, %p144
    %p146 = scmp.le.s32.totalorder 1, %s9
    %p147 = scmp.lt.s32.totalorder %s9, 3
    %p148 = pnand %p146, %p147
    %p149 = pneg %p148
    // Predicated region
    $region9: #{forward.18} parent=5 // pred_check
      _
    $region10: #{forward.18} parent=5 // pred_check_branch
      %151 = sbr.rel (%p148) target = $region12
    $region11: #{forward.18} parent=5 // pred_region
      %s152 = ssub.s32 %s9, 1
      // Predicated region
      $region13: #{forward.18} parent=11 // pred_check
        %p153 = pneg %p84
      $region14: #{forward.18} parent=11 // pred_check_branch
        %155 = sbr.rel (%p153) target = $region16
      $region15: #{forward.18} parent=11 // pred_region
        %s156 = smul.u32 80, %s21
        %p157 = scmp.lt.s32.totalorder %s156, 79
        %s158 = scalar_select %p157, %s156, 79
        %p159 = scmp.lt.s32.totalorder %s20, 0
        %s160 = scalar_select %p159, %s20, 0
        %s161 = sadd.s32 %s160, %s158
        %s162 = smul.addr %s161, 4
        %s163 = scalar_lea.vmem %s1, %s162
        %s164 = smul.u32 80, %s21
      $region16: #{forward.18} parent=11 // pred_fallthru
        _
      // Predicated region
      $region17: #{forward.18} parent=11 // pred_check
        %p165 = pneg %p110
      $region18: #{forward.18} parent=11 // pred_check_branch
        %167 = sbr.rel (%p165) target = $region20
      $region19: #{forward.18} parent=11 // pred_region
        %p168 = scmp.lt.s32.totalorder %s20, 0
        %s169 = scalar_select %p168, %s20, 0
        %s170 = scalar_lea.vmem %s2, %s169
      $region20: #{forward.18} parent=11 // pred_fallthru
        _
    $region12: #{forward.18} parent=5 // pred_fallthru
      _
    %p171 = scmp.lt.s32.totalorder %s9, 2
    // Predicated region
    $region21: #{forward.18} parent=5 // pred_check
      %p172 = pneg %p171
    $region22: #{forward.18} parent=5 // pred_check_branch
      %174 = sbr.rel (%p172) target = $region24
    $region23: #{forward.18} parent=5 // pred_region
      // Predicated region
      $region25: #{forward.18} parent=23 // pred_check
        %p175 = pneg %p50
      $region26: #{forward.18} parent=23 // pred_check_branch
        %177 = sbr.rel (%p175) target = $region28
      $region27: #{forward.18} parent=23 // pred_region
        %s178 = smul.u32 32, %s16
        %s179 = smul.u32 5, %s18
        %p180 = scmp.lt.s32.totalorder %s178, 63
        %s181 = scalar_select %p180, %s178, 63
        %p182 = scmp.lt.s32.totalorder %s179, 4
        %s183 = scalar_select %p182, %s179, 4
        %s184 = smul.addr %s181, 5
        %s185 = sadd.s32 %s183, %s184
        %s186 = smul.addr %s185, 4
        %s187 = scalar_lea.vmem %s0, %s186
        %s188 = smul.u32 32, %s16
        %s189 = smul.u32 5, %s18
      $region28: #{forward.18} parent=23 // pred_fallthru
        _
    $region24: #{forward.18} parent=5 // pred_fallthru
      _
    %p190 = scmp.le.s32.totalorder 1, %s9
    %p191 = scmp.lt.s32.totalorder %s9, 3
    %p192 = pnand %p190, %p191
    %p193 = pneg %p192
    // Predicated region
    $region29: #{forward.18} parent=5 // pred_check
      _
    $region30: #{forward.18} parent=5 // pred_check_branch
      %195 = sbr.rel (%p192) target = $region32
    $region31: #{forward.18} parent=5 // pred_region
      %s196 = ssub.s32 %s9, 1
      %s197 = smul.u32 32, %s19
      %s198 = smul.u32 5, %s21
      %p199 = scmp.lt.s32.totalorder %s197, 63
      %s200 = scalar_select %p199, %s197, 63
      %p201 = scmp.lt.s32.totalorder %s198, 4
      %s202 = scalar_select %p201, %s198, 4
      %s203 = smul.addr %s200, 5
      %s204 = sadd.s32 %s202, %s203
      %s205 = smul.addr %s204, 4
      %s206 = scalar_lea.vmem %s0, %s205
      %p207 = pneg %p56
      %p208 = pneg %p53
      %s209 = smul.u32 80, %s21
      %p210 = scmp.lt.s32.totalorder %s209, 79
      %s211 = scalar_select %p210, %s209, 79
      %p212 = scmp.lt.s32.totalorder %s20, 0
      %s213 = scalar_select %p212, %s20, 0
      %s214 = sadd.s32 %s213, %s211
      %s215 = smul.addr %s214, 4
      %s216 = scalar_lea.vmem %s1, %s215
      %p217 = pneg %p84
      %p218 = pneg %p81
      %p219 = scmp.lt.s32.totalorder %s20, 0
      %s220 = scalar_select %p219, %s20, 0
      %s221 = scalar_lea.vmem %s2, %s220
      %p222 = pneg %p110
      %p223 = pneg %p107
      %p224 = pneg %p138
      %p225 = pneg %p135
      %s226 = smul.u32 32, %s19
      %p227 = scmp.lt.s32.totalorder %s226, 63
      %s228 = scalar_select %p227, %s226, 63
      %p229 = scmp.lt.s32.totalorder %s20, 0
      %s230 = scalar_select %p229, %s20, 0
      %s231 = sadd.s32 %s230, %s228
      %s232 = smul.addr %s231, 4
      %s233 = scalar_lea.vmem %s3, %s232
      %s234 = smul.u32 32, %s19
      %s235 = smul.u32 5, %s21
      %p236 = scmp.lt.s32.totalorder %s234, 63
      %s237 = scalar_select %p236, %s234, 63
      %p238 = scmp.lt.s32.totalorder %s235, 4
      %s239 = scalar_select %p238, %s235, 4
      %s240 = smul.addr %s237, 5
      %s241 = sadd.s32 %s239, %s240
      %s242 = smul.addr %s241, 4
      %s243 = scalar_lea.vmem %s0, %s242
      %s244 = smul.u32 32, %s19
      %s245 = smul.u32 5, %s21
      %s246 = smul.u32 80, %s21
      %p247 = scmp.lt.s32.totalorder %s246, 79
      %s248 = scalar_select %p247, %s246, 79
      %p249 = scmp.lt.s32.totalorder %s20, 0
      %s250 = scalar_select %p249, %s20, 0
      %s251 = sadd.s32 %s250, %s248
      %s252 = smul.addr %s251, 4
      %s253 = scalar_lea.vmem %s1, %s252
      %s254 = smul.u32 80, %s21
      %p255 = scmp.lt.s32.totalorder %s20, 0
      %s256 = scalar_select %p255, %s20, 0
      %s257 = scalar_lea.vmem %s2, %s256
      %s258 = smul.u32 32, %s19
      %p259 = scmp.lt.s32.totalorder %s258, 63
      %s260 = scalar_select %p259, %s258, 63
      %p261 = scmp.lt.s32.totalorder %s20, 0
      %s262 = scalar_select %p261, %s20, 0
      %s263 = sadd.s32 %s262, %s260
      %s264 = smul.addr %s263, 4
      %s265 = scalar_lea.vmem %s3, %s264
      %s266 = smul.u32 32, %s19
      %p268 = scmp.eq.s32.totalorder %s21, 0
      // Predicated region
      $region33: #{forward.18} parent=31 // pred_check
        %p269 = pneg %p268
      $region34: #{forward.18} parent=31 // pred_check_branch
        %271 = sbr.rel (%p269) target = $region36
      $region35: #{forward.18} parent=31 // pred_region
        %272 = vst [vmem:[#allocation2] sm:$0xff] 0.0
        %273 = vst [vmem:[#allocation2 + $0x8] sm:$0xff] 0.0
        %274 = vst [vmem:[#allocation2 + $0x10] sm:$0xff] 0.0
        %275 = vst [vmem:[#allocation2 + $0x18] sm:$0xff] 0.0
        %276 = vst [vmem:[#allocation2 + $0x20] sm:$0xff] 0.0
        %277 = vst [vmem:[#allocation2 + $0x28] sm:$0xff] 0.0
        %278 = vst [vmem:[#allocation2 + $0x30] sm:$0xff] 0.0
        %279 = vst [vmem:[#allocation2 + $0x38] sm:$0xff] 0.0
        %280 = vst [vmem:[#allocation2 + $0x40] sm:$0xff] 0.0
        %281 = vst [vmem:[#allocation2 + $0x48] sm:$0xff] 0.0
        %282 = vst [vmem:[#allocation2 + $0x50] sm:$0xff] 0.0
        %283 = vst [vmem:[#allocation2 + $0x58] sm:$0xff] 0.0
        %284 = vst [vmem:[#allocation2 + $0x60] sm:$0xff] 0.0
        %285 = vst [vmem:[#allocation2 + $0x68] sm:$0xff] 0.0
        %286 = vst [vmem:[#allocation2 + $0x70] sm:$0xff] 0.0
        %287 = vst [vmem:[#allocation2 + $0x78] sm:$0xff] 0.0
        %288 = vst [vmem:[#allocation2 + $0x80] sm:$0xff] 0.0
        %289 = vst [vmem:[#allocation2 + $0x88] sm:$0xff] 0.0
        %290 = vst [vmem:[#allocation2 + $0x90] sm:$0xff] 0.0
        %291 = vst [vmem:[#allocation2 + $0x98] sm:$0xff] 0.0
        %292 = vst [vmem:[#allocation2 + $0xa0] sm:$0xff] 0.0
        %293 = vst [vmem:[#allocation2 + $0xa8] sm:$0xff] 0.0
        %294 = vst [vmem:[#allocation2 + $0xb0] sm:$0xff] 0.0
        %295 = vst [vmem:[#allocation2 + $0xb8] sm:$0xff] 0.0
        %296 = vst [vmem:[#allocation2 + $0xc0] sm:$0xff] 0.0
        %297 = vst [vmem:[#allocation2 + $0xc8] sm:$0xff] 0.0
        %298 = vst [vmem:[#allocation2 + $0xd0] sm:$0xff] 0.0
        %299 = vst [vmem:[#allocation2 + $0xd8] sm:$0xff] 0.0
        %300 = vst [vmem:[#allocation2 + $0xe0] sm:$0xff] 0.0
        %301 = vst [vmem:[#allocation2 + $0xe8] sm:$0xff] 0.0
        %302 = vst [vmem:[#allocation2 + $0xf0] sm:$0xff] 0.0
        %303 = vst [vmem:[#allocation2 + $0xf8] sm:$0xff] 0.0
      $region36: #{forward.18} parent=31 // pred_fallthru
        _
      %v304 = vld [vmem:[#allocation2] sm:$0xff]
      %v305 = vld [vmem:[#allocation2 + $0x8] sm:$0xff]
      %v306 = vld [vmem:[#allocation2 + $0x10] sm:$0xff]
      %v307 = vld [vmem:[#allocation2 + $0x18] sm:$0xff]
      %v308 = vld [vmem:[#allocation2 + $0x20] sm:$0xff]
      %v309 = vld [vmem:[#allocation2 + $0x28] sm:$0xff]
      %v310 = vld [vmem:[#allocation2 + $0x30] sm:$0xff]
      %v311 = vld [vmem:[#allocation2 + $0x38] sm:$0xff]
      %v312 = vld [vmem:[#allocation2 + $0x40] sm:$0xff]
      %v313 = vld [vmem:[#allocation2 + $0x48] sm:$0xff]
      %v314 = vld [vmem:[#allocation2 + $0x50] sm:$0xff]
      %v315 = vld [vmem:[#allocation2 + $0x58] sm:$0xff]
      %v316 = vld [vmem:[#allocation2 + $0x60] sm:$0xff]
      %v317 = vld [vmem:[#allocation2 + $0x68] sm:$0xff]
      %v318 = vld [vmem:[#allocation2 + $0x70] sm:$0xff]
      %v319 = vld [vmem:[#allocation2 + $0x78] sm:$0xff]
      %v320 = vld [vmem:[#allocation2 + $0x80] sm:$0xff]
      %v321 = vld [vmem:[#allocation2 + $0x88] sm:$0xff]
      %v322 = vld [vmem:[#allocation2 + $0x90] sm:$0xff]
      %v323 = vld [vmem:[#allocation2 + $0x98] sm:$0xff]
      %v324 = vld [vmem:[#allocation2 + $0xa0] sm:$0xff]
      %v325 = vld [vmem:[#allocation2 + $0xa8] sm:$0xff]
      %v326 = vld [vmem:[#allocation2 + $0xb0] sm:$0xff]
      %v327 = vld [vmem:[#allocation2 + $0xb8] sm:$0xff]
      %v328 = vld [vmem:[#allocation2 + $0xc0] sm:$0xff]
      %v329 = vld [vmem:[#allocation2 + $0xc8] sm:$0xff]
      %v330 = vld [vmem:[#allocation2 + $0xd0] sm:$0xff]
      %v331 = vld [vmem:[#allocation2 + $0xd8] sm:$0xff]
      %v332 = vld [vmem:[#allocation2 + $0xe0] sm:$0xff]
      %v333 = vld [vmem:[#allocation2 + $0xe8] sm:$0xff]
      %v334 = vld [vmem:[#allocation2 + $0xf0] sm:$0xff]
      %v335 = vld [vmem:[#allocation2 + $0xf8] sm:$0xff]
      %v336 = vld [vmem:[%s243] sm:$0xff]
      %v337 = vld [vmem:[%s243 + $0x8] sm:$0xff]
      %v338 = vld [vmem:[%s243 + $0x10] sm:$0xf]
      %v339 = vld [vmem:[%s243 + $0x14] sm:$0xff]
      %v340 = vld [vmem:[%s243 + $0x1c] sm:$0xff]
      %v341 = vld [vmem:[%s243 + $0x24] sm:$0xf]
      %v342 = vld [vmem:[%s243 + $0x28] sm:$0xff]
      %v343 = vld [vmem:[%s243 + $0x30] sm:$0xff]
      %v344 = vld [vmem:[%s243 + $0x38] sm:$0xf]
      %v345 = vld [vmem:[%s243 + $0x3c] sm:$0xff]
      %v346 = vld [vmem:[%s243 + $0x44] sm:$0xff]
      %v347 = vld [vmem:[%s243 + $0x4c] sm:$0xf]
      %v348 = vld [vmem:[%s243 + $0x50] sm:$0xff]
      %v349 = vld [vmem:[%s243 + $0x58] sm:$0xff]
      %v350 = vld [vmem:[%s243 + $0x60] sm:$0xf]
      %v351 = vld [vmem:[%s243 + $0x64] sm:$0xff]
      %v352 = vld [vmem:[%s243 + $0x6c] sm:$0xff]
      %v353 = vld [vmem:[%s243 + $0x74] sm:$0xf]
      %v354 = vld [vmem:[%s243 + $0x78] sm:$0xff]
      %v355 = vld [vmem:[%s243 + $0x80] sm:$0xff]
      %v356 = vld [vmem:[%s243 + $0x88] sm:$0xf]
      %v357 = vld [vmem:[%s243 + $0x8c] sm:$0xff]
      %v358 = vld [vmem:[%s243 + $0x94] sm:$0xff]
      %v359 = vld [vmem:[%s243 + $0x9c] sm:$0xf]
      %v360 = vld [vmem:[%s243 + $0xa0] sm:$0xff]
      %v361 = vld [vmem:[%s243 + $0xa8] sm:$0xff]
      %v362 = vld [vmem:[%s243 + $0xb0] sm:$0xf]
      %v363 = vld [vmem:[%s243 + $0xb4] sm:$0xff]
      %v364 = vld [vmem:[%s243 + $0xbc] sm:$0xff]
      %v365 = vld [vmem:[%s243 + $0xc4] sm:$0xf]
      %v366 = vld [vmem:[%s243 + $0xc8] sm:$0xff]
      %v367 = vld [vmem:[%s243 + $0xd0] sm:$0xff]
      %v368 = vld [vmem:[%s243 + $0xd8] sm:$0xf]
      %v369 = vld [vmem:[%s243 + $0xdc] sm:$0xff]
      %v370 = vld [vmem:[%s243 + $0xe4] sm:$0xff]
      %v371 = vld [vmem:[%s243 + $0xec] sm:$0xf]
      %v372 = vld [vmem:[%s243 + $0xf0] sm:$0xff]
      %v373 = vld [vmem:[%s243 + $0xf8] sm:$0xff]
      %v374 = vld [vmem:[%s243 + $0x100] sm:$0xf]
      %v375 = vld [vmem:[%s243 + $0x104] sm:$0xff]
      %v376 = vld [vmem:[%s243 + $0x10c] sm:$0xff]
      %v377 = vld [vmem:[%s243 + $0x114] sm:$0xf]
      %v378 = vld [vmem:[%s243 + $0x118] sm:$0xff]
      %v379 = vld [vmem:[%s243 + $0x120] sm:$0xff]
      %v380 = vld [vmem:[%s243 + $0x128] sm:$0xf]
      %v381 = vld [vmem:[%s243 + $0x12c] sm:$0xff]
      %v382 = vld [vmem:[%s243 + $0x134] sm:$0xff]
      %v383 = vld [vmem:[%s243 + $0x13c] sm:$0xf]
      %v384 = vld [vmem:[%s243 + $0x140] sm:$0xff]
      %v385 = vld [vmem:[%s243 + $0x148] sm:$0xff]
      %v386 = vld [vmem:[%s243 + $0x150] sm:$0xf]
      %v387 = vld [vmem:[%s243 + $0x154] sm:$0xff]
      %v388 = vld [vmem:[%s243 + $0x15c] sm:$0xff]
      %v389 = vld [vmem:[%s243 + $0x164] sm:$0xf]
      %v390 = vld [vmem:[%s243 + $0x168] sm:$0xff]
      %v391 = vld [vmem:[%s243 + $0x170] sm:$0xff]
      %v392 = vld [vmem:[%s243 + $0x178] sm:$0xf]
      %v393 = vld [vmem:[%s243 + $0x17c] sm:$0xff]
      %v394 = vld [vmem:[%s243 + $0x184] sm:$0xff]
      %v395 = vld [vmem:[%s243 + $0x18c] sm:$0xf]
      %v396 = vld [vmem:[%s243 + $0x190] sm:$0xff]
      %v397 = vld [vmem:[%s243 + $0x198] sm:$0xff]
      %v398 = vld [vmem:[%s243 + $0x1a0] sm:$0xf]
      %v399 = vld [vmem:[%s243 + $0x1a4] sm:$0xff]
      %v400 = vld [vmem:[%s243 + $0x1ac] sm:$0xff]
      %v401 = vld [vmem:[%s243 + $0x1b4] sm:$0xf]
      %v402 = vld [vmem:[%s243 + $0x1b8] sm:$0xff]
      %v403 = vld [vmem:[%s243 + $0x1c0] sm:$0xff]
      %v404 = vld [vmem:[%s243 + $0x1c8] sm:$0xf]
      %v405 = vld [vmem:[%s243 + $0x1cc] sm:$0xff]
      %v406 = vld [vmem:[%s243 + $0x1d4] sm:$0xff]
      %v407 = vld [vmem:[%s243 + $0x1dc] sm:$0xf]
      %v408 = vld [vmem:[%s243 + $0x1e0] sm:$0xff]
      %v409 = vld [vmem:[%s243 + $0x1e8] sm:$0xff]
      %v410 = vld [vmem:[%s243 + $0x1f0] sm:$0xf]
      %v411 = vld [vmem:[%s243 + $0x1f4] sm:$0xff]
      %v412 = vld [vmem:[%s243 + $0x1fc] sm:$0xff]
      %v413 = vld [vmem:[%s243 + $0x204] sm:$0xf]
      %v414 = vld [vmem:[%s243 + $0x208] sm:$0xff]
      %v415 = vld [vmem:[%s243 + $0x210] sm:$0xff]
      %v416 = vld [vmem:[%s243 + $0x218] sm:$0xf]
      %v417 = vld [vmem:[%s243 + $0x21c] sm:$0xff]
      %v418 = vld [vmem:[%s243 + $0x224] sm:$0xff]
      %v419 = vld [vmem:[%s243 + $0x22c] sm:$0xf]
      %v420 = vld [vmem:[%s243 + $0x230] sm:$0xff]
      %v421 = vld [vmem:[%s243 + $0x238] sm:$0xff]
      %v422 = vld [vmem:[%s243 + $0x240] sm:$0xf]
      %v423 = vld [vmem:[%s243 + $0x244] sm:$0xff]
      %v424 = vld [vmem:[%s243 + $0x24c] sm:$0xff]
      %v425 = vld [vmem:[%s243 + $0x254] sm:$0xf]
      %v426 = vld [vmem:[%s243 + $0x258] sm:$0xff]
      %v427 = vld [vmem:[%s243 + $0x260] sm:$0xff]
      %v428 = vld [vmem:[%s243 + $0x268] sm:$0xf]
      %v429 = vld [vmem:[%s243 + $0x26c] sm:$0xff]
      %v430 = vld [vmem:[%s243 + $0x274] sm:$0xff]
      %v431 = vld [vmem:[%s243 + $0x27c] sm:$0xf]
      %v432 = vld [vmem:[%s253] sm:$0xf]
      %v433 = vld [vmem:[%s253 + $0x4] sm:$0xf]
      %v434 = vld [vmem:[%s253 + $0x8] sm:$0xf]
      %v435 = vld [vmem:[%s253 + $0xc] sm:$0xf]
      %v436 = vld [vmem:[%s253 + $0x10] sm:$0xf]
      %v437 = vld [vmem:[%s253 + $0x14] sm:$0xf]
      %v438 = vld [vmem:[%s253 + $0x18] sm:$0xf]
      %v439 = vld [vmem:[%s253 + $0x1c] sm:$0xf]
      %v440 = vld [vmem:[%s253 + $0x20] sm:$0xf]
      %v441 = vld [vmem:[%s253 + $0x24] sm:$0xf]
      %v442 = vld [vmem:[%s253 + $0x28] sm:$0xf]
      %v443 = vld [vmem:[%s253 + $0x2c] sm:$0xf]
      %v444 = vld [vmem:[%s253 + $0x30] sm:$0xf]
      %v445 = vld [vmem:[%s253 + $0x34] sm:$0xf]
      %v446 = vld [vmem:[%s253 + $0x38] sm:$0xf]
      %v447 = vld [vmem:[%s253 + $0x3c] sm:$0xf]
      %v448 = vld [vmem:[%s253 + $0x40] sm:$0xf]
      %v449 = vld [vmem:[%s253 + $0x44] sm:$0xf]
      %v450 = vld [vmem:[%s253 + $0x48] sm:$0xf]
      %v451 = vld [vmem:[%s253 + $0x4c] sm:$0xf]
      %v452 = vld [vmem:[%s253 + $0x50] sm:$0xf]
      %v453 = vld [vmem:[%s253 + $0x54] sm:$0xf]
      %v454 = vld [vmem:[%s253 + $0x58] sm:$0xf]
      %v455 = vld [vmem:[%s253 + $0x5c] sm:$0xf]
      %v456 = vld [vmem:[%s253 + $0x60] sm:$0xf]
      %v457 = vld [vmem:[%s253 + $0x64] sm:$0xf]
      %v458 = vld [vmem:[%s253 + $0x68] sm:$0xf]
      %v459 = vld [vmem:[%s253 + $0x6c] sm:$0xf]
      %v460 = vld [vmem:[%s253 + $0x70] sm:$0xf]
      %v461 = vld [vmem:[%s253 + $0x74] sm:$0xf]
      %v462 = vld [vmem:[%s253 + $0x78] sm:$0xf]
      %v463 = vld [vmem:[%s253 + $0x7c] sm:$0xf]
      %v464 = vld [vmem:[%s253 + $0x80] sm:$0xf]
      %v465 = vld [vmem:[%s253 + $0x84] sm:$0xf]
      %v466 = vld [vmem:[%s253 + $0x88] sm:$0xf]
      %v467 = vld [vmem:[%s253 + $0x8c] sm:$0xf]
      %v468 = vld [vmem:[%s253 + $0x90] sm:$0xf]
      %v469 = vld [vmem:[%s253 + $0x94] sm:$0xf]
      %v470 = vld [vmem:[%s253 + $0x98] sm:$0xf]
      %v471 = vld [vmem:[%s253 + $0x9c] sm:$0xf]
      %v472 = vld [vmem:[%s253 + $0xa0] sm:$0xf]
      %v473 = vld [vmem:[%s253 + $0xa4] sm:$0xf]
      %v474 = vld [vmem:[%s253 + $0xa8] sm:$0xf]
      %v475 = vld [vmem:[%s253 + $0xac] sm:$0xf]
      %v476 = vld [vmem:[%s253 + $0xb0] sm:$0xf]
      %v477 = vld [vmem:[%s253 + $0xb4] sm:$0xf]
      %v478 = vld [vmem:[%s253 + $0xb8] sm:$0xf]
      %v479 = vld [vmem:[%s253 + $0xbc] sm:$0xf]
      %v480 = vld [vmem:[%s253 + $0xc0] sm:$0xf]
      %v481 = vld [vmem:[%s253 + $0xc4] sm:$0xf]
      %v482 = vld [vmem:[%s253 + $0xc8] sm:$0xf]
      %v483 = vld [vmem:[%s253 + $0xcc] sm:$0xf]
      %v484 = vld [vmem:[%s253 + $0xd0] sm:$0xf]
      %v485 = vld [vmem:[%s253 + $0xd4] sm:$0xf]
      %v486 = vld [vmem:[%s253 + $0xd8] sm:$0xf]
      %v487 = vld [vmem:[%s253 + $0xdc] sm:$0xf]
      %v488 = vld [vmem:[%s253 + $0xe0] sm:$0xf]
      %v489 = vld [vmem:[%s253 + $0xe4] sm:$0xf]
      %v490 = vld [vmem:[%s253 + $0xe8] sm:$0xf]
      %v491 = vld [vmem:[%s253 + $0xec] sm:$0xf]
      %v492 = vld [vmem:[%s253 + $0xf0] sm:$0xf]
      %v493 = vld [vmem:[%s253 + $0xf4] sm:$0xf]
      %v494 = vld [vmem:[%s253 + $0xf8] sm:$0xf]
      %v495 = vld [vmem:[%s253 + $0xfc] sm:$0xf]
      %v496 = vld [vmem:[%s253 + $0x100] sm:$0xf]
      %v497 = vld [vmem:[%s253 + $0x104] sm:$0xf]
      %v498 = vld [vmem:[%s253 + $0x108] sm:$0xf]
      %v499 = vld [vmem:[%s253 + $0x10c] sm:$0xf]
      %v500 = vld [vmem:[%s253 + $0x110] sm:$0xf]
      %v501 = vld [vmem:[%s253 + $0x114] sm:$0xf]
      %v502 = vld [vmem:[%s253 + $0x118] sm:$0xf]
      %v503 = vld [vmem:[%s253 + $0x11c] sm:$0xf]
      %v504 = vld [vmem:[%s253 + $0x120] sm:$0xf]
      %v505 = vld [vmem:[%s253 + $0x124] sm:$0xf]
      %v506 = vld [vmem:[%s253 + $0x128] sm:$0xf]
      %v507 = vld [vmem:[%s253 + $0x12c] sm:$0xf]
      %v508 = vld [vmem:[%s253 + $0x130] sm:$0xf]
      %v509 = vld [vmem:[%s253 + $0x134] sm:$0xf]
      %v510 = vld [vmem:[%s253 + $0x138] sm:$0xf]
      %v511 = vld [vmem:[%s253 + $0x13c] sm:$0xf]
      %v608 = vunpack.c.l.b16 %v336
      %v609 = vunpack.c.h.b16 %v336
      %v610 = vunpack.c.l.b16 %v337
      %v611 = vunpack.c.h.b16 %v337
      %v612 = vunpack.c.l.b16 %v338
      %v613 = vunpack.c.l.b16 %v339
      %v614 = vunpack.c.h.b16 %v339
      %v615 = vunpack.c.l.b16 %v340
      %v616 = vunpack.c.h.b16 %v340
      %v617 = vunpack.c.l.b16 %v341
      %v618 = vunpack.c.l.b16 %v342
      %v619 = vunpack.c.h.b16 %v342
      %v620 = vunpack.c.l.b16 %v343
      %v621 = vunpack.c.h.b16 %v343
      %v622 = vunpack.c.l.b16 %v344
      %v623 = vunpack.c.l.b16 %v345
      %v624 = vunpack.c.h.b16 %v345
      %v625 = vunpack.c.l.b16 %v346
      %v626 = vunpack.c.h.b16 %v346
      %v627 = vunpack.c.l.b16 %v347
      %v628 = vunpack.c.l.b16 %v348
      %v629 = vunpack.c.h.b16 %v348
      %v630 = vunpack.c.l.b16 %v349
      %v631 = vunpack.c.h.b16 %v349
      %v632 = vunpack.c.l.b16 %v350
      %v633 = vunpack.c.l.b16 %v351
      %v634 = vunpack.c.h.b16 %v351
      %v635 = vunpack.c.l.b16 %v352
      %v636 = vunpack.c.h.b16 %v352
      %v637 = vunpack.c.l.b16 %v353
      %v638 = vunpack.c.l.b16 %v354
      %v639 = vunpack.c.h.b16 %v354
      %v640 = vunpack.c.l.b16 %v355
      %v641 = vunpack.c.h.b16 %v355
      %v642 = vunpack.c.l.b16 %v356
      %v643 = vunpack.c.l.b16 %v357
      %v644 = vunpack.c.h.b16 %v357
      %v645 = vunpack.c.l.b16 %v358
      %v646 = vunpack.c.h.b16 %v358
      %v647 = vunpack.c.l.b16 %v359
      %v648 = vunpack.c.l.b16 %v360
      %v649 = vunpack.c.h.b16 %v360
      %v650 = vunpack.c.l.b16 %v361
      %v651 = vunpack.c.h.b16 %v361
      %v652 = vunpack.c.l.b16 %v362
      %v653 = vunpack.c.l.b16 %v363
      %v654 = vunpack.c.h.b16 %v363
      %v655 = vunpack.c.l.b16 %v364
      %v656 = vunpack.c.h.b16 %v364
      %v657 = vunpack.c.l.b16 %v365
      %v658 = vunpack.c.l.b16 %v366
      %v659 = vunpack.c.h.b16 %v366
      %v660 = vunpack.c.l.b16 %v367
      %v661 = vunpack.c.h.b16 %v367
      %v662 = vunpack.c.l.b16 %v368
      %v663 = vunpack.c.l.b16 %v369
      %v664 = vunpack.c.h.b16 %v369
      %v665 = vunpack.c.l.b16 %v370
      %v666 = vunpack.c.h.b16 %v370
      %v667 = vunpack.c.l.b16 %v371
      %v668 = vunpack.c.l.b16 %v372
      %v669 = vunpack.c.h.b16 %v372
      %v670 = vunpack.c.l.b16 %v373
      %v671 = vunpack.c.h.b16 %v373
      %v672 = vunpack.c.l.b16 %v374
      %v673 = vunpack.c.l.b16 %v375
      %v674 = vunpack.c.h.b16 %v375
      %v675 = vunpack.c.l.b16 %v376
      %v676 = vunpack.c.h.b16 %v376
      %v677 = vunpack.c.l.b16 %v377
      %v678 = vunpack.c.l.b16 %v378
      %v679 = vunpack.c.h.b16 %v378
      %v680 = vunpack.c.l.b16 %v379
      %v681 = vunpack.c.h.b16 %v379
      %v682 = vunpack.c.l.b16 %v380
      %v683 = vunpack.c.l.b16 %v381
      %v684 = vunpack.c.h.b16 %v381
      %v685 = vunpack.c.l.b16 %v382
      %v686 = vunpack.c.h.b16 %v382
      %v687 = vunpack.c.l.b16 %v383
      %v688 = vunpack.c.l.b16 %v384
      %v689 = vunpack.c.h.b16 %v384
      %v690 = vunpack.c.l.b16 %v385
      %v691 = vunpack.c.h.b16 %v385
      %v692 = vunpack.c.l.b16 %v386
      %v693 = vunpack.c.l.b16 %v387
      %v694 = vunpack.c.h.b16 %v387
      %v695 = vunpack.c.l.b16 %v388
      %v696 = vunpack.c.h.b16 %v388
      %v697 = vunpack.c.l.b16 %v389
      %v698 = vunpack.c.l.b16 %v390
      %v699 = vunpack.c.h.b16 %v390
      %v700 = vunpack.c.l.b16 %v391
      %v701 = vunpack.c.h.b16 %v391
      %v702 = vunpack.c.l.b16 %v392
      %v703 = vunpack.c.l.b16 %v393
      %v704 = vunpack.c.h.b16 %v393
      %v705 = vunpack.c.l.b16 %v394
      %v706 = vunpack.c.h.b16 %v394
      %v707 = vunpack.c.l.b16 %v395
      %v708 = vunpack.c.l.b16 %v396
      %v709 = vunpack.c.h.b16 %v396
      %v710 = vunpack.c.l.b16 %v397
      %v711 = vunpack.c.h.b16 %v397
      %v712 = vunpack.c.l.b16 %v398
      %v713 = vunpack.c.l.b16 %v399
      %v714 = vunpack.c.h.b16 %v399
      %v715 = vunpack.c.l.b16 %v400
      %v716 = vunpack.c.h.b16 %v400
      %v717 = vunpack.c.l.b16 %v401
      %v718 = vunpack.c.l.b16 %v402
      %v719 = vunpack.c.h.b16 %v402
      %v720 = vunpack.c.l.b16 %v403
      %v721 = vunpack.c.h.b16 %v403
      %v722 = vunpack.c.l.b16 %v404
      %v723 = vunpack.c.l.b16 %v405
      %v724 = vunpack.c.h.b16 %v405
      %v725 = vunpack.c.l.b16 %v406
      %v726 = vunpack.c.h.b16 %v406
      %v727 = vunpack.c.l.b16 %v407
      %v728 = vunpack.c.l.b16 %v408
      %v729 = vunpack.c.h.b16 %v408
      %v730 = vunpack.c.l.b16 %v409
      %v731 = vunpack.c.h.b16 %v409
      %v732 = vunpack.c.l.b16 %v410
      %v733 = vunpack.c.l.b16 %v411
      %v734 = vunpack.c.h.b16 %v411
      %v735 = vunpack.c.l.b16 %v412
      %v736 = vunpack.c.h.b16 %v412
      %v737 = vunpack.c.l.b16 %v413
      %v738 = vunpack.c.l.b16 %v414
      %v739 = vunpack.c.h.b16 %v414
      %v740 = vunpack.c.l.b16 %v415
      %v741 = vunpack.c.h.b16 %v415
      %v742 = vunpack.c.l.b16 %v416
      %v743 = vunpack.c.l.b16 %v417
      %v744 = vunpack.c.h.b16 %v417
      %v745 = vunpack.c.l.b16 %v418
      %v746 = vunpack.c.h.b16 %v418
      %v747 = vunpack.c.l.b16 %v419
      %v748 = vunpack.c.l.b16 %v420
      %v749 = vunpack.c.h.b16 %v420
      %v750 = vunpack.c.l.b16 %v421
      %v751 = vunpack.c.h.b16 %v421
      %v752 = vunpack.c.l.b16 %v422
      %v753 = vunpack.c.l.b16 %v423
      %v754 = vunpack.c.h.b16 %v423
      %v755 = vunpack.c.l.b16 %v424
      %v756 = vunpack.c.h.b16 %v424
      %v757 = vunpack.c.l.b16 %v425
      %v758 = vunpack.c.l.b16 %v426
      %v759 = vunpack.c.h.b16 %v426
      %v760 = vunpack.c.l.b16 %v427
      %v761 = vunpack.c.h.b16 %v427
      %v762 = vunpack.c.l.b16 %v428
      %v763 = vunpack.c.l.b16 %v429
      %v764 = vunpack.c.h.b16 %v429
      %v765 = vunpack.c.l.b16 %v430
      %v766 = vunpack.c.h.b16 %v430
      %v767 = vunpack.c.l.b16 %v431
      %v768 = vpack.c.b16 %v613, %v608
      %v769 = vpack.c.b16 %v614, %v609
      %v770 = vpack.c.b16 %v615, %v610
      %v771 = vpack.c.b16 %v616, %v611
      %v772 = vpack.c.b16 %v617, %v612
      %v773 = vpack.c.b16 %v623, %v618
      %v774 = vpack.c.b16 %v624, %v619
      %v775 = vpack.c.b16 %v625, %v620
      %v776 = vpack.c.b16 %v626, %v621
      %v777 = vpack.c.b16 %v627, %v622
      %v778 = vpack.c.b16 %v633, %v628
      %v779 = vpack.c.b16 %v634, %v629
      %v780 = vpack.c.b16 %v635, %v630
      %v781 = vpack.c.b16 %v636, %v631
      %v782 = vpack.c.b16 %v637, %v632
      %v783 = vpack.c.b16 %v643, %v638
      %v784 = vpack.c.b16 %v644, %v639
      %v785 = vpack.c.b16 %v645, %v640
      %v786 = vpack.c.b16 %v646, %v641
      %v787 = vpack.c.b16 %v647, %v642
      %v788 = vpack.c.b16 %v653, %v648
      %v789 = vpack.c.b16 %v654, %v649
      %v790 = vpack.c.b16 %v655, %v650
      %v791 = vpack.c.b16 %v656, %v651
      %v792 = vpack.c.b16 %v657, %v652
      %v793 = vpack.c.b16 %v663, %v658
      %v794 = vpack.c.b16 %v664, %v659
      %v795 = vpack.c.b16 %v665, %v660
      %v796 = vpack.c.b16 %v666, %v661
      %v797 = vpack.c.b16 %v667, %v662
      %v798 = vpack.c.b16 %v673, %v668
      %v799 = vpack.c.b16 %v674, %v669
      %v800 = vpack.c.b16 %v675, %v670
      %v801 = vpack.c.b16 %v676, %v671
      %v802 = vpack.c.b16 %v677, %v672
      %v803 = vpack.c.b16 %v683, %v678
      %v804 = vpack.c.b16 %v684, %v679
      %v805 = vpack.c.b16 %v685, %v680
      %v806 = vpack.c.b16 %v686, %v681
      %v807 = vpack.c.b16 %v687, %v682
      %v808 = vpack.c.b16 %v693, %v688
      %v809 = vpack.c.b16 %v694, %v689
      %v810 = vpack.c.b16 %v695, %v690
      %v811 = vpack.c.b16 %v696, %v691
      %v812 = vpack.c.b16 %v697, %v692
      %v813 = vpack.c.b16 %v703, %v698
      %v814 = vpack.c.b16 %v704, %v699
      %v815 = vpack.c.b16 %v705, %v700
      %v816 = vpack.c.b16 %v706, %v701
      %v817 = vpack.c.b16 %v707, %v702
      %v818 = vpack.c.b16 %v713, %v708
      %v819 = vpack.c.b16 %v714, %v709
      %v820 = vpack.c.b16 %v715, %v710
      %v821 = vpack.c.b16 %v716, %v711
      %v822 = vpack.c.b16 %v717, %v712
      %v823 = vpack.c.b16 %v723, %v718
      %v824 = vpack.c.b16 %v724, %v719
      %v825 = vpack.c.b16 %v725, %v720
      %v826 = vpack.c.b16 %v726, %v721
      %v827 = vpack.c.b16 %v727, %v722
      %v828 = vpack.c.b16 %v733, %v728
      %v829 = vpack.c.b16 %v734, %v729
      %v830 = vpack.c.b16 %v735, %v730
      %v831 = vpack.c.b16 %v736, %v731
      %v832 = vpack.c.b16 %v737, %v732
      %v833 = vpack.c.b16 %v743, %v738
      %v834 = vpack.c.b16 %v744, %v739
      %v835 = vpack.c.b16 %v745, %v740
      %v836 = vpack.c.b16 %v746, %v741
      %v837 = vpack.c.b16 %v747, %v742
      %v838 = vpack.c.b16 %v753, %v748
      %v839 = vpack.c.b16 %v754, %v749
      %v840 = vpack.c.b16 %v755, %v750
      %v841 = vpack.c.b16 %v756, %v751
      %v842 = vpack.c.b16 %v757, %v752
      %v843 = vpack.c.b16 %v763, %v758
      %v844 = vpack.c.b16 %v764, %v759
      %v845 = vpack.c.b16 %v765, %v760
      %v846 = vpack.c.b16 %v766, %v761
      %v847 = vpack.c.b16 %v767, %v762
      %v1008 = vunpack.c.l.b16 %v432
      %v1009 = vunpack.c.l.b16 %v433
      %v1010 = vunpack.c.l.b16 %v434
      %v1011 = vunpack.c.l.b16 %v435
      %v1012 = vunpack.c.l.b16 %v436
      %v1013 = vunpack.c.l.b16 %v437
      %v1014 = vunpack.c.l.b16 %v438
      %v1015 = vunpack.c.l.b16 %v439
      %v1016 = vunpack.c.l.b16 %v440
      %v1017 = vunpack.c.l.b16 %v441
      %v1018 = vunpack.c.l.b16 %v442
      %v1019 = vunpack.c.l.b16 %v443
      %v1020 = vunpack.c.l.b16 %v444
      %v1021 = vunpack.c.l.b16 %v445
      %v1022 = vunpack.c.l.b16 %v446
      %v1023 = vunpack.c.l.b16 %v447
      %v1024 = vunpack.c.l.b16 %v448
      %v1025 = vunpack.c.l.b16 %v449
      %v1026 = vunpack.c.l.b16 %v450
      %v1027 = vunpack.c.l.b16 %v451
      %v1028 = vunpack.c.l.b16 %v452
      %v1029 = vunpack.c.l.b16 %v453
      %v1030 = vunpack.c.l.b16 %v454
      %v1031 = vunpack.c.l.b16 %v455
      %v1032 = vunpack.c.l.b16 %v456
      %v1033 = vunpack.c.l.b16 %v457
      %v1034 = vunpack.c.l.b16 %v458
      %v1035 = vunpack.c.l.b16 %v459
      %v1036 = vunpack.c.l.b16 %v460
      %v1037 = vunpack.c.l.b16 %v461
      %v1038 = vunpack.c.l.b16 %v462
      %v1039 = vunpack.c.l.b16 %v463
      %v1040 = vunpack.c.l.b16 %v464
      %v1041 = vunpack.c.l.b16 %v465
      %v1042 = vunpack.c.l.b16 %v466
      %v1043 = vunpack.c.l.b16 %v467
      %v1044 = vunpack.c.l.b16 %v468
      %v1045 = vunpack.c.l.b16 %v469
      %v1046 = vunpack.c.l.b16 %v470
      %v1047 = vunpack.c.l.b16 %v471
      %v1048 = vunpack.c.l.b16 %v472
      %v1049 = vunpack.c.l.b16 %v473
      %v1050 = vunpack.c.l.b16 %v474
      %v1051 = vunpack.c.l.b16 %v475
      %v1052 = vunpack.c.l.b16 %v476
      %v1053 = vunpack.c.l.b16 %v477
      %v1054 = vunpack.c.l.b16 %v478
      %v1055 = vunpack.c.l.b16 %v479
      %v1056 = vunpack.c.l.b16 %v480
      %v1057 = vunpack.c.l.b16 %v481
      %v1058 = vunpack.c.l.b16 %v482
      %v1059 = vunpack.c.l.b16 %v483
      %v1060 = vunpack.c.l.b16 %v484
      %v1061 = vunpack.c.l.b16 %v485
      %v1062 = vunpack.c.l.b16 %v486
      %v1063 = vunpack.c.l.b16 %v487
      %v1064 = vunpack.c.l.b16 %v488
      %v1065 = vunpack.c.l.b16 %v489
      %v1066 = vunpack.c.l.b16 %v490
      %v1067 = vunpack.c.l.b16 %v491
      %v1068 = vunpack.c.l.b16 %v492
      %v1069 = vunpack.c.l.b16 %v493
      %v1070 = vunpack.c.l.b16 %v494
      %v1071 = vunpack.c.l.b16 %v495
      %v1072 = vunpack.c.l.b16 %v496
      %v1073 = vunpack.c.l.b16 %v497
      %v1074 = vunpack.c.l.b16 %v498
      %v1075 = vunpack.c.l.b16 %v499
      %v1076 = vunpack.c.l.b16 %v500
      %v1077 = vunpack.c.l.b16 %v501
      %v1078 = vunpack.c.l.b16 %v502
      %v1079 = vunpack.c.l.b16 %v503
      %v1080 = vunpack.c.l.b16 %v504
      %v1081 = vunpack.c.l.b16 %v505
      %v1082 = vunpack.c.l.b16 %v506
      %v1083 = vunpack.c.l.b16 %v507
      %v1084 = vunpack.c.l.b16 %v508
      %v1085 = vunpack.c.l.b16 %v509
      %v1086 = vunpack.c.l.b16 %v510
      %v1087 = vunpack.c.l.b16 %v511
      %v1088 = vpack.c.b16 %v1009, %v1008
      %v1089 = vpack.c.b16 %v1011, %v1010
      %v1090 = vpack.c.b16 %v1013, %v1012
      %v1091 = vpack.c.b16 %v1015, %v1014
      %v1092 = vpack.c.b16 %v1017, %v1016
      %v1093 = vpack.c.b16 %v1019, %v1018
      %v1094 = vpack.c.b16 %v1021, %v1020
      %v1095 = vpack.c.b16 %v1023, %v1022
      %v1096 = vpack.c.b16 %v1025, %v1024
      %v1097 = vpack.c.b16 %v1027, %v1026
      %v1098 = vpack.c.b16 %v1029, %v1028
      %v1099 = vpack.c.b16 %v1031, %v1030
      %v1100 = vpack.c.b16 %v1033, %v1032
      %v1101 = vpack.c.b16 %v1035, %v1034
      %v1102 = vpack.c.b16 %v1037, %v1036
      %v1103 = vpack.c.b16 %v1039, %v1038
      %v1104 = vpack.c.b16 %v1041, %v1040
      %v1105 = vpack.c.b16 %v1043, %v1042
      %v1106 = vpack.c.b16 %v1045, %v1044
      %v1107 = vpack.c.b16 %v1047, %v1046
      %v1108 = vpack.c.b16 %v1049, %v1048
      %v1109 = vpack.c.b16 %v1051, %v1050
      %v1110 = vpack.c.b16 %v1053, %v1052
      %v1111 = vpack.c.b16 %v1055, %v1054
      %v1112 = vpack.c.b16 %v1057, %v1056
      %v1113 = vpack.c.b16 %v1059, %v1058
      %v1114 = vpack.c.b16 %v1061, %v1060
      %v1115 = vpack.c.b16 %v1063, %v1062
      %v1116 = vpack.c.b16 %v1065, %v1064
      %v1117 = vpack.c.b16 %v1067, %v1066
      %v1118 = vpack.c.b16 %v1069, %v1068
      %v1119 = vpack.c.b16 %v1071, %v1070
      %v1120 = vpack.c.b16 %v1073, %v1072
      %v1121 = vpack.c.b16 %v1075, %v1074
      %v1122 = vpack.c.b16 %v1077, %v1076
      %v1123 = vpack.c.b16 %v1079, %v1078
      %v1124 = vpack.c.b16 %v1081, %v1080
      %v1125 = vpack.c.b16 %v1083, %v1082
      %v1126 = vpack.c.b16 %v1085, %v1084
      %v1127 = vpack.c.b16 %v1087, %v1086
      %1168 = vmatprep.subr.bf16.mxu0 0
      %1169 = vmatpush1.bf16.msra.mxu0 %v1095
      %1170 = vmatprep.subr.bf16.mxu0 0
      %1171 = vmatpush1.bf16.msra.mxu0 %v1094
      %1172 = vmatprep.subr.bf16.mxu0 0
      %1173 = vmatpush1.bf16.msra.mxu0 %v1093
      %1174 = vmatprep.subr.bf16.mxu0 0
      %1175 = vmatpush1.bf16.msra.mxu0 %v1092
      %1176 = vmatprep.subr.bf16.mxu0 0
      %1177 = vmatpush1.bf16.msra.mxu0 %v1091
      %1178 = vmatprep.subr.bf16.mxu0 0
      %1179 = vmatpush1.bf16.msra.mxu0 %v1090
      %1180 = vmatprep.subr.bf16.mxu0 0
      %1181 = vmatpush1.bf16.msra.mxu0 %v1089
      %1182 = vmatprep.subr.bf16.mxu0 0
      %1183 = vmatpush1.bf16.msra.mxu0 %v1088
      %1184 = vmatprep.subr.bf16.mxu0 0
      %1185 = vmatpush2.bf16.msra.mxu0 %v1103
      %1186 = vmatprep.subr.bf16.mxu0 0
      %1187 = vmatpush2.bf16.msra.mxu0 %v1102
      %1188 = vmatprep.subr.bf16.mxu0 0
      %1189 = vmatpush2.bf16.msra.mxu0 %v1101
      %1190 = vmatprep.subr.bf16.mxu0 0
      %1191 = vmatpush2.bf16.msra.mxu0 %v1100
      %1192 = vmatprep.subr.bf16.mxu0 0
      %1193 = vmatpush2.bf16.msra.mxu0 %v1099
      %1194 = vmatprep.subr.bf16.mxu0 0
      %1195 = vmatpush2.bf16.msra.mxu0 %v1098
      %1196 = vmatprep.subr.bf16.mxu0 0
      %1197 = vmatpush2.bf16.msra.mxu0 %v1097
      %1198 = vmatprep.subr.bf16.mxu0 0
      %1199 = vmatpush2.bf16.msra.mxu0 %v1096
      %1200 = vmatprep.mubr.bf16.mxu0 %v769
      %1201 = vmatmul.mubr.bf16.gmra.mxu0 %v768
      %v1202 = vpop.f32.mrf.mxu0
      %v1203 = vadd.f32 0.0, %v1202
      %v1204 = vpop.f32.mrf.mxu0
      %v1205 = vpop.f32.mrf.mxu0
      %v1206 = vadd.f32 0.0, %v1205
      %v1207 = vpop.f32.mrf.mxu0
      %1208 = vmatprep.mubr.bf16.mxu0 %v774
      %1209 = vmatmul.mubr.bf16.gmra.mxu0 %v773
      %v1210 = vpop.f32.mrf.mxu0
      %v1211 = vadd.f32 0.0, %v1210
      %v1212 = vpop.f32.mrf.mxu0
      %v1213 = vpop.f32.mrf.mxu0
      %v1214 = vadd.f32 0.0, %v1213
      %v1215 = vpop.f32.mrf.mxu0
      %1216 = vmatprep.mubr.bf16.mxu0 %v779
      %1217 = vmatmul.mubr.bf16.gmra.mxu0 %v778
      %v1218 = vpop.f32.mrf.mxu0
      %v1219 = vadd.f32 0.0, %v1218
      %v1220 = vpop.f32.mrf.mxu0
      %v1221 = vpop.f32.mrf.mxu0
      %v1222 = vadd.f32 0.0, %v1221
      %v1223 = vpop.f32.mrf.mxu0
      %1224 = vmatprep.mubr.bf16.mxu0 %v784
      %1225 = vmatmul.mubr.bf16.gmra.mxu0 %v783
      %v1226 = vpop.f32.mrf.mxu0
      %v1227 = vadd.f32 0.0, %v1226
      %v1228 = vpop.f32.mrf.mxu0
      %v1229 = vpop.f32.mrf.mxu0
      %v1230 = vadd.f32 0.0, %v1229
      %v1231 = vpop.f32.mrf.mxu0
      %1232 = vmatprep.mubr.bf16.mxu0 %v789
      %1233 = vmatmul.mubr.bf16.gmra.mxu0 %v788
      %v1234 = vpop.f32.mrf.mxu0
      %v1235 = vadd.f32 0.0, %v1234
      %v1236 = vpop.f32.mrf.mxu0
      %v1237 = vpop.f32.mrf.mxu0
      %v1238 = vadd.f32 0.0, %v1237
      %v1239 = vpop.f32.mrf.mxu0
      %1240 = vmatprep.mubr.bf16.mxu0 %v794
      %1241 = vmatmul.mubr.bf16.gmra.mxu0 %v793
      %v1242 = vpop.f32.mrf.mxu0
      %v1243 = vadd.f32 0.0, %v1242
      %v1244 = vpop.f32.mrf.mxu0
      %v1245 = vpop.f32.mrf.mxu0
      %v1246 = vadd.f32 0.0, %v1245
      %v1247 = vpop.f32.mrf.mxu0
      %1248 = vmatprep.mubr.bf16.mxu0 %v799
      %1249 = vmatmul.mubr.bf16.gmra.mxu0 %v798
      %v1250 = vpop.f32.mrf.mxu0
      %v1251 = vadd.f32 0.0, %v1250
      %v1252 = vpop.f32.mrf.mxu0
      %v1253 = vpop.f32.mrf.mxu0
      %v1254 = vadd.f32 0.0, %v1253
      %v1255 = vpop.f32.mrf.mxu0
      %1256 = vmatprep.mubr.bf16.mxu0 %v804
      %1257 = vmatmul.mubr.bf16.gmra.mxu0 %v803
      %v1258 = vpop.f32.mrf.mxu0
      %v1259 = vadd.f32 0.0, %v1258
      %v1260 = vpop.f32.mrf.mxu0
      %v1261 = vpop.f32.mrf.mxu0
      %v1262 = vadd.f32 0.0, %v1261
      %v1263 = vpop.f32.mrf.mxu0
      %1264 = vmatprep.mubr.bf16.mxu0 %v809
      %1265 = vmatmul.mubr.bf16.gmra.mxu0 %v808
      %v1266 = vpop.f32.mrf.mxu0
      %v1267 = vadd.f32 0.0, %v1266
      %v1268 = vpop.f32.mrf.mxu0
      %v1269 = vpop.f32.mrf.mxu0
      %v1270 = vadd.f32 0.0, %v1269
      %v1271 = vpop.f32.mrf.mxu0
      %1272 = vmatprep.mubr.bf16.mxu0 %v814
      %1273 = vmatmul.mubr.bf16.gmra.mxu0 %v813
      %v1274 = vpop.f32.mrf.mxu0
      %v1275 = vadd.f32 0.0, %v1274
      %v1276 = vpop.f32.mrf.mxu0
      %v1277 = vpop.f32.mrf.mxu0
      %v1278 = vadd.f32 0.0, %v1277
      %v1279 = vpop.f32.mrf.mxu0
      %1280 = vmatprep.mubr.bf16.mxu0 %v819
      %1281 = vmatmul.mubr.bf16.gmra.mxu0 %v818
      %v1282 = vpop.f32.mrf.mxu0
      %v1283 = vadd.f32 0.0, %v1282
      %v1284 = vpop.f32.mrf.mxu0
      %v1285 = vpop.f32.mrf.mxu0
      %v1286 = vadd.f32 0.0, %v1285
      %v1287 = vpop.f32.mrf.mxu0
      %1288 = vmatprep.mubr.bf16.mxu0 %v824
      %1289 = vmatmul.mubr.bf16.gmra.mxu0 %v823
      %v1290 = vpop.f32.mrf.mxu0
      %v1291 = vadd.f32 0.0, %v1290
      %v1292 = vpop.f32.mrf.mxu0
      %v1293 = vpop.f32.mrf.mxu0
      %v1294 = vadd.f32 0.0, %v1293
      %v1295 = vpop.f32.mrf.mxu0
      %1296 = vmatprep.mubr.bf16.mxu0 %v829
      %1297 = vmatmul.mubr.bf16.gmra.mxu0 %v828
      %v1298 = vpop.f32.mrf.mxu0
      %v1299 = vadd.f32 0.0, %v1298
      %v1300 = vpop.f32.mrf.mxu0
      %v1301 = vpop.f32.mrf.mxu0
      %v1302 = vadd.f32 0.0, %v1301
      %v1303 = vpop.f32.mrf.mxu0
      %1304 = vmatprep.mubr.bf16.mxu0 %v834
      %1305 = vmatmul.mubr.bf16.gmra.mxu0 %v833
      %v1306 = vpop.f32.mrf.mxu0
      %v1307 = vadd.f32 0.0, %v1306
      %v1308 = vpop.f32.mrf.mxu0
      %v1309 = vpop.f32.mrf.mxu0
      %v1310 = vadd.f32 0.0, %v1309
      %v1311 = vpop.f32.mrf.mxu0
      %1312 = vmatprep.mubr.bf16.mxu0 %v839
      %1313 = vmatmul.mubr.bf16.gmra.mxu0 %v838
      %v1314 = vpop.f32.mrf.mxu0
      %v1315 = vadd.f32 0.0, %v1314
      %v1316 = vpop.f32.mrf.mxu0
      %v1317 = vpop.f32.mrf.mxu0
      %v1318 = vadd.f32 0.0, %v1317
      %v1319 = vpop.f32.mrf.mxu0
      %1320 = vmatprep.mubr.bf16.mxu0 %v844
      %1321 = vmatmul.mubr.bf16.gmra.mxu0 %v843
      %v1322 = vpop.f32.mrf.mxu0
      %v1323 = vadd.f32 0.0, %v1322
      %v1324 = vpop.f32.mrf.mxu0
      %v1325 = vpop.f32.mrf.mxu0
      %v1326 = vadd.f32 0.0, %v1325
      %v1327 = vpop.f32.mrf.mxu0
      %1328 = vdwg.mxu0
      %1329 = vmatprep.subr.bf16.mxu0 0
      %1330 = vmatpush1.bf16.msra.mxu0 %v1111
      %1331 = vmatprep.subr.bf16.mxu0 0
      %1332 = vmatpush1.bf16.msra.mxu0 %v1110
      %1333 = vmatprep.subr.bf16.mxu0 0
      %1334 = vmatpush1.bf16.msra.mxu0 %v1109
      %1335 = vmatprep.subr.bf16.mxu0 0
      %1336 = vmatpush1.bf16.msra.mxu0 %v1108
      %1337 = vmatprep.subr.bf16.mxu0 0
      %1338 = vmatpush1.bf16.msra.mxu0 %v1107
      %1339 = vmatprep.subr.bf16.mxu0 0
      %1340 = vmatpush1.bf16.msra.mxu0 %v1106
      %1341 = vmatprep.subr.bf16.mxu0 0
      %1342 = vmatpush1.bf16.msra.mxu0 %v1105
      %1343 = vmatprep.subr.bf16.mxu0 0
      %1344 = vmatpush1.bf16.msra.mxu0 %v1104
      %1345 = vmatprep.subr.bf16.mxu0 0
      %1346 = vmatpush2.bf16.msra.mxu0 %v1119
      %1347 = vmatprep.subr.bf16.mxu0 0
      %1348 = vmatpush2.bf16.msra.mxu0 %v1118
      %1349 = vmatprep.subr.bf16.mxu0 0
      %1350 = vmatpush2.bf16.msra.mxu0 %v1117
      %1351 = vmatprep.subr.bf16.mxu0 0
      %1352 = vmatpush2.bf16.msra.mxu0 %v1116
      %1353 = vmatprep.subr.bf16.mxu0 0
      %1354 = vmatpush2.bf16.msra.mxu0 %v1115
      %1355 = vmatprep.subr.bf16.mxu0 0
      %1356 = vmatpush2.bf16.msra.mxu0 %v1114
      %1357 = vmatprep.subr.bf16.mxu0 0
      %1358 = vmatpush2.bf16.msra.mxu0 %v1113
      %1359 = vmatprep.subr.bf16.mxu0 0
      %1360 = vmatpush2.bf16.msra.mxu0 %v1112
      %1361 = vmatprep.mubr.bf16.mxu0 %v771
      %1362 = vmatmul.mubr.bf16.gmra.mxu0 %v770
      %v1363 = vpop.f32.mrf.mxu0
      %v1364 = vadd.f32 %v1203, %v1363
      %v1365 = vpop.f32.mrf.mxu0
      %v1366 = vpop.f32.mrf.mxu0
      %v1367 = vadd.f32 %v1206, %v1366
      %v1368 = vpop.f32.mrf.mxu0
      %1369 = vmatprep.mubr.bf16.mxu0 %v776
      %1370 = vmatmul.mubr.bf16.gmra.mxu0 %v775
      %v1371 = vpop.f32.mrf.mxu0
      %v1372 = vadd.f32 %v1211, %v1371
      %v1373 = vpop.f32.mrf.mxu0
      %v1374 = vpop.f32.mrf.mxu0
      %v1375 = vadd.f32 %v1214, %v1374
      %v1376 = vpop.f32.mrf.mxu0
      %1377 = vmatprep.mubr.bf16.mxu0 %v781
      %1378 = vmatmul.mubr.bf16.gmra.mxu0 %v780
      %v1379 = vpop.f32.mrf.mxu0
      %v1380 = vadd.f32 %v1219, %v1379
      %v1381 = vpop.f32.mrf.mxu0
      %v1382 = vpop.f32.mrf.mxu0
      %v1383 = vadd.f32 %v1222, %v1382
      %v1384 = vpop.f32.mrf.mxu0
      %1385 = vmatprep.mubr.bf16.mxu0 %v786
      %1386 = vmatmul.mubr.bf16.gmra.mxu0 %v785
      %v1387 = vpop.f32.mrf.mxu0
      %v1388 = vadd.f32 %v1227, %v1387
      %v1389 = vpop.f32.mrf.mxu0
      %v1390 = vpop.f32.mrf.mxu0
      %v1391 = vadd.f32 %v1230, %v1390
      %v1392 = vpop.f32.mrf.mxu0
      %1393 = vmatprep.mubr.bf16.mxu0 %v791
      %1394 = vmatmul.mubr.bf16.gmra.mxu0 %v790
      %v1395 = vpop.f32.mrf.mxu0
      %v1396 = vadd.f32 %v1235, %v1395
      %v1397 = vpop.f32.mrf.mxu0
      %v1398 = vpop.f32.mrf.mxu0
      %v1399 = vadd.f32 %v1238, %v1398
      %v1400 = vpop.f32.mrf.mxu0
      %1401 = vmatprep.mubr.bf16.mxu0 %v796
      %1402 = vmatmul.mubr.bf16.gmra.mxu0 %v795
      %v1403 = vpop.f32.mrf.mxu0
      %v1404 = vadd.f32 %v1243, %v1403
      %v1405 = vpop.f32.mrf.mxu0
      %v1406 = vpop.f32.mrf.mxu0
      %v1407 = vadd.f32 %v1246, %v1406
      %v1408 = vpop.f32.mrf.mxu0
      %1409 = vmatprep.mubr.bf16.mxu0 %v801
      %1410 = vmatmul.mubr.bf16.gmra.mxu0 %v800
      %v1411 = vpop.f32.mrf.mxu0
      %v1412 = vadd.f32 %v1251, %v1411
      %v1413 = vpop.f32.mrf.mxu0
      %v1414 = vpop.f32.mrf.mxu0
      %v1415 = vadd.f32 %v1254, %v1414
      %v1416 = vpop.f32.mrf.mxu0
      %1417 = vmatprep.mubr.bf16.mxu0 %v806
      %1418 = vmatmul.mubr.bf16.gmra.mxu0 %v805
      %v1419 = vpop.f32.mrf.mxu0
      %v1420 = vadd.f32 %v1259, %v1419
      %v1421 = vpop.f32.mrf.mxu0
      %v1422 = vpop.f32.mrf.mxu0
      %v1423 = vadd.f32 %v1262, %v1422
      %v1424 = vpop.f32.mrf.mxu0
      %1425 = vmatprep.mubr.bf16.mxu0 %v811
      %1426 = vmatmul.mubr.bf16.gmra.mxu0 %v810
      %v1427 = vpop.f32.mrf.mxu0
      %v1428 = vadd.f32 %v1267, %v1427
      %v1429 = vpop.f32.mrf.mxu0
      %v1430 = vpop.f32.mrf.mxu0
      %v1431 = vadd.f32 %v1270, %v1430
      %v1432 = vpop.f32.mrf.mxu0
      %1433 = vmatprep.mubr.bf16.mxu0 %v816
      %1434 = vmatmul.mubr.bf16.gmra.mxu0 %v815
      %v1435 = vpop.f32.mrf.mxu0
      %v1436 = vadd.f32 %v1275, %v1435
      %v1437 = vpop.f32.mrf.mxu0
      %v1438 = vpop.f32.mrf.mxu0
      %v1439 = vadd.f32 %v1278, %v1438
      %v1440 = vpop.f32.mrf.mxu0
      %1441 = vmatprep.mubr.bf16.mxu0 %v821
      %1442 = vmatmul.mubr.bf16.gmra.mxu0 %v820
      %v1443 = vpop.f32.mrf.mxu0
      %v1444 = vadd.f32 %v1283, %v1443
      %v1445 = vpop.f32.mrf.mxu0
      %v1446 = vpop.f32.mrf.mxu0
      %v1447 = vadd.f32 %v1286, %v1446
      %v1448 = vpop.f32.mrf.mxu0
      %1449 = vmatprep.mubr.bf16.mxu0 %v826
      %1450 = vmatmul.mubr.bf16.gmra.mxu0 %v825
      %v1451 = vpop.f32.mrf.mxu0
      %v1452 = vadd.f32 %v1291, %v1451
      %v1453 = vpop.f32.mrf.mxu0
      %v1454 = vpop.f32.mrf.mxu0
      %v1455 = vadd.f32 %v1294, %v1454
      %v1456 = vpop.f32.mrf.mxu0
      %1457 = vmatprep.mubr.bf16.mxu0 %v831
      %1458 = vmatmul.mubr.bf16.gmra.mxu0 %v830
      %v1459 = vpop.f32.mrf.mxu0
      %v1460 = vadd.f32 %v1299, %v1459
      %v1461 = vpop.f32.mrf.mxu0
      %v1462 = vpop.f32.mrf.mxu0
      %v1463 = vadd.f32 %v1302, %v1462
      %v1464 = vpop.f32.mrf.mxu0
      %1465 = vmatprep.mubr.bf16.mxu0 %v836
      %1466 = vmatmul.mubr.bf16.gmra.mxu0 %v835
      %v1467 = vpop.f32.mrf.mxu0
      %v1468 = vadd.f32 %v1307, %v1467
      %v1469 = vpop.f32.mrf.mxu0
      %v1470 = vpop.f32.mrf.mxu0
      %v1471 = vadd.f32 %v1310, %v1470
      %v1472 = vpop.f32.mrf.mxu0
      %1473 = vmatprep.mubr.bf16.mxu0 %v841
      %1474 = vmatmul.mubr.bf16.gmra.mxu0 %v840
      %v1475 = vpop.f32.mrf.mxu0
      %v1476 = vadd.f32 %v1315, %v1475
      %v1477 = vpop.f32.mrf.mxu0
      %v1478 = vpop.f32.mrf.mxu0
      %v1479 = vadd.f32 %v1318, %v1478
      %v1480 = vpop.f32.mrf.mxu0
      %1481 = vmatprep.mubr.bf16.mxu0 %v846
      %1482 = vmatmul.mubr.bf16.gmra.mxu0 %v845
      %v1483 = vpop.f32.mrf.mxu0
      %v1484 = vadd.f32 %v1323, %v1483
      %v1485 = vpop.f32.mrf.mxu0
      %v1486 = vpop.f32.mrf.mxu0
      %v1487 = vadd.f32 %v1326, %v1486
      %v1488 = vpop.f32.mrf.mxu0
      %1489 = vdwg.mxu0
      %1490 = vmatprep.subr.bf16.mxu0 0
      %1491 = vmatpush1.bf16.msra.mxu0 %v1127
      %1492 = vmatprep.subr.bf16.mxu0 0
      %1493 = vmatpush1.bf16.msra.mxu0 %v1126
      %1494 = vmatprep.subr.bf16.mxu0 0
      %1495 = vmatpush1.bf16.msra.mxu0 %v1125
      %1496 = vmatprep.subr.bf16.mxu0 0
      %1497 = vmatpush1.bf16.msra.mxu0 %v1124
      %1498 = vmatprep.subr.bf16.mxu0 0
      %1499 = vmatpush1.bf16.msra.mxu0 %v1123
      %1500 = vmatprep.subr.bf16.mxu0 0
      %1501 = vmatpush1.bf16.msra.mxu0 %v1122
      %1502 = vmatprep.subr.bf16.mxu0 0
      %1503 = vmatpush1.bf16.msra.mxu0 %v1121
      %1504 = vmatprep.subr.bf16.mxu0 0
      %1505 = vmatpush1.bf16.msra.mxu0 %v1120
      %1506 = vmatprep.subr.bf16.mxu0 0
      %1507 = vmatpush2.bf16.msra.mxu0 0
      %1508 = vmatprep.subr.bf16.mxu0 0
      %1509 = vmatpush2.bf16.msra.mxu0 0
      %1510 = vmatprep.subr.bf16.mxu0 0
      %1511 = vmatpush2.bf16.msra.mxu0 0
      %1512 = vmatprep.subr.bf16.mxu0 0
      %1513 = vmatpush2.bf16.msra.mxu0 0
      %1514 = vmatprep.subr.bf16.mxu0 0
      %1515 = vmatpush2.bf16.msra.mxu0 0
      %1516 = vmatprep.subr.bf16.mxu0 0
      %1517 = vmatpush2.bf16.msra.mxu0 0
      %1518 = vmatprep.subr.bf16.mxu0 0
      %1519 = vmatpush2.bf16.msra.mxu0 0
      %1520 = vmatprep.subr.bf16.mxu0 0
      %1521 = vmatpush2.bf16.msra.mxu0 0
      %1522 = vmatprep.mubr.bf16.mxu0 0
      %1523 = vmatmul.mubr.bf16.gmra.mxu0 %v772
      %v1524 = vpop.f32.mrf.mxu0
      %v1525 = vadd.f32 %v1364, %v1524
      %v1526 = vpop.f32.mrf.mxu0
      %v1527 = vpop.f32.mrf.mxu0
      %v1528 = vadd.f32 %v1367, %v1527
      %v1529 = vpop.f32.mrf.mxu0
      %1530 = vmatprep.mubr.bf16.mxu0 0
      %1531 = vmatmul.mubr.bf16.gmra.mxu0 %v777
      %v1532 = vpop.f32.mrf.mxu0
      %v1533 = vadd.f32 %v1372, %v1532
      %v1534 = vpop.f32.mrf.mxu0
      %v1535 = vpop.f32.mrf.mxu0
      %v1536 = vadd.f32 %v1375, %v1535
      %v1537 = vpop.f32.mrf.mxu0
      %1538 = vmatprep.mubr.bf16.mxu0 0
      %1539 = vmatmul.mubr.bf16.gmra.mxu0 %v782
      %v1540 = vpop.f32.mrf.mxu0
      %v1541 = vadd.f32 %v1380, %v1540
      %v1542 = vpop.f32.mrf.mxu0
      %v1543 = vpop.f32.mrf.mxu0
      %v1544 = vadd.f32 %v1383, %v1543
      %v1545 = vpop.f32.mrf.mxu0
      %1546 = vmatprep.mubr.bf16.mxu0 0
      %1547 = vmatmul.mubr.bf16.gmra.mxu0 %v787
      %v1548 = vpop.f32.mrf.mxu0
      %v1549 = vadd.f32 %v1388, %v1548
      %v1550 = vpop.f32.mrf.mxu0
      %v1551 = vpop.f32.mrf.mxu0
      %v1552 = vadd.f32 %v1391, %v1551
      %v1553 = vpop.f32.mrf.mxu0
      %1554 = vmatprep.mubr.bf16.mxu0 0
      %1555 = vmatmul.mubr.bf16.gmra.mxu0 %v792
      %v1556 = vpop.f32.mrf.mxu0
      %v1557 = vadd.f32 %v1396, %v1556
      %v1558 = vpop.f32.mrf.mxu0
      %v1559 = vpop.f32.mrf.mxu0
      %v1560 = vadd.f32 %v1399, %v1559
      %v1561 = vpop.f32.mrf.mxu0
      %1562 = vmatprep.mubr.bf16.mxu0 0
      %1563 = vmatmul.mubr.bf16.gmra.mxu0 %v797
      %v1564 = vpop.f32.mrf.mxu0
      %v1565 = vadd.f32 %v1404, %v1564
      %v1566 = vpop.f32.mrf.mxu0
      %v1567 = vpop.f32.mrf.mxu0
      %v1568 = vadd.f32 %v1407, %v1567
      %v1569 = vpop.f32.mrf.mxu0
      %1570 = vmatprep.mubr.bf16.mxu0 0
      %1571 = vmatmul.mubr.bf16.gmra.mxu0 %v802
      %v1572 = vpop.f32.mrf.mxu0
      %v1573 = vadd.f32 %v1412, %v1572
      %v1574 = vpop.f32.mrf.mxu0
      %v1575 = vpop.f32.mrf.mxu0
      %v1576 = vadd.f32 %v1415, %v1575
      %v1577 = vpop.f32.mrf.mxu0
      %1578 = vmatprep.mubr.bf16.mxu0 0
      %1579 = vmatmul.mubr.bf16.gmra.mxu0 %v807
      %v1580 = vpop.f32.mrf.mxu0
      %v1581 = vadd.f32 %v1420, %v1580
      %v1582 = vpop.f32.mrf.mxu0
      %v1583 = vpop.f32.mrf.mxu0
      %v1584 = vadd.f32 %v1423, %v1583
      %v1585 = vpop.f32.mrf.mxu0
      %1586 = vmatprep.mubr.bf16.mxu0 0
      %1587 = vmatmul.mubr.bf16.gmra.mxu0 %v812
      %v1588 = vpop.f32.mrf.mxu0
      %v1589 = vadd.f32 %v1428, %v1588
      %v1590 = vpop.f32.mrf.mxu0
      %v1591 = vpop.f32.mrf.mxu0
      %v1592 = vadd.f32 %v1431, %v1591
      %v1593 = vpop.f32.mrf.mxu0
      %1594 = vmatprep.mubr.bf16.mxu0 0
      %1595 = vmatmul.mubr.bf16.gmra.mxu0 %v817
      %v1596 = vpop.f32.mrf.mxu0
      %v1597 = vadd.f32 %v1436, %v1596
      %v1598 = vpop.f32.mrf.mxu0
      %v1599 = vpop.f32.mrf.mxu0
      %v1600 = vadd.f32 %v1439, %v1599
      %v1601 = vpop.f32.mrf.mxu0
      %1602 = vmatprep.mubr.bf16.mxu0 0
      %1603 = vmatmul.mubr.bf16.gmra.mxu0 %v822
      %v1604 = vpop.f32.mrf.mxu0
      %v1605 = vadd.f32 %v1444, %v1604
      %v1606 = vpop.f32.mrf.mxu0
      %v1607 = vpop.f32.mrf.mxu0
      %v1608 = vadd.f32 %v1447, %v1607
      %v1609 = vpop.f32.mrf.mxu0
      %1610 = vmatprep.mubr.bf16.mxu0 0
      %1611 = vmatmul.mubr.bf16.gmra.mxu0 %v827
      %v1612 = vpop.f32.mrf.mxu0
      %v1613 = vadd.f32 %v1452, %v1612
      %v1614 = vpop.f32.mrf.mxu0
      %v1615 = vpop.f32.mrf.mxu0
      %v1616 = vadd.f32 %v1455, %v1615
      %v1617 = vpop.f32.mrf.mxu0
      %1618 = vmatprep.mubr.bf16.mxu0 0
      %1619 = vmatmul.mubr.bf16.gmra.mxu0 %v832
      %v1620 = vpop.f32.mrf.mxu0
      %v1621 = vadd.f32 %v1460, %v1620
      %v1622 = vpop.f32.mrf.mxu0
      %v1623 = vpop.f32.mrf.mxu0
      %v1624 = vadd.f32 %v1463, %v1623
      %v1625 = vpop.f32.mrf.mxu0
      %1626 = vmatprep.mubr.bf16.mxu0 0
      %1627 = vmatmul.mubr.bf16.gmra.mxu0 %v837
      %v1628 = vpop.f32.mrf.mxu0
      %v1629 = vadd.f32 %v1468, %v1628
      %v1630 = vpop.f32.mrf.mxu0
      %v1631 = vpop.f32.mrf.mxu0
      %v1632 = vadd.f32 %v1471, %v1631
      %v1633 = vpop.f32.mrf.mxu0
      %1634 = vmatprep.mubr.bf16.mxu0 0
      %1635 = vmatmul.mubr.bf16.gmra.mxu0 %v842
      %v1636 = vpop.f32.mrf.mxu0
      %v1637 = vadd.f32 %v1476, %v1636
      %v1638 = vpop.f32.mrf.mxu0
      %v1639 = vpop.f32.mrf.mxu0
      %v1640 = vadd.f32 %v1479, %v1639
      %v1641 = vpop.f32.mrf.mxu0
      %1642 = vmatprep.mubr.bf16.mxu0 0
      %1643 = vmatmul.mubr.bf16.gmra.mxu0 %v847
      %v1644 = vpop.f32.mrf.mxu0
      %v1645 = vadd.f32 %v1484, %v1644
      %v1646 = vpop.f32.mrf.mxu0
      %v1647 = vpop.f32.mrf.mxu0
      %v1648 = vadd.f32 %v1487, %v1647
      %v1649 = vpop.f32.mrf.mxu0
      %1650 = vdwg.mxu0
      %v1651 = vadd.f32 %v304, %v1525
      %v1652 = vadd.f32 %v305, %v1528
      %v1653 = vadd.f32 %v306, %v1533
      %v1654 = vadd.f32 %v307, %v1536
      %v1655 = vadd.f32 %v308, %v1541
      %v1656 = vadd.f32 %v309, %v1544
      %v1657 = vadd.f32 %v310, %v1549
      %v1658 = vadd.f32 %v311, %v1552
      %v1659 = vadd.f32 %v312, %v1557
      %v1660 = vadd.f32 %v313, %v1560
      %v1661 = vadd.f32 %v314, %v1565
      %v1662 = vadd.f32 %v315, %v1568
      %v1663 = vadd.f32 %v316, %v1573
      %v1664 = vadd.f32 %v317, %v1576
      %v1665 = vadd.f32 %v318, %v1581
      %v1666 = vadd.f32 %v319, %v1584
      %v1667 = vadd.f32 %v320, %v1589
      %v1668 = vadd.f32 %v321, %v1592
      %v1669 = vadd.f32 %v322, %v1597
      %v1670 = vadd.f32 %v323, %v1600
      %v1671 = vadd.f32 %v324, %v1605
      %v1672 = vadd.f32 %v325, %v1608
      %v1673 = vadd.f32 %v326, %v1613
      %v1674 = vadd.f32 %v327, %v1616
      %v1675 = vadd.f32 %v328, %v1621
      %v1676 = vadd.f32 %v329, %v1624
      %v1677 = vadd.f32 %v330, %v1629
      %v1678 = vadd.f32 %v331, %v1632
      %v1679 = vadd.f32 %v332, %v1637
      %v1680 = vadd.f32 %v333, %v1640
      %v1681 = vadd.f32 %v334, %v1645
      %v1682 = vadd.f32 %v335, %v1648
      %1683 = vst [vmem:[#allocation2] sm:$0xff] %v1651
      %1684 = vst [vmem:[#allocation2 + $0x8] sm:$0xff] %v1652
      %1685 = vst [vmem:[#allocation2 + $0x10] sm:$0xff] %v1653
      %1686 = vst [vmem:[#allocation2 + $0x18] sm:$0xff] %v1654
      %1687 = vst [vmem:[#allocation2 + $0x20] sm:$0xff] %v1655
      %1688 = vst [vmem:[#allocation2 + $0x28] sm:$0xff] %v1656
      %1689 = vst [vmem:[#allocation2 + $0x30] sm:$0xff] %v1657
      %1690 = vst [vmem:[#allocation2 + $0x38] sm:$0xff] %v1658
      %1691 = vst [vmem:[#allocation2 + $0x40] sm:$0xff] %v1659
      %1692 = vst [vmem:[#allocation2 + $0x48] sm:$0xff] %v1660
      %1693 = vst [vmem:[#allocation2 + $0x50] sm:$0xff] %v1661
      %1694 = vst [vmem:[#allocation2 + $0x58] sm:$0xff] %v1662
      %1695 = vst [vmem:[#allocation2 + $0x60] sm:$0xff] %v1663
      %1696 = vst [vmem:[#allocation2 + $0x68] sm:$0xff] %v1664
      %1697 = vst [vmem:[#allocation2 + $0x70] sm:$0xff] %v1665
      %1698 = vst [vmem:[#allocation2 + $0x78] sm:$0xff] %v1666
      %1699 = vst [vmem:[#allocation2 + $0x80] sm:$0xff] %v1667
      %1700 = vst [vmem:[#allocation2 + $0x88] sm:$0xff] %v1668
      %1701 = vst [vmem:[#allocation2 + $0x90] sm:$0xff] %v1669
      %1702 = vst [vmem:[#allocation2 + $0x98] sm:$0xff] %v1670
      %1703 = vst [vmem:[#allocation2 + $0xa0] sm:$0xff] %v1671
      %1704 = vst [vmem:[#allocation2 + $0xa8] sm:$0xff] %v1672
      %1705 = vst [vmem:[#allocation2 + $0xb0] sm:$0xff] %v1673
      %1706 = vst [vmem:[#allocation2 + $0xb8] sm:$0xff] %v1674
      %1707 = vst [vmem:[#allocation2 + $0xc0] sm:$0xff] %v1675
      %1708 = vst [vmem:[#allocation2 + $0xc8] sm:$0xff] %v1676
      %1709 = vst [vmem:[#allocation2 + $0xd0] sm:$0xff] %v1677
      %1710 = vst [vmem:[#allocation2 + $0xd8] sm:$0xff] %v1678
      %1711 = vst [vmem:[#allocation2 + $0xe0] sm:$0xff] %v1679
      %1712 = vst [vmem:[#allocation2 + $0xe8] sm:$0xff] %v1680
      %1713 = vst [vmem:[#allocation2 + $0xf0] sm:$0xff] %v1681
      %1714 = vst [vmem:[#allocation2 + $0xf8] sm:$0xff] %v1682
      // Predicated region
      $region37: #{forward.18} parent=31 // pred_check
        %p1715 = pneg %p268
      $region38: #{forward.18} parent=31 // pred_check_branch
        %1717 = sbr.rel (%p1715) target = $region40
      $region39: #{forward.18} parent=31 // pred_region
        %v1718 = vld [vmem:[#allocation2] sm:$0xff]
        %v1719 = vld [vmem:[#allocation2 + $0x8] sm:$0xff]
        %v1720 = vld [vmem:[#allocation2 + $0x10] sm:$0xff]
        %v1721 = vld [vmem:[#allocation2 + $0x18] sm:$0xff]
        %v1722 = vld [vmem:[#allocation2 + $0x20] sm:$0xff]
        %v1723 = vld [vmem:[#allocation2 + $0x28] sm:$0xff]
        %v1724 = vld [vmem:[#allocation2 + $0x30] sm:$0xff]
        %v1725 = vld [vmem:[#allocation2 + $0x38] sm:$0xff]
        %v1726 = vld [vmem:[#allocation2 + $0x40] sm:$0xff]
        %v1727 = vld [vmem:[#allocation2 + $0x48] sm:$0xff]
        %v1728 = vld [vmem:[#allocation2 + $0x50] sm:$0xff]
        %v1729 = vld [vmem:[#allocation2 + $0x58] sm:$0xff]
        %v1730 = vld [vmem:[#allocation2 + $0x60] sm:$0xff]
        %v1731 = vld [vmem:[#allocation2 + $0x68] sm:$0xff]
        %v1732 = vld [vmem:[#allocation2 + $0x70] sm:$0xff]
        %v1733 = vld [vmem:[#allocation2 + $0x78] sm:$0xff]
        %v1734 = vld [vmem:[#allocation2 + $0x80] sm:$0xff]
        %v1735 = vld [vmem:[#allocation2 + $0x88] sm:$0xff]
        %v1736 = vld [vmem:[#allocation2 + $0x90] sm:$0xff]
        %v1737 = vld [vmem:[#allocation2 + $0x98] sm:$0xff]
        %v1738 = vld [vmem:[#allocation2 + $0xa0] sm:$0xff]
        %v1739 = vld [vmem:[#allocation2 + $0xa8] sm:$0xff]
        %v1740 = vld [vmem:[#allocation2 + $0xb0] sm:$0xff]
        %v1741 = vld [vmem:[#allocation2 + $0xb8] sm:$0xff]
        %v1742 = vld [vmem:[#allocation2 + $0xc0] sm:$0xff]
        %v1743 = vld [vmem:[#allocation2 + $0xc8] sm:$0xff]
        %v1744 = vld [vmem:[#allocation2 + $0xd0] sm:$0xff]
        %v1745 = vld [vmem:[#allocation2 + $0xd8] sm:$0xff]
        %v1746 = vld [vmem:[#allocation2 + $0xe0] sm:$0xff]
        %v1747 = vld [vmem:[#allocation2 + $0xe8] sm:$0xff]
        %v1748 = vld [vmem:[#allocation2 + $0xf0] sm:$0xff]
        %v1749 = vld [vmem:[#allocation2 + $0xf8] sm:$0xff]
        %v1750 = vld [vmem:[%s257] sm:$0x1]
        %v1752 = vlaneseq
        %v1753 = vshrl.u32 %v1752, 7
        %v1754 = vsub.s32 0, %v1753
        %v1755 = vrot.slane %v1750, %v1754
        %v1757 = vadd.f32 %v1718, %v1755
        %v1758 = vadd.f32 %v1719, %v1755
        %v1759 = vadd.f32 %v1720, %v1755
        %v1760 = vadd.f32 %v1721, %v1755
        %v1761 = vadd.f32 %v1722, %v1755
        %v1762 = vadd.f32 %v1723, %v1755
        %v1763 = vadd.f32 %v1724, %v1755
        %v1764 = vadd.f32 %v1725, %v1755
        %v1765 = vadd.f32 %v1726, %v1755
        %v1766 = vadd.f32 %v1727, %v1755
        %v1767 = vadd.f32 %v1728, %v1755
        %v1768 = vadd.f32 %v1729, %v1755
        %v1769 = vadd.f32 %v1730, %v1755
        %v1770 = vadd.f32 %v1731, %v1755
        %v1771 = vadd.f32 %v1732, %v1755
        %v1772 = vadd.f32 %v1733, %v1755
        %v1773 = vadd.f32 %v1734, %v1755
        %v1774 = vadd.f32 %v1735, %v1755
        %v1775 = vadd.f32 %v1736, %v1755
        %v1776 = vadd.f32 %v1737, %v1755
        %v1777 = vadd.f32 %v1738, %v1755
        %v1778 = vadd.f32 %v1739, %v1755
        %v1779 = vadd.f32 %v1740, %v1755
        %v1780 = vadd.f32 %v1741, %v1755
        %v1781 = vadd.f32 %v1742, %v1755
        %v1782 = vadd.f32 %v1743, %v1755
        %v1783 = vadd.f32 %v1744, %v1755
        %v1784 = vadd.f32 %v1745, %v1755
        %v1785 = vadd.f32 %v1746, %v1755
        %v1786 = vadd.f32 %v1747, %v1755
        %v1787 = vadd.f32 %v1748, %v1755
        %v1788 = vadd.f32 %v1749, %v1755
        %v1789 = vmax.f32 %v1757, 0.0
        %v1790 = vmax.f32 %v1758, 0.0
        %v1791 = vmax.f32 %v1759, 0.0
        %v1792 = vmax.f32 %v1760, 0.0
        %v1793 = vmax.f32 %v1761, 0.0
        %v1794 = vmax.f32 %v1762, 0.0
        %v1795 = vmax.f32 %v1763, 0.0
        %v1796 = vmax.f32 %v1764, 0.0
        %v1797 = vmax.f32 %v1765, 0.0
        %v1798 = vmax.f32 %v1766, 0.0
        %v1799 = vmax.f32 %v1767, 0.0
        %v1800 = vmax.f32 %v1768, 0.0
        %v1801 = vmax.f32 %v1769, 0.0
        %v1802 = vmax.f32 %v1770, 0.0
        %v1803 = vmax.f32 %v1771, 0.0
        %v1804 = vmax.f32 %v1772, 0.0
        %v1805 = vmax.f32 %v1773, 0.0
        %v1806 = vmax.f32 %v1774, 0.0
        %v1807 = vmax.f32 %v1775, 0.0
        %v1808 = vmax.f32 %v1776, 0.0
        %v1809 = vmax.f32 %v1777, 0.0
        %v1810 = vmax.f32 %v1778, 0.0
        %v1811 = vmax.f32 %v1779, 0.0
        %v1812 = vmax.f32 %v1780, 0.0
        %v1813 = vmax.f32 %v1781, 0.0
        %v1814 = vmax.f32 %v1782, 0.0
        %v1815 = vmax.f32 %v1783, 0.0
        %v1816 = vmax.f32 %v1784, 0.0
        %v1817 = vmax.f32 %v1785, 0.0
        %v1818 = vmax.f32 %v1786, 0.0
        %v1819 = vmax.f32 %v1787, 0.0
        %v1820 = vmax.f32 %v1788, 0.0
        %v1821 = vpack.c.bf16 %v1790, %v1789
        %v1822 = vpack.c.bf16 %v1792, %v1791
        %v1823 = vpack.c.bf16 %v1794, %v1793
        %v1824 = vpack.c.bf16 %v1796, %v1795
        %v1825 = vpack.c.bf16 %v1798, %v1797
        %v1826 = vpack.c.bf16 %v1800, %v1799
        %v1827 = vpack.c.bf16 %v1802, %v1801
        %v1828 = vpack.c.bf16 %v1804, %v1803
        %v1829 = vpack.c.bf16 %v1806, %v1805
        %v1830 = vpack.c.bf16 %v1808, %v1807
        %v1831 = vpack.c.bf16 %v1810, %v1809
        %v1832 = vpack.c.bf16 %v1812, %v1811
        %v1833 = vpack.c.bf16 %v1814, %v1813
        %v1834 = vpack.c.bf16 %v1816, %v1815
        %v1835 = vpack.c.bf16 %v1818, %v1817
        %v1836 = vpack.c.bf16 %v1820, %v1819
        %v1853 = vunpack.c.l.b16 %v1821
        %v1854 = vunpack.c.h.b16 %v1821
        %v1855 = vunpack.c.l.b16 %v1822
        %v1856 = vunpack.c.h.b16 %v1822
        %v1857 = vunpack.c.l.b16 %v1823
        %v1858 = vunpack.c.h.b16 %v1823
        %v1859 = vunpack.c.l.b16 %v1824
        %v1860 = vunpack.c.h.b16 %v1824
        %v1861 = vunpack.c.l.b16 %v1825
        %v1862 = vunpack.c.h.b16 %v1825
        %v1863 = vunpack.c.l.b16 %v1826
        %v1864 = vunpack.c.h.b16 %v1826
        %v1865 = vunpack.c.l.b16 %v1827
        %v1866 = vunpack.c.h.b16 %v1827
        %v1867 = vunpack.c.l.b16 %v1828
        %v1868 = vunpack.c.h.b16 %v1828
        %v1869 = vunpack.c.l.b16 %v1829
        %v1870 = vunpack.c.h.b16 %v1829
        %v1871 = vunpack.c.l.b16 %v1830
        %v1872 = vunpack.c.h.b16 %v1830
        %v1873 = vunpack.c.l.b16 %v1831
        %v1874 = vunpack.c.h.b16 %v1831
        %v1875 = vunpack.c.l.b16 %v1832
        %v1876 = vunpack.c.h.b16 %v1832
        %v1877 = vunpack.c.l.b16 %v1833
        %v1878 = vunpack.c.h.b16 %v1833
        %v1879 = vunpack.c.l.b16 %v1834
        %v1880 = vunpack.c.h.b16 %v1834
        %v1881 = vunpack.c.l.b16 %v1835
        %v1882 = vunpack.c.h.b16 %v1835
        %v1883 = vunpack.c.l.b16 %v1836
        %v1884 = vunpack.c.h.b16 %v1836
        %v1885 = vpack.c.b16 %v1853, %v1853
        %v1886 = vpack.c.b16 %v1854, %v1854
        %v1887 = vpack.c.b16 %v1855, %v1855
        %v1888 = vpack.c.b16 %v1856, %v1856
        %v1889 = vpack.c.b16 %v1857, %v1857
        %v1890 = vpack.c.b16 %v1858, %v1858
        %v1891 = vpack.c.b16 %v1859, %v1859
        %v1892 = vpack.c.b16 %v1860, %v1860
        %v1893 = vpack.c.b16 %v1861, %v1861
        %v1894 = vpack.c.b16 %v1862, %v1862
        %v1895 = vpack.c.b16 %v1863, %v1863
        %v1896 = vpack.c.b16 %v1864, %v1864
        %v1897 = vpack.c.b16 %v1865, %v1865
        %v1898 = vpack.c.b16 %v1866, %v1866
        %v1899 = vpack.c.b16 %v1867, %v1867
        %v1900 = vpack.c.b16 %v1868, %v1868
        %v1901 = vpack.c.b16 %v1869, %v1869
        %v1902 = vpack.c.b16 %v1870, %v1870
        %v1903 = vpack.c.b16 %v1871, %v1871
        %v1904 = vpack.c.b16 %v1872, %v1872
        %v1905 = vpack.c.b16 %v1873, %v1873
        %v1906 = vpack.c.b16 %v1874, %v1874
        %v1907 = vpack.c.b16 %v1875, %v1875
        %v1908 = vpack.c.b16 %v1876, %v1876
        %v1909 = vpack.c.b16 %v1877, %v1877
        %v1910 = vpack.c.b16 %v1878, %v1878
        %v1911 = vpack.c.b16 %v1879, %v1879
        %v1912 = vpack.c.b16 %v1880, %v1880
        %v1913 = vpack.c.b16 %v1881, %v1881
        %v1914 = vpack.c.b16 %v1882, %v1882
        %v1915 = vpack.c.b16 %v1883, %v1883
        %v1916 = vpack.c.b16 %v1884, %v1884
        %1949 = vst [vmem:[%s265] sm:$0xf] %v1885
        %1950 = vst [vmem:[%s265 + $0x4] sm:$0xf] %v1886
        %1951 = vst [vmem:[%s265 + $0x8] sm:$0xf] %v1887
        %1952 = vst [vmem:[%s265 + $0xc] sm:$0xf] %v1888
        %1953 = vst [vmem:[%s265 + $0x10] sm:$0xf] %v1889
        %1954 = vst [vmem:[%s265 + $0x14] sm:$0xf] %v1890
        %1955 = vst [vmem:[%s265 + $0x18] sm:$0xf] %v1891
        %1956 = vst [vmem:[%s265 + $0x1c] sm:$0xf] %v1892
        %1957 = vst [vmem:[%s265 + $0x20] sm:$0xf] %v1893
        %1958 = vst [vmem:[%s265 + $0x24] sm:$0xf] %v1894
        %1959 = vst [vmem:[%s265 + $0x28] sm:$0xf] %v1895
        %1960 = vst [vmem:[%s265 + $0x2c] sm:$0xf] %v1896
        %1961 = vst [vmem:[%s265 + $0x30] sm:$0xf] %v1897
        %1962 = vst [vmem:[%s265 + $0x34] sm:$0xf] %v1898
        %1963 = vst [vmem:[%s265 + $0x38] sm:$0xf] %v1899
        %1964 = vst [vmem:[%s265 + $0x3c] sm:$0xf] %v1900
        %1965 = vst [vmem:[%s265 + $0x40] sm:$0xf] %v1901
        %1966 = vst [vmem:[%s265 + $0x44] sm:$0xf] %v1902
        %1967 = vst [vmem:[%s265 + $0x48] sm:$0xf] %v1903
        %1968 = vst [vmem:[%s265 + $0x4c] sm:$0xf] %v1904
        %1969 = vst [vmem:[%s265 + $0x50] sm:$0xf] %v1905
        %1970 = vst [vmem:[%s265 + $0x54] sm:$0xf] %v1906
        %1971 = vst [vmem:[%s265 + $0x58] sm:$0xf] %v1907
        %1972 = vst [vmem:[%s265 + $0x5c] sm:$0xf] %v1908
        %1973 = vst [vmem:[%s265 + $0x60] sm:$0xf] %v1909
        %1974 = vst [vmem:[%s265 + $0x64] sm:$0xf] %v1910
        %1975 = vst [vmem:[%s265 + $0x68] sm:$0xf] %v1911
        %1976 = vst [vmem:[%s265 + $0x6c] sm:$0xf] %v1912
        %1977 = vst [vmem:[%s265 + $0x70] sm:$0xf] %v1913
        %1978 = vst [vmem:[%s265 + $0x74] sm:$0xf] %v1914
        %1979 = vst [vmem:[%s265 + $0x78] sm:$0xf] %v1915
        %1980 = vst [vmem:[%s265 + $0x7c] sm:$0xf] %v1916
      $region40: #{forward.18} parent=31 // pred_fallthru
        _
      %s1981 = smul.u32 32, %s19
      %p1982 = scmp.lt.s32.totalorder %s1981, 63
      %s1983 = scalar_select %p1982, %s1981, 63
      %p1984 = scmp.lt.s32.totalorder %s20, 0
      %s1985 = scalar_select %p1984, %s20, 0
      %s1986 = sadd.s32 %s1985, %s1983
      %s1987 = smul.addr %s1986, 4
      %s1988 = scalar_lea.vmem %s3, %s1987
      // Predicated region
      $region41: #{forward.18} parent=31 // pred_check
        %p1989 = pneg %p135
      $region42: #{forward.18} parent=31 // pred_check_branch
        %1991 = sbr.rel (%p1989) target = $region44
      $region43: #{forward.18} parent=31 // pred_region
        %s1992 = smul.u32 32, %s19
      $region44: #{forward.18} parent=31 // pred_fallthru
        _
    $region32: #{forward.18} parent=5 // pred_fallthru
      _
    %p1993 = scmp.le.s32.totalorder 2, %s9
    // Predicated region
    $region45: #{forward.18} parent=5 // pred_check
      %p1994 = pneg %p1993
    $region46: #{forward.18} parent=5 // pred_check_branch
      %1996 = sbr.rel (%p1994) target = $region48
    $region47: #{forward.18} parent=5 // pred_region
      %s1997 = ssub.s32 %s9, 2
      // Predicated region
      $region49: #{forward.18} parent=47 // pred_check
        %p1998 = pneg %p141
      $region50: #{forward.18} parent=47 // pred_check_branch
        %2000 = sbr.rel (%p1998) target = $region52
      $region51: #{forward.18} parent=47 // pred_region
        %s2001 = smul.u32 32, %s22
        %p2002 = scmp.lt.s32.totalorder %s2001, 63
        %s2003 = scalar_select %p2002, %s2001, 63
        %p2004 = scmp.lt.s32.totalorder %s23, 0
        %s2005 = scalar_select %p2004, %s23, 0
        %s2006 = sadd.s32 %s2005, %s2003
        %s2007 = smul.addr %s2006, 4
        %s2008 = scalar_lea.vmem %s3, %s2007
      $region52: #{forward.18} parent=47 // pred_fallthru
        _
    $region48: #{forward.18} parent=5 // pred_fallthru
      _
  $region6: #{forward.18} parent=0 // loop_footer
    %s13 = sadd.s32 1, %s9
  $region7: #{forward.18} parent=0 // loop_footer_branch
    %8 = sbr.rel target = $region3
  $region8: #{forward.18} parent=0 // loop_exit
    _

// kernel: forward.21
$region0: #{forward.21}
  #allocation0 [shape = 'u32[]', space=smem, size = 0x4, offset = 0x4, fixed_abs, tag = 'smem constant byte address 0x4 - core index']
  #allocation1 [shape = 'u32[144,128]{1,0:T(1,128)}', space=vmem, size = 0x12000, scoped, tag = 'internal scratch']
  #allocation2 [shape = 'f32[104,256]{1,0:T(8,128)}', space=vmem, size = 0x1a000, scoped, tag = 'scratch operand']
  %s0 = inlined_call_operand.vmem [shape: bf16[104,1792], index: 0, kind: input, shape index: {}]
  %s1 = inlined_call_operand.vmem [shape: bf16[1792,256], index: 1, kind: input, shape index: {}]
  %s2 = inlined_call_operand.vmem [shape: f32[1,256], index: 2, kind: input, shape index: {}]
  %s3 = inlined_call_operand.vmem [shape: bf16[104,256], index: 3, kind: output, shape index: {}]
  %s4 = sld [smem:[#allocation0]]
  $region30: #{forward.21} parent=0
    _
  %s6 = ssub.s32 1, %s4
  %s7 = scalar_select 0, %s6, %s4
  // Predicated region
  $region2: #{forward.21} parent=0 // pred_check
    _
  $region3: #{forward.21} parent=0 // pred_check_branch
    %9 = sbr.rel (0) target = $region5
  $region4: #{forward.21} parent=0 // pred_region
    _
  $region5: #{forward.21} parent=0 // pred_fallthru
    _
  // Predicated region
  $region6: #{forward.21} parent=0 // pred_check
    _
  $region7: #{forward.21} parent=0 // pred_check_branch
    %11 = sbr.rel (0) target = $region9
  $region8: #{forward.21} parent=0 // pred_region
    _
  $region9: #{forward.21} parent=0 // pred_fallthru
    _
  // Predicated region
  $region10: #{forward.21} parent=0 // pred_check
    _
  $region11: #{forward.21} parent=0 // pred_check_branch
    %13 = sbr.rel (0) target = $region13
  $region12: #{forward.21} parent=0 // pred_region
    _
  $region13: #{forward.21} parent=0 // pred_fallthru
    _
  %p14 = scmp.eq.s32.totalorder 0, 0
  // Predicated region
  $region14: #{forward.21} parent=0 // pred_check
    %p15 = pneg %p14
  $region15: #{forward.21} parent=0 // pred_check_branch
    %17 = sbr.rel (%p15) target = $region17
  $region16: #{forward.21} parent=0 // pred_region
    %18 = vst [vmem:[#allocation2] sm:$0xff] 0.0
    %19 = vst [vmem:[#allocation2 + $0x8] sm:$0xff] 0.0
    %20 = vst [vmem:[#allocation2 + $0x10] sm:$0xff] 0.0
    %21 = vst [vmem:[#allocation2 + $0x18] sm:$0xff] 0.0
    %22 = vst [vmem:[#allocation2 + $0x20] sm:$0xff] 0.0
    %23 = vst [vmem:[#allocation2 + $0x28] sm:$0xff] 0.0
    %24 = vst [vmem:[#allocation2 + $0x30] sm:$0xff] 0.0
    %25 = vst [vmem:[#allocation2 + $0x38] sm:$0xff] 0.0
    %26 = vst [vmem:[#allocation2 + $0x40] sm:$0xff] 0.0
    %27 = vst [vmem:[#allocation2 + $0x48] sm:$0xff] 0.0
    %28 = vst [vmem:[#allocation2 + $0x50] sm:$0xff] 0.0
    %29 = vst [vmem:[#allocation2 + $0x58] sm:$0xff] 0.0
    %30 = vst [vmem:[#allocation2 + $0x60] sm:$0xff] 0.0
    %31 = vst [vmem:[#allocation2 + $0x68] sm:$0xff] 0.0
    %32 = vst [vmem:[#allocation2 + $0x70] sm:$0xff] 0.0
    %33 = vst [vmem:[#allocation2 + $0x78] sm:$0xff] 0.0
    %34 = vst [vmem:[#allocation2 + $0x80] sm:$0xff] 0.0
    %35 = vst [vmem:[#allocation2 + $0x88] sm:$0xff] 0.0
    %36 = vst [vmem:[#allocation2 + $0x90] sm:$0xff] 0.0
    %37 = vst [vmem:[#allocation2 + $0x98] sm:$0xff] 0.0
    %38 = vst [vmem:[#allocation2 + $0xa0] sm:$0xff] 0.0
    %39 = vst [vmem:[#allocation2 + $0xa8] sm:$0xff] 0.0
    %40 = vst [vmem:[#allocation2 + $0xb0] sm:$0xff] 0.0
    %41 = vst [vmem:[#allocation2 + $0xb8] sm:$0xff] 0.0
    %42 = vst [vmem:[#allocation2 + $0xc0] sm:$0xff] 0.0
    %43 = vst [vmem:[#allocation2 + $0xc8] sm:$0xff] 0.0
  $region17: #{forward.21} parent=0 // pred_fallthru
    _
  %v44 = vld [vmem:[#allocation2] sm:$0xff]
  %v45 = vld [vmem:[#allocation2 + $0x8] sm:$0xff]
  %v46 = vld [vmem:[#allocation2 + $0x10] sm:$0xff]
  %v47 = vld [vmem:[#allocation2 + $0x18] sm:$0xff]
  %v48 = vld [vmem:[#allocation2 + $0x20] sm:$0xff]
  %v49 = vld [vmem:[#allocation2 + $0x28] sm:$0xff]
  %v50 = vld [vmem:[#allocation2 + $0x30] sm:$0xff]
  %v51 = vld [vmem:[#allocation2 + $0x38] sm:$0xff]
  %v52 = vld [vmem:[#allocation2 + $0x40] sm:$0xff]
  %v53 = vld [vmem:[#allocation2 + $0x48] sm:$0xff]
  %v54 = vld [vmem:[#allocation2 + $0x50] sm:$0xff]
  %v55 = vld [vmem:[#allocation2 + $0x58] sm:$0xff]
  %v56 = vld [vmem:[#allocation2 + $0x60] sm:$0xff]
  %v57 = vld [vmem:[#allocation2 + $0x68] sm:$0xff]
  %v58 = vld [vmem:[#allocation2 + $0x70] sm:$0xff]
  %v59 = vld [vmem:[#allocation2 + $0x78] sm:$0xff]
  %v60 = vld [vmem:[#allocation2 + $0x80] sm:$0xff]
  %v61 = vld [vmem:[#allocation2 + $0x88] sm:$0xff]
  %v62 = vld [vmem:[#allocation2 + $0x90] sm:$0xff]
  %v63 = vld [vmem:[#allocation2 + $0x98] sm:$0xff]
  %v64 = vld [vmem:[#allocation2 + $0xa0] sm:$0xff]
  %v65 = vld [vmem:[#allocation2 + $0xa8] sm:$0xff]
  %v66 = vld [vmem:[#allocation2 + $0xb0] sm:$0xff]
  %v67 = vld [vmem:[#allocation2 + $0xb8] sm:$0xff]
  %v68 = vld [vmem:[#allocation2 + $0xc0] sm:$0xff]
  %v69 = vld [vmem:[#allocation2 + $0xc8] sm:$0xff]
  %v70 = vld [vmem:[%s0] sm:$0xff]
  %v71 = vld [vmem:[%s0 + $0x8] sm:$0xff]
  %v72 = vld [vmem:[%s0 + $0x10] sm:$0xff]
  %v73 = vld [vmem:[%s0 + $0x18] sm:$0xff]
  %v74 = vld [vmem:[%s0 + $0x20] sm:$0xff]
  %v75 = vld [vmem:[%s0 + $0x28] sm:$0xff]
  %v76 = vld [vmem:[%s0 + $0x30] sm:$0xff]
  %v77 = vld [vmem:[%s0 + $0x38] sm:$0xff]
  %v78 = vld [vmem:[%s0 + $0x40] sm:$0xff]
  %v79 = vld [vmem:[%s0 + $0x48] sm:$0xff]
  %v80 = vld [vmem:[%s0 + $0x50] sm:$0xff]
  %v81 = vld [vmem:[%s0 + $0x58] sm:$0xff]
  %v82 = vld [vmem:[%s0 + $0x60] sm:$0xff]
  %v83 = vld [vmem:[%s0 + $0x68] sm:$0xff]
  %v84 = vld [vmem:[%s0 + $0x70] sm:$0xff]
  %v85 = vld [vmem:[%s0 + $0x78] sm:$0xff]
  %v86 = vld [vmem:[%s0 + $0x80] sm:$0xff]
  %v87 = vld [vmem:[%s0 + $0x88] sm:$0xff]
  %v88 = vld [vmem:[%s0 + $0x90] sm:$0xff]
  %v89 = vld [vmem:[%s0 + $0x98] sm:$0xff]
  %v90 = vld [vmem:[%s0 + $0xa0] sm:$0xff]
  %v91 = vld [vmem:[%s0 + $0xa8] sm:$0xff]
  %v92 = vld [vmem:[%s0 + $0xb0] sm:$0xff]
  %v93 = vld [vmem:[%s0 + $0xb8] sm:$0xff]
  %v94 = vld [vmem:[%s0 + $0xc0] sm:$0xff]
  %v95 = vld [vmem:[%s0 + $0xc8] sm:$0xff]
  %v96 = vld [vmem:[%s0 + $0xd0] sm:$0xff]
  %v97 = vld [vmem:[%s0 + $0xd8] sm:$0xff]
  %v98 = vld [vmem:[%s0 + $0xe0] sm:$0xff]
  %v99 = vld [vmem:[%s0 + $0xe8] sm:$0xff]
  %v100 = vld [vmem:[%s0 + $0xf0] sm:$0xff]
  %v101 = vld [vmem:[%s0 + $0xf8] sm:$0xff]
  %v102 = vld [vmem:[%s0 + $0x100] sm:$0xff]
  %v103 = vld [vmem:[%s0 + $0x108] sm:$0xff]
  %v104 = vld [vmem:[%s0 + $0x110] sm:$0xff]
  %v105 = vld [vmem:[%s0 + $0x118] sm:$0xff]
  %v106 = vld [vmem:[%s0 + $0x120] sm:$0xff]
  %v107 = vld [vmem:[%s0 + $0x128] sm:$0xff]
  %v108 = vld [vmem:[%s0 + $0x130] sm:$0xff]
  %v109 = vld [vmem:[%s0 + $0x138] sm:$0xff]
  %v110 = vld [vmem:[%s0 + $0x140] sm:$0xff]
  %v111 = vld [vmem:[%s0 + $0x148] sm:$0xff]
  %v112 = vld [vmem:[%s0 + $0x150] sm:$0xff]
  %v113 = vld [vmem:[%s0 + $0x158] sm:$0xff]
  %v114 = vld [vmem:[%s0 + $0x160] sm:$0xff]
  %v115 = vld [vmem:[%s0 + $0x168] sm:$0xff]
  %v116 = vld [vmem:[%s0 + $0x170] sm:$0xff]
  %v117 = vld [vmem:[%s0 + $0x178] sm:$0xff]
  %v118 = vld [vmem:[%s0 + $0x180] sm:$0xff]
  %v119 = vld [vmem:[%s0 + $0x188] sm:$0xff]
  %v120 = vld [vmem:[%s0 + $0x190] sm:$0xff]
  %v121 = vld [vmem:[%s0 + $0x198] sm:$0xff]
  %v122 = vld [vmem:[%s0 + $0x1a0] sm:$0xff]
  %v123 = vld [vmem:[%s0 + $0x1a8] sm:$0xff]
  %v124 = vld [vmem:[%s0 + $0x1b0] sm:$0xff]
  %v125 = vld [vmem:[%s0 + $0x1b8] sm:$0xff]
  %v126 = vld [vmem:[%s0 + $0x1c0] sm:$0xff]
  %v127 = vld [vmem:[%s0 + $0x1c8] sm:$0xff]
  %v128 = vld [vmem:[%s0 + $0x1d0] sm:$0xff]
  %v129 = vld [vmem:[%s0 + $0x1d8] sm:$0xff]
  %v130 = vld [vmem:[%s0 + $0x1e0] sm:$0xff]
  %v131 = vld [vmem:[%s0 + $0x1e8] sm:$0xff]
  %v132 = vld [vmem:[%s0 + $0x1f0] sm:$0xff]
  %v133 = vld [vmem:[%s0 + $0x1f8] sm:$0xff]
  %v134 = vld [vmem:[%s0 + $0x200] sm:$0xff]
  %v135 = vld [vmem:[%s0 + $0x208] sm:$0xff]
  %v136 = vld [vmem:[%s0 + $0x210] sm:$0xff]
  %v137 = vld [vmem:[%s0 + $0x218] sm:$0xff]
  %v138 = vld [vmem:[%s0 + $0x220] sm:$0xff]
  %v139 = vld [vmem:[%s0 + $0x228] sm:$0xff]
  %v140 = vld [vmem:[%s0 + $0x230] sm:$0xff]
  %v141 = vld [vmem:[%s0 + $0x238] sm:$0xff]
  %v142 = vld [vmem:[%s0 + $0x240] sm:$0xff]
  %v143 = vld [vmem:[%s0 + $0x248] sm:$0xff]
  %v144 = vld [vmem:[%s0 + $0x250] sm:$0xff]
  %v145 = vld [vmem:[%s0 + $0x258] sm:$0xff]
  %v146 = vld [vmem:[%s0 + $0x260] sm:$0xff]
  %v147 = vld [vmem:[%s0 + $0x268] sm:$0xff]
  %v148 = vld [vmem:[%s0 + $0x270] sm:$0xff]
  %v149 = vld [vmem:[%s0 + $0x278] sm:$0xff]
  %v150 = vld [vmem:[%s0 + $0x280] sm:$0xff]
  %v151 = vld [vmem:[%s0 + $0x288] sm:$0xff]
  %v152 = vld [vmem:[%s0 + $0x290] sm:$0xff]
  %v153 = vld [vmem:[%s0 + $0x298] sm:$0xff]
  %v154 = vld [vmem:[%s0 + $0x2a0] sm:$0xff]
  %v155 = vld [vmem:[%s0 + $0x2a8] sm:$0xff]
  %v156 = vld [vmem:[%s0 + $0x2b0] sm:$0xff]
  %v157 = vld [vmem:[%s0 + $0x2b8] sm:$0xff]
  %v158 = vld [vmem:[%s0 + $0x2c0] sm:$0xff]
  %v159 = vld [vmem:[%s0 + $0x2c8] sm:$0xff]
  %v160 = vld [vmem:[%s0 + $0x2d0] sm:$0xff]
  %v161 = vld [vmem:[%s1] sm:$0xff]
  %v162 = vld [vmem:[%s1 + $0x8] sm:$0xff]
  %v163 = vld [vmem:[%s1 + $0x10] sm:$0xff]
  %v164 = vld [vmem:[%s1 + $0x18] sm:$0xff]
  %v165 = vld [vmem:[%s1 + $0x20] sm:$0xff]
  %v166 = vld [vmem:[%s1 + $0x28] sm:$0xff]
  %v167 = vld [vmem:[%s1 + $0x30] sm:$0xff]
  %v168 = vld [vmem:[%s1 + $0x38] sm:$0xff]
  %v169 = vld [vmem:[%s1 + $0x40] sm:$0xff]
  %v170 = vld [vmem:[%s1 + $0x48] sm:$0xff]
  %v171 = vld [vmem:[%s1 + $0x50] sm:$0xff]
  %v172 = vld [vmem:[%s1 + $0x58] sm:$0xff]
  %v173 = vld [vmem:[%s1 + $0x60] sm:$0xff]
  %v174 = vld [vmem:[%s1 + $0x68] sm:$0xff]
  %v175 = vld [vmem:[%s1 + $0x70] sm:$0xff]
  %v176 = vld [vmem:[%s1 + $0x78] sm:$0xff]
  %v177 = vld [vmem:[%s1 + $0x80] sm:$0xff]
  %v178 = vld [vmem:[%s1 + $0x88] sm:$0xff]
  %v179 = vld [vmem:[%s1 + $0x90] sm:$0xff]
  %v180 = vld [vmem:[%s1 + $0x98] sm:$0xff]
  %v181 = vld [vmem:[%s1 + $0xa0] sm:$0xff]
  %v182 = vld [vmem:[%s1 + $0xa8] sm:$0xff]
  %v183 = vld [vmem:[%s1 + $0xb0] sm:$0xff]
  %v184 = vld [vmem:[%s1 + $0xb8] sm:$0xff]
  %v185 = vld [vmem:[%s1 + $0xc0] sm:$0xff]
  %v186 = vld [vmem:[%s1 + $0xc8] sm:$0xff]
  %v187 = vld [vmem:[%s1 + $0xd0] sm:$0xff]
  %v188 = vld [vmem:[%s1 + $0xd8] sm:$0xff]
  %v189 = vld [vmem:[%s1 + $0xe0] sm:$0xff]
  %v190 = vld [vmem:[%s1 + $0xe8] sm:$0xff]
  %v191 = vld [vmem:[%s1 + $0xf0] sm:$0xff]
  %v192 = vld [vmem:[%s1 + $0xf8] sm:$0xff]
  %v193 = vld [vmem:[%s1 + $0x100] sm:$0xff]
  %v194 = vld [vmem:[%s1 + $0x108] sm:$0xff]
  %v195 = vld [vmem:[%s1 + $0x110] sm:$0xff]
  %v196 = vld [vmem:[%s1 + $0x118] sm:$0xff]
  %v197 = vld [vmem:[%s1 + $0x120] sm:$0xff]
  %v198 = vld [vmem:[%s1 + $0x128] sm:$0xff]
  %v199 = vld [vmem:[%s1 + $0x130] sm:$0xff]
  %v200 = vld [vmem:[%s1 + $0x138] sm:$0xff]
  %v201 = vld [vmem:[%s1 + $0x140] sm:$0xff]
  %v202 = vld [vmem:[%s1 + $0x148] sm:$0xff]
  %v203 = vld [vmem:[%s1 + $0x150] sm:$0xff]
  %v204 = vld [vmem:[%s1 + $0x158] sm:$0xff]
  %v205 = vld [vmem:[%s1 + $0x160] sm:$0xff]
  %v206 = vld [vmem:[%s1 + $0x168] sm:$0xff]
  %v207 = vld [vmem:[%s1 + $0x170] sm:$0xff]
  %v208 = vld [vmem:[%s1 + $0x178] sm:$0xff]
  %v209 = vld [vmem:[%s1 + $0x180] sm:$0xff]
  %v210 = vld [vmem:[%s1 + $0x188] sm:$0xff]
  %v211 = vld [vmem:[%s1 + $0x190] sm:$0xff]
  %v212 = vld [vmem:[%s1 + $0x198] sm:$0xff]
  %v213 = vld [vmem:[%s1 + $0x1a0] sm:$0xff]
  %v214 = vld [vmem:[%s1 + $0x1a8] sm:$0xff]
  %v215 = vld [vmem:[%s1 + $0x1b0] sm:$0xff]
  %v216 = vld [vmem:[%s1 + $0x1b8] sm:$0xff]
  %v217 = vld [vmem:[%s1 + $0x1c0] sm:$0xff]
  %v218 = vld [vmem:[%s1 + $0x1c8] sm:$0xff]
  %v219 = vld [vmem:[%s1 + $0x1d0] sm:$0xff]
  %v220 = vld [vmem:[%s1 + $0x1d8] sm:$0xff]
  %v221 = vld [vmem:[%s1 + $0x1e0] sm:$0xff]
  %v222 = vld [vmem:[%s1 + $0x1e8] sm:$0xff]
  %v223 = vld [vmem:[%s1 + $0x1f0] sm:$0xff]
  %v224 = vld [vmem:[%s1 + $0x1f8] sm:$0xff]
  %v225 = vld [vmem:[%s1 + $0x200] sm:$0xff]
  %v226 = vld [vmem:[%s1 + $0x208] sm:$0xff]
  %v227 = vld [vmem:[%s1 + $0x210] sm:$0xff]
  %v228 = vld [vmem:[%s1 + $0x218] sm:$0xff]
  %v229 = vld [vmem:[%s1 + $0x220] sm:$0xff]
  %v230 = vld [vmem:[%s1 + $0x228] sm:$0xff]
  %v231 = vld [vmem:[%s1 + $0x230] sm:$0xff]
  %v232 = vld [vmem:[%s1 + $0x238] sm:$0xff]
  %v233 = vld [vmem:[%s1 + $0x240] sm:$0xff]
  %v234 = vld [vmem:[%s1 + $0x248] sm:$0xff]
  %v235 = vld [vmem:[%s1 + $0x250] sm:$0xff]
  %v236 = vld [vmem:[%s1 + $0x258] sm:$0xff]
  %v237 = vld [vmem:[%s1 + $0x260] sm:$0xff]
  %v238 = vld [vmem:[%s1 + $0x268] sm:$0xff]
  %v239 = vld [vmem:[%s1 + $0x270] sm:$0xff]
  %v240 = vld [vmem:[%s1 + $0x278] sm:$0xff]
  %v241 = vld [vmem:[%s1 + $0x280] sm:$0xff]
  %v242 = vld [vmem:[%s1 + $0x288] sm:$0xff]
  %v243 = vld [vmem:[%s1 + $0x290] sm:$0xff]
  %v244 = vld [vmem:[%s1 + $0x298] sm:$0xff]
  %v245 = vld [vmem:[%s1 + $0x2a0] sm:$0xff]
  %v246 = vld [vmem:[%s1 + $0x2a8] sm:$0xff]
  %v247 = vld [vmem:[%s1 + $0x2b0] sm:$0xff]
  %v248 = vld [vmem:[%s1 + $0x2b8] sm:$0xff]
  %v249 = vld [vmem:[%s1 + $0x2c0] sm:$0xff]
  %v250 = vld [vmem:[%s1 + $0x2c8] sm:$0xff]
  %v251 = vld [vmem:[%s1 + $0x2d0] sm:$0xff]
  %v252 = vld [vmem:[%s1 + $0x2d8] sm:$0xff]
  %v253 = vld [vmem:[%s1 + $0x2e0] sm:$0xff]
  %v254 = vld [vmem:[%s1 + $0x2e8] sm:$0xff]
  %v255 = vld [vmem:[%s1 + $0x2f0] sm:$0xff]
  %v256 = vld [vmem:[%s1 + $0x2f8] sm:$0xff]
  %v257 = vld [vmem:[%s1 + $0x300] sm:$0xff]
  %v258 = vld [vmem:[%s1 + $0x308] sm:$0xff]
  %v259 = vld [vmem:[%s1 + $0x310] sm:$0xff]
  %v260 = vld [vmem:[%s1 + $0x318] sm:$0xff]
  %v261 = vld [vmem:[%s1 + $0x320] sm:$0xff]
  %v262 = vld [vmem:[%s1 + $0x328] sm:$0xff]
  %v263 = vld [vmem:[%s1 + $0x330] sm:$0xff]
  %v264 = vld [vmem:[%s1 + $0x338] sm:$0xff]
  %v265 = vld [vmem:[%s1 + $0x340] sm:$0xff]
  %v266 = vld [vmem:[%s1 + $0x348] sm:$0xff]
  %v267 = vld [vmem:[%s1 + $0x350] sm:$0xff]
  %v268 = vld [vmem:[%s1 + $0x358] sm:$0xff]
  %v269 = vld [vmem:[%s1 + $0x360] sm:$0xff]
  %v270 = vld [vmem:[%s1 + $0x368] sm:$0xff]
  %v271 = vld [vmem:[%s1 + $0x370] sm:$0xff]
  %v272 = vld [vmem:[%s1 + $0x378] sm:$0xff]
  %v273 = vld [vmem:[%s1 + $0x380] sm:$0xff]
  %v274 = vld [vmem:[%s1 + $0x388] sm:$0xff]
  %v275 = vld [vmem:[%s1 + $0x390] sm:$0xff]
  %v276 = vld [vmem:[%s1 + $0x398] sm:$0xff]
  %v277 = vld [vmem:[%s1 + $0x3a0] sm:$0xff]
  %v278 = vld [vmem:[%s1 + $0x3a8] sm:$0xff]
  %v279 = vld [vmem:[%s1 + $0x3b0] sm:$0xff]
  %v280 = vld [vmem:[%s1 + $0x3b8] sm:$0xff]
  %v281 = vld [vmem:[%s1 + $0x3c0] sm:$0xff]
  %v282 = vld [vmem:[%s1 + $0x3c8] sm:$0xff]
  %v283 = vld [vmem:[%s1 + $0x3d0] sm:$0xff]
  %v284 = vld [vmem:[%s1 + $0x3d8] sm:$0xff]
  %v285 = vld [vmem:[%s1 + $0x3e0] sm:$0xff]
  %v286 = vld [vmem:[%s1 + $0x3e8] sm:$0xff]
  %v287 = vld [vmem:[%s1 + $0x3f0] sm:$0xff]
  %v288 = vld [vmem:[%s1 + $0x3f8] sm:$0xff]
  %v289 = vld [vmem:[%s1 + $0x400] sm:$0xff]
  %v290 = vld [vmem:[%s1 + $0x408] sm:$0xff]
  %v291 = vld [vmem:[%s1 + $0x410] sm:$0xff]
  %v292 = vld [vmem:[%s1 + $0x418] sm:$0xff]
  %v293 = vld [vmem:[%s1 + $0x420] sm:$0xff]
  %v294 = vld [vmem:[%s1 + $0x428] sm:$0xff]
  %v295 = vld [vmem:[%s1 + $0x430] sm:$0xff]
  %v296 = vld [vmem:[%s1 + $0x438] sm:$0xff]
  %v297 = vld [vmem:[%s1 + $0x440] sm:$0xff]
  %v298 = vld [vmem:[%s1 + $0x448] sm:$0xff]
  %v299 = vld [vmem:[%s1 + $0x450] sm:$0xff]
  %v300 = vld [vmem:[%s1 + $0x458] sm:$0xff]
  %v301 = vld [vmem:[%s1 + $0x460] sm:$0xff]
  %v302 = vld [vmem:[%s1 + $0x468] sm:$0xff]
  %v303 = vld [vmem:[%s1 + $0x470] sm:$0xff]
  %v304 = vld [vmem:[%s1 + $0x478] sm:$0xff]
  %v305 = vld [vmem:[%s1 + $0x480] sm:$0xff]
  %v306 = vld [vmem:[%s1 + $0x488] sm:$0xff]
  %v307 = vld [vmem:[%s1 + $0x490] sm:$0xff]
  %v308 = vld [vmem:[%s1 + $0x498] sm:$0xff]
  %v309 = vld [vmem:[%s1 + $0x4a0] sm:$0xff]
  %v310 = vld [vmem:[%s1 + $0x4a8] sm:$0xff]
  %v311 = vld [vmem:[%s1 + $0x4b0] sm:$0xff]
  %v312 = vld [vmem:[%s1 + $0x4b8] sm:$0xff]
  %v313 = vld [vmem:[%s1 + $0x4c0] sm:$0xff]
  %v314 = vld [vmem:[%s1 + $0x4c8] sm:$0xff]
  %v315 = vld [vmem:[%s1 + $0x4d0] sm:$0xff]
  %v316 = vld [vmem:[%s1 + $0x4d8] sm:$0xff]
  %v317 = vld [vmem:[%s1 + $0x4e0] sm:$0xff]
  %v318 = vld [vmem:[%s1 + $0x4e8] sm:$0xff]
  %v319 = vld [vmem:[%s1 + $0x4f0] sm:$0xff]
  %v320 = vld [vmem:[%s1 + $0x4f8] sm:$0xff]
  %v321 = vld [vmem:[%s1 + $0x500] sm:$0xff]
  %v322 = vld [vmem:[%s1 + $0x508] sm:$0xff]
  %v323 = vld [vmem:[%s1 + $0x510] sm:$0xff]
  %v324 = vld [vmem:[%s1 + $0x518] sm:$0xff]
  %v325 = vld [vmem:[%s1 + $0x520] sm:$0xff]
  %v326 = vld [vmem:[%s1 + $0x528] sm:$0xff]
  %v327 = vld [vmem:[%s1 + $0x530] sm:$0xff]
  %v328 = vld [vmem:[%s1 + $0x538] sm:$0xff]
  %v329 = vld [vmem:[%s1 + $0x540] sm:$0xff]
  %v330 = vld [vmem:[%s1 + $0x548] sm:$0xff]
  %v331 = vld [vmem:[%s1 + $0x550] sm:$0xff]
  %v332 = vld [vmem:[%s1 + $0x558] sm:$0xff]
  %v333 = vld [vmem:[%s1 + $0x560] sm:$0xff]
  %v334 = vld [vmem:[%s1 + $0x568] sm:$0xff]
  %v335 = vld [vmem:[%s1 + $0x570] sm:$0xff]
  %v336 = vld [vmem:[%s1 + $0x578] sm:$0xff]
  %v337 = vld [vmem:[%s1 + $0x580] sm:$0xff]
  %v338 = vld [vmem:[%s1 + $0x588] sm:$0xff]
  %v339 = vld [vmem:[%s1 + $0x590] sm:$0xff]
  %v340 = vld [vmem:[%s1 + $0x598] sm:$0xff]
  %v341 = vld [vmem:[%s1 + $0x5a0] sm:$0xff]
  %v342 = vld [vmem:[%s1 + $0x5a8] sm:$0xff]
  %v343 = vld [vmem:[%s1 + $0x5b0] sm:$0xff]
  %v344 = vld [vmem:[%s1 + $0x5b8] sm:$0xff]
  %v345 = vld [vmem:[%s1 + $0x5c0] sm:$0xff]
  %v346 = vld [vmem:[%s1 + $0x5c8] sm:$0xff]
  %v347 = vld [vmem:[%s1 + $0x5d0] sm:$0xff]
  %v348 = vld [vmem:[%s1 + $0x5d8] sm:$0xff]
  %v349 = vld [vmem:[%s1 + $0x5e0] sm:$0xff]
  %v350 = vld [vmem:[%s1 + $0x5e8] sm:$0xff]
  %v351 = vld [vmem:[%s1 + $0x5f0] sm:$0xff]
  %v352 = vld [vmem:[%s1 + $0x5f8] sm:$0xff]
  %v353 = vld [vmem:[%s1 + $0x600] sm:$0xff]
  %v354 = vld [vmem:[%s1 + $0x608] sm:$0xff]
  %v355 = vld [vmem:[%s1 + $0x610] sm:$0xff]
  %v356 = vld [vmem:[%s1 + $0x618] sm:$0xff]
  %v357 = vld [vmem:[%s1 + $0x620] sm:$0xff]
  %v358 = vld [vmem:[%s1 + $0x628] sm:$0xff]
  %v359 = vld [vmem:[%s1 + $0x630] sm:$0xff]
  %v360 = vld [vmem:[%s1 + $0x638] sm:$0xff]
  %v361 = vld [vmem:[%s1 + $0x640] sm:$0xff]
  %v362 = vld [vmem:[%s1 + $0x648] sm:$0xff]
  %v363 = vld [vmem:[%s1 + $0x650] sm:$0xff]
  %v364 = vld [vmem:[%s1 + $0x658] sm:$0xff]
  %v365 = vld [vmem:[%s1 + $0x660] sm:$0xff]
  %v366 = vld [vmem:[%s1 + $0x668] sm:$0xff]
  %v367 = vld [vmem:[%s1 + $0x670] sm:$0xff]
  %v368 = vld [vmem:[%s1 + $0x678] sm:$0xff]
  %v369 = vld [vmem:[%s1 + $0x680] sm:$0xff]
  %v370 = vld [vmem:[%s1 + $0x688] sm:$0xff]
  %v371 = vld [vmem:[%s1 + $0x690] sm:$0xff]
  %v372 = vld [vmem:[%s1 + $0x698] sm:$0xff]
  %v373 = vld [vmem:[%s1 + $0x6a0] sm:$0xff]
  %v374 = vld [vmem:[%s1 + $0x6a8] sm:$0xff]
  %v375 = vld [vmem:[%s1 + $0x6b0] sm:$0xff]
  %v376 = vld [vmem:[%s1 + $0x6b8] sm:$0xff]
  %v377 = vld [vmem:[%s1 + $0x6c0] sm:$0xff]
  %v378 = vld [vmem:[%s1 + $0x6c8] sm:$0xff]
  %v379 = vld [vmem:[%s1 + $0x6d0] sm:$0xff]
  %v380 = vld [vmem:[%s1 + $0x6d8] sm:$0xff]
  %v381 = vld [vmem:[%s1 + $0x6e0] sm:$0xff]
  %v382 = vld [vmem:[%s1 + $0x6e8] sm:$0xff]
  %v383 = vld [vmem:[%s1 + $0x6f0] sm:$0xff]
  %v384 = vld [vmem:[%s1 + $0x6f8] sm:$0xff]
  %v476 = vunpack.c.l.b16 %v70
  %v477 = vunpack.c.h.b16 %v70
  %v478 = vunpack.c.l.b16 %v71
  %v479 = vunpack.c.h.b16 %v71
  %v480 = vunpack.c.l.b16 %v72
  %v481 = vunpack.c.h.b16 %v72
  %v482 = vunpack.c.l.b16 %v73
  %v483 = vunpack.c.h.b16 %v73
  %v484 = vunpack.c.l.b16 %v74
  %v485 = vunpack.c.h.b16 %v74
  %v486 = vunpack.c.l.b16 %v75
  %v487 = vunpack.c.h.b16 %v75
  %v488 = vunpack.c.l.b16 %v76
  %v489 = vunpack.c.h.b16 %v76
  %v490 = vunpack.c.l.b16 %v77
  %v491 = vunpack.c.h.b16 %v77
  %v492 = vunpack.c.l.b16 %v78
  %v493 = vunpack.c.h.b16 %v78
  %v494 = vunpack.c.l.b16 %v79
  %v495 = vunpack.c.h.b16 %v79
  %v496 = vunpack.c.l.b16 %v80
  %v497 = vunpack.c.h.b16 %v80
  %v498 = vunpack.c.l.b16 %v81
  %v499 = vunpack.c.h.b16 %v81
  %v500 = vunpack.c.l.b16 %v82
  %v501 = vunpack.c.h.b16 %v82
  %v502 = vunpack.c.l.b16 %v83
  %v503 = vunpack.c.h.b16 %v83
  %v504 = vunpack.c.l.b16 %v84
  %v505 = vunpack.c.h.b16 %v84
  %v506 = vunpack.c.l.b16 %v85
  %v507 = vunpack.c.h.b16 %v85
  %v508 = vunpack.c.l.b16 %v86
  %v509 = vunpack.c.h.b16 %v86
  %v510 = vunpack.c.l.b16 %v87
  %v511 = vunpack.c.h.b16 %v87
  %v512 = vunpack.c.l.b16 %v88
  %v513 = vunpack.c.h.b16 %v88
  %v514 = vunpack.c.l.b16 %v89
  %v515 = vunpack.c.h.b16 %v89
  %v516 = vunpack.c.l.b16 %v90
  %v517 = vunpack.c.h.b16 %v90
  %v518 = vunpack.c.l.b16 %v91
  %v519 = vunpack.c.h.b16 %v91
  %v520 = vunpack.c.l.b16 %v92
  %v521 = vunpack.c.h.b16 %v92
  %v522 = vunpack.c.l.b16 %v93
  %v523 = vunpack.c.h.b16 %v93
  %v524 = vunpack.c.l.b16 %v94
  %v525 = vunpack.c.h.b16 %v94
  %v526 = vunpack.c.l.b16 %v95
  %v527 = vunpack.c.h.b16 %v95
  %v528 = vunpack.c.l.b16 %v96
  %v529 = vunpack.c.h.b16 %v96
  %v530 = vunpack.c.l.b16 %v97
  %v531 = vunpack.c.h.b16 %v97
  %v532 = vunpack.c.l.b16 %v98
  %v533 = vunpack.c.h.b16 %v98
  %v534 = vunpack.c.l.b16 %v99
  %v535 = vunpack.c.h.b16 %v99
  %v536 = vunpack.c.l.b16 %v100
  %v537 = vunpack.c.h.b16 %v100
  %v538 = vunpack.c.l.b16 %v101
  %v539 = vunpack.c.h.b16 %v101
  %v540 = vunpack.c.l.b16 %v102
  %v541 = vunpack.c.h.b16 %v102
  %v542 = vunpack.c.l.b16 %v103
  %v543 = vunpack.c.h.b16 %v103
  %v544 = vunpack.c.l.b16 %v104
  %v545 = vunpack.c.h.b16 %v104
  %v546 = vunpack.c.l.b16 %v105
  %v547 = vunpack.c.h.b16 %v105
  %v548 = vunpack.c.l.b16 %v106
  %v549 = vunpack.c.h.b16 %v106
  %v550 = vunpack.c.l.b16 %v107
  %v551 = vunpack.c.h.b16 %v107
  %v552 = vunpack.c.l.b16 %v108
  %v553 = vunpack.c.h.b16 %v108
  %v554 = vunpack.c.l.b16 %v109
  %v555 = vunpack.c.h.b16 %v109
  %v556 = vunpack.c.l.b16 %v110
  %v557 = vunpack.c.h.b16 %v110
  %v558 = vunpack.c.l.b16 %v111
  %v559 = vunpack.c.h.b16 %v111
  %v560 = vunpack.c.l.b16 %v112
  %v561 = vunpack.c.h.b16 %v112
  %v562 = vunpack.c.l.b16 %v113
  %v563 = vunpack.c.h.b16 %v113
  %v564 = vunpack.c.l.b16 %v114
  %v565 = vunpack.c.h.b16 %v114
  %v566 = vunpack.c.l.b16 %v115
  %v567 = vunpack.c.h.b16 %v115
  %v568 = vunpack.c.l.b16 %v116
  %v569 = vunpack.c.h.b16 %v116
  %v570 = vunpack.c.l.b16 %v117
  %v571 = vunpack.c.h.b16 %v117
  %v572 = vunpack.c.l.b16 %v118
  %v573 = vunpack.c.h.b16 %v118
  %v574 = vunpack.c.l.b16 %v119
  %v575 = vunpack.c.h.b16 %v119
  %v576 = vunpack.c.l.b16 %v120
  %v577 = vunpack.c.h.b16 %v120
  %v578 = vunpack.c.l.b16 %v121
  %v579 = vunpack.c.h.b16 %v121
  %v580 = vunpack.c.l.b16 %v122
  %v581 = vunpack.c.h.b16 %v122
  %v582 = vunpack.c.l.b16 %v123
  %v583 = vunpack.c.h.b16 %v123
  %v584 = vunpack.c.l.b16 %v124
  %v585 = vunpack.c.h.b16 %v124
  %v586 = vunpack.c.l.b16 %v125
  %v587 = vunpack.c.h.b16 %v125
  %v588 = vunpack.c.l.b16 %v126
  %v589 = vunpack.c.h.b16 %v126
  %v590 = vunpack.c.l.b16 %v127
  %v591 = vunpack.c.h.b16 %v127
  %v592 = vunpack.c.l.b16 %v128
  %v593 = vunpack.c.h.b16 %v128
  %v594 = vunpack.c.l.b16 %v129
  %v595 = vunpack.c.h.b16 %v129
  %v596 = vunpack.c.l.b16 %v130
  %v597 = vunpack.c.h.b16 %v130
  %v598 = vunpack.c.l.b16 %v131
  %v599 = vunpack.c.h.b16 %v131
  %v600 = vunpack.c.l.b16 %v132
  %v601 = vunpack.c.h.b16 %v132
  %v602 = vunpack.c.l.b16 %v133
  %v603 = vunpack.c.h.b16 %v133
  %v604 = vunpack.c.l.b16 %v134
  %v605 = vunpack.c.h.b16 %v134
  %v606 = vunpack.c.l.b16 %v135
  %v607 = vunpack.c.h.b16 %v135
  %v608 = vunpack.c.l.b16 %v136
  %v609 = vunpack.c.h.b16 %v136
  %v610 = vunpack.c.l.b16 %v137
  %v611 = vunpack.c.h.b16 %v137
  %v612 = vunpack.c.l.b16 %v138
  %v613 = vunpack.c.h.b16 %v138
  %v614 = vunpack.c.l.b16 %v139
  %v615 = vunpack.c.h.b16 %v139
  %v616 = vunpack.c.l.b16 %v140
  %v617 = vunpack.c.h.b16 %v140
  %v618 = vunpack.c.l.b16 %v141
  %v619 = vunpack.c.h.b16 %v141
  %v620 = vunpack.c.l.b16 %v142
  %v621 = vunpack.c.h.b16 %v142
  %v622 = vunpack.c.l.b16 %v143
  %v623 = vunpack.c.h.b16 %v143
  %v624 = vunpack.c.l.b16 %v144
  %v625 = vunpack.c.h.b16 %v144
  %v626 = vunpack.c.l.b16 %v145
  %v627 = vunpack.c.h.b16 %v145
  %v628 = vunpack.c.l.b16 %v146
  %v629 = vunpack.c.h.b16 %v146
  %v630 = vunpack.c.l.b16 %v147
  %v631 = vunpack.c.h.b16 %v147
  %v632 = vunpack.c.l.b16 %v148
  %v633 = vunpack.c.h.b16 %v148
  %v634 = vunpack.c.l.b16 %v149
  %v635 = vunpack.c.h.b16 %v149
  %v636 = vunpack.c.l.b16 %v150
  %v637 = vunpack.c.h.b16 %v150
  %v638 = vunpack.c.l.b16 %v151
  %v639 = vunpack.c.h.b16 %v151
  %v640 = vunpack.c.l.b16 %v152
  %v641 = vunpack.c.h.b16 %v152
  %v642 = vunpack.c.l.b16 %v153
  %v643 = vunpack.c.h.b16 %v153
  %v644 = vunpack.c.l.b16 %v154
  %v645 = vunpack.c.h.b16 %v154
  %v646 = vunpack.c.l.b16 %v155
  %v647 = vunpack.c.h.b16 %v155
  %v648 = vunpack.c.l.b16 %v156
  %v649 = vunpack.c.h.b16 %v156
  %v650 = vunpack.c.l.b16 %v157
  %v651 = vunpack.c.h.b16 %v157
  %v652 = vunpack.c.l.b16 %v158
  %v653 = vunpack.c.h.b16 %v158
  %v654 = vunpack.c.l.b16 %v159
  %v655 = vunpack.c.h.b16 %v159
  %v656 = vunpack.c.l.b16 %v160
  %v657 = vunpack.c.h.b16 %v160
  %v658 = vpack.c.b16 %v490, %v476
  %v659 = vpack.c.b16 %v491, %v477
  %v660 = vpack.c.b16 %v492, %v478
  %v661 = vpack.c.b16 %v493, %v479
  %v662 = vpack.c.b16 %v494, %v480
  %v663 = vpack.c.b16 %v495, %v481
  %v664 = vpack.c.b16 %v496, %v482
  %v665 = vpack.c.b16 %v497, %v483
  %v666 = vpack.c.b16 %v498, %v484
  %v667 = vpack.c.b16 %v499, %v485
  %v668 = vpack.c.b16 %v500, %v486
  %v669 = vpack.c.b16 %v501, %v487
  %v670 = vpack.c.b16 %v502, %v488
  %v671 = vpack.c.b16 %v503, %v489
  %v672 = vpack.c.b16 %v518, %v504
  %v673 = vpack.c.b16 %v519, %v505
  %v674 = vpack.c.b16 %v520, %v506
  %v675 = vpack.c.b16 %v521, %v507
  %v676 = vpack.c.b16 %v522, %v508
  %v677 = vpack.c.b16 %v523, %v509
  %v678 = vpack.c.b16 %v524, %v510
  %v679 = vpack.c.b16 %v525, %v511
  %v680 = vpack.c.b16 %v526, %v512
  %v681 = vpack.c.b16 %v527, %v513
  %v682 = vpack.c.b16 %v528, %v514
  %v683 = vpack.c.b16 %v529, %v515
  %v684 = vpack.c.b16 %v530, %v516
  %v685 = vpack.c.b16 %v531, %v517
  %v686 = vpack.c.b16 %v546, %v532
  %v687 = vpack.c.b16 %v547, %v533
  %v688 = vpack.c.b16 %v548, %v534
  %v689 = vpack.c.b16 %v549, %v535
  %v690 = vpack.c.b16 %v550, %v536
  %v691 = vpack.c.b16 %v551, %v537
  %v692 = vpack.c.b16 %v552, %v538
  %v693 = vpack.c.b16 %v553, %v539
  %v694 = vpack.c.b16 %v554, %v540
  %v695 = vpack.c.b16 %v555, %v541
  %v696 = vpack.c.b16 %v556, %v542
  %v697 = vpack.c.b16 %v557, %v543
  %v698 = vpack.c.b16 %v558, %v544
  %v699 = vpack.c.b16 %v559, %v545
  %v700 = vpack.c.b16 %v574, %v560
  %v701 = vpack.c.b16 %v575, %v561
  %v702 = vpack.c.b16 %v576, %v562
  %v703 = vpack.c.b16 %v577, %v563
  %v704 = vpack.c.b16 %v578, %v564
  %v705 = vpack.c.b16 %v579, %v565
  %v706 = vpack.c.b16 %v580, %v566
  %v707 = vpack.c.b16 %v581, %v567
  %v708 = vpack.c.b16 %v582, %v568
  %v709 = vpack.c.b16 %v583, %v569
  %v710 = vpack.c.b16 %v584, %v570
  %v711 = vpack.c.b16 %v585, %v571
  %v712 = vpack.c.b16 %v586, %v572
  %v713 = vpack.c.b16 %v587, %v573
  %v714 = vpack.c.b16 %v602, %v588
  %v715 = vpack.c.b16 %v603, %v589
  %v716 = vpack.c.b16 %v604, %v590
  %v717 = vpack.c.b16 %v605, %v591
  %v718 = vpack.c.b16 %v606, %v592
  %v719 = vpack.c.b16 %v607, %v593
  %v720 = vpack.c.b16 %v608, %v594
  %v721 = vpack.c.b16 %v609, %v595
  %v722 = vpack.c.b16 %v610, %v596
  %v723 = vpack.c.b16 %v611, %v597
  %v724 = vpack.c.b16 %v612, %v598
  %v725 = vpack.c.b16 %v613, %v599
  %v726 = vpack.c.b16 %v614, %v600
  %v727 = vpack.c.b16 %v615, %v601
  %v728 = vpack.c.b16 %v630, %v616
  %v729 = vpack.c.b16 %v631, %v617
  %v730 = vpack.c.b16 %v632, %v618
  %v731 = vpack.c.b16 %v633, %v619
  %v732 = vpack.c.b16 %v634, %v620
  %v733 = vpack.c.b16 %v635, %v621
  %v734 = vpack.c.b16 %v636, %v622
  %v735 = vpack.c.b16 %v637, %v623
  %v736 = vpack.c.b16 %v638, %v624
  %v737 = vpack.c.b16 %v639, %v625
  %v738 = vpack.c.b16 %v640, %v626
  %v739 = vpack.c.b16 %v641, %v627
  %v740 = vpack.c.b16 %v642, %v628
  %v741 = vpack.c.b16 %v643, %v629
  %v742 = vpack.c.b16 %v644, %v644
  %v743 = vpack.c.b16 %v645, %v645
  %v744 = vpack.c.b16 %v646, %v646
  %v745 = vpack.c.b16 %v647, %v647
  %v746 = vpack.c.b16 %v648, %v648
  %v747 = vpack.c.b16 %v649, %v649
  %v748 = vpack.c.b16 %v650, %v650
  %v749 = vpack.c.b16 %v651, %v651
  %v750 = vpack.c.b16 %v652, %v652
  %v751 = vpack.c.b16 %v653, %v653
  %v752 = vpack.c.b16 %v654, %v654
  %v753 = vpack.c.b16 %v655, %v655
  %v754 = vpack.c.b16 %v656, %v656
  %v755 = vpack.c.b16 %v657, %v657
  %v1078 = vunpack.c.l.b16 %v161
  %v1079 = vunpack.c.h.b16 %v161
  %v1080 = vunpack.c.l.b16 %v162
  %v1081 = vunpack.c.h.b16 %v162
  %v1082 = vunpack.c.l.b16 %v163
  %v1083 = vunpack.c.h.b16 %v163
  %v1084 = vunpack.c.l.b16 %v164
  %v1085 = vunpack.c.h.b16 %v164
  %v1086 = vunpack.c.l.b16 %v165
  %v1087 = vunpack.c.h.b16 %v165
  %v1088 = vunpack.c.l.b16 %v166
  %v1089 = vunpack.c.h.b16 %v166
  %v1090 = vunpack.c.l.b16 %v167
  %v1091 = vunpack.c.h.b16 %v167
  %v1092 = vunpack.c.l.b16 %v168
  %v1093 = vunpack.c.h.b16 %v168
  %v1094 = vunpack.c.l.b16 %v169
  %v1095 = vunpack.c.h.b16 %v169
  %v1096 = vunpack.c.l.b16 %v170
  %v1097 = vunpack.c.h.b16 %v170
  %v1098 = vunpack.c.l.b16 %v171
  %v1099 = vunpack.c.h.b16 %v171
  %v1100 = vunpack.c.l.b16 %v172
  %v1101 = vunpack.c.h.b16 %v172
  %v1102 = vunpack.c.l.b16 %v173
  %v1103 = vunpack.c.h.b16 %v173
  %v1104 = vunpack.c.l.b16 %v174
  %v1105 = vunpack.c.h.b16 %v174
  %v1106 = vunpack.c.l.b16 %v175
  %v1107 = vunpack.c.h.b16 %v175
  %v1108 = vunpack.c.l.b16 %v176
  %v1109 = vunpack.c.h.b16 %v176
  %v1110 = vunpack.c.l.b16 %v177
  %v1111 = vunpack.c.h.b16 %v177
  %v1112 = vunpack.c.l.b16 %v178
  %v1113 = vunpack.c.h.b16 %v178
  %v1114 = vunpack.c.l.b16 %v179
  %v1115 = vunpack.c.h.b16 %v179
  %v1116 = vunpack.c.l.b16 %v180
  %v1117 = vunpack.c.h.b16 %v180
  %v1118 = vunpack.c.l.b16 %v181
  %v1119 = vunpack.c.h.b16 %v181
  %v1120 = vunpack.c.l.b16 %v182
  %v1121 = vunpack.c.h.b16 %v182
  %v1122 = vunpack.c.l.b16 %v183
  %v1123 = vunpack.c.h.b16 %v183
  %v1124 = vunpack.c.l.b16 %v184
  %v1125 = vunpack.c.h.b16 %v184
  %v1126 = vunpack.c.l.b16 %v185
  %v1127 = vunpack.c.h.b16 %v185
  %v1128 = vunpack.c.l.b16 %v186
  %v1129 = vunpack.c.h.b16 %v186
  %v1130 = vunpack.c.l.b16 %v187
  %v1131 = vunpack.c.h.b16 %v187
  %v1132 = vunpack.c.l.b16 %v188
  %v1133 = vunpack.c.h.b16 %v188
  %v1134 = vunpack.c.l.b16 %v189
  %v1135 = vunpack.c.h.b16 %v189
  %v1136 = vunpack.c.l.b16 %v190
  %v1137 = vunpack.c.h.b16 %v190
  %v1138 = vunpack.c.l.b16 %v191
  %v1139 = vunpack.c.h.b16 %v191
  %v1140 = vunpack.c.l.b16 %v192
  %v1141 = vunpack.c.h.b16 %v192
  %v1142 = vunpack.c.l.b16 %v193
  %v1143 = vunpack.c.h.b16 %v193
  %v1144 = vunpack.c.l.b16 %v194
  %v1145 = vunpack.c.h.b16 %v194
  %v1146 = vunpack.c.l.b16 %v195
  %v1147 = vunpack.c.h.b16 %v195
  %v1148 = vunpack.c.l.b16 %v196
  %v1149 = vunpack.c.h.b16 %v196
  %v1150 = vunpack.c.l.b16 %v197
  %v1151 = vunpack.c.h.b16 %v197
  %v1152 = vunpack.c.l.b16 %v198
  %v1153 = vunpack.c.h.b16 %v198
  %v1154 = vunpack.c.l.b16 %v199
  %v1155 = vunpack.c.h.b16 %v199
  %v1156 = vunpack.c.l.b16 %v200
  %v1157 = vunpack.c.h.b16 %v200
  %v1158 = vunpack.c.l.b16 %v201
  %v1159 = vunpack.c.h.b16 %v201
  %v1160 = vunpack.c.l.b16 %v202
  %v1161 = vunpack.c.h.b16 %v202
  %v1162 = vunpack.c.l.b16 %v203
  %v1163 = vunpack.c.h.b16 %v203
  %v1164 = vunpack.c.l.b16 %v204
  %v1165 = vunpack.c.h.b16 %v204
  %v1166 = vunpack.c.l.b16 %v205
  %v1167 = vunpack.c.h.b16 %v205
  %v1168 = vunpack.c.l.b16 %v206
  %v1169 = vunpack.c.h.b16 %v206
  %v1170 = vunpack.c.l.b16 %v207
  %v1171 = vunpack.c.h.b16 %v207
  %v1172 = vunpack.c.l.b16 %v208
  %v1173 = vunpack.c.h.b16 %v208
  %v1174 = vunpack.c.l.b16 %v209
  %v1175 = vunpack.c.h.b16 %v209
  %v1176 = vunpack.c.l.b16 %v210
  %v1177 = vunpack.c.h.b16 %v210
  %v1178 = vunpack.c.l.b16 %v211
  %v1179 = vunpack.c.h.b16 %v211
  %v1180 = vunpack.c.l.b16 %v212
  %v1181 = vunpack.c.h.b16 %v212
  %v1182 = vunpack.c.l.b16 %v213
  %v1183 = vunpack.c.h.b16 %v213
  %v1184 = vunpack.c.l.b16 %v214
  %v1185 = vunpack.c.h.b16 %v214
  %v1186 = vunpack.c.l.b16 %v215
  %v1187 = vunpack.c.h.b16 %v215
  %v1188 = vunpack.c.l.b16 %v216
  %v1189 = vunpack.c.h.b16 %v216
  %v1190 = vunpack.c.l.b16 %v217
  %v1191 = vunpack.c.h.b16 %v217
  %v1192 = vunpack.c.l.b16 %v218
  %v1193 = vunpack.c.h.b16 %v218
  %v1194 = vunpack.c.l.b16 %v219
  %v1195 = vunpack.c.h.b16 %v219
  %v1196 = vunpack.c.l.b16 %v220
  %v1197 = vunpack.c.h.b16 %v220
  %v1198 = vunpack.c.l.b16 %v221
  %v1199 = vunpack.c.h.b16 %v221
  %v1200 = vunpack.c.l.b16 %v222
  %v1201 = vunpack.c.h.b16 %v222
  %v1202 = vunpack.c.l.b16 %v223
  %v1203 = vunpack.c.h.b16 %v223
  %v1204 = vunpack.c.l.b16 %v224
  %v1205 = vunpack.c.h.b16 %v224
  %v1206 = vunpack.c.l.b16 %v225
  %v1207 = vunpack.c.h.b16 %v225
  %v1208 = vunpack.c.l.b16 %v226
  %v1209 = vunpack.c.h.b16 %v226
  %v1210 = vunpack.c.l.b16 %v227
  %v1211 = vunpack.c.h.b16 %v227
  %v1212 = vunpack.c.l.b16 %v228
  %v1213 = vunpack.c.h.b16 %v228
  %v1214 = vunpack.c.l.b16 %v229
  %v1215 = vunpack.c.h.b16 %v229
  %v1216 = vunpack.c.l.b16 %v230
  %v1217 = vunpack.c.h.b16 %v230
  %v1218 = vunpack.c.l.b16 %v231
  %v1219 = vunpack.c.h.b16 %v231
  %v1220 = vunpack.c.l.b16 %v232
  %v1221 = vunpack.c.h.b16 %v232
  %v1222 = vunpack.c.l.b16 %v233
  %v1223 = vunpack.c.h.b16 %v233
  %v1224 = vunpack.c.l.b16 %v234
  %v1225 = vunpack.c.h.b16 %v234
  %v1226 = vunpack.c.l.b16 %v235
  %v1227 = vunpack.c.h.b16 %v235
  %v1228 = vunpack.c.l.b16 %v236
  %v1229 = vunpack.c.h.b16 %v236
  %v1230 = vunpack.c.l.b16 %v237
  %v1231 = vunpack.c.h.b16 %v237
  %v1232 = vunpack.c.l.b16 %v238
  %v1233 = vunpack.c.h.b16 %v238
  %v1234 = vunpack.c.l.b16 %v239
  %v1235 = vunpack.c.h.b16 %v239
  %v1236 = vunpack.c.l.b16 %v240
  %v1237 = vunpack.c.h.b16 %v240
  %v1238 = vunpack.c.l.b16 %v241
  %v1239 = vunpack.c.h.b16 %v241
  %v1240 = vunpack.c.l.b16 %v242
  %v1241 = vunpack.c.h.b16 %v242
  %v1242 = vunpack.c.l.b16 %v243
  %v1243 = vunpack.c.h.b16 %v243
  %v1244 = vunpack.c.l.b16 %v244
  %v1245 = vunpack.c.h.b16 %v244
  %v1246 = vunpack.c.l.b16 %v245
  %v1247 = vunpack.c.h.b16 %v245
  %v1248 = vunpack.c.l.b16 %v246
  %v1249 = vunpack.c.h.b16 %v246
  %v1250 = vunpack.c.l.b16 %v247
  %v1251 = vunpack.c.h.b16 %v247
  %v1252 = vunpack.c.l.b16 %v248
  %v1253 = vunpack.c.h.b16 %v248
  %v1254 = vunpack.c.l.b16 %v249
  %v1255 = vunpack.c.h.b16 %v249
  %v1256 = vunpack.c.l.b16 %v250
  %v1257 = vunpack.c.h.b16 %v250
  %v1258 = vunpack.c.l.b16 %v251
  %v1259 = vunpack.c.h.b16 %v251
  %v1260 = vunpack.c.l.b16 %v252
  %v1261 = vunpack.c.h.b16 %v252
  %v1262 = vunpack.c.l.b16 %v253
  %v1263 = vunpack.c.h.b16 %v253
  %v1264 = vunpack.c.l.b16 %v254
  %v1265 = vunpack.c.h.b16 %v254
  %v1266 = vunpack.c.l.b16 %v255
  %v1267 = vunpack.c.h.b16 %v255
  %v1268 = vunpack.c.l.b16 %v256
  %v1269 = vunpack.c.h.b16 %v256
  %v1270 = vunpack.c.l.b16 %v257
  %v1271 = vunpack.c.h.b16 %v257
  %v1272 = vunpack.c.l.b16 %v258
  %v1273 = vunpack.c.h.b16 %v258
  %v1274 = vunpack.c.l.b16 %v259
  %v1275 = vunpack.c.h.b16 %v259
  %v1276 = vunpack.c.l.b16 %v260
  %v1277 = vunpack.c.h.b16 %v260
  %v1278 = vunpack.c.l.b16 %v261
  %v1279 = vunpack.c.h.b16 %v261
  %v1280 = vunpack.c.l.b16 %v262
  %v1281 = vunpack.c.h.b16 %v262
  %v1282 = vunpack.c.l.b16 %v263
  %v1283 = vunpack.c.h.b16 %v263
  %v1284 = vunpack.c.l.b16 %v264
  %v1285 = vunpack.c.h.b16 %v264
  %v1286 = vunpack.c.l.b16 %v265
  %v1287 = vunpack.c.h.b16 %v265
  %v1288 = vunpack.c.l.b16 %v266
  %v1289 = vunpack.c.h.b16 %v266
  %v1290 = vunpack.c.l.b16 %v267
  %v1291 = vunpack.c.h.b16 %v267
  %v1292 = vunpack.c.l.b16 %v268
  %v1293 = vunpack.c.h.b16 %v268
  %v1294 = vunpack.c.l.b16 %v269
  %v1295 = vunpack.c.h.b16 %v269
  %v1296 = vunpack.c.l.b16 %v270
  %v1297 = vunpack.c.h.b16 %v270
  %v1298 = vunpack.c.l.b16 %v271
  %v1299 = vunpack.c.h.b16 %v271
  %v1300 = vunpack.c.l.b16 %v272
  %v1301 = vunpack.c.h.b16 %v272
  %v1302 = vunpack.c.l.b16 %v273
  %v1303 = vunpack.c.h.b16 %v273
  %v1304 = vunpack.c.l.b16 %v274
  %v1305 = vunpack.c.h.b16 %v274
  %v1306 = vunpack.c.l.b16 %v275
  %v1307 = vunpack.c.h.b16 %v275
  %v1308 = vunpack.c.l.b16 %v276
  %v1309 = vunpack.c.h.b16 %v276
  %v1310 = vunpack.c.l.b16 %v277
  %v1311 = vunpack.c.h.b16 %v277
  %v1312 = vunpack.c.l.b16 %v278
  %v1313 = vunpack.c.h.b16 %v278
  %v1314 = vunpack.c.l.b16 %v279
  %v1315 = vunpack.c.h.b16 %v279
  %v1316 = vunpack.c.l.b16 %v280
  %v1317 = vunpack.c.h.b16 %v280
  %v1318 = vunpack.c.l.b16 %v281
  %v1319 = vunpack.c.h.b16 %v281
  %v1320 = vunpack.c.l.b16 %v282
  %v1321 = vunpack.c.h.b16 %v282
  %v1322 = vunpack.c.l.b16 %v283
  %v1323 = vunpack.c.h.b16 %v283
  %v1324 = vunpack.c.l.b16 %v284
  %v1325 = vunpack.c.h.b16 %v284
  %v1326 = vunpack.c.l.b16 %v285
  %v1327 = vunpack.c.h.b16 %v285
  %v1328 = vunpack.c.l.b16 %v286
  %v1329 = vunpack.c.h.b16 %v286
  %v1330 = vunpack.c.l.b16 %v287
  %v1331 = vunpack.c.h.b16 %v287
  %v1332 = vunpack.c.l.b16 %v288
  %v1333 = vunpack.c.h.b16 %v288
  %v1334 = vunpack.c.l.b16 %v289
  %v1335 = vunpack.c.h.b16 %v289
  %v1336 = vunpack.c.l.b16 %v290
  %v1337 = vunpack.c.h.b16 %v290
  %v1338 = vunpack.c.l.b16 %v291
  %v1339 = vunpack.c.h.b16 %v291
  %v1340 = vunpack.c.l.b16 %v292
  %v1341 = vunpack.c.h.b16 %v292
  %v1342 = vunpack.c.l.b16 %v293
  %v1343 = vunpack.c.h.b16 %v293
  %v1344 = vunpack.c.l.b16 %v294
  %v1345 = vunpack.c.h.b16 %v294
  %v1346 = vunpack.c.l.b16 %v295
  %v1347 = vunpack.c.h.b16 %v295
  %v1348 = vunpack.c.l.b16 %v296
  %v1349 = vunpack.c.h.b16 %v296
  %v1350 = vunpack.c.l.b16 %v297
  %v1351 = vunpack.c.h.b16 %v297
  %v1352 = vunpack.c.l.b16 %v298
  %v1353 = vunpack.c.h.b16 %v298
  %v1354 = vunpack.c.l.b16 %v299
  %v1355 = vunpack.c.h.b16 %v299
  %v1356 = vunpack.c.l.b16 %v300
  %v1357 = vunpack.c.h.b16 %v300
  %v1358 = vunpack.c.l.b16 %v301
  %v1359 = vunpack.c.h.b16 %v301
  %v1360 = vunpack.c.l.b16 %v302
  %v1361 = vunpack.c.h.b16 %v302
  %v1362 = vunpack.c.l.b16 %v303
  %v1363 = vunpack.c.h.b16 %v303
  %v1364 = vunpack.c.l.b16 %v304
  %v1365 = vunpack.c.h.b16 %v304
  %v1366 = vunpack.c.l.b16 %v305
  %v1367 = vunpack.c.h.b16 %v305
  %v1368 = vunpack.c.l.b16 %v306
  %v1369 = vunpack.c.h.b16 %v306
  %v1370 = vunpack.c.l.b16 %v307
  %v1371 = vunpack.c.h.b16 %v307
  %v1372 = vunpack.c.l.b16 %v308
  %v1373 = vunpack.c.h.b16 %v308
  %v1374 = vunpack.c.l.b16 %v309
  %v1375 = vunpack.c.h.b16 %v309
  %v1376 = vunpack.c.l.b16 %v310
  %v1377 = vunpack.c.h.b16 %v310
  %v1378 = vunpack.c.l.b16 %v311
  %v1379 = vunpack.c.h.b16 %v311
  %v1380 = vunpack.c.l.b16 %v312
  %v1381 = vunpack.c.h.b16 %v312
  %v1382 = vunpack.c.l.b16 %v313
  %v1383 = vunpack.c.h.b16 %v313
  %v1384 = vunpack.c.l.b16 %v314
  %v1385 = vunpack.c.h.b16 %v314
  %v1386 = vunpack.c.l.b16 %v315
  %v1387 = vunpack.c.h.b16 %v315
  %v1388 = vunpack.c.l.b16 %v316
  %v1389 = vunpack.c.h.b16 %v316
  %v1390 = vunpack.c.l.b16 %v317
  %v1391 = vunpack.c.h.b16 %v317
  %v1392 = vunpack.c.l.b16 %v318
  %v1393 = vunpack.c.h.b16 %v318
  %v1394 = vunpack.c.l.b16 %v319
  %v1395 = vunpack.c.h.b16 %v319
  %v1396 = vunpack.c.l.b16 %v320
  %v1397 = vunpack.c.h.b16 %v320
  %v1398 = vunpack.c.l.b16 %v321
  %v1399 = vunpack.c.h.b16 %v321
  %v1400 = vunpack.c.l.b16 %v322
  %v1401 = vunpack.c.h.b16 %v322
  %v1402 = vunpack.c.l.b16 %v323
  %v1403 = vunpack.c.h.b16 %v323
  %v1404 = vunpack.c.l.b16 %v324
  %v1405 = vunpack.c.h.b16 %v324
  %v1406 = vunpack.c.l.b16 %v325
  %v1407 = vunpack.c.h.b16 %v325
  %v1408 = vunpack.c.l.b16 %v326
  %v1409 = vunpack.c.h.b16 %v326
  %v1410 = vunpack.c.l.b16 %v327
  %v1411 = vunpack.c.h.b16 %v327
  %v1412 = vunpack.c.l.b16 %v328
  %v1413 = vunpack.c.h.b16 %v328
  %v1414 = vunpack.c.l.b16 %v329
  %v1415 = vunpack.c.h.b16 %v329
  %v1416 = vunpack.c.l.b16 %v330
  %v1417 = vunpack.c.h.b16 %v330
  %v1418 = vunpack.c.l.b16 %v331
  %v1419 = vunpack.c.h.b16 %v331
  %v1420 = vunpack.c.l.b16 %v332
  %v1421 = vunpack.c.h.b16 %v332
  %v1422 = vunpack.c.l.b16 %v333
  %v1423 = vunpack.c.h.b16 %v333
  %v1424 = vunpack.c.l.b16 %v334
  %v1425 = vunpack.c.h.b16 %v334
  %v1426 = vunpack.c.l.b16 %v335
  %v1427 = vunpack.c.h.b16 %v335
  %v1428 = vunpack.c.l.b16 %v336
  %v1429 = vunpack.c.h.b16 %v336
  %v1430 = vunpack.c.l.b16 %v337
  %v1431 = vunpack.c.h.b16 %v337
  %v1432 = vunpack.c.l.b16 %v338
  %v1433 = vunpack.c.h.b16 %v338
  %v1434 = vunpack.c.l.b16 %v339
  %v1435 = vunpack.c.h.b16 %v339
  %v1436 = vunpack.c.l.b16 %v340
  %v1437 = vunpack.c.h.b16 %v340
  %v1438 = vunpack.c.l.b16 %v341
  %v1439 = vunpack.c.h.b16 %v341
  %v1440 = vunpack.c.l.b16 %v342
  %v1441 = vunpack.c.h.b16 %v342
  %v1442 = vunpack.c.l.b16 %v343
  %v1443 = vunpack.c.h.b16 %v343
  %v1444 = vunpack.c.l.b16 %v344
  %v1445 = vunpack.c.h.b16 %v344
  %v1446 = vunpack.c.l.b16 %v345
  %v1447 = vunpack.c.h.b16 %v345
  %v1448 = vunpack.c.l.b16 %v346
  %v1449 = vunpack.c.h.b16 %v346
  %v1450 = vunpack.c.l.b16 %v347
  %v1451 = vunpack.c.h.b16 %v347
  %v1452 = vunpack.c.l.b16 %v348
  %v1453 = vunpack.c.h.b16 %v348
  %v1454 = vunpack.c.l.b16 %v349
  %v1455 = vunpack.c.h.b16 %v349
  %v1456 = vunpack.c.l.b16 %v350
  %v1457 = vunpack.c.h.b16 %v350
  %v1458 = vunpack.c.l.b16 %v351
  %v1459 = vunpack.c.h.b16 %v351
  %v1460 = vunpack.c.l.b16 %v352
  %v1461 = vunpack.c.h.b16 %v352
  %v1462 = vunpack.c.l.b16 %v353
  %v1463 = vunpack.c.h.b16 %v353
  %v1464 = vunpack.c.l.b16 %v354
  %v1465 = vunpack.c.h.b16 %v354
  %v1466 = vunpack.c.l.b16 %v355
  %v1467 = vunpack.c.h.b16 %v355
  %v1468 = vunpack.c.l.b16 %v356
  %v1469 = vunpack.c.h.b16 %v356
  %v1470 = vunpack.c.l.b16 %v357
  %v1471 = vunpack.c.h.b16 %v357
  %v1472 = vunpack.c.l.b16 %v358
  %v1473 = vunpack.c.h.b16 %v358
  %v1474 = vunpack.c.l.b16 %v359
  %v1475 = vunpack.c.h.b16 %v359
  %v1476 = vunpack.c.l.b16 %v360
  %v1477 = vunpack.c.h.b16 %v360
  %v1478 = vunpack.c.l.b16 %v361
  %v1479 = vunpack.c.h.b16 %v361
  %v1480 = vunpack.c.l.b16 %v362
  %v1481 = vunpack.c.h.b16 %v362
  %v1482 = vunpack.c.l.b16 %v363
  %v1483 = vunpack.c.h.b16 %v363
  %v1484 = vunpack.c.l.b16 %v364
  %v1485 = vunpack.c.h.b16 %v364
  %v1486 = vunpack.c.l.b16 %v365
  %v1487 = vunpack.c.h.b16 %v365
  %v1488 = vunpack.c.l.b16 %v366
  %v1489 = vunpack.c.h.b16 %v366
  %v1490 = vunpack.c.l.b16 %v367
  %v1491 = vunpack.c.h.b16 %v367
  %v1492 = vunpack.c.l.b16 %v368
  %v1493 = vunpack.c.h.b16 %v368
  %v1494 = vunpack.c.l.b16 %v369
  %v1495 = vunpack.c.h.b16 %v369
  %v1496 = vunpack.c.l.b16 %v370
  %v1497 = vunpack.c.h.b16 %v370
  %v1498 = vunpack.c.l.b16 %v371
  %v1499 = vunpack.c.h.b16 %v371
  %v1500 = vunpack.c.l.b16 %v372
  %v1501 = vunpack.c.h.b16 %v372
  %v1502 = vunpack.c.l.b16 %v373
  %v1503 = vunpack.c.h.b16 %v373
  %v1504 = vunpack.c.l.b16 %v374
  %v1505 = vunpack.c.h.b16 %v374
  %v1506 = vunpack.c.l.b16 %v375
  %v1507 = vunpack.c.h.b16 %v375
  %v1508 = vunpack.c.l.b16 %v376
  %v1509 = vunpack.c.h.b16 %v376
  %v1510 = vunpack.c.l.b16 %v377
  %v1511 = vunpack.c.h.b16 %v377
  %v1512 = vunpack.c.l.b16 %v378
  %v1513 = vunpack.c.h.b16 %v378
  %v1514 = vunpack.c.l.b16 %v379
  %v1515 = vunpack.c.h.b16 %v379
  %v1516 = vunpack.c.l.b16 %v380
  %v1517 = vunpack.c.h.b16 %v380
  %v1518 = vunpack.c.l.b16 %v381
  %v1519 = vunpack.c.h.b16 %v381
  %v1520 = vunpack.c.l.b16 %v382
  %v1521 = vunpack.c.h.b16 %v382
  %v1522 = vunpack.c.l.b16 %v383
  %v1523 = vunpack.c.h.b16 %v383
  %v1524 = vunpack.c.l.b16 %v384
  %v1525 = vunpack.c.h.b16 %v384
  %v1526 = vpack.c.b16 %v1080, %v1078
  %v1527 = vpack.c.b16 %v1081, %v1079
  %v1528 = vpack.c.b16 %v1084, %v1082
  %v1529 = vpack.c.b16 %v1085, %v1083
  %v1530 = vpack.c.b16 %v1088, %v1086
  %v1531 = vpack.c.b16 %v1089, %v1087
  %v1532 = vpack.c.b16 %v1092, %v1090
  %v1533 = vpack.c.b16 %v1093, %v1091
  %v1534 = vpack.c.b16 %v1096, %v1094
  %v1535 = vpack.c.b16 %v1097, %v1095
  %v1536 = vpack.c.b16 %v1100, %v1098
  %v1537 = vpack.c.b16 %v1101, %v1099
  %v1538 = vpack.c.b16 %v1104, %v1102
  %v1539 = vpack.c.b16 %v1105, %v1103
  %v1540 = vpack.c.b16 %v1108, %v1106
  %v1541 = vpack.c.b16 %v1109, %v1107
  %v1542 = vpack.c.b16 %v1112, %v1110
  %v1543 = vpack.c.b16 %v1113, %v1111
  %v1544 = vpack.c.b16 %v1116, %v1114
  %v1545 = vpack.c.b16 %v1117, %v1115
  %v1546 = vpack.c.b16 %v1120, %v1118
  %v1547 = vpack.c.b16 %v1121, %v1119
  %v1548 = vpack.c.b16 %v1124, %v1122
  %v1549 = vpack.c.b16 %v1125, %v1123
  %v1550 = vpack.c.b16 %v1128, %v1126
  %v1551 = vpack.c.b16 %v1129, %v1127
  %v1552 = vpack.c.b16 %v1132, %v1130
  %v1553 = vpack.c.b16 %v1133, %v1131
  %v1554 = vpack.c.b16 %v1136, %v1134
  %v1555 = vpack.c.b16 %v1137, %v1135
  %v1556 = vpack.c.b16 %v1140, %v1138
  %v1557 = vpack.c.b16 %v1141, %v1139
  %v1558 = vpack.c.b16 %v1144, %v1142
  %v1559 = vpack.c.b16 %v1145, %v1143
  %v1560 = vpack.c.b16 %v1148, %v1146
  %v1561 = vpack.c.b16 %v1149, %v1147
  %v1562 = vpack.c.b16 %v1152, %v1150
  %v1563 = vpack.c.b16 %v1153, %v1151
  %v1564 = vpack.c.b16 %v1156, %v1154
  %v1565 = vpack.c.b16 %v1157, %v1155
  %v1566 = vpack.c.b16 %v1160, %v1158
  %v1567 = vpack.c.b16 %v1161, %v1159
  %v1568 = vpack.c.b16 %v1164, %v1162
  %v1569 = vpack.c.b16 %v1165, %v1163
  %v1570 = vpack.c.b16 %v1168, %v1166
  %v1571 = vpack.c.b16 %v1169, %v1167
  %v1572 = vpack.c.b16 %v1172, %v1170
  %v1573 = vpack.c.b16 %v1173, %v1171
  %v1574 = vpack.c.b16 %v1176, %v1174
  %v1575 = vpack.c.b16 %v1177, %v1175
  %v1576 = vpack.c.b16 %v1180, %v1178
  %v1577 = vpack.c.b16 %v1181, %v1179
  %v1578 = vpack.c.b16 %v1184, %v1182
  %v1579 = vpack.c.b16 %v1185, %v1183
  %v1580 = vpack.c.b16 %v1188, %v1186
  %v1581 = vpack.c.b16 %v1189, %v1187
  %v1582 = vpack.c.b16 %v1192, %v1190
  %v1583 = vpack.c.b16 %v1193, %v1191
  %v1584 = vpack.c.b16 %v1196, %v1194
  %v1585 = vpack.c.b16 %v1197, %v1195
  %v1586 = vpack.c.b16 %v1200, %v1198
  %v1587 = vpack.c.b16 %v1201, %v1199
  %v1588 = vpack.c.b16 %v1204, %v1202
  %v1589 = vpack.c.b16 %v1205, %v1203
  %v1590 = vpack.c.b16 %v1208, %v1206
  %v1591 = vpack.c.b16 %v1209, %v1207
  %v1592 = vpack.c.b16 %v1212, %v1210
  %v1593 = vpack.c.b16 %v1213, %v1211
  %v1594 = vpack.c.b16 %v1216, %v1214
  %v1595 = vpack.c.b16 %v1217, %v1215
  %v1596 = vpack.c.b16 %v1220, %v1218
  %v1597 = vpack.c.b16 %v1221, %v1219
  %v1598 = vpack.c.b16 %v1224, %v1222
  %v1599 = vpack.c.b16 %v1225, %v1223
  %v1600 = vpack.c.b16 %v1228, %v1226
  %v1601 = vpack.c.b16 %v1229, %v1227
  %v1602 = vpack.c.b16 %v1232, %v1230
  %v1603 = vpack.c.b16 %v1233, %v1231
  %v1604 = vpack.c.b16 %v1236, %v1234
  %v1605 = vpack.c.b16 %v1237, %v1235
  %v1606 = vpack.c.b16 %v1240, %v1238
  %v1607 = vpack.c.b16 %v1241, %v1239
  %v1608 = vpack.c.b16 %v1244, %v1242
  %v1609 = vpack.c.b16 %v1245, %v1243
  %v1610 = vpack.c.b16 %v1248, %v1246
  %v1611 = vpack.c.b16 %v1249, %v1247
  %v1612 = vpack.c.b16 %v1252, %v1250
  %v1613 = vpack.c.b16 %v1253, %v1251
  %v1614 = vpack.c.b16 %v1256, %v1254
  %v1615 = vpack.c.b16 %v1257, %v1255
  %v1616 = vpack.c.b16 %v1260, %v1258
  %v1617 = vpack.c.b16 %v1261, %v1259
  %v1618 = vpack.c.b16 %v1264, %v1262
  %v1619 = vpack.c.b16 %v1265, %v1263
  %v1620 = vpack.c.b16 %v1268, %v1266
  %v1621 = vpack.c.b16 %v1269, %v1267
  %v1622 = vpack.c.b16 %v1272, %v1270
  %v1623 = vpack.c.b16 %v1273, %v1271
  %v1624 = vpack.c.b16 %v1276, %v1274
  %v1625 = vpack.c.b16 %v1277, %v1275
  %v1626 = vpack.c.b16 %v1280, %v1278
  %v1627 = vpack.c.b16 %v1281, %v1279
  %v1628 = vpack.c.b16 %v1284, %v1282
  %v1629 = vpack.c.b16 %v1285, %v1283
  %v1630 = vpack.c.b16 %v1288, %v1286
  %v1631 = vpack.c.b16 %v1289, %v1287
  %v1632 = vpack.c.b16 %v1292, %v1290
  %v1633 = vpack.c.b16 %v1293, %v1291
  %v1634 = vpack.c.b16 %v1296, %v1294
  %v1635 = vpack.c.b16 %v1297, %v1295
  %v1636 = vpack.c.b16 %v1300, %v1298
  %v1637 = vpack.c.b16 %v1301, %v1299
  %v1638 = vpack.c.b16 %v1304, %v1302
  %v1639 = vpack.c.b16 %v1305, %v1303
  %v1640 = vpack.c.b16 %v1308, %v1306
  %v1641 = vpack.c.b16 %v1309, %v1307
  %v1642 = vpack.c.b16 %v1312, %v1310
  %v1643 = vpack.c.b16 %v1313, %v1311
  %v1644 = vpack.c.b16 %v1316, %v1314
  %v1645 = vpack.c.b16 %v1317, %v1315
  %v1646 = vpack.c.b16 %v1320, %v1318
  %v1647 = vpack.c.b16 %v1321, %v1319
  %v1648 = vpack.c.b16 %v1324, %v1322
  %v1649 = vpack.c.b16 %v1325, %v1323
  %v1650 = vpack.c.b16 %v1328, %v1326
  %v1651 = vpack.c.b16 %v1329, %v1327
  %v1652 = vpack.c.b16 %v1332, %v1330
  %v1653 = vpack.c.b16 %v1333, %v1331
  %v1654 = vpack.c.b16 %v1336, %v1334
  %v1655 = vpack.c.b16 %v1337, %v1335
  %v1656 = vpack.c.b16 %v1340, %v1338
  %v1657 = vpack.c.b16 %v1341, %v1339
  %v1658 = vpack.c.b16 %v1344, %v1342
  %v1659 = vpack.c.b16 %v1345, %v1343
  %v1660 = vpack.c.b16 %v1348, %v1346
  %v1661 = vpack.c.b16 %v1349, %v1347
  %v1662 = vpack.c.b16 %v1352, %v1350
  %v1663 = vpack.c.b16 %v1353, %v1351
  %v1664 = vpack.c.b16 %v1356, %v1354
  %v1665 = vpack.c.b16 %v1357, %v1355
  %v1666 = vpack.c.b16 %v1360, %v1358
  %v1667 = vpack.c.b16 %v1361, %v1359
  %v1668 = vpack.c.b16 %v1364, %v1362
  %v1669 = vpack.c.b16 %v1365, %v1363
  %v1670 = vpack.c.b16 %v1368, %v1366
  %v1671 = vpack.c.b16 %v1369, %v1367
  %v1672 = vpack.c.b16 %v1372, %v1370
  %v1673 = vpack.c.b16 %v1373, %v1371
  %v1674 = vpack.c.b16 %v1376, %v1374
  %v1675 = vpack.c.b16 %v1377, %v1375
  %v1676 = vpack.c.b16 %v1380, %v1378
  %v1677 = vpack.c.b16 %v1381, %v1379
  %v1678 = vpack.c.b16 %v1384, %v1382
  %v1679 = vpack.c.b16 %v1385, %v1383
  %v1680 = vpack.c.b16 %v1388, %v1386
  %v1681 = vpack.c.b16 %v1389, %v1387
  %v1682 = vpack.c.b16 %v1392, %v1390
  %v1683 = vpack.c.b16 %v1393, %v1391
  %v1684 = vpack.c.b16 %v1396, %v1394
  %v1685 = vpack.c.b16 %v1397, %v1395
  %v1686 = vpack.c.b16 %v1400, %v1398
  %v1687 = vpack.c.b16 %v1401, %v1399
  %v1688 = vpack.c.b16 %v1404, %v1402
  %v1689 = vpack.c.b16 %v1405, %v1403
  %v1690 = vpack.c.b16 %v1408, %v1406
  %v1691 = vpack.c.b16 %v1409, %v1407
  %v1692 = vpack.c.b16 %v1412, %v1410
  %v1693 = vpack.c.b16 %v1413, %v1411
  %v1694 = vpack.c.b16 %v1416, %v1414
  %v1695 = vpack.c.b16 %v1417, %v1415
  %v1696 = vpack.c.b16 %v1420, %v1418
  %v1697 = vpack.c.b16 %v1421, %v1419
  %v1698 = vpack.c.b16 %v1424, %v1422
  %v1699 = vpack.c.b16 %v1425, %v1423
  %v1700 = vpack.c.b16 %v1428, %v1426
  %v1701 = vpack.c.b16 %v1429, %v1427
  %v1702 = vpack.c.b16 %v1432, %v1430
  %v1703 = vpack.c.b16 %v1433, %v1431
  %v1704 = vpack.c.b16 %v1436, %v1434
  %v1705 = vpack.c.b16 %v1437, %v1435
  %v1706 = vpack.c.b16 %v1440, %v1438
  %v1707 = vpack.c.b16 %v1441, %v1439
  %v1708 = vpack.c.b16 %v1444, %v1442
  %v1709 = vpack.c.b16 %v1445, %v1443
  %v1710 = vpack.c.b16 %v1448, %v1446
  %v1711 = vpack.c.b16 %v1449, %v1447
  %v1712 = vpack.c.b16 %v1452, %v1450
  %v1713 = vpack.c.b16 %v1453, %v1451
  %v1714 = vpack.c.b16 %v1456, %v1454
  %v1715 = vpack.c.b16 %v1457, %v1455
  %v1716 = vpack.c.b16 %v1460, %v1458
  %v1717 = vpack.c.b16 %v1461, %v1459
  %v1718 = vpack.c.b16 %v1464, %v1462
  %v1719 = vpack.c.b16 %v1465, %v1463
  %v1720 = vpack.c.b16 %v1468, %v1466
  %v1721 = vpack.c.b16 %v1469, %v1467
  %v1722 = vpack.c.b16 %v1472, %v1470
  %v1723 = vpack.c.b16 %v1473, %v1471
  %v1724 = vpack.c.b16 %v1476, %v1474
  %v1725 = vpack.c.b16 %v1477, %v1475
  %v1726 = vpack.c.b16 %v1480, %v1478
  %v1727 = vpack.c.b16 %v1481, %v1479
  %v1728 = vpack.c.b16 %v1484, %v1482
  %v1729 = vpack.c.b16 %v1485, %v1483
  %v1730 = vpack.c.b16 %v1488, %v1486
  %v1731 = vpack.c.b16 %v1489, %v1487
  %v1732 = vpack.c.b16 %v1492, %v1490
  %v1733 = vpack.c.b16 %v1493, %v1491
  %v1734 = vpack.c.b16 %v1496, %v1494
  %v1735 = vpack.c.b16 %v1497, %v1495
  %v1736 = vpack.c.b16 %v1500, %v1498
  %v1737 = vpack.c.b16 %v1501, %v1499
  %v1738 = vpack.c.b16 %v1504, %v1502
  %v1739 = vpack.c.b16 %v1505, %v1503
  %v1740 = vpack.c.b16 %v1508, %v1506
  %v1741 = vpack.c.b16 %v1509, %v1507
  %v1742 = vpack.c.b16 %v1512, %v1510
  %v1743 = vpack.c.b16 %v1513, %v1511
  %v1744 = vpack.c.b16 %v1516, %v1514
  %v1745 = vpack.c.b16 %v1517, %v1515
  %v1746 = vpack.c.b16 %v1520, %v1518
  %v1747 = vpack.c.b16 %v1521, %v1519
  %v1748 = vpack.c.b16 %v1524, %v1522
  %v1749 = vpack.c.b16 %v1525, %v1523
  %1974 = vmatprep.subr.bf16.mxu0 %v1541
  %1975 = vmatpush1.bf16.msra.mxu0 %v1540
  %1976 = vmatprep.subr.bf16.mxu0 %v1539
  %1977 = vmatpush1.bf16.msra.mxu0 %v1538
  %1978 = vmatprep.subr.bf16.mxu0 %v1537
  %1979 = vmatpush1.bf16.msra.mxu0 %v1536
  %1980 = vmatprep.subr.bf16.mxu0 %v1535
  %1981 = vmatpush1.bf16.msra.mxu0 %v1534
  %1982 = vmatprep.subr.bf16.mxu0 %v1533
  %1983 = vmatpush1.bf16.msra.mxu0 %v1532
  %1984 = vmatprep.subr.bf16.mxu0 %v1531
  %1985 = vmatpush1.bf16.msra.mxu0 %v1530
  %1986 = vmatprep.subr.bf16.mxu0 %v1529
  %1987 = vmatpush1.bf16.msra.mxu0 %v1528
  %1988 = vmatprep.subr.bf16.mxu0 %v1527
  %1989 = vmatpush1.bf16.msra.mxu0 %v1526
  %1990 = vmatprep.subr.bf16.mxu0 %v1557
  %1991 = vmatpush2.bf16.msra.mxu0 %v1556
  %1992 = vmatprep.subr.bf16.mxu0 %v1555
  %1993 = vmatpush2.bf16.msra.mxu0 %v1554
  %1994 = vmatprep.subr.bf16.mxu0 %v1553
  %1995 = vmatpush2.bf16.msra.mxu0 %v1552
  %1996 = vmatprep.subr.bf16.mxu0 %v1551
  %1997 = vmatpush2.bf16.msra.mxu0 %v1550
  %1998 = vmatprep.subr.bf16.mxu0 %v1549
  %1999 = vmatpush2.bf16.msra.mxu0 %v1548
  %2000 = vmatprep.subr.bf16.mxu0 %v1547
  %2001 = vmatpush2.bf16.msra.mxu0 %v1546
  %2002 = vmatprep.subr.bf16.mxu0 %v1545
  %2003 = vmatpush2.bf16.msra.mxu0 %v1544
  %2004 = vmatprep.subr.bf16.mxu0 %v1543
  %2005 = vmatpush2.bf16.msra.mxu0 %v1542
  %2006 = vmatprep.mubr.bf16.mxu0 %v659
  %2007 = vmatmul.mubr.bf16.gmra.mxu0 %v658
  %v2008 = vpop.f32.mrf.mxu0
  %v2009 = vadd.f32 0.0, %v2008
  %v2010 = vpop.f32.mrf.mxu0
  %v2011 = vadd.f32 0.0, %v2010
  %v2012 = vpop.f32.mrf.mxu0
  %v2013 = vadd.f32 0.0, %v2012
  %v2014 = vpop.f32.mrf.mxu0
  %v2015 = vadd.f32 0.0, %v2014
  %2016 = vmatprep.mubr.bf16.mxu0 %v673
  %2017 = vmatmul.mubr.bf16.gmra.mxu0 %v672
  %v2018 = vpop.f32.mrf.mxu0
  %v2019 = vadd.f32 0.0, %v2018
  %v2020 = vpop.f32.mrf.mxu0
  %v2021 = vadd.f32 0.0, %v2020
  %v2022 = vpop.f32.mrf.mxu0
  %v2023 = vadd.f32 0.0, %v2022
  %v2024 = vpop.f32.mrf.mxu0
  %v2025 = vadd.f32 0.0, %v2024
  %2026 = vmatprep.mubr.bf16.mxu0 %v687
  %2027 = vmatmul.mubr.bf16.gmra.mxu0 %v686
  %v2028 = vpop.f32.mrf.mxu0
  %v2029 = vadd.f32 0.0, %v2028
  %v2030 = vpop.f32.mrf.mxu0
  %v2031 = vadd.f32 0.0, %v2030
  %v2032 = vpop.f32.mrf.mxu0
  %v2033 = vadd.f32 0.0, %v2032
  %v2034 = vpop.f32.mrf.mxu0
  %v2035 = vadd.f32 0.0, %v2034
  %2036 = vmatprep.mubr.bf16.mxu0 %v701
  %2037 = vmatmul.mubr.bf16.gmra.mxu0 %v700
  %v2038 = vpop.f32.mrf.mxu0
  %v2039 = vadd.f32 0.0, %v2038
  %v2040 = vpop.f32.mrf.mxu0
  %v2041 = vadd.f32 0.0, %v2040
  %v2042 = vpop.f32.mrf.mxu0
  %v2043 = vadd.f32 0.0, %v2042
  %v2044 = vpop.f32.mrf.mxu0
  %v2045 = vadd.f32 0.0, %v2044
  %2046 = vmatprep.mubr.bf16.mxu0 %v715
  %2047 = vmatmul.mubr.bf16.gmra.mxu0 %v714
  %v2048 = vpop.f32.mrf.mxu0
  %v2049 = vadd.f32 0.0, %v2048
  %v2050 = vpop.f32.mrf.mxu0
  %v2051 = vadd.f32 0.0, %v2050
  %v2052 = vpop.f32.mrf.mxu0
  %v2053 = vadd.f32 0.0, %v2052
  %v2054 = vpop.f32.mrf.mxu0
  %v2055 = vadd.f32 0.0, %v2054
  %2056 = vmatprep.mubr.bf16.mxu0 %v729
  %2057 = vmatmul.mubr.bf16.gmra.mxu0 %v728
  %v2058 = vpop.f32.mrf.mxu0
  %v2059 = vadd.f32 0.0, %v2058
  %v2060 = vpop.f32.mrf.mxu0
  %v2061 = vadd.f32 0.0, %v2060
  %v2062 = vpop.f32.mrf.mxu0
  %v2063 = vadd.f32 0.0, %v2062
  %v2064 = vpop.f32.mrf.mxu0
  %v2065 = vadd.f32 0.0, %v2064
  %2066 = vmatprep.mubr.bf16.mxu0 %v743
  %2067 = vmatmul.mubr.bf16.gmra.mxu0 %v742
  %v2068 = vpop.f32.mrf.mxu0
  %v2069 = vadd.f32 0.0, %v2068
  %v2070 = vpop.f32.mrf.mxu0
  %v2071 = vadd.f32 0.0, %v2070
  %v2072 = vpop.f32.mrf.mxu0
  %v2073 = vpop.f32.mrf.mxu0
  %2074 = vdwg.mxu0
  %2075 = vmatprep.subr.bf16.mxu0 %v1573
  %2076 = vmatpush1.bf16.msra.mxu0 %v1572
  %2077 = vmatprep.subr.bf16.mxu0 %v1571
  %2078 = vmatpush1.bf16.msra.mxu0 %v1570
  %2079 = vmatprep.subr.bf16.mxu0 %v1569
  %2080 = vmatpush1.bf16.msra.mxu0 %v1568
  %2081 = vmatprep.subr.bf16.mxu0 %v1567
  %2082 = vmatpush1.bf16.msra.mxu0 %v1566
  %2083 = vmatprep.subr.bf16.mxu0 %v1565
  %2084 = vmatpush1.bf16.msra.mxu0 %v1564
  %2085 = vmatprep.subr.bf16.mxu0 %v1563
  %2086 = vmatpush1.bf16.msra.mxu0 %v1562
  %2087 = vmatprep.subr.bf16.mxu0 %v1561
  %2088 = vmatpush1.bf16.msra.mxu0 %v1560
  %2089 = vmatprep.subr.bf16.mxu0 %v1559
  %2090 = vmatpush1.bf16.msra.mxu0 %v1558
  %2091 = vmatprep.subr.bf16.mxu0 %v1589
  %2092 = vmatpush2.bf16.msra.mxu0 %v1588
  %2093 = vmatprep.subr.bf16.mxu0 %v1587
  %2094 = vmatpush2.bf16.msra.mxu0 %v1586
  %2095 = vmatprep.subr.bf16.mxu0 %v1585
  %2096 = vmatpush2.bf16.msra.mxu0 %v1584
  %2097 = vmatprep.subr.bf16.mxu0 %v1583
  %2098 = vmatpush2.bf16.msra.mxu0 %v1582
  %2099 = vmatprep.subr.bf16.mxu0 %v1581
  %2100 = vmatpush2.bf16.msra.mxu0 %v1580
  %2101 = vmatprep.subr.bf16.mxu0 %v1579
  %2102 = vmatpush2.bf16.msra.mxu0 %v1578
  %2103 = vmatprep.subr.bf16.mxu0 %v1577
  %2104 = vmatpush2.bf16.msra.mxu0 %v1576
  %2105 = vmatprep.subr.bf16.mxu0 %v1575
  %2106 = vmatpush2.bf16.msra.mxu0 %v1574
  %2107 = vmatprep.mubr.bf16.mxu0 %v661
  %2108 = vmatmul.mubr.bf16.gmra.mxu0 %v660
  %v2109 = vpop.f32.mrf.mxu0
  %v2110 = vadd.f32 %v2009, %v2109
  %v2111 = vpop.f32.mrf.mxu0
  %v2112 = vadd.f32 %v2011, %v2111
  %v2113 = vpop.f32.mrf.mxu0
  %v2114 = vadd.f32 %v2013, %v2113
  %v2115 = vpop.f32.mrf.mxu0
  %v2116 = vadd.f32 %v2015, %v2115
  %2117 = vmatprep.mubr.bf16.mxu0 %v675
  %2118 = vmatmul.mubr.bf16.gmra.mxu0 %v674
  %v2119 = vpop.f32.mrf.mxu0
  %v2120 = vadd.f32 %v2019, %v2119
  %v2121 = vpop.f32.mrf.mxu0
  %v2122 = vadd.f32 %v2021, %v2121
  %v2123 = vpop.f32.mrf.mxu0
  %v2124 = vadd.f32 %v2023, %v2123
  %v2125 = vpop.f32.mrf.mxu0
  %v2126 = vadd.f32 %v2025, %v2125
  %2127 = vmatprep.mubr.bf16.mxu0 %v689
  %2128 = vmatmul.mubr.bf16.gmra.mxu0 %v688
  %v2129 = vpop.f32.mrf.mxu0
  %v2130 = vadd.f32 %v2029, %v2129
  %v2131 = vpop.f32.mrf.mxu0
  %v2132 = vadd.f32 %v2031, %v2131
  %v2133 = vpop.f32.mrf.mxu0
  %v2134 = vadd.f32 %v2033, %v2133
  %v2135 = vpop.f32.mrf.mxu0
  %v2136 = vadd.f32 %v2035, %v2135
  %2137 = vmatprep.mubr.bf16.mxu0 %v703
  %2138 = vmatmul.mubr.bf16.gmra.mxu0 %v702
  %v2139 = vpop.f32.mrf.mxu0
  %v2140 = vadd.f32 %v2039, %v2139
  %v2141 = vpop.f32.mrf.mxu0
  %v2142 = vadd.f32 %v2041, %v2141
  %v2143 = vpop.f32.mrf.mxu0
  %v2144 = vadd.f32 %v2043, %v2143
  %v2145 = vpop.f32.mrf.mxu0
  %v2146 = vadd.f32 %v2045, %v2145
  %2147 = vmatprep.mubr.bf16.mxu0 %v717
  %2148 = vmatmul.mubr.bf16.gmra.mxu0 %v716
  %v2149 = vpop.f32.mrf.mxu0
  %v2150 = vadd.f32 %v2049, %v2149
  %v2151 = vpop.f32.mrf.mxu0
  %v2152 = vadd.f32 %v2051, %v2151
  %v2153 = vpop.f32.mrf.mxu0
  %v2154 = vadd.f32 %v2053, %v2153
  %v2155 = vpop.f32.mrf.mxu0
  %v2156 = vadd.f32 %v2055, %v2155
  %2157 = vmatprep.mubr.bf16.mxu0 %v731
  %2158 = vmatmul.mubr.bf16.gmra.mxu0 %v730
  %v2159 = vpop.f32.mrf.mxu0
  %v2160 = vadd.f32 %v2059, %v2159
  %v2161 = vpop.f32.mrf.mxu0
  %v2162 = vadd.f32 %v2061, %v2161
  %v2163 = vpop.f32.mrf.mxu0
  %v2164 = vadd.f32 %v2063, %v2163
  %v2165 = vpop.f32.mrf.mxu0
  %v2166 = vadd.f32 %v2065, %v2165
  %2167 = vmatprep.mubr.bf16.mxu0 %v745
  %2168 = vmatmul.mubr.bf16.gmra.mxu0 %v744
  %v2169 = vpop.f32.mrf.mxu0
  %v2170 = vadd.f32 %v2069, %v2169
  %v2171 = vpop.f32.mrf.mxu0
  %v2172 = vadd.f32 %v2071, %v2171
  %v2173 = vpop.f32.mrf.mxu0
  %v2174 = vpop.f32.mrf.mxu0
  %2175 = vdwg.mxu0
  %2176 = vmatprep.subr.bf16.mxu0 %v1605
  %2177 = vmatpush1.bf16.msra.mxu0 %v1604
  %2178 = vmatprep.subr.bf16.mxu0 %v1603
  %2179 = vmatpush1.bf16.msra.mxu0 %v1602
  %2180 = vmatprep.subr.bf16.mxu0 %v1601
  %2181 = vmatpush1.bf16.msra.mxu0 %v1600
  %2182 = vmatprep.subr.bf16.mxu0 %v1599
  %2183 = vmatpush1.bf16.msra.mxu0 %v1598
  %2184 = vmatprep.subr.bf16.mxu0 %v1597
  %2185 = vmatpush1.bf16.msra.mxu0 %v1596
  %2186 = vmatprep.subr.bf16.mxu0 %v1595
  %2187 = vmatpush1.bf16.msra.mxu0 %v1594
  %2188 = vmatprep.subr.bf16.mxu0 %v1593
  %2189 = vmatpush1.bf16.msra.mxu0 %v1592
  %2190 = vmatprep.subr.bf16.mxu0 %v1591
  %2191 = vmatpush1.bf16.msra.mxu0 %v1590
  %2192 = vmatprep.subr.bf16.mxu0 %v1621
  %2193 = vmatpush2.bf16.msra.mxu0 %v1620
  %2194 = vmatprep.subr.bf16.mxu0 %v1619
  %2195 = vmatpush2.bf16.msra.mxu0 %v1618
  %2196 = vmatprep.subr.bf16.mxu0 %v1617
  %2197 = vmatpush2.bf16.msra.mxu0 %v1616
  %2198 = vmatprep.subr.bf16.mxu0 %v1615
  %2199 = vmatpush2.bf16.msra.mxu0 %v1614
  %2200 = vmatprep.subr.bf16.mxu0 %v1613
  %2201 = vmatpush2.bf16.msra.mxu0 %v1612
  %2202 = vmatprep.subr.bf16.mxu0 %v1611
  %2203 = vmatpush2.bf16.msra.mxu0 %v1610
  %2204 = vmatprep.subr.bf16.mxu0 %v1609
  %2205 = vmatpush2.bf16.msra.mxu0 %v1608
  %2206 = vmatprep.subr.bf16.mxu0 %v1607
  %2207 = vmatpush2.bf16.msra.mxu0 %v1606
  %2208 = vmatprep.mubr.bf16.mxu0 %v663
  %2209 = vmatmul.mubr.bf16.gmra.mxu0 %v662
  %v2210 = vpop.f32.mrf.mxu0
  %v2211 = vadd.f32 %v2110, %v2210
  %v2212 = vpop.f32.mrf.mxu0
  %v2213 = vadd.f32 %v2112, %v2212
  %v2214 = vpop.f32.mrf.mxu0
  %v2215 = vadd.f32 %v2114, %v2214
  %v2216 = vpop.f32.mrf.mxu0
  %v2217 = vadd.f32 %v2116, %v2216
  %2218 = vmatprep.mubr.bf16.mxu0 %v677
  %2219 = vmatmul.mubr.bf16.gmra.mxu0 %v676
  %v2220 = vpop.f32.mrf.mxu0
  %v2221 = vadd.f32 %v2120, %v2220
  %v2222 = vpop.f32.mrf.mxu0
  %v2223 = vadd.f32 %v2122, %v2222
  %v2224 = vpop.f32.mrf.mxu0
  %v2225 = vadd.f32 %v2124, %v2224
  %v2226 = vpop.f32.mrf.mxu0
  %v2227 = vadd.f32 %v2126, %v2226
  %2228 = vmatprep.mubr.bf16.mxu0 %v691
  %2229 = vmatmul.mubr.bf16.gmra.mxu0 %v690
  %v2230 = vpop.f32.mrf.mxu0
  %v2231 = vadd.f32 %v2130, %v2230
  %v2232 = vpop.f32.mrf.mxu0
  %v2233 = vadd.f32 %v2132, %v2232
  %v2234 = vpop.f32.mrf.mxu0
  %v2235 = vadd.f32 %v2134, %v2234
  %v2236 = vpop.f32.mrf.mxu0
  %v2237 = vadd.f32 %v2136, %v2236
  %2238 = vmatprep.mubr.bf16.mxu0 %v705
  %2239 = vmatmul.mubr.bf16.gmra.mxu0 %v704
  %v2240 = vpop.f32.mrf.mxu0
  %v2241 = vadd.f32 %v2140, %v2240
  %v2242 = vpop.f32.mrf.mxu0
  %v2243 = vadd.f32 %v2142, %v2242
  %v2244 = vpop.f32.mrf.mxu0
  %v2245 = vadd.f32 %v2144, %v2244
  %v2246 = vpop.f32.mrf.mxu0
  %v2247 = vadd.f32 %v2146, %v2246
  %2248 = vmatprep.mubr.bf16.mxu0 %v719
  %2249 = vmatmul.mubr.bf16.gmra.mxu0 %v718
  %v2250 = vpop.f32.mrf.mxu0
  %v2251 = vadd.f32 %v2150, %v2250
  %v2252 = vpop.f32.mrf.mxu0
  %v2253 = vadd.f32 %v2152, %v2252
  %v2254 = vpop.f32.mrf.mxu0
  %v2255 = vadd.f32 %v2154, %v2254
  %v2256 = vpop.f32.mrf.mxu0
  %v2257 = vadd.f32 %v2156, %v2256
  %2258 = vmatprep.mubr.bf16.mxu0 %v733
  %2259 = vmatmul.mubr.bf16.gmra.mxu0 %v732
  %v2260 = vpop.f32.mrf.mxu0
  %v2261 = vadd.f32 %v2160, %v2260
  %v2262 = vpop.f32.mrf.mxu0
  %v2263 = vadd.f32 %v2162, %v2262
  %v2264 = vpop.f32.mrf.mxu0
  %v2265 = vadd.f32 %v2164, %v2264
  %v2266 = vpop.f32.mrf.mxu0
  %v2267 = vadd.f32 %v2166, %v2266
  %2268 = vmatprep.mubr.bf16.mxu0 %v747
  %2269 = vmatmul.mubr.bf16.gmra.mxu0 %v746
  %v2270 = vpop.f32.mrf.mxu0
  %v2271 = vadd.f32 %v2170, %v2270
  %v2272 = vpop.f32.mrf.mxu0
  %v2273 = vadd.f32 %v2172, %v2272
  %v2274 = vpop.f32.mrf.mxu0
  %v2275 = vpop.f32.mrf.mxu0
  %2276 = vdwg.mxu0
  %2277 = vmatprep.subr.bf16.mxu0 %v1637
  %2278 = vmatpush1.bf16.msra.mxu0 %v1636
  %2279 = vmatprep.subr.bf16.mxu0 %v1635
  %2280 = vmatpush1.bf16.msra.mxu0 %v1634
  %2281 = vmatprep.subr.bf16.mxu0 %v1633
  %2282 = vmatpush1.bf16.msra.mxu0 %v1632
  %2283 = vmatprep.subr.bf16.mxu0 %v1631
  %2284 = vmatpush1.bf16.msra.mxu0 %v1630
  %2285 = vmatprep.subr.bf16.mxu0 %v1629
  %2286 = vmatpush1.bf16.msra.mxu0 %v1628
  %2287 = vmatprep.subr.bf16.mxu0 %v1627
  %2288 = vmatpush1.bf16.msra.mxu0 %v1626
  %2289 = vmatprep.subr.bf16.mxu0 %v1625
  %2290 = vmatpush1.bf16.msra.mxu0 %v1624
  %2291 = vmatprep.subr.bf16.mxu0 %v1623
  %2292 = vmatpush1.bf16.msra.mxu0 %v1622
  %2293 = vmatprep.subr.bf16.mxu0 %v1653
  %2294 = vmatpush2.bf16.msra.mxu0 %v1652
  %2295 = vmatprep.subr.bf16.mxu0 %v1651
  %2296 = vmatpush2.bf16.msra.mxu0 %v1650
  %2297 = vmatprep.subr.bf16.mxu0 %v1649
  %2298 = vmatpush2.bf16.msra.mxu0 %v1648
  %2299 = vmatprep.subr.bf16.mxu0 %v1647
  %2300 = vmatpush2.bf16.msra.mxu0 %v1646
  %2301 = vmatprep.subr.bf16.mxu0 %v1645
  %2302 = vmatpush2.bf16.msra.mxu0 %v1644
  %2303 = vmatprep.subr.bf16.mxu0 %v1643
  %2304 = vmatpush2.bf16.msra.mxu0 %v1642
  %2305 = vmatprep.subr.bf16.mxu0 %v1641
  %2306 = vmatpush2.bf16.msra.mxu0 %v1640
  %2307 = vmatprep.subr.bf16.mxu0 %v1639
  %2308 = vmatpush2.bf16.msra.mxu0 %v1638
  %2309 = vmatprep.mubr.bf16.mxu0 %v665
  %2310 = vmatmul.mubr.bf16.gmra.mxu0 %v664
  %v2311 = vpop.f32.mrf.mxu0
  %v2312 = vadd.f32 %v2211, %v2311
  %v2313 = vpop.f32.mrf.mxu0
  %v2314 = vadd.f32 %v2213, %v2313
  %v2315 = vpop.f32.mrf.mxu0
  %v2316 = vadd.f32 %v2215, %v2315
  %v2317 = vpop.f32.mrf.mxu0
  %v2318 = vadd.f32 %v2217, %v2317
  %2319 = vmatprep.mubr.bf16.mxu0 %v679
  %2320 = vmatmul.mubr.bf16.gmra.mxu0 %v678
  %v2321 = vpop.f32.mrf.mxu0
  %v2322 = vadd.f32 %v2221, %v2321
  %v2323 = vpop.f32.mrf.mxu0
  %v2324 = vadd.f32 %v2223, %v2323
  %v2325 = vpop.f32.mrf.mxu0
  %v2326 = vadd.f32 %v2225, %v2325
  %v2327 = vpop.f32.mrf.mxu0
  %v2328 = vadd.f32 %v2227, %v2327
  %2329 = vmatprep.mubr.bf16.mxu0 %v693
  %2330 = vmatmul.mubr.bf16.gmra.mxu0 %v692
  %v2331 = vpop.f32.mrf.mxu0
  %v2332 = vadd.f32 %v2231, %v2331
  %v2333 = vpop.f32.mrf.mxu0
  %v2334 = vadd.f32 %v2233, %v2333
  %v2335 = vpop.f32.mrf.mxu0
  %v2336 = vadd.f32 %v2235, %v2335
  %v2337 = vpop.f32.mrf.mxu0
  %v2338 = vadd.f32 %v2237, %v2337
  %2339 = vmatprep.mubr.bf16.mxu0 %v707
  %2340 = vmatmul.mubr.bf16.gmra.mxu0 %v706
  %v2341 = vpop.f32.mrf.mxu0
  %v2342 = vadd.f32 %v2241, %v2341
  %v2343 = vpop.f32.mrf.mxu0
  %v2344 = vadd.f32 %v2243, %v2343
  %v2345 = vpop.f32.mrf.mxu0
  %v2346 = vadd.f32 %v2245, %v2345
  %v2347 = vpop.f32.mrf.mxu0
  %v2348 = vadd.f32 %v2247, %v2347
  %2349 = vmatprep.mubr.bf16.mxu0 %v721
  %2350 = vmatmul.mubr.bf16.gmra.mxu0 %v720
  %v2351 = vpop.f32.mrf.mxu0
  %v2352 = vadd.f32 %v2251, %v2351
  %v2353 = vpop.f32.mrf.mxu0
  %v2354 = vadd.f32 %v2253, %v2353
  %v2355 = vpop.f32.mrf.mxu0
  %v2356 = vadd.f32 %v2255, %v2355
  %v2357 = vpop.f32.mrf.mxu0
  %v2358 = vadd.f32 %v2257, %v2357
  %2359 = vmatprep.mubr.bf16.mxu0 %v735
  %2360 = vmatmul.mubr.bf16.gmra.mxu0 %v734
  %v2361 = vpop.f32.mrf.mxu0
  %v2362 = vadd.f32 %v2261, %v2361
  %v2363 = vpop.f32.mrf.mxu0
  %v2364 = vadd.f32 %v2263, %v2363
  %v2365 = vpop.f32.mrf.mxu0
  %v2366 = vadd.f32 %v2265, %v2365
  %v2367 = vpop.f32.mrf.mxu0
  %v2368 = vadd.f32 %v2267, %v2367
  %2369 = vmatprep.mubr.bf16.mxu0 %v749
  %2370 = vmatmul.mubr.bf16.gmra.mxu0 %v748
  %v2371 = vpop.f32.mrf.mxu0
  %v2372 = vadd.f32 %v2271, %v2371
  %v2373 = vpop.f32.mrf.mxu0
  %v2374 = vadd.f32 %v2273, %v2373
  %v2375 = vpop.f32.mrf.mxu0
  %v2376 = vpop.f32.mrf.mxu0
  %2377 = vdwg.mxu0
  %2378 = vmatprep.subr.bf16.mxu0 %v1669
  %2379 = vmatpush1.bf16.msra.mxu0 %v1668
  %2380 = vmatprep.subr.bf16.mxu0 %v1667
  %2381 = vmatpush1.bf16.msra.mxu0 %v1666
  %2382 = vmatprep.subr.bf16.mxu0 %v1665
  %2383 = vmatpush1.bf16.msra.mxu0 %v1664
  %2384 = vmatprep.subr.bf16.mxu0 %v1663
  %2385 = vmatpush1.bf16.msra.mxu0 %v1662
  %2386 = vmatprep.subr.bf16.mxu0 %v1661
  %2387 = vmatpush1.bf16.msra.mxu0 %v1660
  %2388 = vmatprep.subr.bf16.mxu0 %v1659
  %2389 = vmatpush1.bf16.msra.mxu0 %v1658
  %2390 = vmatprep.subr.bf16.mxu0 %v1657
  %2391 = vmatpush1.bf16.msra.mxu0 %v1656
  %2392 = vmatprep.subr.bf16.mxu0 %v1655
  %2393 = vmatpush1.bf16.msra.mxu0 %v1654
  %2394 = vmatprep.subr.bf16.mxu0 %v1685
  %2395 = vmatpush2.bf16.msra.mxu0 %v1684
  %2396 = vmatprep.subr.bf16.mxu0 %v1683
  %2397 = vmatpush2.bf16.msra.mxu0 %v1682
  %2398 = vmatprep.subr.bf16.mxu0 %v1681
  %2399 = vmatpush2.bf16.msra.mxu0 %v1680
  %2400 = vmatprep.subr.bf16.mxu0 %v1679
  %2401 = vmatpush2.bf16.msra.mxu0 %v1678
  %2402 = vmatprep.subr.bf16.mxu0 %v1677
  %2403 = vmatpush2.bf16.msra.mxu0 %v1676
  %2404 = vmatprep.subr.bf16.mxu0 %v1675
  %2405 = vmatpush2.bf16.msra.mxu0 %v1674
  %2406 = vmatprep.subr.bf16.mxu0 %v1673
  %2407 = vmatpush2.bf16.msra.mxu0 %v1672
  %2408 = vmatprep.subr.bf16.mxu0 %v1671
  %2409 = vmatpush2.bf16.msra.mxu0 %v1670
  %2410 = vmatprep.mubr.bf16.mxu0 %v667
  %2411 = vmatmul.mubr.bf16.gmra.mxu0 %v666
  %v2412 = vpop.f32.mrf.mxu0
  %v2413 = vadd.f32 %v2312, %v2412
  %v2414 = vpop.f32.mrf.mxu0
  %v2415 = vadd.f32 %v2314, %v2414
  %v2416 = vpop.f32.mrf.mxu0
  %v2417 = vadd.f32 %v2316, %v2416
  %v2418 = vpop.f32.mrf.mxu0
  %v2419 = vadd.f32 %v2318, %v2418
  %2420 = vmatprep.mubr.bf16.mxu0 %v681
  %2421 = vmatmul.mubr.bf16.gmra.mxu0 %v680
  %v2422 = vpop.f32.mrf.mxu0
  %v2423 = vadd.f32 %v2322, %v2422
  %v2424 = vpop.f32.mrf.mxu0
  %v2425 = vadd.f32 %v2324, %v2424
  %v2426 = vpop.f32.mrf.mxu0
  %v2427 = vadd.f32 %v2326, %v2426
  %v2428 = vpop.f32.mrf.mxu0
  %v2429 = vadd.f32 %v2328, %v2428
  %2430 = vmatprep.mubr.bf16.mxu0 %v695
  %2431 = vmatmul.mubr.bf16.gmra.mxu0 %v694
  %v2432 = vpop.f32.mrf.mxu0
  %v2433 = vadd.f32 %v2332, %v2432
  %v2434 = vpop.f32.mrf.mxu0
  %v2435 = vadd.f32 %v2334, %v2434
  %v2436 = vpop.f32.mrf.mxu0
  %v2437 = vadd.f32 %v2336, %v2436
  %v2438 = vpop.f32.mrf.mxu0
  %v2439 = vadd.f32 %v2338, %v2438
  %2440 = vmatprep.mubr.bf16.mxu0 %v709
  %2441 = vmatmul.mubr.bf16.gmra.mxu0 %v708
  %v2442 = vpop.f32.mrf.mxu0
  %v2443 = vadd.f32 %v2342, %v2442
  %v2444 = vpop.f32.mrf.mxu0
  %v2445 = vadd.f32 %v2344, %v2444
  %v2446 = vpop.f32.mrf.mxu0
  %v2447 = vadd.f32 %v2346, %v2446
  %v2448 = vpop.f32.mrf.mxu0
  %v2449 = vadd.f32 %v2348, %v2448
  %2450 = vmatprep.mubr.bf16.mxu0 %v723
  %2451 = vmatmul.mubr.bf16.gmra.mxu0 %v722
  %v2452 = vpop.f32.mrf.mxu0
  %v2453 = vadd.f32 %v2352, %v2452
  %v2454 = vpop.f32.mrf.mxu0
  %v2455 = vadd.f32 %v2354, %v2454
  %v2456 = vpop.f32.mrf.mxu0
  %v2457 = vadd.f32 %v2356, %v2456
  %v2458 = vpop.f32.mrf.mxu0
  %v2459 = vadd.f32 %v2358, %v2458
  %2460 = vmatprep.mubr.bf16.mxu0 %v737
  %2461 = vmatmul.mubr.bf16.gmra.mxu0 %v736
  %v2462 = vpop.f32.mrf.mxu0
  %v2463 = vadd.f32 %v2362, %v2462
  %v2464 = vpop.f32.mrf.mxu0
  %v2465 = vadd.f32 %v2364, %v2464
  %v2466 = vpop.f32.mrf.mxu0
  %v2467 = vadd.f32 %v2366, %v2466
  %v2468 = vpop.f32.mrf.mxu0
  %v2469 = vadd.f32 %v2368, %v2468
  %2470 = vmatprep.mubr.bf16.mxu0 %v751
  %2471 = vmatmul.mubr.bf16.gmra.mxu0 %v750
  %v2472 = vpop.f32.mrf.mxu0
  %v2473 = vadd.f32 %v2372, %v2472
  %v2474 = vpop.f32.mrf.mxu0
  %v2475 = vadd.f32 %v2374, %v2474
  %v2476 = vpop.f32.mrf.mxu0
  %v2477 = vpop.f32.mrf.mxu0
  %2478 = vdwg.mxu0
  %2479 = vmatprep.subr.bf16.mxu0 %v1701
  %2480 = vmatpush1.bf16.msra.mxu0 %v1700
  %2481 = vmatprep.subr.bf16.mxu0 %v1699
  %2482 = vmatpush1.bf16.msra.mxu0 %v1698
  %2483 = vmatprep.subr.bf16.mxu0 %v1697
  %2484 = vmatpush1.bf16.msra.mxu0 %v1696
  %2485 = vmatprep.subr.bf16.mxu0 %v1695
  %2486 = vmatpush1.bf16.msra.mxu0 %v1694
  %2487 = vmatprep.subr.bf16.mxu0 %v1693
  %2488 = vmatpush1.bf16.msra.mxu0 %v1692
  %2489 = vmatprep.subr.bf16.mxu0 %v1691
  %2490 = vmatpush1.bf16.msra.mxu0 %v1690
  %2491 = vmatprep.subr.bf16.mxu0 %v1689
  %2492 = vmatpush1.bf16.msra.mxu0 %v1688
  %2493 = vmatprep.subr.bf16.mxu0 %v1687
  %2494 = vmatpush1.bf16.msra.mxu0 %v1686
  %2495 = vmatprep.subr.bf16.mxu0 %v1717
  %2496 = vmatpush2.bf16.msra.mxu0 %v1716
  %2497 = vmatprep.subr.bf16.mxu0 %v1715
  %2498 = vmatpush2.bf16.msra.mxu0 %v1714
  %2499 = vmatprep.subr.bf16.mxu0 %v1713
  %2500 = vmatpush2.bf16.msra.mxu0 %v1712
  %2501 = vmatprep.subr.bf16.mxu0 %v1711
  %2502 = vmatpush2.bf16.msra.mxu0 %v1710
  %2503 = vmatprep.subr.bf16.mxu0 %v1709
  %2504 = vmatpush2.bf16.msra.mxu0 %v1708
  %2505 = vmatprep.subr.bf16.mxu0 %v1707
  %2506 = vmatpush2.bf16.msra.mxu0 %v1706
  %2507 = vmatprep.subr.bf16.mxu0 %v1705
  %2508 = vmatpush2.bf16.msra.mxu0 %v1704
  %2509 = vmatprep.subr.bf16.mxu0 %v1703
  %2510 = vmatpush2.bf16.msra.mxu0 %v1702
  %2511 = vmatprep.mubr.bf16.mxu0 %v669
  %2512 = vmatmul.mubr.bf16.gmra.mxu0 %v668
  %v2513 = vpop.f32.mrf.mxu0
  %v2514 = vadd.f32 %v2413, %v2513
  %v2515 = vpop.f32.mrf.mxu0
  %v2516 = vadd.f32 %v2415, %v2515
  %v2517 = vpop.f32.mrf.mxu0
  %v2518 = vadd.f32 %v2417, %v2517
  %v2519 = vpop.f32.mrf.mxu0
  %v2520 = vadd.f32 %v2419, %v2519
  %2521 = vmatprep.mubr.bf16.mxu0 %v683
  %2522 = vmatmul.mubr.bf16.gmra.mxu0 %v682
  %v2523 = vpop.f32.mrf.mxu0
  %v2524 = vadd.f32 %v2423, %v2523
  %v2525 = vpop.f32.mrf.mxu0
  %v2526 = vadd.f32 %v2425, %v2525
  %v2527 = vpop.f32.mrf.mxu0
  %v2528 = vadd.f32 %v2427, %v2527
  %v2529 = vpop.f32.mrf.mxu0
  %v2530 = vadd.f32 %v2429, %v2529
  %2531 = vmatprep.mubr.bf16.mxu0 %v697
  %2532 = vmatmul.mubr.bf16.gmra.mxu0 %v696
  %v2533 = vpop.f32.mrf.mxu0
  %v2534 = vadd.f32 %v2433, %v2533
  %v2535 = vpop.f32.mrf.mxu0
  %v2536 = vadd.f32 %v2435, %v2535
  %v2537 = vpop.f32.mrf.mxu0
  %v2538 = vadd.f32 %v2437, %v2537
  %v2539 = vpop.f32.mrf.mxu0
  %v2540 = vadd.f32 %v2439, %v2539
  %2541 = vmatprep.mubr.bf16.mxu0 %v711
  %2542 = vmatmul.mubr.bf16.gmra.mxu0 %v710
  %v2543 = vpop.f32.mrf.mxu0
  %v2544 = vadd.f32 %v2443, %v2543
  %v2545 = vpop.f32.mrf.mxu0
  %v2546 = vadd.f32 %v2445, %v2545
  %v2547 = vpop.f32.mrf.mxu0
  %v2548 = vadd.f32 %v2447, %v2547
  %v2549 = vpop.f32.mrf.mxu0
  %v2550 = vadd.f32 %v2449, %v2549
  %2551 = vmatprep.mubr.bf16.mxu0 %v725
  %2552 = vmatmul.mubr.bf16.gmra.mxu0 %v724
  %v2553 = vpop.f32.mrf.mxu0
  %v2554 = vadd.f32 %v2453, %v2553
  %v2555 = vpop.f32.mrf.mxu0
  %v2556 = vadd.f32 %v2455, %v2555
  %v2557 = vpop.f32.mrf.mxu0
  %v2558 = vadd.f32 %v2457, %v2557
  %v2559 = vpop.f32.mrf.mxu0
  %v2560 = vadd.f32 %v2459, %v2559
  %2561 = vmatprep.mubr.bf16.mxu0 %v739
  %2562 = vmatmul.mubr.bf16.gmra.mxu0 %v738
  %v2563 = vpop.f32.mrf.mxu0
  %v2564 = vadd.f32 %v2463, %v2563
  %v2565 = vpop.f32.mrf.mxu0
  %v2566 = vadd.f32 %v2465, %v2565
  %v2567 = vpop.f32.mrf.mxu0
  %v2568 = vadd.f32 %v2467, %v2567
  %v2569 = vpop.f32.mrf.mxu0
  %v2570 = vadd.f32 %v2469, %v2569
  %2571 = vmatprep.mubr.bf16.mxu0 %v753
  %2572 = vmatmul.mubr.bf16.gmra.mxu0 %v752
  %v2573 = vpop.f32.mrf.mxu0
  %v2574 = vadd.f32 %v2473, %v2573
  %v2575 = vpop.f32.mrf.mxu0
  %v2576 = vadd.f32 %v2475, %v2575
  %v2577 = vpop.f32.mrf.mxu0
  %v2578 = vpop.f32.mrf.mxu0
  %2579 = vdwg.mxu0
  %2580 = vmatprep.subr.bf16.mxu0 %v1733
  %2581 = vmatpush1.bf16.msra.mxu0 %v1732
  %2582 = vmatprep.subr.bf16.mxu0 %v1731
  %2583 = vmatpush1.bf16.msra.mxu0 %v1730
  %2584 = vmatprep.subr.bf16.mxu0 %v1729
  %2585 = vmatpush1.bf16.msra.mxu0 %v1728
  %2586 = vmatprep.subr.bf16.mxu0 %v1727
  %2587 = vmatpush1.bf16.msra.mxu0 %v1726
  %2588 = vmatprep.subr.bf16.mxu0 %v1725
  %2589 = vmatpush1.bf16.msra.mxu0 %v1724
  %2590 = vmatprep.subr.bf16.mxu0 %v1723
  %2591 = vmatpush1.bf16.msra.mxu0 %v1722
  %2592 = vmatprep.subr.bf16.mxu0 %v1721
  %2593 = vmatpush1.bf16.msra.mxu0 %v1720
  %2594 = vmatprep.subr.bf16.mxu0 %v1719
  %2595 = vmatpush1.bf16.msra.mxu0 %v1718
  %2596 = vmatprep.subr.bf16.mxu0 %v1749
  %2597 = vmatpush2.bf16.msra.mxu0 %v1748
  %2598 = vmatprep.subr.bf16.mxu0 %v1747
  %2599 = vmatpush2.bf16.msra.mxu0 %v1746
  %2600 = vmatprep.subr.bf16.mxu0 %v1745
  %2601 = vmatpush2.bf16.msra.mxu0 %v1744
  %2602 = vmatprep.subr.bf16.mxu0 %v1743
  %2603 = vmatpush2.bf16.msra.mxu0 %v1742
  %2604 = vmatprep.subr.bf16.mxu0 %v1741
  %2605 = vmatpush2.bf16.msra.mxu0 %v1740
  %2606 = vmatprep.subr.bf16.mxu0 %v1739
  %2607 = vmatpush2.bf16.msra.mxu0 %v1738
  %2608 = vmatprep.subr.bf16.mxu0 %v1737
  %2609 = vmatpush2.bf16.msra.mxu0 %v1736
  %2610 = vmatprep.subr.bf16.mxu0 %v1735
  %2611 = vmatpush2.bf16.msra.mxu0 %v1734
  %2612 = vmatprep.mubr.bf16.mxu0 %v671
  %2613 = vmatmul.mubr.bf16.gmra.mxu0 %v670
  %v2614 = vpop.f32.mrf.mxu0
  %v2615 = vadd.f32 %v2514, %v2614
  %v2616 = vpop.f32.mrf.mxu0
  %v2617 = vadd.f32 %v2516, %v2616
  %v2618 = vpop.f32.mrf.mxu0
  %v2619 = vadd.f32 %v2518, %v2618
  %v2620 = vpop.f32.mrf.mxu0
  %v2621 = vadd.f32 %v2520, %v2620
  %2622 = vmatprep.mubr.bf16.mxu0 %v685
  %2623 = vmatmul.mubr.bf16.gmra.mxu0 %v684
  %v2624 = vpop.f32.mrf.mxu0
  %v2625 = vadd.f32 %v2524, %v2624
  %v2626 = vpop.f32.mrf.mxu0
  %v2627 = vadd.f32 %v2526, %v2626
  %v2628 = vpop.f32.mrf.mxu0
  %v2629 = vadd.f32 %v2528, %v2628
  %v2630 = vpop.f32.mrf.mxu0
  %v2631 = vadd.f32 %v2530, %v2630
  %2632 = vmatprep.mubr.bf16.mxu0 %v699
  %2633 = vmatmul.mubr.bf16.gmra.mxu0 %v698
  %v2634 = vpop.f32.mrf.mxu0
  %v2635 = vadd.f32 %v2534, %v2634
  %v2636 = vpop.f32.mrf.mxu0
  %v2637 = vadd.f32 %v2536, %v2636
  %v2638 = vpop.f32.mrf.mxu0
  %v2639 = vadd.f32 %v2538, %v2638
  %v2640 = vpop.f32.mrf.mxu0
  %v2641 = vadd.f32 %v2540, %v2640
  %2642 = vmatprep.mubr.bf16.mxu0 %v713
  %2643 = vmatmul.mubr.bf16.gmra.mxu0 %v712
  %v2644 = vpop.f32.mrf.mxu0
  %v2645 = vadd.f32 %v2544, %v2644
  %v2646 = vpop.f32.mrf.mxu0
  %v2647 = vadd.f32 %v2546, %v2646
  %v2648 = vpop.f32.mrf.mxu0
  %v2649 = vadd.f32 %v2548, %v2648
  %v2650 = vpop.f32.mrf.mxu0
  %v2651 = vadd.f32 %v2550, %v2650
  %2652 = vmatprep.mubr.bf16.mxu0 %v727
  %2653 = vmatmul.mubr.bf16.gmra.mxu0 %v726
  %v2654 = vpop.f32.mrf.mxu0
  %v2655 = vadd.f32 %v2554, %v2654
  %v2656 = vpop.f32.mrf.mxu0
  %v2657 = vadd.f32 %v2556, %v2656
  %v2658 = vpop.f32.mrf.mxu0
  %v2659 = vadd.f32 %v2558, %v2658
  %v2660 = vpop.f32.mrf.mxu0
  %v2661 = vadd.f32 %v2560, %v2660
  %2662 = vmatprep.mubr.bf16.mxu0 %v741
  %2663 = vmatmul.mubr.bf16.gmra.mxu0 %v740
  %v2664 = vpop.f32.mrf.mxu0
  %v2665 = vadd.f32 %v2564, %v2664
  %v2666 = vpop.f32.mrf.mxu0
  %v2667 = vadd.f32 %v2566, %v2666
  %v2668 = vpop.f32.mrf.mxu0
  %v2669 = vadd.f32 %v2568, %v2668
  %v2670 = vpop.f32.mrf.mxu0
  %v2671 = vadd.f32 %v2570, %v2670
  %2672 = vmatprep.mubr.bf16.mxu0 %v755
  %2673 = vmatmul.mubr.bf16.gmra.mxu0 %v754
  %v2674 = vpop.f32.mrf.mxu0
  %v2675 = vadd.f32 %v2574, %v2674
  %v2676 = vpop.f32.mrf.mxu0
  %v2677 = vadd.f32 %v2576, %v2676
  %v2678 = vpop.f32.mrf.mxu0
  %v2679 = vpop.f32.mrf.mxu0
  %2680 = vdwg.mxu0
  %v2681 = vadd.f32 %v44, %v2615
  %v2682 = vadd.f32 %v45, %v2617
  %v2683 = vadd.f32 %v46, %v2619
  %v2684 = vadd.f32 %v47, %v2621
  %v2685 = vadd.f32 %v48, %v2625
  %v2686 = vadd.f32 %v49, %v2627
  %v2687 = vadd.f32 %v50, %v2629
  %v2688 = vadd.f32 %v51, %v2631
  %v2689 = vadd.f32 %v52, %v2635
  %v2690 = vadd.f32 %v53, %v2637
  %v2691 = vadd.f32 %v54, %v2639
  %v2692 = vadd.f32 %v55, %v2641
  %v2693 = vadd.f32 %v56, %v2645
  %v2694 = vadd.f32 %v57, %v2647
  %v2695 = vadd.f32 %v58, %v2649
  %v2696 = vadd.f32 %v59, %v2651
  %v2697 = vadd.f32 %v60, %v2655
  %v2698 = vadd.f32 %v61, %v2657
  %v2699 = vadd.f32 %v62, %v2659
  %v2700 = vadd.f32 %v63, %v2661
  %v2701 = vadd.f32 %v64, %v2665
  %v2702 = vadd.f32 %v65, %v2667
  %v2703 = vadd.f32 %v66, %v2669
  %v2704 = vadd.f32 %v67, %v2671
  %v2705 = vadd.f32 %v68, %v2675
  %v2706 = vadd.f32 %v69, %v2677
  %2707 = vst [vmem:[#allocation2] sm:$0xff] %v2681
  %2708 = vst [vmem:[#allocation2 + $0x8] sm:$0xff] %v2682
  %2709 = vst [vmem:[#allocation2 + $0x10] sm:$0xff] %v2683
  %2710 = vst [vmem:[#allocation2 + $0x18] sm:$0xff] %v2684
  %2711 = vst [vmem:[#allocation2 + $0x20] sm:$0xff] %v2685
  %2712 = vst [vmem:[#allocation2 + $0x28] sm:$0xff] %v2686
  %2713 = vst [vmem:[#allocation2 + $0x30] sm:$0xff] %v2687
  %2714 = vst [vmem:[#allocation2 + $0x38] sm:$0xff] %v2688
  %2715 = vst [vmem:[#allocation2 + $0x40] sm:$0xff] %v2689
  %2716 = vst [vmem:[#allocation2 + $0x48] sm:$0xff] %v2690
  %2717 = vst [vmem:[#allocation2 + $0x50] sm:$0xff] %v2691
  %2718 = vst [vmem:[#allocation2 + $0x58] sm:$0xff] %v2692
  %2719 = vst [vmem:[#allocation2 + $0x60] sm:$0xff] %v2693
  %2720 = vst [vmem:[#allocation2 + $0x68] sm:$0xff] %v2694
  %2721 = vst [vmem:[#allocation2 + $0x70] sm:$0xff] %v2695
  %2722 = vst [vmem:[#allocation2 + $0x78] sm:$0xff] %v2696
  %2723 = vst [vmem:[#allocation2 + $0x80] sm:$0xff] %v2697
  %2724 = vst [vmem:[#allocation2 + $0x88] sm:$0xff] %v2698
  %2725 = vst [vmem:[#allocation2 + $0x90] sm:$0xff] %v2699
  %2726 = vst [vmem:[#allocation2 + $0x98] sm:$0xff] %v2700
  %2727 = vst [vmem:[#allocation2 + $0xa0] sm:$0xff] %v2701
  %2728 = vst [vmem:[#allocation2 + $0xa8] sm:$0xff] %v2702
  %2729 = vst [vmem:[#allocation2 + $0xb0] sm:$0xff] %v2703
  %2730 = vst [vmem:[#allocation2 + $0xb8] sm:$0xff] %v2704
  %2731 = vst [vmem:[#allocation2 + $0xc0] sm:$0xff] %v2705
  %2732 = vst [vmem:[#allocation2 + $0xc8] sm:$0xff] %v2706
  // Predicated region
  $region18: #{forward.21} parent=0 // pred_check
    %p2733 = pneg %p14
  $region19: #{forward.21} parent=0 // pred_check_branch
    %2735 = sbr.rel (%p2733) target = $region21
  $region20: #{forward.21} parent=0 // pred_region
    %v2736 = vld [vmem:[#allocation2] sm:$0xff]
    %v2737 = vld [vmem:[#allocation2 + $0x8] sm:$0xff]
    %v2738 = vld [vmem:[#allocation2 + $0x10] sm:$0xff]
    %v2739 = vld [vmem:[#allocation2 + $0x18] sm:$0xff]
    %v2740 = vld [vmem:[#allocation2 + $0x20] sm:$0xff]
    %v2741 = vld [vmem:[#allocation2 + $0x28] sm:$0xff]
    %v2742 = vld [vmem:[#allocation2 + $0x30] sm:$0xff]
    %v2743 = vld [vmem:[#allocation2 + $0x38] sm:$0xff]
    %v2744 = vld [vmem:[#allocation2 + $0x40] sm:$0xff]
    %v2745 = vld [vmem:[#allocation2 + $0x48] sm:$0xff]
    %v2746 = vld [vmem:[#allocation2 + $0x50] sm:$0xff]
    %v2747 = vld [vmem:[#allocation2 + $0x58] sm:$0xff]
    %v2748 = vld [vmem:[#allocation2 + $0x60] sm:$0xff]
    %v2749 = vld [vmem:[#allocation2 + $0x68] sm:$0xff]
    %v2750 = vld [vmem:[#allocation2 + $0x70] sm:$0xff]
    %v2751 = vld [vmem:[#allocation2 + $0x78] sm:$0xff]
    %v2752 = vld [vmem:[#allocation2 + $0x80] sm:$0xff]
    %v2753 = vld [vmem:[#allocation2 + $0x88] sm:$0xff]
    %v2754 = vld [vmem:[#allocation2 + $0x90] sm:$0xff]
    %v2755 = vld [vmem:[#allocation2 + $0x98] sm:$0xff]
    %v2756 = vld [vmem:[#allocation2 + $0xa0] sm:$0xff]
    %v2757 = vld [vmem:[#allocation2 + $0xa8] sm:$0xff]
    %v2758 = vld [vmem:[#allocation2 + $0xb0] sm:$0xff]
    %v2759 = vld [vmem:[#allocation2 + $0xb8] sm:$0xff]
    %v2760 = vld [vmem:[#allocation2 + $0xc0] sm:$0xff]
    %v2761 = vld [vmem:[#allocation2 + $0xc8] sm:$0xff]
    %v2762 = vld [vmem:[%s2] sm:$0x3]
    %v2764 = vlaneseq
    %v2765 = vshrl.u32 %v2764, 7
    %v2766 = vsub.s32 0, %v2765
    %v2767 = vrot.slane %v2762, %v2766
    %v2768 = vlaneseq
    %v2769 = vshrl.u32 %v2768, 7
    %v2770 = vsub.s32 1, %v2769
    %v2771 = vrot.slane %v2762, %v2770
    %v2774 = vadd.f32 %v2736, %v2767
    %v2775 = vadd.f32 %v2737, %v2771
    %v2776 = vadd.f32 %v2738, %v2767
    %v2777 = vadd.f32 %v2739, %v2771
    %v2778 = vadd.f32 %v2740, %v2767
    %v2779 = vadd.f32 %v2741, %v2771
    %v2780 = vadd.f32 %v2742, %v2767
    %v2781 = vadd.f32 %v2743, %v2771
    %v2782 = vadd.f32 %v2744, %v2767
    %v2783 = vadd.f32 %v2745, %v2771
    %v2784 = vadd.f32 %v2746, %v2767
    %v2785 = vadd.f32 %v2747, %v2771
    %v2786 = vadd.f32 %v2748, %v2767
    %v2787 = vadd.f32 %v2749, %v2771
    %v2788 = vadd.f32 %v2750, %v2767
    %v2789 = vadd.f32 %v2751, %v2771
    %v2790 = vadd.f32 %v2752, %v2767
    %v2791 = vadd.f32 %v2753, %v2771
    %v2792 = vadd.f32 %v2754, %v2767
    %v2793 = vadd.f32 %v2755, %v2771
    %v2794 = vadd.f32 %v2756, %v2767
    %v2795 = vadd.f32 %v2757, %v2771
    %v2796 = vadd.f32 %v2758, %v2767
    %v2797 = vadd.f32 %v2759, %v2771
    %v2798 = vadd.f32 %v2760, %v2767
    %v2799 = vadd.f32 %v2761, %v2771
    %v2800 = vmax.f32 %v2774, 0.0
    %v2801 = vmax.f32 %v2775, 0.0
    %v2802 = vmax.f32 %v2776, 0.0
    %v2803 = vmax.f32 %v2777, 0.0
    %v2804 = vmax.f32 %v2778, 0.0
    %v2805 = vmax.f32 %v2779, 0.0
    %v2806 = vmax.f32 %v2780, 0.0
    %v2807 = vmax.f32 %v2781, 0.0
    %v2808 = vmax.f32 %v2782, 0.0
    %v2809 = vmax.f32 %v2783, 0.0
    %v2810 = vmax.f32 %v2784, 0.0
    %v2811 = vmax.f32 %v2785, 0.0
    %v2812 = vmax.f32 %v2786, 0.0
    %v2813 = vmax.f32 %v2787, 0.0
    %v2814 = vmax.f32 %v2788, 0.0
    %v2815 = vmax.f32 %v2789, 0.0
    %v2816 = vmax.f32 %v2790, 0.0
    %v2817 = vmax.f32 %v2791, 0.0
    %v2818 = vmax.f32 %v2792, 0.0
    %v2819 = vmax.f32 %v2793, 0.0
    %v2820 = vmax.f32 %v2794, 0.0
    %v2821 = vmax.f32 %v2795, 0.0
    %v2822 = vmax.f32 %v2796, 0.0
    %v2823 = vmax.f32 %v2797, 0.0
    %v2824 = vmax.f32 %v2798, 0.0
    %v2825 = vmax.f32 %v2799, 0.0
    %v2826 = vpack.c.bf16 %v2802, %v2800
    %v2827 = vpack.c.bf16 %v2803, %v2801
    %v2828 = vpack.c.bf16 %v2806, %v2804
    %v2829 = vpack.c.bf16 %v2807, %v2805
    %v2830 = vpack.c.bf16 %v2810, %v2808
    %v2831 = vpack.c.bf16 %v2811, %v2809
    %v2832 = vpack.c.bf16 %v2814, %v2812
    %v2833 = vpack.c.bf16 %v2815, %v2813
    %v2834 = vpack.c.bf16 %v2818, %v2816
    %v2835 = vpack.c.bf16 %v2819, %v2817
    %v2836 = vpack.c.bf16 %v2822, %v2820
    %v2837 = vpack.c.bf16 %v2823, %v2821
    %v2838 = vpack.c.bf16 %v2824, %v2824
    %v2839 = vpack.c.bf16 %v2825, %v2825
    %v2854 = vunpack.c.l.b16 %v2826
    %v2855 = vunpack.c.l.b16 %v2827
    %v2856 = vunpack.c.h.b16 %v2826
    %v2857 = vunpack.c.h.b16 %v2827
    %v2858 = vunpack.c.l.b16 %v2828
    %v2859 = vunpack.c.l.b16 %v2829
    %v2860 = vunpack.c.h.b16 %v2828
    %v2861 = vunpack.c.h.b16 %v2829
    %v2862 = vunpack.c.l.b16 %v2830
    %v2863 = vunpack.c.l.b16 %v2831
    %v2864 = vunpack.c.h.b16 %v2830
    %v2865 = vunpack.c.h.b16 %v2831
    %v2866 = vunpack.c.l.b16 %v2832
    %v2867 = vunpack.c.l.b16 %v2833
    %v2868 = vunpack.c.h.b16 %v2832
    %v2869 = vunpack.c.h.b16 %v2833
    %v2870 = vunpack.c.l.b16 %v2834
    %v2871 = vunpack.c.l.b16 %v2835
    %v2872 = vunpack.c.h.b16 %v2834
    %v2873 = vunpack.c.h.b16 %v2835
    %v2874 = vunpack.c.l.b16 %v2836
    %v2875 = vunpack.c.l.b16 %v2837
    %v2876 = vunpack.c.h.b16 %v2836
    %v2877 = vunpack.c.h.b16 %v2837
    %v2878 = vunpack.c.l.b16 %v2838
    %v2879 = vunpack.c.l.b16 %v2839
    %v2880 = vpack.c.b16 %v2855, %v2854
    %v2881 = vpack.c.b16 %v2857, %v2856
    %v2882 = vpack.c.b16 %v2859, %v2858
    %v2883 = vpack.c.b16 %v2861, %v2860
    %v2884 = vpack.c.b16 %v2863, %v2862
    %v2885 = vpack.c.b16 %v2865, %v2864
    %v2886 = vpack.c.b16 %v2867, %v2866
    %v2887 = vpack.c.b16 %v2869, %v2868
    %v2888 = vpack.c.b16 %v2871, %v2870
    %v2889 = vpack.c.b16 %v2873, %v2872
    %v2890 = vpack.c.b16 %v2875, %v2874
    %v2891 = vpack.c.b16 %v2877, %v2876
    %v2892 = vpack.c.b16 %v2879, %v2878
    %2906 = vst [vmem:[%s3] sm:$0xff] %v2880
    %2907 = vst [vmem:[%s3 + $0x8] sm:$0xff] %v2881
    %2908 = vst [vmem:[%s3 + $0x10] sm:$0xff] %v2882
    %2909 = vst [vmem:[%s3 + $0x18] sm:$0xff] %v2883
    %2910 = vst [vmem:[%s3 + $0x20] sm:$0xff] %v2884
    %2911 = vst [vmem:[%s3 + $0x28] sm:$0xff] %v2885
    %2912 = vst [vmem:[%s3 + $0x30] sm:$0xff] %v2886
    %2913 = vst [vmem:[%s3 + $0x38] sm:$0xff] %v2887
    %2914 = vst [vmem:[%s3 + $0x40] sm:$0xff] %v2888
    %2915 = vst [vmem:[%s3 + $0x48] sm:$0xff] %v2889
    %2916 = vst [vmem:[%s3 + $0x50] sm:$0xff] %v2890
    %2917 = vst [vmem:[%s3 + $0x58] sm:$0xff] %v2891
    %2918 = vst [vmem:[%s3 + $0x60] sm:$0xff] %v2892
  $region21: #{forward.21} parent=0 // pred_fallthru
    _
  // Predicated region
  $region22: #{forward.21} parent=0 // pred_check
    _
  $region23: #{forward.21} parent=0 // pred_check_branch
    %2920 = sbr.rel (0) target = $region25
  $region24: #{forward.21} parent=0 // pred_region
    _
  $region25: #{forward.21} parent=0 // pred_fallthru
    _
  // Predicated region
  $region26: #{forward.21} parent=0 // pred_check
    _
  $region27: #{forward.21} parent=0 // pred_check_branch
    %2922 = sbr.rel (0) target = $region29
  $region28: #{forward.21} parent=0 // pred_region
    _
  $region29: #{forward.21} parent=0 // pred_fallthru
    _

</llo_original>
